<compile_context>
chip_gen: v7x
topology: tpu7x:2x2x1
jax: 0.10.0
libtpu: 0.0.40
codegen_flags: <defaults>
</compile_context>

<pallas_src>
import functools

import jax
import jax.numpy as jnp
from jax import lax
from jax.experimental import pallas as pl
from jax.experimental.pallas import tpu as pltpu


def _leaky(v, slope=0.01):
    return jnp.where(v >= 0, v, slope * v)


# --------------------------------------------------------------------------------------
# Pass 1: fused (3x3x3 conv ++ 1x1x1 conv) as one MXU matmul per (n, depth-block) tile.
# x_ref  : [(DT+2)*R, G*C] bf16  row-flattened, depth-contiguous slab (G=3 -> kw in lanes)
# wct_ref: [Cout+1, 27*C]  bf16  fused weight (rows ordered kd,kh,kw,c; last col = 1x1x1)
# z_ref  : [Cout+1, Lb]    bf16  conv result (channel-major -> lane-dense stores)
# st_ref : [Cout+1, 2]     f32   partial (sum, sum_sq) over the valid columns
# --------------------------------------------------------------------------------------
def _conv_stats_kernel(x_ref, wct_ref, msk_ref, z_ref, st_ref, *, R, Wp, Lb, G):
    taps = []
    for kd in range(3):
        for kh in range(3):
            base = kd * R + kh * Wp
            if G == 3:                                     # kw pre-expanded into lanes
                taps.append(x_ref[base:base + Lb, :])
            else:
                for kw in range(3):
                    taps.append(x_ref[base + kw:base + kw + Lb, :])
    lhs = jnp.concatenate(taps, axis=1)                    # [Lb, 27*C], stays bf16

    # channel-major result:  zt[o, q] = sum_k wct[o, k] * lhs[q, k]   (f32 accumulation)
    zt = lax.dot_general(wct_ref[...], lhs,
                         dimension_numbers=(((1,), (1,)), ((), ())),
                         preferred_element_type=jnp.float32)          # [Cout+1, Lb]
    zb = zt.astype(jnp.bfloat16)
    z_ref[...] = zb

    # Stats from the bf16-rounded z (exactly what passes 2/3 will read back).
    zr = zb.astype(jnp.float32) * msk_ref[...]             # mask out halo / junk columns
    st_ref[...] = jnp.concatenate(
        [jnp.sum(zr, axis=1, keepdims=True),
         jnp.sum(zr * zr, axis=1, keepdims=True)], axis=1)             # [Cout+1, 2]


# --------------------------------------------------------------------------------------
# Pass 2: apply BN1/BN2 (per-channel scale/shift) + LeakyReLU + merge + LeakyReLU and
# emit per-tile partial statistics for BN3.  All elementwise math in f32.
# --------------------------------------------------------------------------------------
def _merge_stats_kernel(z_ref, aff_ref, msk_ref, st_ref, *, Cout):
    zn = z_ref[...].astype(jnp.float32) * aff_ref[:, 0:1] + aff_ref[:, 1:2]
    p2 = _leaky(zn[:Cout, :])
    p1 = zn[Cout:Cout + 1, :]
    y = _leaky(p1 + p2)                                    # [Cout, Lb]
    ym = y * msk_ref[...]
    st_ref[...] = jnp.concatenate(
        [jnp.sum(ym, axis=1, keepdims=True),
         jnp.sum(ym * ym, axis=1, keepdims=True)], axis=1)             # [Cout, 2]


# --------------------------------------------------------------------------------------
# Pass 3: recompute the (cheap) merge from z and apply the final BN3 scale/shift.
# --------------------------------------------------------------------------------------
def _apply_kernel(z_ref, aff_ref, out_ref, *, Cout):
    zn = z_ref[...].astype(jnp.float32) * aff_ref[:, 0:1] + aff_ref[:, 1:2]
    p2 = _leaky(zn[:Cout, :])
    p1 = zn[Cout:Cout + 1, :]
    y = _leaky(p1 + p2)
    out_ref[...] = y * aff_ref[:Cout, 2:3] + aff_ref[:Cout, 3:4]       # BN3 affine


def _pick_depth_tile(D, R, HWp, C, G, Cout, budget_bytes=32 * 1024 * 1024):
    """Largest divisor of D whose estimated in-flight VMEM footprint fits the budget."""
    best = 1
    for dt in range(1, D + 1):
        if D % dt:
            continue
        Lb = (dt - 1) * R + HWp
        est = (2 * 2 * (dt + 2) * R * G * C        # x slab blocks (double-buffered, bf16)
               + 2 * 2 * (Cout + 1) * Lb           # z blocks (double-buffered, bf16)
               + 2 * 2 * Lb * 27 * C               # lhs + tap staging (bf16)
               + 3 * 4 * (Cout + 1) * Lb           # f32 intermediates (zt, masked, ...)
               + 2 * 4 * Cout * Lb)                # pass-3 f32 output blocks
        if est <= budget_bytes:
            best = dt
    return best


def connection_components_forward(x, params, norm_rate):
    """x: [N, Cin, D, H, W] (PyTorch NCDHW). Returns [N, Cout, D, H, W] float32."""
    N, C, D, H, W = x.shape
    Cout = params["w2"].shape[0]
    Hp, Wp = H + 2, W + 2
    R = Hp * Wp + 2            # flattened padded rows per depth slice (+1 guard row each end)
    eps = norm_rate
    cnt = N * D * H * W

    # kw pre-expansion only pays when Cin is small (<= 8): 9 in-kernel slices instead of 27.
    G = 3 if C <= 8 else 1
    DT = _pick_depth_tile(D, R, H * Wp, C, G, Cout)
    DB = D // DT
    Lb = (DT - 1) * R + H * Wp     # conv output columns per depth-block tile (halo/junk kept)

    # ---- input prep (XLA glue): channels-last, padded, (optionally) kw-expanded, bf16 ----
    x_cl = jnp.transpose(x, (0, 2, 3, 4, 1)).astype(jnp.bfloat16)        # [N,D,H,W,C]
    if G == 3:
        xp = jnp.pad(x_cl, ((0, 0), (1, 1), (1, 1), (1, 3), (0, 0)))     # [N,D+2,Hp,W+4,C]
        xk = jnp.concatenate([xp[:, :, :, k:k + Wp, :] for k in range(3)], axis=-1)
    else:
        xk = jnp.pad(x_cl, ((0, 0), (1, 1), (1, 1), (1, 1), (0, 0)))     # [N,D+2,Hp,Wp,C]
    xq = xk.reshape(N, D + 2, Hp * Wp, G * C)
    xq = jnp.pad(xq, ((0, 0), (0, 0), (1, 1), (0, 0)))                   # [N,D+2,R,G*C]

    # overlapping depth blocks (DT+2 padded slices per block, stride DT), rows flattened.
    if DB == 1:
        xb = xq.reshape(N, 1, (D + 2) * R, G * C)
    else:
        xb = jnp.stack([xq[:, db * DT:db * DT + DT + 2] for db in range(DB)], axis=1)
        xb = xb.reshape(N, DB, (DT + 2) * R, G * C)

    # ---- fused conv weight: rows ordered (kd, kh, kw, c); extra column = 1x1x1 conv ----
    w2 = params["w2"].astype(jnp.float32)                                # [Cout,C,3,3,3]
    w1 = params["w1"].astype(jnp.float32)                                # [1,C,1,1,1]
    wc = jnp.zeros((27 * C, Cout + 1), jnp.float32)
    wc = wc.at[:, :Cout].set(jnp.transpose(w2, (2, 3, 4, 1, 0)).reshape(27 * C, Cout))
    wc = wc.at[13 * C:14 * C, Cout].set(w1.reshape(C))                   # centre tap
    wct = wc.T.astype(jnp.bfloat16)                                      # [Cout+1, 27*C]
    # (conv biases b1/b2 are dropped: cancelled exactly by training-mode BN)

    # valid-column mask: within each R-column depth chunk only the first H*Wp columns are
    # conv rows, and of those only width positions 1..W are valid (halo/junk excluded).
    q = jnp.arange(Lb, dtype=jnp.int32)
    ql = q % R
    valid = (ql < H * Wp) & ((ql % Wp) >= 1) & ((ql % Wp) <= W)
    vmask = valid.astype(jnp.float32).reshape(1, Lb)

    grid = (N, DB)
    cparams = pltpu.CompilerParams(dimension_semantics=("parallel", "parallel"),
                                   vmem_limit_bytes=64 * 1024 * 1024)

    xb_spec = pl.BlockSpec((None, None, (DT + 2) * R, G * C), lambda n, d: (n, d, 0, 0))
    wct_spec = pl.BlockSpec((Cout + 1, 27 * C), lambda n, d: (0, 0))
    msk_spec = pl.BlockSpec((1, Lb), lambda n, d: (0, 0))
    z_spec = pl.BlockSpec((None, None, Cout + 1, Lb), lambda n, d: (n, d, 0, 0))

    # -------- pass 1: conv (+1x1) + partial BN1/BN2 stats --------
    z, st1 = pl.pallas_call(
        functools.partial(_conv_stats_kernel, R=R, Wp=Wp, Lb=Lb, G=G),
        grid=grid,
        in_specs=[xb_spec, wct_spec, msk_spec],
        out_specs=(z_spec,
                   pl.BlockSpec((None, None, Cout + 1, 2), lambda n, d: (n, d, 0, 0))),
        out_shape=(jax.ShapeDtypeStruct((N, DB, Cout + 1, Lb), jnp.bfloat16),
                   jax.ShapeDtypeStruct((N, DB, Cout + 1, 2), jnp.float32)),
        compiler_params=cparams,
    )(xb, wct, vmask)

    # ---- finalize BN1 (channel Cout) / BN2 (channels 0..Cout-1) scale & shift ----
    s = jnp.sum(st1, axis=(0, 1))                                        # [Cout+1, 2]
    mean = s[:, 0] / cnt
    var = jnp.maximum(s[:, 1] / cnt - mean * mean, 0.0)
    gamma = jnp.concatenate([params["bn2_g"], params["bn1_g"]]).astype(jnp.float32)
    beta = jnp.concatenate([params["bn2_b"], params["bn1_b"]]).astype(jnp.float32)
    scale12 = gamma * lax.rsqrt(var + eps)
    shift12 = beta - mean * scale12
    aff12 = jnp.stack([scale12, shift12], axis=1)                        # [Cout+1, 2]

    # -------- pass 2: merge + partial stats for BN3 --------
    st3 = pl.pallas_call(
        functools.partial(_merge_stats_kernel, Cout=Cout),
        grid=grid,
        in_specs=[z_spec, pl.BlockSpec((Cout + 1, 2), lambda n, d: (0, 0)), msk_spec],
        out_specs=pl.BlockSpec((None, None, Cout, 2), lambda n, d: (n, d, 0, 0)),
        out_shape=jax.ShapeDtypeStruct((N, DB, Cout, 2), jnp.float32),
        compiler_params=cparams,
    )(z, aff12, vmask)

    s3 = jnp.sum(st3, axis=(0, 1))                                       # [Cout, 2]
    mean3 = s3[:, 0] / cnt
    var3 = jnp.maximum(s3[:, 1] / cnt - mean3 * mean3, 0.0)
    scale3 = params["bn3_g"].astype(jnp.float32) * lax.rsqrt(var3 + eps)
    shift3 = params["bn3_b"].astype(jnp.float32) - mean3 * scale3
    aff_all = jnp.concatenate(
        [aff12, jnp.stack([jnp.pad(scale3, (0, 1)), jnp.pad(shift3, (0, 1))], axis=1)],
        axis=1)                                                          # [Cout+1, 4]

    # -------- pass 3: apply everything, channel-major lane-dense output --------
    out_raw = pl.pallas_call(
        functools.partial(_apply_kernel, Cout=Cout),
        grid=grid,
        in_specs=[z_spec, pl.BlockSpec((Cout + 1, 4), lambda n, d: (0, 0))],
        out_specs=pl.BlockSpec((None, None, Cout, Lb), lambda n, d: (n, d, 0, 0)),
        out_shape=jax.ShapeDtypeStruct((N, DB, Cout, Lb), jnp.float32),
        compiler_params=cparams,
    )(z, aff_all)

    # crop the halo/junk columns and return NCDHW (XLA glue; W<128 so in-kernel stores of
    # the cropped layout would be lane-sparse -- keep the XLA path per review caveat).
    pad_cols = DT * R - Lb
    out_p = jnp.pad(out_raw, ((0, 0), (0, 0), (0, 0), (0, pad_cols)))
    out_p = out_p.reshape(N, DB, Cout, DT, R)[..., :H * Wp]
    out_p = out_p.reshape(N, DB, Cout, DT, H, Wp)[..., 1:W + 1]          # [N,DB,Cout,DT,H,W]
    return jnp.transpose(out_p, (0, 2, 1, 3, 4, 5)).reshape(N, Cout, D, H, W)


# --------------------------------------------------------------------------------------
# Independent pure-JAX reference (PyTorch semantics: conv bias, training-mode BN,
# LeakyReLU).  `round_conv_to_bf16` mirrors the kernel's bf16 storage of the conv
# intermediate (bias is added after the rounding point, matching its exact cancellation
# by the training-mode BN mean subtraction in the kernel).
# --------------------------------------------------------------------------------------
def reference_forward(x, params, eps, *, round_conv_to_bf16=False):
    def bn(y, g, b):
        mean = jnp.mean(y, axis=(0, 2, 3, 4), keepdims=True)
        var = jnp.mean((y - mean) ** 2, axis=(0, 2, 3, 4), keepdims=True)
        return (y - mean) / jnp.sqrt(var + eps) * g.reshape(1, -1, 1, 1, 1) \
            + b.reshape(1, -1, 1, 1, 1)

    lrelu = lambda v: jnp.where(v >= 0, v, 0.01 * v)
    rnd = (lambda t: t.astype(jnp.bfloat16).astype(jnp.float32)) if round_conv_to_bf16 \
        else (lambda t: t)
    dn1 = lax.conv_dimension_numbers(x.shape, params["w1"].shape, ("NCDHW", "OIDHW", "NCDHW"))
    dn2 = lax.conv_dimension_numbers(x.shape, params["w2"].shape, ("NCDHW", "OIDHW", "NCDHW"))
    p1 = rnd(lax.conv_general_dilated(x, params["w1"], (1, 1, 1), "SAME",
                                      dimension_numbers=dn1, precision=lax.Precision.HIGHEST))
    p1 = bn(p1 + params["b1"].reshape(1, -1, 1, 1, 1), params["bn1_g"], params["bn1_b"])
    p2 = rnd(lax.conv_general_dilated(x, params["w2"], (1, 1, 1), "SAME",
                                      dimension_numbers=dn2, precision=lax.Precision.HIGHEST))
    p2 = lrelu(bn(p2 + params["b2"].reshape(1, -1, 1, 1, 1), params["bn2_g"], params["bn2_b"]))
    out = lrelu(p1 + p2)
    return bn(out, params["bn3_g"], params["bn3_b"])


if __name__ == "__main__":
    key = jax.random.PRNGKey(0)
    N, Cin, D, H, W = 2, 4, 8, 16, 16
    Cout = 8
    norm_rate = 1e-3

    ks = jax.random.split(key, 5)
    x = jax.random.normal(ks[0], (N, Cin, D, H, W), jnp.float32)
    params = {
        "w1": jax.random.normal(ks[1], (1, Cin, 1, 1, 1), jnp.float32) * 0.3,
        "b1": jax.random.normal(ks[2], (1,), jnp.float32) * 0.1,
        "w2": jax.random.normal(ks[3], (Cout, Cin, 3, 3, 3), jnp.float32) * 0.1,
        "b2": jax.random.normal(ks[4], (Cout,), jnp.float32) * 0.1,
        # PyTorch BatchNorm3d default affine init: weight=1, bias=0
        "bn1_g": jnp.ones((1,), jnp.float32), "bn1_b": jnp.zeros((1,), jnp.float32),
        "bn2_g": jnp.ones((Cout,), jnp.float32), "bn2_b": jnp.zeros((Cout,), jnp.float32),
        "bn3_g": jnp.ones((Cout,), jnp.float32), "bn3_b": jnp.zeros((Cout,), jnp.float32),
    }

    fwd = jax.jit(lambda xx: connection_components_forward(xx, params, norm_rate))
    out = jax.block_until_ready(fwd(x))
    assert out.shape == (N, Cout, D, H, W)

    # Reference evaluated with the same bf16 quantization points the kernel uses
    # (bf16 x / conv weights, bf16-stored conv intermediate), isolating kernel structure
    # from the intended bf16 quantization.
    x_q = x.astype(jnp.bfloat16).astype(jnp.float32)
    params_q = dict(params)
    params_q["w1"] = params["w1"].astype(jnp.bfloat16).astype(jnp.float32)
    params_q["w2"] = params["w2"].astype(jnp.bfloat16).astype(jnp.float32)
    ref = reference_forward(x_q, params_q, norm_rate, round_conv_to_bf16=True)

    err = jnp.abs(out - ref)
    max_err = float(jnp.max(err))
    p99_err = float(jnp.percentile(err, 99.0))
    # A handful of elements may differ by one bf16 ulp (f32 accumulation-order of the two
    # conv implementations straddling a rounding boundary); the bulk must match tightly.
    assert p99_err < 5e-3 and max_err < 1e-1, (max_err, p99_err)
    print("KERNEL_OK")
</pallas_src>

<mosaic_0001>
module attributes {stable_mosaic.version = 11 : i64} {
  func.func @_conv_stats_kernel(%arg0: i32, %arg1: i32, %arg2: memref<1x1x3260x12xbf16, #tpu.memory_space<vmem>>, %arg3: memref<9x108xbf16, #tpu.memory_space<vmem>>, %arg4: memref<1x2570xf32, #tpu.memory_space<vmem>>, %arg5: memref<1x1x9x2570xbf16, #tpu.memory_space<vmem>>, %arg6: memref<1x1x9x2xf32, #tpu.memory_space<vmem>>) attributes {dimension_semantics = [#tpu.dimension_semantics<parallel>, #tpu.dimension_semantics<parallel>], iteration_bounds = array<i64: 2, 1>, scalar_prefetch = 0 : i64, scratch_operands = 0 : i64, tpu.core_type = #tpu.core_type<tc>, window_params = [{transform_indices = @transform_0, window_bounds = array<i64: 1, 1, 3260, 12>}, {pipeline_mode = #tpu.pipeline_mode<synchronous>, transform_indices = @transform_1, window_bounds = array<i64: 9, 108>}, {pipeline_mode = #tpu.pipeline_mode<synchronous>, transform_indices = @transform_2, window_bounds = array<i64: 1, 2570>}, {transform_indices = @transform_3, window_bounds = array<i64: 1, 1, 9, 2570>}, {transform_indices = @transform_4, window_bounds = array<i64: 1, 1, 9, 2>}]} {
    %c0 = arith.constant 0 : index
    %c0_0 = arith.constant 0 : index
    %c0_1 = arith.constant 0 : index
    %c0_2 = arith.constant 0 : index
    %0 = vector.load %arg2[%c0, %c0_0, %c0_1, %c0_2] : memref<1x1x3260x12xbf16, #tpu.memory_space<vmem>>, vector<1x1x2570x12xbf16>
    %1 = vector.shape_cast %0 : vector<1x1x2570x12xbf16> to vector<2570x12xbf16>
    %c0_3 = arith.constant 0 : index
    %c0_4 = arith.constant 0 : index
    %c18 = arith.constant 18 : index
    %c0_5 = arith.constant 0 : index
    %2 = vector.load %arg2[%c0_3, %c0_4, %c18, %c0_5] : memref<1x1x3260x12xbf16, #tpu.memory_space<vmem>>, vector<1x1x2570x12xbf16>
    %3 = vector.shape_cast %2 : vector<1x1x2570x12xbf16> to vector<2570x12xbf16>
    %c0_6 = arith.constant 0 : index
    %c0_7 = arith.constant 0 : index
    %c36 = arith.constant 36 : index
    %c0_8 = arith.constant 0 : index
    %4 = vector.load %arg2[%c0_6, %c0_7, %c36, %c0_8] : memref<1x1x3260x12xbf16, #tpu.memory_space<vmem>>, vector<1x1x2570x12xbf16>
    %5 = vector.shape_cast %4 : vector<1x1x2570x12xbf16> to vector<2570x12xbf16>
    %c0_9 = arith.constant 0 : index
    %c0_10 = arith.constant 0 : index
    %c326 = arith.constant 326 : index
    %c0_11 = arith.constant 0 : index
    %6 = vector.load %arg2[%c0_9, %c0_10, %c326, %c0_11] : memref<1x1x3260x12xbf16, #tpu.memory_space<vmem>>, vector<1x1x2570x12xbf16>
    %7 = vector.shape_cast %6 : vector<1x1x2570x12xbf16> to vector<2570x12xbf16>
    %c0_12 = arith.constant 0 : index
    %c0_13 = arith.constant 0 : index
    %c344 = arith.constant 344 : index
    %c0_14 = arith.constant 0 : index
    %8 = vector.load %arg2[%c0_12, %c0_13, %c344, %c0_14] : memref<1x1x3260x12xbf16, #tpu.memory_space<vmem>>, vector<1x1x2570x12xbf16>
    %9 = vector.shape_cast %8 : vector<1x1x2570x12xbf16> to vector<2570x12xbf16>
    %c0_15 = arith.constant 0 : index
    %c0_16 = arith.constant 0 : index
    %c362 = arith.constant 362 : index
    %c0_17 = arith.constant 0 : index
    %10 = vector.load %arg2[%c0_15, %c0_16, %c362, %c0_17] : memref<1x1x3260x12xbf16, #tpu.memory_space<vmem>>, vector<1x1x2570x12xbf16>
    %11 = vector.shape_cast %10 : vector<1x1x2570x12xbf16> to vector<2570x12xbf16>
    %c0_18 = arith.constant 0 : index
    %c0_19 = arith.constant 0 : index
    %c652 = arith.constant 652 : index
    %c0_20 = arith.constant 0 : index
    %12 = vector.load %arg2[%c0_18, %c0_19, %c652, %c0_20] : memref<1x1x3260x12xbf16, #tpu.memory_space<vmem>>, vector<1x1x2570x12xbf16>
    %13 = vector.shape_cast %12 : vector<1x1x2570x12xbf16> to vector<2570x12xbf16>
    %c0_21 = arith.constant 0 : index
    %c0_22 = arith.constant 0 : index
    %c670 = arith.constant 670 : index
    %c0_23 = arith.constant 0 : index
    %14 = vector.load %arg2[%c0_21, %c0_22, %c670, %c0_23] : memref<1x1x3260x12xbf16, #tpu.memory_space<vmem>>, vector<1x1x2570x12xbf16>
    %15 = vector.shape_cast %14 : vector<1x1x2570x12xbf16> to vector<2570x12xbf16>
    %c0_24 = arith.constant 0 : index
    %c0_25 = arith.constant 0 : index
    %c688 = arith.constant 688 : index
    %c0_26 = arith.constant 0 : index
    %16 = vector.load %arg2[%c0_24, %c0_25, %c688, %c0_26] : memref<1x1x3260x12xbf16, #tpu.memory_space<vmem>>, vector<1x1x2570x12xbf16>
    %17 = vector.shape_cast %16 : vector<1x1x2570x12xbf16> to vector<2570x12xbf16>
    %18 = tpu.concatenate %1, %3, %5, %7, %9, %11, %13, %15, %17 in 1 : vector<2570x12xbf16>, vector<2570x12xbf16>, vector<2570x12xbf16>, vector<2570x12xbf16>, vector<2570x12xbf16>, vector<2570x12xbf16>, vector<2570x12xbf16>, vector<2570x12xbf16>, vector<2570x12xbf16> -> vector<2570x108xbf16>
    %c0_27 = arith.constant 0 : index
    %c0_28 = arith.constant 0 : index
    %19 = vector.load %arg3[%c0_27, %c0_28] : memref<9x108xbf16, #tpu.memory_space<vmem>>, vector<9x108xbf16>
    %cst = arith.constant dense<0.000000e+00> : vector<9x2570xf32>
    %20 = tpu.matmul %19, %18, %cst {dimension_numbers = #tpu.dot_dimension_numbers<[1], [1], [0], [0], [0, 0, 1, 0], [], []>} : vector<9x108xbf16>, vector<2570x108xbf16>, vector<9x2570xf32> -> vector<9x2570xf32>
    %21 = arith.truncf %20 : vector<9x2570xf32> to vector<9x2570xbf16>
    %c0_29 = arith.constant 0 : index
    %c0_30 = arith.constant 0 : index
    %c0_31 = arith.constant 0 : index
    %c0_32 = arith.constant 0 : index
    %22 = vector.load %arg5[%c0_29, %c0_30, %c0_31, %c0_32] : memref<1x1x9x2570xbf16, #tpu.memory_space<vmem>>, vector<1x1x9x2570xbf16>
    %23 = vector.shape_cast %22 : vector<1x1x9x2570xbf16> to vector<9x2570xbf16>
    %24 = vector.shape_cast %21 : vector<9x2570xbf16> to vector<1x1x9x2570xbf16>
    tpu.vector_store %arg5[%c0_29, %c0_30, %c0_31, %c0_32], %24 {strides = array<i32>} : memref<1x1x9x2570xbf16, #tpu.memory_space<vmem>>, vector<1x1x9x2570xbf16>,
    %25 = arith.extf %21 : vector<9x2570xbf16> to vector<9x2570xf32>
    %c0_33 = arith.constant 0 : index
    %c0_34 = arith.constant 0 : index
    %26 = vector.load %arg4[%c0_33, %c0_34] : memref<1x2570xf32, #tpu.memory_space<vmem>>, vector<1x2570xf32>
    %27 = vector.broadcast %26 : vector<1x2570xf32> to vector<9x2570xf32>
    %28 = arith.mulf %25, %27 : vector<9x2570xf32>
    %cst_35 = arith.constant dense<0.000000e+00> : vector<9xf32>
    %29 = vector.multi_reduction <add>, %28, %cst_35 [1] : vector<9x2570xf32> to vector<9xf32>
    %30 = vector.shape_cast %29 : vector<9xf32> to vector<9x1xf32>
    %31 = arith.mulf %28, %28 : vector<9x2570xf32>
    %cst_36 = arith.constant dense<0.000000e+00> : vector<9xf32>
    %32 = vector.multi_reduction <add>, %31, %cst_36 [1] : vector<9x2570xf32> to vector<9xf32>
    %33 = vector.shape_cast %32 : vector<9xf32> to vector<9x1xf32>
    %34 = tpu.concatenate %30, %33 in 1 : vector<9x1xf32>, vector<9x1xf32> -> vector<9x2xf32>
    %c0_37 = arith.constant 0 : index
    %c0_38 = arith.constant 0 : index
    %c0_39 = arith.constant 0 : index
    %c0_40 = arith.constant 0 : index
    %35 = vector.load %arg6[%c0_37, %c0_38, %c0_39, %c0_40] : memref<1x1x9x2xf32, #tpu.memory_space<vmem>>, vector<1x1x9x2xf32>
    %36 = vector.shape_cast %35 : vector<1x1x9x2xf32> to vector<9x2xf32>
    %37 = vector.shape_cast %34 : vector<9x2xf32> to vector<1x1x9x2xf32>
    tpu.vector_store %arg6[%c0_37, %c0_38, %c0_39, %c0_40], %37 {strides = array<i32>} : memref<1x1x9x2xf32, #tpu.memory_space<vmem>>, vector<1x1x9x2xf32>,
    return
  }
  func.func @transform_0(%arg0: i32, %arg1: i32) -> (i32, i32, i32, i32) {
    %c0_i32 = arith.constant 0 : i32
    %c0_i32_0 = arith.constant 0 : i32
    %c0_i32_1 = arith.constant 0 : i32
    return %arg0, %arg1, %c0_i32, %c0_i32_0 : i32, i32, i32, i32
  }
  func.func @transform_1(%arg0: i32, %arg1: i32) -> (i32, i32) {
    %c0_i32 = arith.constant 0 : i32
    %c0_i32_0 = arith.constant 0 : i32
    %c0_i32_1 = arith.constant 0 : i32
    return %c0_i32, %c0_i32_0 : i32, i32
  }
  func.func @transform_2(%arg0: i32, %arg1: i32) -> (i32, i32) {
    %c0_i32 = arith.constant 0 : i32
    %c0_i32_0 = arith.constant 0 : i32
    %c0_i32_1 = arith.constant 0 : i32
    return %c0_i32, %c0_i32_0 : i32, i32
  }
  func.func @transform_3(%arg0: i32, %arg1: i32) -> (i32, i32, i32, i32) {
    %c0_i32 = arith.constant 0 : i32
    %c0_i32_0 = arith.constant 0 : i32
    %c0_i32_1 = arith.constant 0 : i32
    return %arg0, %arg1, %c0_i32, %c0_i32_0 : i32, i32, i32, i32
  }
  func.func @transform_4(%arg0: i32, %arg1: i32) -> (i32, i32, i32, i32) {
    %c0_i32 = arith.constant 0 : i32
    %c0_i32_0 = arith.constant 0 : i32
    %c0_i32_1 = arith.constant 0 : i32
    return %arg0, %arg1, %c0_i32, %c0_i32_0 : i32, i32, i32, i32
  }
}

module attributes {stable_mosaic.version = 11 : i64} {
  func.func @_merge_stats_kernel(%arg0: i32, %arg1: i32, %arg2: memref<1x1x9x2570xbf16, #tpu.memory_space<vmem>>, %arg3: memref<9x2xf32, #tpu.memory_space<vmem>>, %arg4: memref<1x2570xf32, #tpu.memory_space<vmem>>, %arg5: memref<1x1x8x2xf32, #tpu.memory_space<vmem>>) attributes {dimension_semantics = [#tpu.dimension_semantics<parallel>, #tpu.dimension_semantics<parallel>], iteration_bounds = array<i64: 2, 1>, scalar_prefetch = 0 : i64, scratch_operands = 0 : i64, tpu.core_type = #tpu.core_type<tc>, window_params = [{transform_indices = @transform_0, window_bounds = array<i64: 1, 1, 9, 2570>}, {pipeline_mode = #tpu.pipeline_mode<synchronous>, transform_indices = @transform_1, window_bounds = array<i64: 9, 2>}, {pipeline_mode = #tpu.pipeline_mode<synchronous>, transform_indices = @transform_2, window_bounds = array<i64: 1, 2570>}, {transform_indices = @transform_3, window_bounds = array<i64: 1, 1, 8, 2>}]} {
    %c0 = arith.constant 0 : index
    %c0_0 = arith.constant 0 : index
    %c0_1 = arith.constant 0 : index
    %c0_2 = arith.constant 0 : index
    %0 = vector.load %arg2[%c0, %c0_0, %c0_1, %c0_2] : memref<1x1x9x2570xbf16, #tpu.memory_space<vmem>>, vector<1x1x9x2570xbf16>
    %1 = vector.shape_cast %0 : vector<1x1x9x2570xbf16> to vector<9x2570xbf16>
    %2 = arith.extf %1 : vector<9x2570xbf16> to vector<9x2570xf32>
    %c0_3 = arith.constant 0 : index
    %c0_4 = arith.constant 0 : index
    %3 = vector.load %arg3[%c0_3, %c0_4] : memref<9x2xf32, #tpu.memory_space<vmem>>, vector<9x1xf32>
    %4 = vector.broadcast %3 : vector<9x1xf32> to vector<9x2570xf32>
    %5 = arith.mulf %2, %4 : vector<9x2570xf32>
    %c0_5 = arith.constant 0 : index
    %c1 = arith.constant 1 : index
    %6 = vector.load %arg3[%c0_5, %c1] : memref<9x2xf32, #tpu.memory_space<vmem>>, vector<9x1xf32>
    %7 = vector.broadcast %6 : vector<9x1xf32> to vector<9x2570xf32>
    %8 = arith.addf %5, %7 : vector<9x2570xf32>
    %9 = vector.extract_strided_slice %8 {offsets = [0, 0], sizes = [8, 2570], strides = [1, 1]} : vector<9x2570xf32> to vector<8x2570xf32>
    %cst = arith.constant 0.000000e+00 : f32
    %10 = vector.broadcast %cst : f32 to vector<8x2570xf32>
    %11 = arith.cmpf oge, %9, %10 : vector<8x2570xf32>
    %cst_6 = arith.constant 0.00999999977 : f32
    %12 = vector.broadcast %cst_6 : f32 to vector<8x2570xf32>
    %13 = arith.mulf %12, %9 : vector<8x2570xf32>
    %14 = arith.select %11, %9, %13 : vector<8x2570xi1>, vector<8x2570xf32>
    %15 = vector.extract_strided_slice %8 {offsets = [8, 0], sizes = [1, 2570], strides = [1, 1]} : vector<9x2570xf32> to vector<1x2570xf32>
    %16 = vector.broadcast %15 : vector<1x2570xf32> to vector<8x2570xf32>
    %17 = arith.addf %16, %14 : vector<8x2570xf32>
    %cst_7 = arith.constant 0.000000e+00 : f32
    %18 = vector.broadcast %cst_7 : f32 to vector<8x2570xf32>
    %19 = arith.cmpf oge, %17, %18 : vector<8x2570xf32>
    %cst_8 = arith.constant 0.00999999977 : f32
    %20 = vector.broadcast %cst_8 : f32 to vector<8x2570xf32>
    %21 = arith.mulf %20, %17 : vector<8x2570xf32>
    %22 = arith.select %19, %17, %21 : vector<8x2570xi1>, vector<8x2570xf32>
    %c0_9 = arith.constant 0 : index
    %c0_10 = arith.constant 0 : index
    %23 = vector.load %arg4[%c0_9, %c0_10] : memref<1x2570xf32, #tpu.memory_space<vmem>>, vector<1x2570xf32>
    %24 = vector.broadcast %23 : vector<1x2570xf32> to vector<8x2570xf32>
    %25 = arith.mulf %22, %24 : vector<8x2570xf32>
    %cst_11 = arith.constant dense<0.000000e+00> : vector<8xf32>
    %26 = vector.multi_reduction <add>, %25, %cst_11 [1] : vector<8x2570xf32> to vector<8xf32>
    %27 = vector.shape_cast %26 : vector<8xf32> to vector<8x1xf32>
    %28 = arith.mulf %25, %25 : vector<8x2570xf32>
    %cst_12 = arith.constant dense<0.000000e+00> : vector<8xf32>
    %29 = vector.multi_reduction <add>, %28, %cst_12 [1] : vector<8x2570xf32> to vector<8xf32>
    %30 = vector.shape_cast %29 : vector<8xf32> to vector<8x1xf32>
    %31 = tpu.concatenate %27, %30 in 1 : vector<8x1xf32>, vector<8x1xf32> -> vector<8x2xf32>
    %c0_13 = arith.constant 0 : index
    %c0_14 = arith.constant 0 : index
    %c0_15 = arith.constant 0 : index
    %c0_16 = arith.constant 0 : index
    %32 = vector.load %arg5[%c0_13, %c0_14, %c0_15, %c0_16] : memref<1x1x8x2xf32, #tpu.memory_space<vmem>>, vector<1x1x8x2xf32>
    %33 = vector.shape_cast %32 : vector<1x1x8x2xf32> to vector<8x2xf32>
    %34 = vector.shape_cast %31 : vector<8x2xf32> to vector<1x1x8x2xf32>
    tpu.vector_store %arg5[%c0_13, %c0_14, %c0_15, %c0_16], %34 {strides = array<i32>} : memref<1x1x8x2xf32, #tpu.memory_space<vmem>>, vector<1x1x8x2xf32>,
    return
  }
  func.func @transform_0(%arg0: i32, %arg1: i32) -> (i32, i32, i32, i32) {
    %c0_i32 = arith.constant 0 : i32
    %c0_i32_0 = arith.constant 0 : i32
    %c0_i32_1 = arith.constant 0 : i32
    return %arg0, %arg1, %c0_i32, %c0_i32_0 : i32, i32, i32, i32
  }
  func.func @transform_1(%arg0: i32, %arg1: i32) -> (i32, i32) {
    %c0_i32 = arith.constant 0 : i32
    %c0_i32_0 = arith.constant 0 : i32
    %c0_i32_1 = arith.constant 0 : i32
    return %c0_i32, %c0_i32_0 : i32, i32
  }
  func.func @transform_2(%arg0: i32, %arg1: i32) -> (i32, i32) {
    %c0_i32 = arith.constant 0 : i32
    %c0_i32_0 = arith.constant 0 : i32
    %c0_i32_1 = arith.constant 0 : i32
    return %c0_i32, %c0_i32_0 : i32, i32
  }
  func.func @transform_3(%arg0: i32, %arg1: i32) -> (i32, i32, i32, i32) {
    %c0_i32 = arith.constant 0 : i32
    %c0_i32_0 = arith.constant 0 : i32
    %c0_i32_1 = arith.constant 0 : i32
    return %arg0, %arg1, %c0_i32, %c0_i32_0 : i32, i32, i32, i32
  }
}

module attributes {stable_mosaic.version = 11 : i64} {
  func.func @_apply_kernel(%arg0: i32, %arg1: i32, %arg2: memref<1x1x9x2570xbf16, #tpu.memory_space<vmem>>, %arg3: memref<9x4xf32, #tpu.memory_space<vmem>>, %arg4: memref<1x1x8x2570xf32, #tpu.memory_space<vmem>>) attributes {dimension_semantics = [#tpu.dimension_semantics<parallel>, #tpu.dimension_semantics<parallel>], iteration_bounds = array<i64: 2, 1>, scalar_prefetch = 0 : i64, scratch_operands = 0 : i64, tpu.core_type = #tpu.core_type<tc>, window_params = [{transform_indices = @transform_0, window_bounds = array<i64: 1, 1, 9, 2570>}, {pipeline_mode = #tpu.pipeline_mode<synchronous>, transform_indices = @transform_1, window_bounds = array<i64: 9, 4>}, {transform_indices = @transform_2, window_bounds = array<i64: 1, 1, 8, 2570>}]} {
    %c0 = arith.constant 0 : index
    %c0_0 = arith.constant 0 : index
    %c0_1 = arith.constant 0 : index
    %c0_2 = arith.constant 0 : index
    %0 = vector.load %arg2[%c0, %c0_0, %c0_1, %c0_2] : memref<1x1x9x2570xbf16, #tpu.memory_space<vmem>>, vector<1x1x9x2570xbf16>
    %1 = vector.shape_cast %0 : vector<1x1x9x2570xbf16> to vector<9x2570xbf16>
    %2 = arith.extf %1 : vector<9x2570xbf16> to vector<9x2570xf32>
    %c0_3 = arith.constant 0 : index
    %c0_4 = arith.constant 0 : index
    %3 = vector.load %arg3[%c0_3, %c0_4] : memref<9x4xf32, #tpu.memory_space<vmem>>, vector<9x1xf32>
    %4 = vector.broadcast %3 : vector<9x1xf32> to vector<9x2570xf32>
    %5 = arith.mulf %2, %4 : vector<9x2570xf32>
    %c0_5 = arith.constant 0 : index
    %c1 = arith.constant 1 : index
    %6 = vector.load %arg3[%c0_5, %c1] : memref<9x4xf32, #tpu.memory_space<vmem>>, vector<9x1xf32>
    %7 = vector.broadcast %6 : vector<9x1xf32> to vector<9x2570xf32>
    %8 = arith.addf %5, %7 : vector<9x2570xf32>
    %9 = vector.extract_strided_slice %8 {offsets = [0, 0], sizes = [8, 2570], strides = [1, 1]} : vector<9x2570xf32> to vector<8x2570xf32>
    %cst = arith.constant 0.000000e+00 : f32
    %10 = vector.broadcast %cst : f32 to vector<8x2570xf32>
    %11 = arith.cmpf oge, %9, %10 : vector<8x2570xf32>
    %cst_6 = arith.constant 0.00999999977 : f32
    %12 = vector.broadcast %cst_6 : f32 to vector<8x2570xf32>
    %13 = arith.mulf %12, %9 : vector<8x2570xf32>
    %14 = arith.select %11, %9, %13 : vector<8x2570xi1>, vector<8x2570xf32>
    %15 = vector.extract_strided_slice %8 {offsets = [8, 0], sizes = [1, 2570], strides = [1, 1]} : vector<9x2570xf32> to vector<1x2570xf32>
    %16 = vector.broadcast %15 : vector<1x2570xf32> to vector<8x2570xf32>
    %17 = arith.addf %16, %14 : vector<8x2570xf32>
    %cst_7 = arith.constant 0.000000e+00 : f32
    %18 = vector.broadcast %cst_7 : f32 to vector<8x2570xf32>
    %19 = arith.cmpf oge, %17, %18 : vector<8x2570xf32>
    %cst_8 = arith.constant 0.00999999977 : f32
    %20 = vector.broadcast %cst_8 : f32 to vector<8x2570xf32>
    %21 = arith.mulf %20, %17 : vector<8x2570xf32>
    %22 = arith.select %19, %17, %21 : vector<8x2570xi1>, vector<8x2570xf32>
    %c0_9 = arith.constant 0 : index
    %c2 = arith.constant 2 : index
    %23 = vector.load %arg3[%c0_9, %c2] : memref<9x4xf32, #tpu.memory_space<vmem>>, vector<8x1xf32>
    %24 = vector.broadcast %23 : vector<8x1xf32> to vector<8x2570xf32>
    %25 = arith.mulf %22, %24 : vector<8x2570xf32>
    %c0_10 = arith.constant 0 : index
    %c3 = arith.constant 3 : index
    %26 = vector.load %arg3[%c0_10, %c3] : memref<9x4xf32, #tpu.memory_space<vmem>>, vector<8x1xf32>
    %27 = vector.broadcast %26 : vector<8x1xf32> to vector<8x2570xf32>
    %28 = arith.addf %25, %27 : vector<8x2570xf32>
    %c0_11 = arith.constant 0 : index
    %c0_12 = arith.constant 0 : index
    %c0_13 = arith.constant 0 : index
    %c0_14 = arith.constant 0 : index
    %29 = vector.load %arg4[%c0_11, %c0_12, %c0_13, %c0_14] : memref<1x1x8x2570xf32, #tpu.memory_space<vmem>>, vector<1x1x8x2570xf32>
    %30 = vector.shape_cast %29 : vector<1x1x8x2570xf32> to vector<8x2570xf32>
    %31 = vector.shape_cast %28 : vector<8x2570xf32> to vector<1x1x8x2570xf32>
    tpu.vector_store %arg4[%c0_11, %c0_12, %c0_13, %c0_14], %31 {strides = array<i32>} : memref<1x1x8x2570xf32, #tpu.memory_space<vmem>>, vector<1x1x8x2570xf32>,
    return
  }
  func.func @transform_0(%arg0: i32, %arg1: i32) -> (i32, i32, i32, i32) {
    %c0_i32 = arith.constant 0 : i32
    %c0_i32_0 = arith.constant 0 : i32
    %c0_i32_1 = arith.constant 0 : i32
    return %arg0, %arg1, %c0_i32, %c0_i32_0 : i32, i32, i32, i32
  }
  func.func @transform_1(%arg0: i32, %arg1: i32) -> (i32, i32) {
    %c0_i32 = arith.constant 0 : i32
    %c0_i32_0 = arith.constant 0 : i32
    %c0_i32_1 = arith.constant 0 : i32
    return %c0_i32, %c0_i32_0 : i32, i32
  }
  func.func @transform_2(%arg0: i32, %arg1: i32) -> (i32, i32, i32, i32) {
    %c0_i32 = arith.constant 0 : i32
    %c0_i32_0 = arith.constant 0 : i32
    %c0_i32_1 = arith.constant 0 : i32
    return %arg0, %arg1, %c0_i32, %c0_i32_0 : i32, i32, i32, i32
  }
}

</mosaic_0001>

<llo_original>
// kernel: _lambda_.4
$region0: #{_lambda_.4}
  #allocation0 [shape = 'u32[]', space=smem, size = 0x4, offset = 0x4, fixed_abs, tag = 'smem constant byte address 0x4 - core index']
  #allocation1 [shape = 'u32[144,128]{1,0:T(1,128)}', space=vmem, size = 0x12000, scoped, tag = 'internal scratch']
  %s0 = inlined_call_operand.hbm [shape: bf16[2,1,9,2570], index: 0, kind: input, shape index: {}]
  %s1 = inlined_call_operand.hbm [shape: f32[9,2], index: 1, kind: input, shape index: {}]
  %s2 = inlined_call_operand.hbm [shape: f32[1,2570], index: 2, kind: input, shape index: {}]
  %s3 = inlined_call_operand.hbm [shape: f32[2,1,8,2], index: 3, kind: output, shape index: {}]
  %s4 = sld [smem:[#allocation0]]
  $region57: #{_lambda_.4} parent=0
    _
  %s6 = ssub.s32 1, %s4
  %s7 = scalar_select 0, %s6, %s4
  $region1: #{_lambda_.4} parent=0
    #allocation2 [shape = 'u8[172032]{0}', space=vmem, size = 0x2a000, scoped, tag = 'input window, operand 0']
    #allocation3 [shape = 's32[2]{0}', space=sflag, size = 0x8, scoped, tag = 'scoped memory for _lambda_.4']
    #allocation4 [shape = 's32[2]{0}', space=sflag, size = 0x8, scoped, tag = 'scoped memory for _lambda_.4']
    #allocation5 [shape = 'u8[8192]{0}', space=vmem, size = 0x2000, scoped, tag = 'input window, operand 1, single buffered']
    #allocation6 [shape = 's32[1]{0}', space=sflag, size = 0x4, scoped, tag = 'scoped memory for _lambda_.4']
    #allocation7 [shape = 'u8[10752]{0}', space=vmem, size = 0x2c00, scoped, tag = 'input window, operand 2, single buffered']
    #allocation8 [shape = 'u8[8192]{0}', space=vmem, size = 0x2000, scoped, tag = 'output window, operand 0']
    %8 = vsyncpa [#allocation3], 0
    %s9 = scalar_lea.sflag [#allocation3], 1
    %10 = vsyncpa %s9, 0
    %11 = vsyncpa [#allocation6], 0
    %12 = vsyncpa [#allocation4], 0
    %s13 = scalar_lea.sflag [#allocation4], 1
    %14 = vsyncpa %s13, 0
    loop: start=0, step=1, limit=4
    $region2: #{_lambda_.4} parent=1 // loop_pre_header
      _
    $region3: #{_lambda_.4} parent=1 // loop_header
      %s16 = sphi 0, %s20
      %p17 = scmp.ge.s32.totalorder %s16, 4
      %s23 = sphi 0, %s35
      %s24 = sphi 0, %s31
      %s25 = sphi 0, %s23
      %s26 = sphi 0, %s24
      %s27 = sphi 0, %s25
      %s28 = sphi 0, %s26
      %s40 = sphi 0, %s42
      %s43 = sphi 0, %s40
      %s44 = sphi 0, %s43
      %s60 = sphi 0, %s44
      %s64 = sphi 0, %s64
      %s66 = sphi 0, %s64
      %s67 = sphi 0, %s66
      %s81 = sphi 0, %s67
      %s85 = sphi 0, %s85
      %s87 = sphi 0, %s85
      %s88 = sphi 0, %s87
      %s102 = sphi 0, %s88
      %s110 = sphi 0, %s112
      %s113 = sphi 0, %s110
      %s114 = sphi 0, %s113
      %s130 = sphi 0, %s114
    $region4: #{_lambda_.4} parent=1 // loop_header_branch
      %19 = sbr.rel (%p17) target = $region8
    $region5: #{_lambda_.4} parent=1 // loop_body
      %s21 = ssub.s32 %s16, 1
      %s22 = ssub.s32 %s16, 2
      %s29 = sadd.s32 1, %s24
      %p30 = scmp.ge.s32.totalorder %s29, 1
      %s31 = scalar_select %p30, 0, %s29
      %s32 = sadd.s32 1, %s23
      %s33 = scalar_select %p30, %s32, %s23
      %p34 = scmp.ge.s32.totalorder %s33, 2
      %s35 = scalar_select %p34, 0, %s33
      %s36 = ssub.s32 %s23, %s35
      %s37 = ssub.s32 %s24, %s31
      %s38 = sor.u32 %s36, %s37
      %p39 = scmp.eq.s32.totalorder %s38, 0
      %s41 = sadd.s32 %s40, 1
      %s42 = scalar_select %p39, %s40, %s41
      %p45 = pneg %p39
      %p46 = scmp.eq.s32.totalorder %s16, 1
      %p47 = por %p45, %p46
      %p48 = scmp.ne.s32.totalorder %s40, %s43
      %p49 = scmp.eq.s32.totalorder %s16, 0
      %p50 = por %p48, %p49
      %p51 = scmp.ne.s32.totalorder %s40, %s43
      %p52 = scmp.eq.s32.totalorder %s21, 1
      %p53 = por %p51, %p52
      %p54 = scmp.ne.s32.totalorder %s43, %s44
      %p55 = scmp.eq.s32.totalorder %s21, 0
      %p56 = por %p54, %p55
      %p57 = scmp.ne.s32.totalorder %s43, %s44
      %p58 = scmp.eq.s32.totalorder %s22, 1
      %p59 = por %p57, %p58
      %p61 = scmp.ne.s32.totalorder %s44, %s60
      %p62 = scmp.eq.s32.totalorder %s22, 0
      %p63 = por %p61, %p62
      %s65 = sadd.s32 %s64, 1
      %p68 = scmp.eq.s32.totalorder %s16, 1
      %p69 = scmp.ne.s32.totalorder %s64, %s66
      %p70 = scmp.eq.s32.totalorder %s16, 0
      %p71 = por %p69, %p70
      %p72 = scmp.ne.s32.totalorder %s64, %s66
      %p73 = scmp.eq.s32.totalorder %s21, 1
      %p74 = por %p72, %p73
      %p75 = scmp.ne.s32.totalorder %s66, %s67
      %p76 = scmp.eq.s32.totalorder %s21, 0
      %p77 = por %p75, %p76
      %p78 = scmp.ne.s32.totalorder %s66, %s67
      %p79 = scmp.eq.s32.totalorder %s22, 1
      %p80 = por %p78, %p79
      %p82 = scmp.ne.s32.totalorder %s67, %s81
      %p83 = scmp.eq.s32.totalorder %s22, 0
      %p84 = por %p82, %p83
      %s86 = sadd.s32 %s85, 1
      %p89 = scmp.eq.s32.totalorder %s16, 1
      %p90 = scmp.ne.s32.totalorder %s85, %s87
      %p91 = scmp.eq.s32.totalorder %s16, 0
      %p92 = por %p90, %p91
      %p93 = scmp.ne.s32.totalorder %s85, %s87
      %p94 = scmp.eq.s32.totalorder %s21, 1
      %p95 = por %p93, %p94
      %p96 = scmp.ne.s32.totalorder %s87, %s88
      %p97 = scmp.eq.s32.totalorder %s21, 0
      %p98 = por %p96, %p97
      %p99 = scmp.ne.s32.totalorder %s87, %s88
      %p100 = scmp.eq.s32.totalorder %s22, 1
      %p101 = por %p99, %p100
      %p103 = scmp.ne.s32.totalorder %s88, %s102
      %p104 = scmp.eq.s32.totalorder %s22, 0
      %p105 = por %p103, %p104
      %s106 = ssub.s32 %s23, %s35
      %s107 = ssub.s32 %s24, %s31
      %s108 = sor.u32 %s106, %s107
      %p109 = scmp.eq.s32.totalorder %s108, 0
      %s111 = sadd.s32 %s110, 1
      %s112 = scalar_select %p109, %s110, %s111
      %p115 = pneg %p109
      %p116 = scmp.eq.s32.totalorder %s16, 1
      %p117 = por %p115, %p116
      %p118 = scmp.ne.s32.totalorder %s110, %s113
      %p119 = scmp.eq.s32.totalorder %s16, 0
      %p120 = por %p118, %p119
      %p121 = scmp.ne.s32.totalorder %s110, %s113
      %p122 = scmp.eq.s32.totalorder %s21, 1
      %p123 = por %p121, %p122
      %p124 = scmp.ne.s32.totalorder %s113, %s114
      %p125 = scmp.eq.s32.totalorder %s21, 0
      %p126 = por %p124, %p125
      %p127 = scmp.ne.s32.totalorder %s113, %s114
      %p128 = scmp.eq.s32.totalorder %s22, 1
      %p129 = por %p127, %p128
      %p131 = scmp.ne.s32.totalorder %s114, %s130
      %p132 = scmp.eq.s32.totalorder %s22, 0
      %p133 = por %p131, %p132
      %p134 = scmp.le.s32.totalorder 1, %s16
      %p135 = scmp.lt.s32.totalorder %s16, 3
      %p136 = pnand %p134, %p135
      %p137 = pneg %p136
      // Predicated region
      $region9: #{_lambda_.4} parent=5 // pred_check
        _
      $region10: #{_lambda_.4} parent=5 // pred_check_branch
        %139 = sbr.rel (%p136) target = $region12
      $region11: #{_lambda_.4} parent=5 // pred_region
        %s140 = ssub.s32 %s16, 1
        // Predicated region
        $region13: #{_lambda_.4} parent=11 // pred_check
          %p141 = pneg %p77
        $region14: #{_lambda_.4} parent=11 // pred_check_branch
          %143 = sbr.rel (%p141) target = $region16
        $region15: #{_lambda_.4} parent=11 // pred_region
          %s145 = ssub.s32 256, 256
          %146 = vsyncadd [#allocation6], %s145
          %s147 = sshll.u32 [#allocation5], 4
          %s148 = int_to_ptr.vmem [resolvable:$true] %s147
          %153 = dma.hbm_to_vmem [thread:$0]  %s1, 256, %s148, [#allocation6], 128, 128, 8
        $region16: #{_lambda_.4} parent=11 // pred_fallthru
          _
        // Predicated region
        $region17: #{_lambda_.4} parent=11 // pred_check
          %p154 = pneg %p98
        $region18: #{_lambda_.4} parent=11 // pred_check_branch
          %156 = sbr.rel (%p154) target = $region20
        $region19: #{_lambda_.4} parent=11 // pred_region
          %s158 = ssub.s32 336, 336
          %159 = vsyncadd [#allocation6], %s158
          %s161 = sshll.u32 [#allocation7], 4
          %s162 = int_to_ptr.vmem [resolvable:$true] %s161
          %164 = dma.hbm_to_vmem [thread:$0]  %s2, 336, %s162, [#allocation6]
        $region20: #{_lambda_.4} parent=11 // pred_fallthru
          _
      $region12: #{_lambda_.4} parent=5 // pred_fallthru
        _
      %p165 = scmp.lt.s32.totalorder %s16, 2
      // Predicated region
      $region21: #{_lambda_.4} parent=5 // pred_check
        %p166 = pneg %p165
      $region22: #{_lambda_.4} parent=5 // pred_check_branch
        %168 = sbr.rel (%p166) target = $region24
      $region23: #{_lambda_.4} parent=5 // pred_region
        // Predicated region
        $region25: #{_lambda_.4} parent=23 // pred_check
          %p169 = pneg %p50
        $region26: #{_lambda_.4} parent=23 // pred_check_branch
          %171 = sbr.rel (%p169) target = $region28
        $region27: #{_lambda_.4} parent=23 // pred_region
          %s172 = sand.u32 %s40, 1
          %s173 = scalar_lea.sflag [#allocation3], %s172
          %s174 = sand.u32 %s40, 1
          %s175 = smul.addr %s174, 168
          %s176 = scalar_lea.vmem [#allocation2], %s175
          %s178 = ssub.s32 2688, 2688
          %179 = vsyncadd %s173, %s178
          %s180 = smul.addr %s24, 42
          %s181 = smul.addr %s23, 42
          %s182 = sadd.s32 %s180, %s181
          %s183 = smul.addr %s182, 64
          %s184 = scalar_lea.hbm %s0, %s183
          %s185 = sshll.u32 %s176, 4
          %s186 = int_to_ptr.vmem [resolvable:$true] %s185
          %191 = dma.hbm_to_vmem [thread:$0]  %s184, 2688, %s186, %s173, 1344, 1344, 84
        $region28: #{_lambda_.4} parent=23 // pred_fallthru
          _
      $region24: #{_lambda_.4} parent=5 // pred_fallthru
        _
      %p192 = scmp.le.s32.totalorder 1, %s16
      %p193 = scmp.lt.s32.totalorder %s16, 3
      %p194 = pnand %p192, %p193
      %p195 = pneg %p194
      // Predicated region
      $region29: #{_lambda_.4} parent=5 // pred_check
        _
      $region30: #{_lambda_.4} parent=5 // pred_check_branch
        %197 = sbr.rel (%p194) target = $region32
      $region31: #{_lambda_.4} parent=5 // pred_region
        %s198 = ssub.s32 %s16, 1
        %s199 = sand.u32 %s43, 1
        %s200 = scalar_lea.sflag [#allocation3], %s199
        %s201 = sand.u32 %s43, 1
        %s202 = smul.addr %s201, 168
        %s203 = scalar_lea.vmem [#allocation2], %s202
        // Predicated region
        $region33: #{_lambda_.4} parent=31 // pred_check
          %p204 = pneg %p56
        $region34: #{_lambda_.4} parent=31 // pred_check_branch
          %206 = sbr.rel (%p204) target = $region36
        $region35: #{_lambda_.4} parent=31 // pred_region
          %207 = dma.done %s200, 2688
        $region36: #{_lambda_.4} parent=31 // pred_fallthru
          _
        // Predicated region
        $region37: #{_lambda_.4} parent=31 // pred_check
          %p208 = pneg %p77
        $region38: #{_lambda_.4} parent=31 // pred_check_branch
          %210 = sbr.rel (%p208) target = $region40
        $region39: #{_lambda_.4} parent=31 // pred_region
          %211 = dma.done [#allocation6], 256
        $region40: #{_lambda_.4} parent=31 // pred_fallthru
          _
        // Predicated region
        $region41: #{_lambda_.4} parent=31 // pred_check
          %p212 = pneg %p98
        $region42: #{_lambda_.4} parent=31 // pred_check_branch
          %214 = sbr.rel (%p212) target = $region44
        $region43: #{_lambda_.4} parent=31 // pred_region
          %215 = dma.done [#allocation6], 336
        $region44: #{_lambda_.4} parent=31 // pred_fallthru
          _
        %s216 = sand.u32 %s43, 1
        %s217 = scalar_lea.sflag [#allocation3], %s216
        %s218 = sand.u32 %s43, 1
        %s219 = smul.addr %s218, 168
        %s220 = scalar_lea.vmem [#allocation2], %s219
        %p221 = pneg %p56
        %p222 = pneg %p53
        %p223 = pneg %p77
        %p224 = pneg %p74
        %p225 = pneg %p98
        %p226 = pneg %p95
        %p227 = pneg %p126
        %p228 = pneg %p123
        %s229 = sand.u32 %s113, 1
        %s230 = scalar_lea.sflag [#allocation4], %s229
        %s231 = sand.u32 %s113, 1
        %s232 = smul.addr %s231, 8
        %s233 = scalar_lea.vmem [#allocation8], %s232
        %v234 = vld [vmem:[%s203] sm:$0xff]
        %v235 = vld [vmem:[%s203 + $0x8] sm:$0xff]
        %v236 = vld [vmem:[%s203 + $0x10] sm:$0xff]
        %v237 = vld [vmem:[%s203 + $0x18] sm:$0xff]
        %v238 = vld [vmem:[%s203 + $0x20] sm:$0xff]
        %v239 = vld [vmem:[%s203 + $0x28] sm:$0xff]
        %v240 = vld [vmem:[%s203 + $0x30] sm:$0xff]
        %v241 = vld [vmem:[%s203 + $0x38] sm:$0xff]
        %v242 = vld [vmem:[%s203 + $0x40] sm:$0xff]
        %v243 = vld [vmem:[%s203 + $0x48] sm:$0xff]
        %v244 = vld [vmem:[%s203 + $0x50] sm:$0xf]
        %v245 = vld [vmem:[%s203 + $0x54] sm:$0x11]
        %v246 = vld [vmem:[%s203 + $0x5c] sm:$0x11]
        %v247 = vld [vmem:[%s203 + $0x64] sm:$0x11]
        %v248 = vld [vmem:[%s203 + $0x6c] sm:$0x11]
        %v249 = vld [vmem:[%s203 + $0x74] sm:$0x11]
        %v250 = vld [vmem:[%s203 + $0x7c] sm:$0x11]
        %v251 = vld [vmem:[%s203 + $0x84] sm:$0x11]
        %v252 = vld [vmem:[%s203 + $0x8c] sm:$0x11]
        %v253 = vld [vmem:[%s203 + $0x94] sm:$0x11]
        %v254 = vld [vmem:[%s203 + $0x9c] sm:$0x11]
        %v255 = vld [vmem:[%s203 + $0xa4] sm:$0x1]
        %v256 = vunpack.c.l.bf16 %v234
        %v257 = vunpack.c.h.bf16 %v234
        %v258 = vunpack.c.l.bf16 %v235
        %v259 = vunpack.c.h.bf16 %v235
        %v260 = vunpack.c.l.bf16 %v236
        %v261 = vunpack.c.h.bf16 %v236
        %v262 = vunpack.c.l.bf16 %v237
        %v263 = vunpack.c.h.bf16 %v237
        %v264 = vunpack.c.l.bf16 %v238
        %v265 = vunpack.c.h.bf16 %v238
        %v266 = vunpack.c.l.bf16 %v239
        %v267 = vunpack.c.h.bf16 %v239
        %v268 = vunpack.c.l.bf16 %v240
        %v269 = vunpack.c.h.bf16 %v240
        %v270 = vunpack.c.l.bf16 %v241
        %v271 = vunpack.c.h.bf16 %v241
        %v272 = vunpack.c.l.bf16 %v242
        %v273 = vunpack.c.h.bf16 %v242
        %v274 = vunpack.c.l.bf16 %v243
        %v275 = vunpack.c.h.bf16 %v243
        %v276 = vunpack.c.l.bf16 %v244
        %v277 = vunpack.c.l.bf16 %v245
        %v278 = vunpack.c.h.bf16 %v245
        %v279 = vunpack.c.l.bf16 %v246
        %v280 = vunpack.c.h.bf16 %v246
        %v281 = vunpack.c.l.bf16 %v247
        %v282 = vunpack.c.h.bf16 %v247
        %v283 = vunpack.c.l.bf16 %v248
        %v284 = vunpack.c.h.bf16 %v248
        %v285 = vunpack.c.l.bf16 %v249
        %v286 = vunpack.c.h.bf16 %v249
        %v287 = vunpack.c.l.bf16 %v250
        %v288 = vunpack.c.h.bf16 %v250
        %v289 = vunpack.c.l.bf16 %v251
        %v290 = vunpack.c.h.bf16 %v251
        %v291 = vunpack.c.l.bf16 %v252
        %v292 = vunpack.c.h.bf16 %v252
        %v293 = vunpack.c.l.bf16 %v253
        %v294 = vunpack.c.h.bf16 %v253
        %v295 = vunpack.c.l.bf16 %v254
        %v296 = vunpack.c.h.bf16 %v254
        %v297 = vunpack.c.l.bf16 %v255
        %v298 = vld [vmem:[#allocation5] sm:$0xff]
        %v299 = vld [vmem:[#allocation5 + $0x8] sm:$0x1]
        %301 = vset.pattern.permute.xlu0 0
        %302 = vperm.xlu0 %301, %v298
        %v303 = vpop.permute.xlu0 %302
        %306 = vset.pattern.permute.xlu0 0
        %307 = vperm.xlu0 %306, %v299
        %v308 = vpop.permute.xlu0 %307
        %v310 = vmul.f32 %v256, %v303
        %v311 = vmul.f32 %v257, %v303
        %v312 = vmul.f32 %v258, %v303
        %v313 = vmul.f32 %v259, %v303
        %v314 = vmul.f32 %v260, %v303
        %v315 = vmul.f32 %v261, %v303
        %v316 = vmul.f32 %v262, %v303
        %v317 = vmul.f32 %v263, %v303
        %v318 = vmul.f32 %v264, %v303
        %v319 = vmul.f32 %v265, %v303
        %v320 = vmul.f32 %v266, %v303
        %v321 = vmul.f32 %v267, %v303
        %v322 = vmul.f32 %v268, %v303
        %v323 = vmul.f32 %v269, %v303
        %v324 = vmul.f32 %v270, %v303
        %v325 = vmul.f32 %v271, %v303
        %v326 = vmul.f32 %v272, %v303
        %v327 = vmul.f32 %v273, %v303
        %v328 = vmul.f32 %v274, %v303
        %v329 = vmul.f32 %v275, %v303
        %v330 = vmul.f32 %v276, %v303
        %v331 = vmul.f32 %v277, %v308
        %v332 = vmul.f32 %v278, %v308
        %v333 = vmul.f32 %v279, %v308
        %v334 = vmul.f32 %v280, %v308
        %v335 = vmul.f32 %v281, %v308
        %v336 = vmul.f32 %v282, %v308
        %v337 = vmul.f32 %v283, %v308
        %v338 = vmul.f32 %v284, %v308
        %v339 = vmul.f32 %v285, %v308
        %v340 = vmul.f32 %v286, %v308
        %v341 = vmul.f32 %v287, %v308
        %v342 = vmul.f32 %v288, %v308
        %v343 = vmul.f32 %v289, %v308
        %v344 = vmul.f32 %v290, %v308
        %v345 = vmul.f32 %v291, %v308
        %v346 = vmul.f32 %v292, %v308
        %v347 = vmul.f32 %v293, %v308
        %v348 = vmul.f32 %v294, %v308
        %v349 = vmul.f32 %v295, %v308
        %v350 = vmul.f32 %v296, %v308
        %v351 = vmul.f32 %v297, %v308
        %352 = vset.pattern.permute.xlu0 1
        %353 = vperm.xlu0 %352, %v298
        %v354 = vpop.permute.xlu0 %353
        %356 = vset.pattern.permute.xlu0 1
        %357 = vperm.xlu0 %356, %v299
        %v358 = vpop.permute.xlu0 %357
        %v360 = vadd.f32 %v310, %v354
        %v361 = vadd.f32 %v311, %v354
        %v362 = vadd.f32 %v312, %v354
        %v363 = vadd.f32 %v313, %v354
        %v364 = vadd.f32 %v314, %v354
        %v365 = vadd.f32 %v315, %v354
        %v366 = vadd.f32 %v316, %v354
        %v367 = vadd.f32 %v317, %v354
        %v368 = vadd.f32 %v318, %v354
        %v369 = vadd.f32 %v319, %v354
        %v370 = vadd.f32 %v320, %v354
        %v371 = vadd.f32 %v321, %v354
        %v372 = vadd.f32 %v322, %v354
        %v373 = vadd.f32 %v323, %v354
        %v374 = vadd.f32 %v324, %v354
        %v375 = vadd.f32 %v325, %v354
        %v376 = vadd.f32 %v326, %v354
        %v377 = vadd.f32 %v327, %v354
        %v378 = vadd.f32 %v328, %v354
        %v379 = vadd.f32 %v329, %v354
        %v380 = vadd.f32 %v330, %v354
        %v381 = vadd.f32 %v331, %v358
        %v382 = vadd.f32 %v332, %v358
        %v383 = vadd.f32 %v333, %v358
        %v384 = vadd.f32 %v334, %v358
        %v385 = vadd.f32 %v335, %v358
        %v386 = vadd.f32 %v336, %v358
        %v387 = vadd.f32 %v337, %v358
        %v388 = vadd.f32 %v338, %v358
        %v389 = vadd.f32 %v339, %v358
        %v390 = vadd.f32 %v340, %v358
        %v391 = vadd.f32 %v341, %v358
        %v392 = vadd.f32 %v342, %v358
        %v393 = vadd.f32 %v343, %v358
        %v394 = vadd.f32 %v344, %v358
        %v395 = vadd.f32 %v345, %v358
        %v396 = vadd.f32 %v346, %v358
        %v397 = vadd.f32 %v347, %v358
        %v398 = vadd.f32 %v348, %v358
        %v399 = vadd.f32 %v349, %v358
        %v400 = vadd.f32 %v350, %v358
        %v401 = vadd.f32 %v351, %v358
        %vm402 = vcmp.ge.f32.partialorder %v360, 0.0
        %vm403 = vcmp.ge.f32.partialorder %v361, 0.0
        %vm404 = vcmp.ge.f32.partialorder %v362, 0.0
        %vm405 = vcmp.ge.f32.partialorder %v363, 0.0
        %vm406 = vcmp.ge.f32.partialorder %v364, 0.0
        %vm407 = vcmp.ge.f32.partialorder %v365, 0.0
        %vm408 = vcmp.ge.f32.partialorder %v366, 0.0
        %vm409 = vcmp.ge.f32.partialorder %v367, 0.0
        %vm410 = vcmp.ge.f32.partialorder %v368, 0.0
        %vm411 = vcmp.ge.f32.partialorder %v369, 0.0
        %vm412 = vcmp.ge.f32.partialorder %v370, 0.0
        %vm413 = vcmp.ge.f32.partialorder %v371, 0.0
        %vm414 = vcmp.ge.f32.partialorder %v372, 0.0
        %vm415 = vcmp.ge.f32.partialorder %v373, 0.0
        %vm416 = vcmp.ge.f32.partialorder %v374, 0.0
        %vm417 = vcmp.ge.f32.partialorder %v375, 0.0
        %vm418 = vcmp.ge.f32.partialorder %v376, 0.0
        %vm419 = vcmp.ge.f32.partialorder %v377, 0.0
        %vm420 = vcmp.ge.f32.partialorder %v378, 0.0
        %vm421 = vcmp.ge.f32.partialorder %v379, 0.0
        %vm422 = vcmp.ge.f32.partialorder %v380, 0.0
        %v423 = vmul.f32 %v360, 0.01
        %v424 = vmul.f32 %v361, 0.01
        %v425 = vmul.f32 %v362, 0.01
        %v426 = vmul.f32 %v363, 0.01
        %v427 = vmul.f32 %v364, 0.01
        %v428 = vmul.f32 %v365, 0.01
        %v429 = vmul.f32 %v366, 0.01
        %v430 = vmul.f32 %v367, 0.01
        %v431 = vmul.f32 %v368, 0.01
        %v432 = vmul.f32 %v369, 0.01
        %v433 = vmul.f32 %v370, 0.01
        %v434 = vmul.f32 %v371, 0.01
        %v435 = vmul.f32 %v372, 0.01
        %v436 = vmul.f32 %v373, 0.01
        %v437 = vmul.f32 %v374, 0.01
        %v438 = vmul.f32 %v375, 0.01
        %v439 = vmul.f32 %v376, 0.01
        %v440 = vmul.f32 %v377, 0.01
        %v441 = vmul.f32 %v378, 0.01
        %v442 = vmul.f32 %v379, 0.01
        %v443 = vmul.f32 %v380, 0.01
        %v444 = vsel %vm402, %v360, %v423
        %v445 = vsel %vm403, %v361, %v424
        %v446 = vsel %vm404, %v362, %v425
        %v447 = vsel %vm405, %v363, %v426
        %v448 = vsel %vm406, %v364, %v427
        %v449 = vsel %vm407, %v365, %v428
        %v450 = vsel %vm408, %v366, %v429
        %v451 = vsel %vm409, %v367, %v430
        %v452 = vsel %vm410, %v368, %v431
        %v453 = vsel %vm411, %v369, %v432
        %v454 = vsel %vm412, %v370, %v433
        %v455 = vsel %vm413, %v371, %v434
        %v456 = vsel %vm414, %v372, %v435
        %v457 = vsel %vm415, %v373, %v436
        %v458 = vsel %vm416, %v374, %v437
        %v459 = vsel %vm417, %v375, %v438
        %v460 = vsel %vm418, %v376, %v439
        %v461 = vsel %vm419, %v377, %v440
        %v462 = vsel %vm420, %v378, %v441
        %v463 = vsel %vm421, %v379, %v442
        %v464 = vsel %vm422, %v380, %v443
        %v465 = vlaneseq
        %v466 = vshrl.u32 %v465, 7
        %v467 = vsub.s32 0, %v466
        %v468 = vrot.slane %v381, %v467
        %v469 = vlaneseq
        %v470 = vshrl.u32 %v469, 7
        %v471 = vsub.s32 0, %v470
        %v472 = vrot.slane %v382, %v471
        %v473 = vlaneseq
        %v474 = vshrl.u32 %v473, 7
        %v475 = vsub.s32 0, %v474
        %v476 = vrot.slane %v383, %v475
        %v477 = vlaneseq
        %v478 = vshrl.u32 %v477, 7
        %v479 = vsub.s32 0, %v478
        %v480 = vrot.slane %v384, %v479
        %v481 = vlaneseq
        %v482 = vshrl.u32 %v481, 7
        %v483 = vsub.s32 0, %v482
        %v484 = vrot.slane %v385, %v483
        %v485 = vlaneseq
        %v486 = vshrl.u32 %v485, 7
        %v487 = vsub.s32 0, %v486
        %v488 = vrot.slane %v386, %v487
        %v489 = vlaneseq
        %v490 = vshrl.u32 %v489, 7
        %v491 = vsub.s32 0, %v490
        %v492 = vrot.slane %v387, %v491
        %v493 = vlaneseq
        %v494 = vshrl.u32 %v493, 7
        %v495 = vsub.s32 0, %v494
        %v496 = vrot.slane %v388, %v495
        %v497 = vlaneseq
        %v498 = vshrl.u32 %v497, 7
        %v499 = vsub.s32 0, %v498
        %v500 = vrot.slane %v389, %v499
        %v501 = vlaneseq
        %v502 = vshrl.u32 %v501, 7
        %v503 = vsub.s32 0, %v502
        %v504 = vrot.slane %v390, %v503
        %v505 = vlaneseq
        %v506 = vshrl.u32 %v505, 7
        %v507 = vsub.s32 0, %v506
        %v508 = vrot.slane %v391, %v507
        %v509 = vlaneseq
        %v510 = vshrl.u32 %v509, 7
        %v511 = vsub.s32 0, %v510
        %v512 = vrot.slane %v392, %v511
        %v513 = vlaneseq
        %v514 = vshrl.u32 %v513, 7
        %v515 = vsub.s32 0, %v514
        %v516 = vrot.slane %v393, %v515
        %v517 = vlaneseq
        %v518 = vshrl.u32 %v517, 7
        %v519 = vsub.s32 0, %v518
        %v520 = vrot.slane %v394, %v519
        %v521 = vlaneseq
        %v522 = vshrl.u32 %v521, 7
        %v523 = vsub.s32 0, %v522
        %v524 = vrot.slane %v395, %v523
        %v525 = vlaneseq
        %v526 = vshrl.u32 %v525, 7
        %v527 = vsub.s32 0, %v526
        %v528 = vrot.slane %v396, %v527
        %v529 = vlaneseq
        %v530 = vshrl.u32 %v529, 7
        %v531 = vsub.s32 0, %v530
        %v532 = vrot.slane %v397, %v531
        %v533 = vlaneseq
        %v534 = vshrl.u32 %v533, 7
        %v535 = vsub.s32 0, %v534
        %v536 = vrot.slane %v398, %v535
        %v537 = vlaneseq
        %v538 = vshrl.u32 %v537, 7
        %v539 = vsub.s32 0, %v538
        %v540 = vrot.slane %v399, %v539
        %v541 = vlaneseq
        %v542 = vshrl.u32 %v541, 7
        %v543 = vsub.s32 0, %v542
        %v544 = vrot.slane %v400, %v543
        %v545 = vlaneseq
        %v546 = vshrl.u32 %v545, 7
        %v547 = vsub.s32 0, %v546
        %v548 = vrot.slane %v401, %v547
        %v549 = vadd.f32 %v468, %v444
        %v550 = vadd.f32 %v472, %v445
        %v551 = vadd.f32 %v476, %v446
        %v552 = vadd.f32 %v480, %v447
        %v553 = vadd.f32 %v484, %v448
        %v554 = vadd.f32 %v488, %v449
        %v555 = vadd.f32 %v492, %v450
        %v556 = vadd.f32 %v496, %v451
        %v557 = vadd.f32 %v500, %v452
        %v558 = vadd.f32 %v504, %v453
        %v559 = vadd.f32 %v508, %v454
        %v560 = vadd.f32 %v512, %v455
        %v561 = vadd.f32 %v516, %v456
        %v562 = vadd.f32 %v520, %v457
        %v563 = vadd.f32 %v524, %v458
        %v564 = vadd.f32 %v528, %v459
        %v565 = vadd.f32 %v532, %v460
        %v566 = vadd.f32 %v536, %v461
        %v567 = vadd.f32 %v540, %v462
        %v568 = vadd.f32 %v544, %v463
        %v569 = vadd.f32 %v548, %v464
        %vm570 = vcmp.ge.f32.partialorder %v549, 0.0
        %vm571 = vcmp.ge.f32.partialorder %v550, 0.0
        %vm572 = vcmp.ge.f32.partialorder %v551, 0.0
        %vm573 = vcmp.ge.f32.partialorder %v552, 0.0
        %vm574 = vcmp.ge.f32.partialorder %v553, 0.0
        %vm575 = vcmp.ge.f32.partialorder %v554, 0.0
        %vm576 = vcmp.ge.f32.partialorder %v555, 0.0
        %vm577 = vcmp.ge.f32.partialorder %v556, 0.0
        %vm578 = vcmp.ge.f32.partialorder %v557, 0.0
        %vm579 = vcmp.ge.f32.partialorder %v558, 0.0
        %vm580 = vcmp.ge.f32.partialorder %v559, 0.0
        %vm581 = vcmp.ge.f32.partialorder %v560, 0.0
        %vm582 = vcmp.ge.f32.partialorder %v561, 0.0
        %vm583 = vcmp.ge.f32.partialorder %v562, 0.0
        %vm584 = vcmp.ge.f32.partialorder %v563, 0.0
        %vm585 = vcmp.ge.f32.partialorder %v564, 0.0
        %vm586 = vcmp.ge.f32.partialorder %v565, 0.0
        %vm587 = vcmp.ge.f32.partialorder %v566, 0.0
        %vm588 = vcmp.ge.f32.partialorder %v567, 0.0
        %vm589 = vcmp.ge.f32.partialorder %v568, 0.0
        %vm590 = vcmp.ge.f32.partialorder %v569, 0.0
        %v591 = vmul.f32 %v549, 0.01
        %v592 = vmul.f32 %v550, 0.01
        %v593 = vmul.f32 %v551, 0.01
        %v594 = vmul.f32 %v552, 0.01
        %v595 = vmul.f32 %v553, 0.01
        %v596 = vmul.f32 %v554, 0.01
        %v597 = vmul.f32 %v555, 0.01
        %v598 = vmul.f32 %v556, 0.01
        %v599 = vmul.f32 %v557, 0.01
        %v600 = vmul.f32 %v558, 0.01
        %v601 = vmul.f32 %v559, 0.01
        %v602 = vmul.f32 %v560, 0.01
        %v603 = vmul.f32 %v561, 0.01
        %v604 = vmul.f32 %v562, 0.01
        %v605 = vmul.f32 %v563, 0.01
        %v606 = vmul.f32 %v564, 0.01
        %v607 = vmul.f32 %v565, 0.01
        %v608 = vmul.f32 %v566, 0.01
        %v609 = vmul.f32 %v567, 0.01
        %v610 = vmul.f32 %v568, 0.01
        %v611 = vmul.f32 %v569, 0.01
        %v612 = vsel %vm570, %v549, %v591
        %v613 = vsel %vm571, %v550, %v592
        %v614 = vsel %vm572, %v551, %v593
        %v615 = vsel %vm573, %v552, %v594
        %v616 = vsel %vm574, %v553, %v595
        %v617 = vsel %vm575, %v554, %v596
        %v618 = vsel %vm576, %v555, %v597
        %v619 = vsel %vm577, %v556, %v598
        %v620 = vsel %vm578, %v557, %v599
        %v621 = vsel %vm579, %v558, %v600
        %v622 = vsel %vm580, %v559, %v601
        %v623 = vsel %vm581, %v560, %v602
        %v624 = vsel %vm582, %v561, %v603
        %v625 = vsel %vm583, %v562, %v604
        %v626 = vsel %vm584, %v563, %v605
        %v627 = vsel %vm585, %v564, %v606
        %v628 = vsel %vm586, %v565, %v607
        %v629 = vsel %vm587, %v566, %v608
        %v630 = vsel %vm588, %v567, %v609
        %v631 = vsel %vm589, %v568, %v610
        %v632 = vsel %vm590, %v569, %v611
        %v633 = vld [vmem:[#allocation7] sm:$0xff]
        %v634 = vld [vmem:[#allocation7 + $0x8] sm:$0xff]
        %v635 = vld [vmem:[#allocation7 + $0x10] sm:$0x1f]
        %v639 = vlaneseq
        %v640 = vshrl.u32 %v639, 7
        %v641 = vsub.s32 0, %v640
        %v642 = vrot.slane %v633, %v641
        %v643 = vlaneseq
        %v644 = vshrl.u32 %v643, 7
        %v645 = vsub.s32 1, %v644
        %v646 = vrot.slane %v633, %v645
        %v647 = vlaneseq
        %v648 = vshrl.u32 %v647, 7
        %v649 = vsub.s32 2, %v648
        %v650 = vrot.slane %v633, %v649
        %v651 = vlaneseq
        %v652 = vshrl.u32 %v651, 7
        %v653 = vsub.s32 3, %v652
        %v654 = vrot.slane %v633, %v653
        %v655 = vlaneseq
        %v656 = vshrl.u32 %v655, 7
        %v657 = vsub.s32 4, %v656
        %v658 = vrot.slane %v633, %v657
        %v659 = vlaneseq
        %v660 = vshrl.u32 %v659, 7
        %v661 = vsub.s32 5, %v660
        %v662 = vrot.slane %v633, %v661
        %v663 = vlaneseq
        %v664 = vshrl.u32 %v663, 7
        %v665 = vsub.s32 6, %v664
        %v666 = vrot.slane %v633, %v665
        %v667 = vlaneseq
        %v668 = vshrl.u32 %v667, 7
        %v669 = vsub.s32 7, %v668
        %v670 = vrot.slane %v633, %v669
        %v671 = vlaneseq
        %v672 = vshrl.u32 %v671, 7
        %v673 = vsub.s32 0, %v672
        %v674 = vrot.slane %v634, %v673
        %v675 = vlaneseq
        %v676 = vshrl.u32 %v675, 7
        %v677 = vsub.s32 1, %v676
        %v678 = vrot.slane %v634, %v677
        %v679 = vlaneseq
        %v680 = vshrl.u32 %v679, 7
        %v681 = vsub.s32 2, %v680
        %v682 = vrot.slane %v634, %v681
        %v683 = vlaneseq
        %v684 = vshrl.u32 %v683, 7
        %v685 = vsub.s32 3, %v684
        %v686 = vrot.slane %v634, %v685
        %v687 = vlaneseq
        %v688 = vshrl.u32 %v687, 7
        %v689 = vsub.s32 4, %v688
        %v690 = vrot.slane %v634, %v689
        %v691 = vlaneseq
        %v692 = vshrl.u32 %v691, 7
        %v693 = vsub.s32 5, %v692
        %v694 = vrot.slane %v634, %v693
        %v695 = vlaneseq
        %v696 = vshrl.u32 %v695, 7
        %v697 = vsub.s32 6, %v696
        %v698 = vrot.slane %v634, %v697
        %v699 = vlaneseq
        %v700 = vshrl.u32 %v699, 7
        %v701 = vsub.s32 7, %v700
        %v702 = vrot.slane %v634, %v701
        %v703 = vlaneseq
        %v704 = vshrl.u32 %v703, 7
        %v705 = vsub.s32 0, %v704
        %v706 = vrot.slane %v635, %v705
        %v707 = vlaneseq
        %v708 = vshrl.u32 %v707, 7
        %v709 = vsub.s32 1, %v708
        %v710 = vrot.slane %v635, %v709
        %v711 = vlaneseq
        %v712 = vshrl.u32 %v711, 7
        %v713 = vsub.s32 2, %v712
        %v714 = vrot.slane %v635, %v713
        %v715 = vlaneseq
        %v716 = vshrl.u32 %v715, 7
        %v717 = vsub.s32 3, %v716
        %v718 = vrot.slane %v635, %v717
        %v719 = vlaneseq
        %v720 = vshrl.u32 %v719, 7
        %v721 = vsub.s32 4, %v720
        %v722 = vrot.slane %v635, %v721
        %v744 = vmul.f32 %v612, %v642
        %v745 = vmul.f32 %v613, %v646
        %v746 = vmul.f32 %v614, %v650
        %v747 = vmul.f32 %v615, %v654
        %v748 = vmul.f32 %v616, %v658
        %v749 = vmul.f32 %v617, %v662
        %v750 = vmul.f32 %v618, %v666
        %v751 = vmul.f32 %v619, %v670
        %v752 = vmul.f32 %v620, %v674
        %v753 = vmul.f32 %v621, %v678
        %v754 = vmul.f32 %v622, %v682
        %v755 = vmul.f32 %v623, %v686
        %v756 = vmul.f32 %v624, %v690
        %v757 = vmul.f32 %v625, %v694
        %v758 = vmul.f32 %v626, %v698
        %v759 = vmul.f32 %v627, %v702
        %v760 = vmul.f32 %v628, %v706
        %v761 = vmul.f32 %v629, %v710
        %v762 = vmul.f32 %v630, %v714
        %v763 = vmul.f32 %v631, %v718
        %v764 = vmul.f32 %v632, %v722
        %v765 = vadd.f32 %v744, %v745
        %v766 = vadd.f32 %v765, %v746
        %v767 = vadd.f32 %v766, %v747
        %v768 = vadd.f32 %v767, %v748
        %v769 = vadd.f32 %v768, %v749
        %v770 = vadd.f32 %v769, %v750
        %v771 = vadd.f32 %v770, %v751
        %v772 = vadd.f32 %v771, %v752
        %v773 = vadd.f32 %v772, %v753
        %v774 = vadd.f32 %v773, %v754
        %v775 = vadd.f32 %v774, %v755
        %v776 = vadd.f32 %v775, %v756
        %v777 = vadd.f32 %v776, %v757
        %v778 = vadd.f32 %v777, %v758
        %v779 = vadd.f32 %v778, %v759
        %v780 = vadd.f32 %v779, %v760
        %v781 = vadd.f32 %v780, %v761
        %v782 = vadd.f32 %v781, %v762
        %v783 = vadd.f32 %v782, %v763
        %vm784 = vcmask 80896
        %v785 = vsel %vm784, %v764, 0.0
        %v786 = vadd.f32 %v783, %v785
        %787 = vadd.xlane.f32.xlu0 %v786
        %v788 = vpop.xlane.xlu0 %787
        %v789 = vmul.f32 %v744, %v744
        %v790 = vmul.f32 %v745, %v745
        %v791 = vmul.f32 %v746, %v746
        %v792 = vmul.f32 %v747, %v747
        %v793 = vmul.f32 %v748, %v748
        %v794 = vmul.f32 %v749, %v749
        %v795 = vmul.f32 %v750, %v750
        %v796 = vmul.f32 %v751, %v751
        %v797 = vmul.f32 %v752, %v752
        %v798 = vmul.f32 %v753, %v753
        %v799 = vmul.f32 %v754, %v754
        %v800 = vmul.f32 %v755, %v755
        %v801 = vmul.f32 %v756, %v756
        %v802 = vmul.f32 %v757, %v757
        %v803 = vmul.f32 %v758, %v758
        %v804 = vmul.f32 %v759, %v759
        %v805 = vmul.f32 %v760, %v760
        %v806 = vmul.f32 %v761, %v761
        %v807 = vmul.f32 %v762, %v762
        %v808 = vmul.f32 %v763, %v763
        %v809 = vmul.f32 %v764, %v764
        %v810 = vadd.f32 %v789, %v790
        %v811 = vadd.f32 %v810, %v791
        %v812 = vadd.f32 %v811, %v792
        %v813 = vadd.f32 %v812, %v793
        %v814 = vadd.f32 %v813, %v794
        %v815 = vadd.f32 %v814, %v795
        %v816 = vadd.f32 %v815, %v796
        %v817 = vadd.f32 %v816, %v797
        %v818 = vadd.f32 %v817, %v798
        %v819 = vadd.f32 %v818, %v799
        %v820 = vadd.f32 %v819, %v800
        %v821 = vadd.f32 %v820, %v801
        %v822 = vadd.f32 %v821, %v802
        %v823 = vadd.f32 %v822, %v803
        %v824 = vadd.f32 %v823, %v804
        %v825 = vadd.f32 %v824, %v805
        %v826 = vadd.f32 %v825, %v806
        %v827 = vadd.f32 %v826, %v807
        %v828 = vadd.f32 %v827, %v808
        %v829 = vsel %vm784, %v809, 0.0
        %v830 = vadd.f32 %v828, %v829
        %831 = vadd.xlane.f32.xlu0 %v830
        %v832 = vpop.xlane.xlu0 %831
        %vm833 = vcmask 7168
        %v834 = vsel %vm833, %v788, %v832
        %vm835 = vcmask 15360
        %836 = vst.msk [vmem:[%s233] sm:$0xff] %vm835, %v834
        %s837 = sand.u32 %s113, 1
        %s838 = scalar_lea.sflag [#allocation4], %s837
        %s839 = sand.u32 %s113, 1
        %s840 = smul.addr %s839, 8
        %s841 = scalar_lea.vmem [#allocation8], %s840
        // Predicated region
        $region45: #{_lambda_.4} parent=31 // pred_check
          %p842 = pneg %p123
        $region46: #{_lambda_.4} parent=31 // pred_check_branch
          %844 = sbr.rel (%p842) target = $region48
        $region47: #{_lambda_.4} parent=31 // pred_region
          %s846 = ssub.s32 128, 128
          %847 = vsyncadd %s838, %s846
          %s848 = sadd.s32 %s26, %s25
          %s849 = smul.addr %s848, 128
          %s850 = scalar_lea.hbm %s3, %s849
          %s852 = sshll.u32 %s841, 4
          %s853 = int_to_ptr.vmem [resolvable:$true] %s852
          %855 = dma.vmem_to_hbm [thread:$0]  %s853, 128, %s850, %s838
        $region48: #{_lambda_.4} parent=31 // pred_fallthru
          _
      $region32: #{_lambda_.4} parent=5 // pred_fallthru
        _
      %p856 = scmp.le.s32.totalorder 2, %s16
      // Predicated region
      $region49: #{_lambda_.4} parent=5 // pred_check
        %p857 = pneg %p856
      $region50: #{_lambda_.4} parent=5 // pred_check_branch
        %859 = sbr.rel (%p857) target = $region52
      $region51: #{_lambda_.4} parent=5 // pred_region
        %s860 = ssub.s32 %s16, 2
        // Predicated region
        $region53: #{_lambda_.4} parent=51 // pred_check
          %p861 = pneg %p129
        $region54: #{_lambda_.4} parent=51 // pred_check_branch
          %863 = sbr.rel (%p861) target = $region56
        $region55: #{_lambda_.4} parent=51 // pred_region
          %s864 = sand.u32 %s114, 1
          %s865 = scalar_lea.sflag [#allocation4], %s864
          %s866 = sand.u32 %s114, 1
          %s867 = smul.addr %s866, 8
          %s868 = scalar_lea.vmem [#allocation8], %s867
          %869 = dma.done %s865, 128
        $region56: #{_lambda_.4} parent=51 // pred_fallthru
          _
      $region52: #{_lambda_.4} parent=5 // pred_fallthru
        _
    $region6: #{_lambda_.4} parent=1 // loop_footer
      %s20 = sadd.s32 1, %s16
    $region7: #{_lambda_.4} parent=1 // loop_footer_branch
      %15 = sbr.rel target = $region3
    $region8: #{_lambda_.4} parent=1 // loop_exit
      _
    %870 = vsyncpa [#allocation3], 1
    %s871 = scalar_lea.sflag [#allocation3], 1
    %872 = vsyncpa %s871, 1
    %873 = vsyncpa [#allocation6], 1
    %874 = vsyncpa [#allocation4], 1
    %s875 = scalar_lea.sflag [#allocation4], 1
    %876 = vsyncpa %s875, 1

// kernel: _lambda_.5
$region0: #{_lambda_.5}
  #allocation0 [shape = 'u32[]', space=smem, size = 0x4, offset = 0x4, fixed_abs, tag = 'smem constant byte address 0x4 - core index']
  #allocation1 [shape = 'u32[144,128]{1,0:T(1,128)}', space=vmem, size = 0x12000, scoped, tag = 'internal scratch']
  %s0 = inlined_call_operand.hbm [shape: bf16[2,1,9,2570], index: 0, kind: input, shape index: {}]
  %s1 = inlined_call_operand.hbm [shape: f32[9,4], index: 1, kind: input, shape index: {}]
  %s2 = inlined_call_operand.hbm [shape: f32[2,1,8,2570], index: 2, kind: output, shape index: {}]
  %s3 = sld [smem:[#allocation0]]
  $region49: #{_lambda_.5} parent=0
    _
  %s5 = ssub.s32 1, %s3
  %s6 = scalar_select 0, %s5, %s3
  $region1: #{_lambda_.5} parent=0
    #allocation2 [shape = 'u8[172032]{0}', space=vmem, size = 0x2a000, scoped, tag = 'input window, operand 0']
    #allocation3 [shape = 's32[2]{0}', space=sflag, size = 0x8, scoped, tag = 'scoped memory for _lambda_.5']
    #allocation4 [shape = 's32[2]{0}', space=sflag, size = 0x8, scoped, tag = 'scoped memory for _lambda_.5']
    #allocation5 [shape = 'u8[8192]{0}', space=vmem, size = 0x2000, scoped, tag = 'input window, operand 1, single buffered']
    #allocation6 [shape = 's32[1]{0}', space=sflag, size = 0x4, scoped, tag = 'scoped memory for _lambda_.5']
    #allocation7 [shape = 'u8[172032]{0}', space=vmem, size = 0x2a000, scoped, tag = 'output window, operand 0']
    %7 = vsyncpa [#allocation3], 0
    %s8 = scalar_lea.sflag [#allocation3], 1
    %9 = vsyncpa %s8, 0
    %10 = vsyncpa [#allocation6], 0
    %11 = vsyncpa [#allocation4], 0
    %s12 = scalar_lea.sflag [#allocation4], 1
    %13 = vsyncpa %s12, 0
    loop: start=0, step=1, limit=4
    $region2: #{_lambda_.5} parent=1 // loop_pre_header
      _
    $region3: #{_lambda_.5} parent=1 // loop_header
      %s15 = sphi 0, %s19
      %p16 = scmp.ge.s32.totalorder %s15, 4
      %s22 = sphi 0, %s34
      %s23 = sphi 0, %s30
      %s24 = sphi 0, %s22
      %s25 = sphi 0, %s23
      %s26 = sphi 0, %s24
      %s27 = sphi 0, %s25
      %s39 = sphi 0, %s41
      %s42 = sphi 0, %s39
      %s43 = sphi 0, %s42
      %s59 = sphi 0, %s43
      %s63 = sphi 0, %s63
      %s65 = sphi 0, %s63
      %s66 = sphi 0, %s65
      %s80 = sphi 0, %s66
      %s88 = sphi 0, %s90
      %s91 = sphi 0, %s88
      %s92 = sphi 0, %s91
      %s108 = sphi 0, %s92
    $region4: #{_lambda_.5} parent=1 // loop_header_branch
      %18 = sbr.rel (%p16) target = $region8
    $region5: #{_lambda_.5} parent=1 // loop_body
      %s20 = ssub.s32 %s15, 1
      %s21 = ssub.s32 %s15, 2
      %s28 = sadd.s32 1, %s23
      %p29 = scmp.ge.s32.totalorder %s28, 1
      %s30 = scalar_select %p29, 0, %s28
      %s31 = sadd.s32 1, %s22
      %s32 = scalar_select %p29, %s31, %s22
      %p33 = scmp.ge.s32.totalorder %s32, 2
      %s34 = scalar_select %p33, 0, %s32
      %s35 = ssub.s32 %s22, %s34
      %s36 = ssub.s32 %s23, %s30
      %s37 = sor.u32 %s35, %s36
      %p38 = scmp.eq.s32.totalorder %s37, 0
      %s40 = sadd.s32 %s39, 1
      %s41 = scalar_select %p38, %s39, %s40
      %p44 = pneg %p38
      %p45 = scmp.eq.s32.totalorder %s15, 1
      %p46 = por %p44, %p45
      %p47 = scmp.ne.s32.totalorder %s39, %s42
      %p48 = scmp.eq.s32.totalorder %s15, 0
      %p49 = por %p47, %p48
      %p50 = scmp.ne.s32.totalorder %s39, %s42
      %p51 = scmp.eq.s32.totalorder %s20, 1
      %p52 = por %p50, %p51
      %p53 = scmp.ne.s32.totalorder %s42, %s43
      %p54 = scmp.eq.s32.totalorder %s20, 0
      %p55 = por %p53, %p54
      %p56 = scmp.ne.s32.totalorder %s42, %s43
      %p57 = scmp.eq.s32.totalorder %s21, 1
      %p58 = por %p56, %p57
      %p60 = scmp.ne.s32.totalorder %s43, %s59
      %p61 = scmp.eq.s32.totalorder %s21, 0
      %p62 = por %p60, %p61
      %s64 = sadd.s32 %s63, 1
      %p67 = scmp.eq.s32.totalorder %s15, 1
      %p68 = scmp.ne.s32.totalorder %s63, %s65
      %p69 = scmp.eq.s32.totalorder %s15, 0
      %p70 = por %p68, %p69
      %p71 = scmp.ne.s32.totalorder %s63, %s65
      %p72 = scmp.eq.s32.totalorder %s20, 1
      %p73 = por %p71, %p72
      %p74 = scmp.ne.s32.totalorder %s65, %s66
      %p75 = scmp.eq.s32.totalorder %s20, 0
      %p76 = por %p74, %p75
      %p77 = scmp.ne.s32.totalorder %s65, %s66
      %p78 = scmp.eq.s32.totalorder %s21, 1
      %p79 = por %p77, %p78
      %p81 = scmp.ne.s32.totalorder %s66, %s80
      %p82 = scmp.eq.s32.totalorder %s21, 0
      %p83 = por %p81, %p82
      %s84 = ssub.s32 %s22, %s34
      %s85 = ssub.s32 %s23, %s30
      %s86 = sor.u32 %s84, %s85
      %p87 = scmp.eq.s32.totalorder %s86, 0
      %s89 = sadd.s32 %s88, 1
      %s90 = scalar_select %p87, %s88, %s89
      %p93 = pneg %p87
      %p94 = scmp.eq.s32.totalorder %s15, 1
      %p95 = por %p93, %p94
      %p96 = scmp.ne.s32.totalorder %s88, %s91
      %p97 = scmp.eq.s32.totalorder %s15, 0
      %p98 = por %p96, %p97
      %p99 = scmp.ne.s32.totalorder %s88, %s91
      %p100 = scmp.eq.s32.totalorder %s20, 1
      %p101 = por %p99, %p100
      %p102 = scmp.ne.s32.totalorder %s91, %s92
      %p103 = scmp.eq.s32.totalorder %s20, 0
      %p104 = por %p102, %p103
      %p105 = scmp.ne.s32.totalorder %s91, %s92
      %p106 = scmp.eq.s32.totalorder %s21, 1
      %p107 = por %p105, %p106
      %p109 = scmp.ne.s32.totalorder %s92, %s108
      %p110 = scmp.eq.s32.totalorder %s21, 0
      %p111 = por %p109, %p110
      %p112 = scmp.le.s32.totalorder 1, %s15
      %p113 = scmp.lt.s32.totalorder %s15, 3
      %p114 = pnand %p112, %p113
      %p115 = pneg %p114
      // Predicated region
      $region9: #{_lambda_.5} parent=5 // pred_check
        _
      $region10: #{_lambda_.5} parent=5 // pred_check_branch
        %117 = sbr.rel (%p114) target = $region12
      $region11: #{_lambda_.5} parent=5 // pred_region
        %s118 = ssub.s32 %s15, 1
        // Predicated region
        $region13: #{_lambda_.5} parent=11 // pred_check
          %p119 = pneg %p76
        $region14: #{_lambda_.5} parent=11 // pred_check_branch
          %121 = sbr.rel (%p119) target = $region16
        $region15: #{_lambda_.5} parent=11 // pred_region
          %s123 = ssub.s32 256, 256
          %124 = vsyncadd [#allocation6], %s123
          %s125 = sshll.u32 [#allocation5], 4
          %s126 = int_to_ptr.vmem [resolvable:$true] %s125
          %131 = dma.hbm_to_vmem [thread:$0]  %s1, 256, %s126, [#allocation6], 128, 128, 8
        $region16: #{_lambda_.5} parent=11 // pred_fallthru
          _
      $region12: #{_lambda_.5} parent=5 // pred_fallthru
        _
      %p132 = scmp.lt.s32.totalorder %s15, 2
      // Predicated region
      $region17: #{_lambda_.5} parent=5 // pred_check
        %p133 = pneg %p132
      $region18: #{_lambda_.5} parent=5 // pred_check_branch
        %135 = sbr.rel (%p133) target = $region20
      $region19: #{_lambda_.5} parent=5 // pred_region
        // Predicated region
        $region21: #{_lambda_.5} parent=19 // pred_check
          %p136 = pneg %p49
        $region22: #{_lambda_.5} parent=19 // pred_check_branch
          %138 = sbr.rel (%p136) target = $region24
        $region23: #{_lambda_.5} parent=19 // pred_region
          %s139 = sand.u32 %s39, 1
          %s140 = scalar_lea.sflag [#allocation3], %s139
          %s141 = sand.u32 %s39, 1
          %s142 = smul.addr %s141, 168
          %s143 = scalar_lea.vmem [#allocation2], %s142
          %s145 = ssub.s32 2688, 2688
          %146 = vsyncadd %s140, %s145
          %s147 = smul.addr %s23, 42
          %s148 = smul.addr %s22, 42
          %s149 = sadd.s32 %s147, %s148
          %s150 = smul.addr %s149, 64
          %s151 = scalar_lea.hbm %s0, %s150
          %s152 = sshll.u32 %s143, 4
          %s153 = int_to_ptr.vmem [resolvable:$true] %s152
          %158 = dma.hbm_to_vmem [thread:$0]  %s151, 2688, %s153, %s140, 1344, 1344, 84
        $region24: #{_lambda_.5} parent=19 // pred_fallthru
          _
      $region20: #{_lambda_.5} parent=5 // pred_fallthru
        _
      %p159 = scmp.le.s32.totalorder 1, %s15
      %p160 = scmp.lt.s32.totalorder %s15, 3
      %p161 = pnand %p159, %p160
      %p162 = pneg %p161
      // Predicated region
      $region25: #{_lambda_.5} parent=5 // pred_check
        _
      $region26: #{_lambda_.5} parent=5 // pred_check_branch
        %164 = sbr.rel (%p161) target = $region28
      $region27: #{_lambda_.5} parent=5 // pred_region
        %s165 = ssub.s32 %s15, 1
        %s166 = sand.u32 %s42, 1
        %s167 = scalar_lea.sflag [#allocation3], %s166
        %s168 = sand.u32 %s42, 1
        %s169 = smul.addr %s168, 168
        %s170 = scalar_lea.vmem [#allocation2], %s169
        // Predicated region
        $region29: #{_lambda_.5} parent=27 // pred_check
          %p171 = pneg %p55
        $region30: #{_lambda_.5} parent=27 // pred_check_branch
          %173 = sbr.rel (%p171) target = $region32
        $region31: #{_lambda_.5} parent=27 // pred_region
          %174 = dma.done %s167, 2688
        $region32: #{_lambda_.5} parent=27 // pred_fallthru
          _
        // Predicated region
        $region33: #{_lambda_.5} parent=27 // pred_check
          %p175 = pneg %p76
        $region34: #{_lambda_.5} parent=27 // pred_check_branch
          %177 = sbr.rel (%p175) target = $region36
        $region35: #{_lambda_.5} parent=27 // pred_region
          %178 = dma.done [#allocation6], 256
        $region36: #{_lambda_.5} parent=27 // pred_fallthru
          _
        %s179 = sand.u32 %s42, 1
        %s180 = scalar_lea.sflag [#allocation3], %s179
        %s181 = sand.u32 %s42, 1
        %s182 = smul.addr %s181, 168
        %s183 = scalar_lea.vmem [#allocation2], %s182
        %p184 = pneg %p55
        %p185 = pneg %p52
        %p186 = pneg %p76
        %p187 = pneg %p73
        %p188 = pneg %p104
        %p189 = pneg %p101
        %s190 = sand.u32 %s91, 1
        %s191 = scalar_lea.sflag [#allocation4], %s190
        %s192 = sand.u32 %s91, 1
        %s193 = smul.addr %s192, 168
        %s194 = scalar_lea.vmem [#allocation7], %s193
        %v195 = vld [vmem:[%s170] sm:$0xff]
        %v196 = vld [vmem:[%s170 + $0x8] sm:$0xff]
        %v197 = vld [vmem:[%s170 + $0x10] sm:$0xff]
        %v198 = vld [vmem:[%s170 + $0x18] sm:$0xff]
        %v199 = vld [vmem:[%s170 + $0x20] sm:$0xff]
        %v200 = vld [vmem:[%s170 + $0x28] sm:$0xff]
        %v201 = vld [vmem:[%s170 + $0x30] sm:$0xff]
        %v202 = vld [vmem:[%s170 + $0x38] sm:$0xff]
        %v203 = vld [vmem:[%s170 + $0x40] sm:$0xff]
        %v204 = vld [vmem:[%s170 + $0x48] sm:$0xff]
        %v205 = vld [vmem:[%s170 + $0x50] sm:$0xf]
        %v206 = vld [vmem:[%s170 + $0x54] sm:$0x11]
        %v207 = vld [vmem:[%s170 + $0x5c] sm:$0x11]
        %v208 = vld [vmem:[%s170 + $0x64] sm:$0x11]
        %v209 = vld [vmem:[%s170 + $0x6c] sm:$0x11]
        %v210 = vld [vmem:[%s170 + $0x74] sm:$0x11]
        %v211 = vld [vmem:[%s170 + $0x7c] sm:$0x11]
        %v212 = vld [vmem:[%s170 + $0x84] sm:$0x11]
        %v213 = vld [vmem:[%s170 + $0x8c] sm:$0x11]
        %v214 = vld [vmem:[%s170 + $0x94] sm:$0x11]
        %v215 = vld [vmem:[%s170 + $0x9c] sm:$0x11]
        %v216 = vld [vmem:[%s170 + $0xa4] sm:$0x1]
        %v217 = vunpack.c.l.bf16 %v195
        %v218 = vunpack.c.h.bf16 %v195
        %v219 = vunpack.c.l.bf16 %v196
        %v220 = vunpack.c.h.bf16 %v196
        %v221 = vunpack.c.l.bf16 %v197
        %v222 = vunpack.c.h.bf16 %v197
        %v223 = vunpack.c.l.bf16 %v198
        %v224 = vunpack.c.h.bf16 %v198
        %v225 = vunpack.c.l.bf16 %v199
        %v226 = vunpack.c.h.bf16 %v199
        %v227 = vunpack.c.l.bf16 %v200
        %v228 = vunpack.c.h.bf16 %v200
        %v229 = vunpack.c.l.bf16 %v201
        %v230 = vunpack.c.h.bf16 %v201
        %v231 = vunpack.c.l.bf16 %v202
        %v232 = vunpack.c.h.bf16 %v202
        %v233 = vunpack.c.l.bf16 %v203
        %v234 = vunpack.c.h.bf16 %v203
        %v235 = vunpack.c.l.bf16 %v204
        %v236 = vunpack.c.h.bf16 %v204
        %v237 = vunpack.c.l.bf16 %v205
        %v238 = vunpack.c.l.bf16 %v206
        %v239 = vunpack.c.h.bf16 %v206
        %v240 = vunpack.c.l.bf16 %v207
        %v241 = vunpack.c.h.bf16 %v207
        %v242 = vunpack.c.l.bf16 %v208
        %v243 = vunpack.c.h.bf16 %v208
        %v244 = vunpack.c.l.bf16 %v209
        %v245 = vunpack.c.h.bf16 %v209
        %v246 = vunpack.c.l.bf16 %v210
        %v247 = vunpack.c.h.bf16 %v210
        %v248 = vunpack.c.l.bf16 %v211
        %v249 = vunpack.c.h.bf16 %v211
        %v250 = vunpack.c.l.bf16 %v212
        %v251 = vunpack.c.h.bf16 %v212
        %v252 = vunpack.c.l.bf16 %v213
        %v253 = vunpack.c.h.bf16 %v213
        %v254 = vunpack.c.l.bf16 %v214
        %v255 = vunpack.c.h.bf16 %v214
        %v256 = vunpack.c.l.bf16 %v215
        %v257 = vunpack.c.h.bf16 %v215
        %v258 = vunpack.c.l.bf16 %v216
        %v259 = vld [vmem:[#allocation5] sm:$0xff]
        %v260 = vld [vmem:[#allocation5 + $0x8] sm:$0x1]
        %262 = vset.pattern.permute.xlu0 0
        %263 = vperm.xlu0 %262, %v259
        %v264 = vpop.permute.xlu0 %263
        %267 = vset.pattern.permute.xlu0 0
        %268 = vperm.xlu0 %267, %v260
        %v269 = vpop.permute.xlu0 %268
        %v271 = vmul.f32 %v217, %v264
        %v272 = vmul.f32 %v218, %v264
        %v273 = vmul.f32 %v219, %v264
        %v274 = vmul.f32 %v220, %v264
        %v275 = vmul.f32 %v221, %v264
        %v276 = vmul.f32 %v222, %v264
        %v277 = vmul.f32 %v223, %v264
        %v278 = vmul.f32 %v224, %v264
        %v279 = vmul.f32 %v225, %v264
        %v280 = vmul.f32 %v226, %v264
        %v281 = vmul.f32 %v227, %v264
        %v282 = vmul.f32 %v228, %v264
        %v283 = vmul.f32 %v229, %v264
        %v284 = vmul.f32 %v230, %v264
        %v285 = vmul.f32 %v231, %v264
        %v286 = vmul.f32 %v232, %v264
        %v287 = vmul.f32 %v233, %v264
        %v288 = vmul.f32 %v234, %v264
        %v289 = vmul.f32 %v235, %v264
        %v290 = vmul.f32 %v236, %v264
        %v291 = vmul.f32 %v237, %v264
        %v292 = vmul.f32 %v238, %v269
        %v293 = vmul.f32 %v239, %v269
        %v294 = vmul.f32 %v240, %v269
        %v295 = vmul.f32 %v241, %v269
        %v296 = vmul.f32 %v242, %v269
        %v297 = vmul.f32 %v243, %v269
        %v298 = vmul.f32 %v244, %v269
        %v299 = vmul.f32 %v245, %v269
        %v300 = vmul.f32 %v246, %v269
        %v301 = vmul.f32 %v247, %v269
        %v302 = vmul.f32 %v248, %v269
        %v303 = vmul.f32 %v249, %v269
        %v304 = vmul.f32 %v250, %v269
        %v305 = vmul.f32 %v251, %v269
        %v306 = vmul.f32 %v252, %v269
        %v307 = vmul.f32 %v253, %v269
        %v308 = vmul.f32 %v254, %v269
        %v309 = vmul.f32 %v255, %v269
        %v310 = vmul.f32 %v256, %v269
        %v311 = vmul.f32 %v257, %v269
        %v312 = vmul.f32 %v258, %v269
        %313 = vset.pattern.permute.xlu0 1
        %314 = vperm.xlu0 %313, %v259
        %v315 = vpop.permute.xlu0 %314
        %317 = vset.pattern.permute.xlu0 1
        %318 = vperm.xlu0 %317, %v260
        %v319 = vpop.permute.xlu0 %318
        %v321 = vadd.f32 %v271, %v315
        %v322 = vadd.f32 %v272, %v315
        %v323 = vadd.f32 %v273, %v315
        %v324 = vadd.f32 %v274, %v315
        %v325 = vadd.f32 %v275, %v315
        %v326 = vadd.f32 %v276, %v315
        %v327 = vadd.f32 %v277, %v315
        %v328 = vadd.f32 %v278, %v315
        %v329 = vadd.f32 %v279, %v315
        %v330 = vadd.f32 %v280, %v315
        %v331 = vadd.f32 %v281, %v315
        %v332 = vadd.f32 %v282, %v315
        %v333 = vadd.f32 %v283, %v315
        %v334 = vadd.f32 %v284, %v315
        %v335 = vadd.f32 %v285, %v315
        %v336 = vadd.f32 %v286, %v315
        %v337 = vadd.f32 %v287, %v315
        %v338 = vadd.f32 %v288, %v315
        %v339 = vadd.f32 %v289, %v315
        %v340 = vadd.f32 %v290, %v315
        %v341 = vadd.f32 %v291, %v315
        %v342 = vadd.f32 %v292, %v319
        %v343 = vadd.f32 %v293, %v319
        %v344 = vadd.f32 %v294, %v319
        %v345 = vadd.f32 %v295, %v319
        %v346 = vadd.f32 %v296, %v319
        %v347 = vadd.f32 %v297, %v319
        %v348 = vadd.f32 %v298, %v319
        %v349 = vadd.f32 %v299, %v319
        %v350 = vadd.f32 %v300, %v319
        %v351 = vadd.f32 %v301, %v319
        %v352 = vadd.f32 %v302, %v319
        %v353 = vadd.f32 %v303, %v319
        %v354 = vadd.f32 %v304, %v319
        %v355 = vadd.f32 %v305, %v319
        %v356 = vadd.f32 %v306, %v319
        %v357 = vadd.f32 %v307, %v319
        %v358 = vadd.f32 %v308, %v319
        %v359 = vadd.f32 %v309, %v319
        %v360 = vadd.f32 %v310, %v319
        %v361 = vadd.f32 %v311, %v319
        %v362 = vadd.f32 %v312, %v319
        %vm363 = vcmp.ge.f32.partialorder %v321, 0.0
        %vm364 = vcmp.ge.f32.partialorder %v322, 0.0
        %vm365 = vcmp.ge.f32.partialorder %v323, 0.0
        %vm366 = vcmp.ge.f32.partialorder %v324, 0.0
        %vm367 = vcmp.ge.f32.partialorder %v325, 0.0
        %vm368 = vcmp.ge.f32.partialorder %v326, 0.0
        %vm369 = vcmp.ge.f32.partialorder %v327, 0.0
        %vm370 = vcmp.ge.f32.partialorder %v328, 0.0
        %vm371 = vcmp.ge.f32.partialorder %v329, 0.0
        %vm372 = vcmp.ge.f32.partialorder %v330, 0.0
        %vm373 = vcmp.ge.f32.partialorder %v331, 0.0
        %vm374 = vcmp.ge.f32.partialorder %v332, 0.0
        %vm375 = vcmp.ge.f32.partialorder %v333, 0.0
        %vm376 = vcmp.ge.f32.partialorder %v334, 0.0
        %vm377 = vcmp.ge.f32.partialorder %v335, 0.0
        %vm378 = vcmp.ge.f32.partialorder %v336, 0.0
        %vm379 = vcmp.ge.f32.partialorder %v337, 0.0
        %vm380 = vcmp.ge.f32.partialorder %v338, 0.0
        %vm381 = vcmp.ge.f32.partialorder %v339, 0.0
        %vm382 = vcmp.ge.f32.partialorder %v340, 0.0
        %vm383 = vcmp.ge.f32.partialorder %v341, 0.0
        %v384 = vmul.f32 %v321, 0.01
        %v385 = vmul.f32 %v322, 0.01
        %v386 = vmul.f32 %v323, 0.01
        %v387 = vmul.f32 %v324, 0.01
        %v388 = vmul.f32 %v325, 0.01
        %v389 = vmul.f32 %v326, 0.01
        %v390 = vmul.f32 %v327, 0.01
        %v391 = vmul.f32 %v328, 0.01
        %v392 = vmul.f32 %v329, 0.01
        %v393 = vmul.f32 %v330, 0.01
        %v394 = vmul.f32 %v331, 0.01
        %v395 = vmul.f32 %v332, 0.01
        %v396 = vmul.f32 %v333, 0.01
        %v397 = vmul.f32 %v334, 0.01
        %v398 = vmul.f32 %v335, 0.01
        %v399 = vmul.f32 %v336, 0.01
        %v400 = vmul.f32 %v337, 0.01
        %v401 = vmul.f32 %v338, 0.01
        %v402 = vmul.f32 %v339, 0.01
        %v403 = vmul.f32 %v340, 0.01
        %v404 = vmul.f32 %v341, 0.01
        %v405 = vsel %vm363, %v321, %v384
        %v406 = vsel %vm364, %v322, %v385
        %v407 = vsel %vm365, %v323, %v386
        %v408 = vsel %vm366, %v324, %v387
        %v409 = vsel %vm367, %v325, %v388
        %v410 = vsel %vm368, %v326, %v389
        %v411 = vsel %vm369, %v327, %v390
        %v412 = vsel %vm370, %v328, %v391
        %v413 = vsel %vm371, %v329, %v392
        %v414 = vsel %vm372, %v330, %v393
        %v415 = vsel %vm373, %v331, %v394
        %v416 = vsel %vm374, %v332, %v395
        %v417 = vsel %vm375, %v333, %v396
        %v418 = vsel %vm376, %v334, %v397
        %v419 = vsel %vm377, %v335, %v398
        %v420 = vsel %vm378, %v336, %v399
        %v421 = vsel %vm379, %v337, %v400
        %v422 = vsel %vm380, %v338, %v401
        %v423 = vsel %vm381, %v339, %v402
        %v424 = vsel %vm382, %v340, %v403
        %v425 = vsel %vm383, %v341, %v404
        %v426 = vlaneseq
        %v427 = vshrl.u32 %v426, 7
        %v428 = vsub.s32 0, %v427
        %v429 = vrot.slane %v342, %v428
        %v430 = vlaneseq
        %v431 = vshrl.u32 %v430, 7
        %v432 = vsub.s32 0, %v431
        %v433 = vrot.slane %v343, %v432
        %v434 = vlaneseq
        %v435 = vshrl.u32 %v434, 7
        %v436 = vsub.s32 0, %v435
        %v437 = vrot.slane %v344, %v436
        %v438 = vlaneseq
        %v439 = vshrl.u32 %v438, 7
        %v440 = vsub.s32 0, %v439
        %v441 = vrot.slane %v345, %v440
        %v442 = vlaneseq
        %v443 = vshrl.u32 %v442, 7
        %v444 = vsub.s32 0, %v443
        %v445 = vrot.slane %v346, %v444
        %v446 = vlaneseq
        %v447 = vshrl.u32 %v446, 7
        %v448 = vsub.s32 0, %v447
        %v449 = vrot.slane %v347, %v448
        %v450 = vlaneseq
        %v451 = vshrl.u32 %v450, 7
        %v452 = vsub.s32 0, %v451
        %v453 = vrot.slane %v348, %v452
        %v454 = vlaneseq
        %v455 = vshrl.u32 %v454, 7
        %v456 = vsub.s32 0, %v455
        %v457 = vrot.slane %v349, %v456
        %v458 = vlaneseq
        %v459 = vshrl.u32 %v458, 7
        %v460 = vsub.s32 0, %v459
        %v461 = vrot.slane %v350, %v460
        %v462 = vlaneseq
        %v463 = vshrl.u32 %v462, 7
        %v464 = vsub.s32 0, %v463
        %v465 = vrot.slane %v351, %v464
        %v466 = vlaneseq
        %v467 = vshrl.u32 %v466, 7
        %v468 = vsub.s32 0, %v467
        %v469 = vrot.slane %v352, %v468
        %v470 = vlaneseq
        %v471 = vshrl.u32 %v470, 7
        %v472 = vsub.s32 0, %v471
        %v473 = vrot.slane %v353, %v472
        %v474 = vlaneseq
        %v475 = vshrl.u32 %v474, 7
        %v476 = vsub.s32 0, %v475
        %v477 = vrot.slane %v354, %v476
        %v478 = vlaneseq
        %v479 = vshrl.u32 %v478, 7
        %v480 = vsub.s32 0, %v479
        %v481 = vrot.slane %v355, %v480
        %v482 = vlaneseq
        %v483 = vshrl.u32 %v482, 7
        %v484 = vsub.s32 0, %v483
        %v485 = vrot.slane %v356, %v484
        %v486 = vlaneseq
        %v487 = vshrl.u32 %v486, 7
        %v488 = vsub.s32 0, %v487
        %v489 = vrot.slane %v357, %v488
        %v490 = vlaneseq
        %v491 = vshrl.u32 %v490, 7
        %v492 = vsub.s32 0, %v491
        %v493 = vrot.slane %v358, %v492
        %v494 = vlaneseq
        %v495 = vshrl.u32 %v494, 7
        %v496 = vsub.s32 0, %v495
        %v497 = vrot.slane %v359, %v496
        %v498 = vlaneseq
        %v499 = vshrl.u32 %v498, 7
        %v500 = vsub.s32 0, %v499
        %v501 = vrot.slane %v360, %v500
        %v502 = vlaneseq
        %v503 = vshrl.u32 %v502, 7
        %v504 = vsub.s32 0, %v503
        %v505 = vrot.slane %v361, %v504
        %v506 = vlaneseq
        %v507 = vshrl.u32 %v506, 7
        %v508 = vsub.s32 0, %v507
        %v509 = vrot.slane %v362, %v508
        %v510 = vadd.f32 %v429, %v405
        %v511 = vadd.f32 %v433, %v406
        %v512 = vadd.f32 %v437, %v407
        %v513 = vadd.f32 %v441, %v408
        %v514 = vadd.f32 %v445, %v409
        %v515 = vadd.f32 %v449, %v410
        %v516 = vadd.f32 %v453, %v411
        %v517 = vadd.f32 %v457, %v412
        %v518 = vadd.f32 %v461, %v413
        %v519 = vadd.f32 %v465, %v414
        %v520 = vadd.f32 %v469, %v415
        %v521 = vadd.f32 %v473, %v416
        %v522 = vadd.f32 %v477, %v417
        %v523 = vadd.f32 %v481, %v418
        %v524 = vadd.f32 %v485, %v419
        %v525 = vadd.f32 %v489, %v420
        %v526 = vadd.f32 %v493, %v421
        %v527 = vadd.f32 %v497, %v422
        %v528 = vadd.f32 %v501, %v423
        %v529 = vadd.f32 %v505, %v424
        %v530 = vadd.f32 %v509, %v425
        %vm531 = vcmp.ge.f32.partialorder %v510, 0.0
        %vm532 = vcmp.ge.f32.partialorder %v511, 0.0
        %vm533 = vcmp.ge.f32.partialorder %v512, 0.0
        %vm534 = vcmp.ge.f32.partialorder %v513, 0.0
        %vm535 = vcmp.ge.f32.partialorder %v514, 0.0
        %vm536 = vcmp.ge.f32.partialorder %v515, 0.0
        %vm537 = vcmp.ge.f32.partialorder %v516, 0.0
        %vm538 = vcmp.ge.f32.partialorder %v517, 0.0
        %vm539 = vcmp.ge.f32.partialorder %v518, 0.0
        %vm540 = vcmp.ge.f32.partialorder %v519, 0.0
        %vm541 = vcmp.ge.f32.partialorder %v520, 0.0
        %vm542 = vcmp.ge.f32.partialorder %v521, 0.0
        %vm543 = vcmp.ge.f32.partialorder %v522, 0.0
        %vm544 = vcmp.ge.f32.partialorder %v523, 0.0
        %vm545 = vcmp.ge.f32.partialorder %v524, 0.0
        %vm546 = vcmp.ge.f32.partialorder %v525, 0.0
        %vm547 = vcmp.ge.f32.partialorder %v526, 0.0
        %vm548 = vcmp.ge.f32.partialorder %v527, 0.0
        %vm549 = vcmp.ge.f32.partialorder %v528, 0.0
        %vm550 = vcmp.ge.f32.partialorder %v529, 0.0
        %vm551 = vcmp.ge.f32.partialorder %v530, 0.0
        %v552 = vmul.f32 %v510, 0.01
        %v553 = vmul.f32 %v511, 0.01
        %v554 = vmul.f32 %v512, 0.01
        %v555 = vmul.f32 %v513, 0.01
        %v556 = vmul.f32 %v514, 0.01
        %v557 = vmul.f32 %v515, 0.01
        %v558 = vmul.f32 %v516, 0.01
        %v559 = vmul.f32 %v517, 0.01
        %v560 = vmul.f32 %v518, 0.01
        %v561 = vmul.f32 %v519, 0.01
        %v562 = vmul.f32 %v520, 0.01
        %v563 = vmul.f32 %v521, 0.01
        %v564 = vmul.f32 %v522, 0.01
        %v565 = vmul.f32 %v523, 0.01
        %v566 = vmul.f32 %v524, 0.01
        %v567 = vmul.f32 %v525, 0.01
        %v568 = vmul.f32 %v526, 0.01
        %v569 = vmul.f32 %v527, 0.01
        %v570 = vmul.f32 %v528, 0.01
        %v571 = vmul.f32 %v529, 0.01
        %v572 = vmul.f32 %v530, 0.01
        %v573 = vsel %vm531, %v510, %v552
        %v574 = vsel %vm532, %v511, %v553
        %v575 = vsel %vm533, %v512, %v554
        %v576 = vsel %vm534, %v513, %v555
        %v577 = vsel %vm535, %v514, %v556
        %v578 = vsel %vm536, %v515, %v557
        %v579 = vsel %vm537, %v516, %v558
        %v580 = vsel %vm538, %v517, %v559
        %v581 = vsel %vm539, %v518, %v560
        %v582 = vsel %vm540, %v519, %v561
        %v583 = vsel %vm541, %v520, %v562
        %v584 = vsel %vm542, %v521, %v563
        %v585 = vsel %vm543, %v522, %v564
        %v586 = vsel %vm544, %v523, %v565
        %v587 = vsel %vm545, %v524, %v566
        %v588 = vsel %vm546, %v525, %v567
        %v589 = vsel %vm547, %v526, %v568
        %v590 = vsel %vm548, %v527, %v569
        %v591 = vsel %vm549, %v528, %v570
        %v592 = vsel %vm550, %v529, %v571
        %v593 = vsel %vm551, %v530, %v572
        %v594 = vld [vmem:[#allocation5] sm:$0xff]
        %596 = vset.pattern.permute.xlu0 2
        %597 = vperm.xlu0 %596, %v594
        %v598 = vpop.permute.xlu0 %597
        %v600 = vmul.f32 %v573, %v598
        %v601 = vmul.f32 %v574, %v598
        %v602 = vmul.f32 %v575, %v598
        %v603 = vmul.f32 %v576, %v598
        %v604 = vmul.f32 %v577, %v598
        %v605 = vmul.f32 %v578, %v598
        %v606 = vmul.f32 %v579, %v598
        %v607 = vmul.f32 %v580, %v598
        %v608 = vmul.f32 %v581, %v598
        %v609 = vmul.f32 %v582, %v598
        %v610 = vmul.f32 %v583, %v598
        %v611 = vmul.f32 %v584, %v598
        %v612 = vmul.f32 %v585, %v598
        %v613 = vmul.f32 %v586, %v598
        %v614 = vmul.f32 %v587, %v598
        %v615 = vmul.f32 %v588, %v598
        %v616 = vmul.f32 %v589, %v598
        %v617 = vmul.f32 %v590, %v598
        %v618 = vmul.f32 %v591, %v598
        %v619 = vmul.f32 %v592, %v598
        %v620 = vmul.f32 %v593, %v598
        %621 = vset.pattern.permute.xlu0 3
        %622 = vperm.xlu0 %621, %v594
        %v623 = vpop.permute.xlu0 %622
        %v625 = vadd.f32 %v600, %v623
        %v626 = vadd.f32 %v601, %v623
        %v627 = vadd.f32 %v602, %v623
        %v628 = vadd.f32 %v603, %v623
        %v629 = vadd.f32 %v604, %v623
        %v630 = vadd.f32 %v605, %v623
        %v631 = vadd.f32 %v606, %v623
        %v632 = vadd.f32 %v607, %v623
        %v633 = vadd.f32 %v608, %v623
        %v634 = vadd.f32 %v609, %v623
        %v635 = vadd.f32 %v610, %v623
        %v636 = vadd.f32 %v611, %v623
        %v637 = vadd.f32 %v612, %v623
        %v638 = vadd.f32 %v613, %v623
        %v639 = vadd.f32 %v614, %v623
        %v640 = vadd.f32 %v615, %v623
        %v641 = vadd.f32 %v616, %v623
        %v642 = vadd.f32 %v617, %v623
        %v643 = vadd.f32 %v618, %v623
        %v644 = vadd.f32 %v619, %v623
        %v645 = vadd.f32 %v620, %v623
        %646 = vst [vmem:[%s194] sm:$0xff] %v625
        %647 = vst [vmem:[%s194 + $0x8] sm:$0xff] %v626
        %648 = vst [vmem:[%s194 + $0x10] sm:$0xff] %v627
        %649 = vst [vmem:[%s194 + $0x18] sm:$0xff] %v628
        %650 = vst [vmem:[%s194 + $0x20] sm:$0xff] %v629
        %651 = vst [vmem:[%s194 + $0x28] sm:$0xff] %v630
        %652 = vst [vmem:[%s194 + $0x30] sm:$0xff] %v631
        %653 = vst [vmem:[%s194 + $0x38] sm:$0xff] %v632
        %654 = vst [vmem:[%s194 + $0x40] sm:$0xff] %v633
        %655 = vst [vmem:[%s194 + $0x48] sm:$0xff] %v634
        %656 = vst [vmem:[%s194 + $0x50] sm:$0xff] %v635
        %657 = vst [vmem:[%s194 + $0x58] sm:$0xff] %v636
        %658 = vst [vmem:[%s194 + $0x60] sm:$0xff] %v637
        %659 = vst [vmem:[%s194 + $0x68] sm:$0xff] %v638
        %660 = vst [vmem:[%s194 + $0x70] sm:$0xff] %v639
        %661 = vst [vmem:[%s194 + $0x78] sm:$0xff] %v640
        %662 = vst [vmem:[%s194 + $0x80] sm:$0xff] %v641
        %663 = vst [vmem:[%s194 + $0x88] sm:$0xff] %v642
        %664 = vst [vmem:[%s194 + $0x90] sm:$0xff] %v643
        %665 = vst [vmem:[%s194 + $0x98] sm:$0xff] %v644
        %vm666 = vcmask 80896
        %667 = vst.msk [vmem:[%s194 + $0xa0] sm:$0xff] %vm666, %v645
        %s668 = sand.u32 %s91, 1
        %s669 = scalar_lea.sflag [#allocation4], %s668
        %s670 = sand.u32 %s91, 1
        %s671 = smul.addr %s670, 168
        %s672 = scalar_lea.vmem [#allocation7], %s671
        // Predicated region
        $region37: #{_lambda_.5} parent=27 // pred_check
          %p673 = pneg %p101
        $region38: #{_lambda_.5} parent=27 // pred_check_branch
          %675 = sbr.rel (%p673) target = $region40
        $region39: #{_lambda_.5} parent=27 // pred_region
          %s677 = ssub.s32 2688, 2688
          %678 = vsyncadd %s669, %s677
          %s679 = smul.addr %s25, 21
          %s680 = smul.addr %s24, 21
          %s681 = sadd.s32 %s679, %s680
          %s682 = smul.addr %s681, 128
          %s683 = scalar_lea.hbm %s2, %s682
          %s685 = sshll.u32 %s672, 4
          %s686 = int_to_ptr.vmem [resolvable:$true] %s685
          %688 = dma.vmem_to_hbm [thread:$0]  %s686, 2688, %s683, %s669
        $region40: #{_lambda_.5} parent=27 // pred_fallthru
          _
      $region28: #{_lambda_.5} parent=5 // pred_fallthru
        _
      %p689 = scmp.le.s32.totalorder 2, %s15
      // Predicated region
      $region41: #{_lambda_.5} parent=5 // pred_check
        %p690 = pneg %p689
      $region42: #{_lambda_.5} parent=5 // pred_check_branch
        %692 = sbr.rel (%p690) target = $region44
      $region43: #{_lambda_.5} parent=5 // pred_region
        %s693 = ssub.s32 %s15, 2
        // Predicated region
        $region45: #{_lambda_.5} parent=43 // pred_check
          %p694 = pneg %p107
        $region46: #{_lambda_.5} parent=43 // pred_check_branch
          %696 = sbr.rel (%p694) target = $region48
        $region47: #{_lambda_.5} parent=43 // pred_region
          %s697 = sand.u32 %s92, 1
          %s698 = scalar_lea.sflag [#allocation4], %s697
          %s699 = sand.u32 %s92, 1
          %s700 = smul.addr %s699, 168
          %s701 = scalar_lea.vmem [#allocation7], %s700
          %702 = dma.done %s698, 2688
        $region48: #{_lambda_.5} parent=43 // pred_fallthru
          _
      $region44: #{_lambda_.5} parent=5 // pred_fallthru
        _
    $region6: #{_lambda_.5} parent=1 // loop_footer
      %s19 = sadd.s32 1, %s15
    $region7: #{_lambda_.5} parent=1 // loop_footer_branch
      %14 = sbr.rel target = $region3
    $region8: #{_lambda_.5} parent=1 // loop_exit
      _
    %703 = vsyncpa [#allocation3], 1
    %s704 = scalar_lea.sflag [#allocation3], 1
    %705 = vsyncpa %s704, 1
    %706 = vsyncpa [#allocation6], 1
    %707 = vsyncpa [#allocation4], 1
    %s708 = scalar_lea.sflag [#allocation4], 1
    %709 = vsyncpa %s708, 1

// kernel: _lambda_.3
$region0: #{_lambda_.3}
  #allocation0 [shape = 'u32[]', space=smem, size = 0x4, offset = 0x4, fixed_abs, tag = 'smem constant byte address 0x4 - core index']
  #allocation1 [shape = 'u32[144,128]{1,0:T(1,128)}', space=vmem, size = 0x12000, scoped, tag = 'internal scratch']
  %s0 = inlined_call_operand.hbm [shape: bf16[2,1,3260,12], index: 0, kind: input, shape index: {}]
  %s1 = inlined_call_operand.hbm [shape: bf16[9,108], index: 1, kind: input, shape index: {}]
  %s2 = inlined_call_operand.hbm [shape: f32[1,2570], index: 2, kind: input, shape index: {}]
  %s3 = inlined_call_operand.hbm [shape: bf16[2,1,9,2570], index: 3, kind: output, shape index: {0}]
  %s4 = inlined_call_operand.hbm [shape: f32[2,1,9,2], index: 4, kind: output, shape index: {1}]
  %5 = xla_tuple %s3, %s4
  %s6 = sld [smem:[#allocation0]]
  $region65: #{_lambda_.3} parent=0
    _
  %s8 = ssub.s32 1, %s6
  %s9 = scalar_select 0, %s8, %s6
  $region1: #{_lambda_.3} parent=0
    #allocation2 [shape = 'u8[1671168]{0}', space=vmem, size = 0x198000, scoped, tag = 'input window, operand 0']
    #allocation3 [shape = 's32[2]{0}', space=sflag, size = 0x8, scoped, tag = 'scoped memory for _lambda_.3']
    #allocation4 [shape = 's32[2]{0}', space=sflag, size = 0x8, scoped, tag = 'scoped memory for _lambda_.3']
    #allocation5 [shape = 'u8[4096]{0}', space=vmem, size = 0x1000, scoped, tag = 'input window, operand 1, single buffered']
    #allocation6 [shape = 's32[1]{0}', space=sflag, size = 0x4, scoped, tag = 'scoped memory for _lambda_.3']
    #allocation7 [shape = 'u8[10752]{0}', space=vmem, size = 0x2c00, scoped, tag = 'input window, operand 2, single buffered']
    #allocation8 [shape = 'u8[172032]{0}', space=vmem, size = 0x2a000, scoped, tag = 'output window, operand 0']
    #allocation9 [shape = 'u8[16384]{0}', space=vmem, size = 0x4000, scoped, tag = 'output window, operand 1']
    #allocation10 [shape = 's32[2]{0}', space=sflag, size = 0x8, scoped, tag = 'scoped memory for _lambda_.3']
    %10 = vsyncpa [#allocation3], 0
    %s11 = scalar_lea.sflag [#allocation3], 1
    %12 = vsyncpa %s11, 0
    %13 = vsyncpa [#allocation6], 0
    %14 = vsyncpa [#allocation4], 0
    %s15 = scalar_lea.sflag [#allocation4], 1
    %16 = vsyncpa %s15, 0
    %17 = vsyncpa [#allocation10], 0
    %s18 = scalar_lea.sflag [#allocation10], 1
    %19 = vsyncpa %s18, 0
    loop: start=0, step=1, limit=4
    $region2: #{_lambda_.3} parent=1 // loop_pre_header
      _
    $region3: #{_lambda_.3} parent=1 // loop_header
      %s21 = sphi 0, %s25
      %p22 = scmp.ge.s32.totalorder %s21, 4
      %s28 = sphi 0, %s40
      %s29 = sphi 0, %s36
      %s30 = sphi 0, %s28
      %s31 = sphi 0, %s29
      %s32 = sphi 0, %s30
      %s33 = sphi 0, %s31
      %s45 = sphi 0, %s47
      %s48 = sphi 0, %s45
      %s49 = sphi 0, %s48
      %s65 = sphi 0, %s49
      %s69 = sphi 0, %s69
      %s71 = sphi 0, %s69
      %s72 = sphi 0, %s71
      %s86 = sphi 0, %s72
      %s90 = sphi 0, %s90
      %s92 = sphi 0, %s90
      %s93 = sphi 0, %s92
      %s107 = sphi 0, %s93
      %s115 = sphi 0, %s117
      %s118 = sphi 0, %s115
      %s119 = sphi 0, %s118
      %s135 = sphi 0, %s119
      %s143 = sphi 0, %s145
      %s146 = sphi 0, %s143
      %s147 = sphi 0, %s146
      %s163 = sphi 0, %s147
    $region4: #{_lambda_.3} parent=1 // loop_header_branch
      %24 = sbr.rel (%p22) target = $region8
    $region5: #{_lambda_.3} parent=1 // loop_body
      %s26 = ssub.s32 %s21, 1
      %s27 = ssub.s32 %s21, 2
      %s34 = sadd.s32 1, %s29
      %p35 = scmp.ge.s32.totalorder %s34, 1
      %s36 = scalar_select %p35, 0, %s34
      %s37 = sadd.s32 1, %s28
      %s38 = scalar_select %p35, %s37, %s28
      %p39 = scmp.ge.s32.totalorder %s38, 2
      %s40 = scalar_select %p39, 0, %s38
      %s41 = ssub.s32 %s28, %s40
      %s42 = ssub.s32 %s29, %s36
      %s43 = sor.u32 %s41, %s42
      %p44 = scmp.eq.s32.totalorder %s43, 0
      %s46 = sadd.s32 %s45, 1
      %s47 = scalar_select %p44, %s45, %s46
      %p50 = pneg %p44
      %p51 = scmp.eq.s32.totalorder %s21, 1
      %p52 = por %p50, %p51
      %p53 = scmp.ne.s32.totalorder %s45, %s48
      %p54 = scmp.eq.s32.totalorder %s21, 0
      %p55 = por %p53, %p54
      %p56 = scmp.ne.s32.totalorder %s45, %s48
      %p57 = scmp.eq.s32.totalorder %s26, 1
      %p58 = por %p56, %p57
      %p59 = scmp.ne.s32.totalorder %s48, %s49
      %p60 = scmp.eq.s32.totalorder %s26, 0
      %p61 = por %p59, %p60
      %p62 = scmp.ne.s32.totalorder %s48, %s49
      %p63 = scmp.eq.s32.totalorder %s27, 1
      %p64 = por %p62, %p63
      %p66 = scmp.ne.s32.totalorder %s49, %s65
      %p67 = scmp.eq.s32.totalorder %s27, 0
      %p68 = por %p66, %p67
      %s70 = sadd.s32 %s69, 1
      %p73 = scmp.eq.s32.totalorder %s21, 1
      %p74 = scmp.ne.s32.totalorder %s69, %s71
      %p75 = scmp.eq.s32.totalorder %s21, 0
      %p76 = por %p74, %p75
      %p77 = scmp.ne.s32.totalorder %s69, %s71
      %p78 = scmp.eq.s32.totalorder %s26, 1
      %p79 = por %p77, %p78
      %p80 = scmp.ne.s32.totalorder %s71, %s72
      %p81 = scmp.eq.s32.totalorder %s26, 0
      %p82 = por %p80, %p81
      %p83 = scmp.ne.s32.totalorder %s71, %s72
      %p84 = scmp.eq.s32.totalorder %s27, 1
      %p85 = por %p83, %p84
      %p87 = scmp.ne.s32.totalorder %s72, %s86
      %p88 = scmp.eq.s32.totalorder %s27, 0
      %p89 = por %p87, %p88
      %s91 = sadd.s32 %s90, 1
      %p94 = scmp.eq.s32.totalorder %s21, 1
      %p95 = scmp.ne.s32.totalorder %s90, %s92
      %p96 = scmp.eq.s32.totalorder %s21, 0
      %p97 = por %p95, %p96
      %p98 = scmp.ne.s32.totalorder %s90, %s92
      %p99 = scmp.eq.s32.totalorder %s26, 1
      %p100 = por %p98, %p99
      %p101 = scmp.ne.s32.totalorder %s92, %s93
      %p102 = scmp.eq.s32.totalorder %s26, 0
      %p103 = por %p101, %p102
      %p104 = scmp.ne.s32.totalorder %s92, %s93
      %p105 = scmp.eq.s32.totalorder %s27, 1
      %p106 = por %p104, %p105
      %p108 = scmp.ne.s32.totalorder %s93, %s107
      %p109 = scmp.eq.s32.totalorder %s27, 0
      %p110 = por %p108, %p109
      %s111 = ssub.s32 %s28, %s40
      %s112 = ssub.s32 %s29, %s36
      %s113 = sor.u32 %s111, %s112
      %p114 = scmp.eq.s32.totalorder %s113, 0
      %s116 = sadd.s32 %s115, 1
      %s117 = scalar_select %p114, %s115, %s116
      %p120 = pneg %p114
      %p121 = scmp.eq.s32.totalorder %s21, 1
      %p122 = por %p120, %p121
      %p123 = scmp.ne.s32.totalorder %s115, %s118
      %p124 = scmp.eq.s32.totalorder %s21, 0
      %p125 = por %p123, %p124
      %p126 = scmp.ne.s32.totalorder %s115, %s118
      %p127 = scmp.eq.s32.totalorder %s26, 1
      %p128 = por %p126, %p127
      %p129 = scmp.ne.s32.totalorder %s118, %s119
      %p130 = scmp.eq.s32.totalorder %s26, 0
      %p131 = por %p129, %p130
      %p132 = scmp.ne.s32.totalorder %s118, %s119
      %p133 = scmp.eq.s32.totalorder %s27, 1
      %p134 = por %p132, %p133
      %p136 = scmp.ne.s32.totalorder %s119, %s135
      %p137 = scmp.eq.s32.totalorder %s27, 0
      %p138 = por %p136, %p137
      %s139 = ssub.s32 %s28, %s40
      %s140 = ssub.s32 %s29, %s36
      %s141 = sor.u32 %s139, %s140
      %p142 = scmp.eq.s32.totalorder %s141, 0
      %s144 = sadd.s32 %s143, 1
      %s145 = scalar_select %p142, %s143, %s144
      %p148 = pneg %p142
      %p149 = scmp.eq.s32.totalorder %s21, 1
      %p150 = por %p148, %p149
      %p151 = scmp.ne.s32.totalorder %s143, %s146
      %p152 = scmp.eq.s32.totalorder %s21, 0
      %p153 = por %p151, %p152
      %p154 = scmp.ne.s32.totalorder %s143, %s146
      %p155 = scmp.eq.s32.totalorder %s26, 1
      %p156 = por %p154, %p155
      %p157 = scmp.ne.s32.totalorder %s146, %s147
      %p158 = scmp.eq.s32.totalorder %s26, 0
      %p159 = por %p157, %p158
      %p160 = scmp.ne.s32.totalorder %s146, %s147
      %p161 = scmp.eq.s32.totalorder %s27, 1
      %p162 = por %p160, %p161
      %p164 = scmp.ne.s32.totalorder %s147, %s163
      %p165 = scmp.eq.s32.totalorder %s27, 0
      %p166 = por %p164, %p165
      %p167 = scmp.le.s32.totalorder 1, %s21
      %p168 = scmp.lt.s32.totalorder %s21, 3
      %p169 = pnand %p167, %p168
      %p170 = pneg %p169
      // Predicated region
      $region9: #{_lambda_.3} parent=5 // pred_check
        _
      $region10: #{_lambda_.3} parent=5 // pred_check_branch
        %172 = sbr.rel (%p169) target = $region12
      $region11: #{_lambda_.3} parent=5 // pred_region
        %s173 = ssub.s32 %s21, 1
        // Predicated region
        $region13: #{_lambda_.3} parent=11 // pred_check
          %p174 = pneg %p82
        $region14: #{_lambda_.3} parent=11 // pred_check_branch
          %176 = sbr.rel (%p174) target = $region16
        $region15: #{_lambda_.3} parent=11 // pred_region
          %s178 = ssub.s32 128, 128
          %179 = vsyncadd [#allocation6], %s178
          %s180 = sshll.u32 [#allocation5], 4
          %s181 = int_to_ptr.vmem [resolvable:$true] %s180
          %186 = dma.hbm_to_vmem [thread:$0]  %s1, 128, %s181, [#allocation6], 64, 64, 4
        $region16: #{_lambda_.3} parent=11 // pred_fallthru
          _
        // Predicated region
        $region17: #{_lambda_.3} parent=11 // pred_check
          %p187 = pneg %p103
        $region18: #{_lambda_.3} parent=11 // pred_check_branch
          %189 = sbr.rel (%p187) target = $region20
        $region19: #{_lambda_.3} parent=11 // pred_region
          %s191 = ssub.s32 336, 336
          %192 = vsyncadd [#allocation6], %s191
          %s194 = sshll.u32 [#allocation7], 4
          %s195 = int_to_ptr.vmem [resolvable:$true] %s194
          %197 = dma.hbm_to_vmem [thread:$0]  %s2, 336, %s195, [#allocation6]
        $region20: #{_lambda_.3} parent=11 // pred_fallthru
          _
      $region12: #{_lambda_.3} parent=5 // pred_fallthru
        _
      %p198 = scmp.lt.s32.totalorder %s21, 2
      // Predicated region
      $region21: #{_lambda_.3} parent=5 // pred_check
        %p199 = pneg %p198
      $region22: #{_lambda_.3} parent=5 // pred_check_branch
        %201 = sbr.rel (%p199) target = $region24
      $region23: #{_lambda_.3} parent=5 // pred_region
        // Predicated region
        $region25: #{_lambda_.3} parent=23 // pred_check
          %p202 = pneg %p55
        $region26: #{_lambda_.3} parent=23 // pred_check_branch
          %204 = sbr.rel (%p202) target = $region28
        $region27: #{_lambda_.3} parent=23 // pred_region
          %s205 = sand.u32 %s45, 1
          %s206 = scalar_lea.sflag [#allocation3], %s205
          %s207 = sand.u32 %s45, 1
          %s208 = smul.addr %s207, 1632
          %s209 = scalar_lea.vmem [#allocation2], %s208
          %s211 = ssub.s32 26112, 26112
          %212 = vsyncadd %s206, %s211
          %s213 = smul.addr %s29, 408
          %s214 = smul.addr %s28, 408
          %s215 = sadd.s32 %s213, %s214
          %s216 = smul.addr %s215, 64
          %s217 = scalar_lea.hbm %s0, %s216
          %s218 = sshll.u32 %s209, 4
          %s219 = int_to_ptr.vmem [resolvable:$true] %s218
          %224 = dma.hbm_to_vmem [thread:$0]  %s217, 26112, %s219, %s206, 64, 64, 4
        $region28: #{_lambda_.3} parent=23 // pred_fallthru
          _
      $region24: #{_lambda_.3} parent=5 // pred_fallthru
        _
      %p225 = scmp.le.s32.totalorder 1, %s21
      %p226 = scmp.lt.s32.totalorder %s21, 3
      %p227 = pnand %p225, %p226
      %p228 = pneg %p227
      // Predicated region
      $region29: #{_lambda_.3} parent=5 // pred_check
        _
      $region30: #{_lambda_.3} parent=5 // pred_check_branch
        %230 = sbr.rel (%p227) target = $region32
      $region31: #{_lambda_.3} parent=5 // pred_region
        %s231 = ssub.s32 %s21, 1
        %s232 = sand.u32 %s48, 1
        %s233 = scalar_lea.sflag [#allocation3], %s232
        %s234 = sand.u32 %s48, 1
        %s235 = smul.addr %s234, 1632
        %s236 = scalar_lea.vmem [#allocation2], %s235
        // Predicated region
        $region33: #{_lambda_.3} parent=31 // pred_check
          %p237 = pneg %p61
        $region34: #{_lambda_.3} parent=31 // pred_check_branch
          %239 = sbr.rel (%p237) target = $region36
        $region35: #{_lambda_.3} parent=31 // pred_region
          %240 = dma.done %s233, 26112
        $region36: #{_lambda_.3} parent=31 // pred_fallthru
          _
        // Predicated region
        $region37: #{_lambda_.3} parent=31 // pred_check
          %p241 = pneg %p82
        $region38: #{_lambda_.3} parent=31 // pred_check_branch
          %243 = sbr.rel (%p241) target = $region40
        $region39: #{_lambda_.3} parent=31 // pred_region
          %244 = dma.done [#allocation6], 128
        $region40: #{_lambda_.3} parent=31 // pred_fallthru
          _
        // Predicated region
        $region41: #{_lambda_.3} parent=31 // pred_check
          %p245 = pneg %p103
        $region42: #{_lambda_.3} parent=31 // pred_check_branch
          %247 = sbr.rel (%p245) target = $region44
        $region43: #{_lambda_.3} parent=31 // pred_region
          %248 = dma.done [#allocation6], 336
        $region44: #{_lambda_.3} parent=31 // pred_fallthru
          _
        %s249 = sand.u32 %s48, 1
        %s250 = scalar_lea.sflag [#allocation3], %s249
        %s251 = sand.u32 %s48, 1
        %s252 = smul.addr %s251, 1632
        %s253 = scalar_lea.vmem [#allocation2], %s252
        %p254 = pneg %p61
        %p255 = pneg %p58
        %p256 = pneg %p82
        %p257 = pneg %p79
        %p258 = pneg %p103
        %p259 = pneg %p100
        %p260 = pneg %p131
        %p261 = pneg %p128
        %s262 = sand.u32 %s118, 1
        %s263 = scalar_lea.sflag [#allocation4], %s262
        %s264 = sand.u32 %s118, 1
        %s265 = smul.addr %s264, 168
        %s266 = scalar_lea.vmem [#allocation8], %s265
        %p267 = pneg %p159
        %p268 = pneg %p156
        %s269 = sand.u32 %s146, 1
        %s270 = scalar_lea.sflag [#allocation10], %s269
        %s271 = sand.u32 %s146, 1
        %s272 = smul.addr %s271, 16
        %s273 = scalar_lea.vmem [#allocation9], %s272
        %v275 = vld [vmem:[%s236] sm:$0xf]
        %v276 = vld [vmem:[%s236 + $0x4] sm:$0xf]
        %v277 = vld [vmem:[%s236 + $0x8] sm:$0xf]
        %v278 = vld [vmem:[%s236 + $0xc] sm:$0xf]
        %v279 = vld [vmem:[%s236 + $0x10] sm:$0xf]
        %v280 = vld [vmem:[%s236 + $0x14] sm:$0xf]
        %v281 = vld [vmem:[%s236 + $0x18] sm:$0xf]
        %v282 = vld [vmem:[%s236 + $0x1c] sm:$0xf]
        %v283 = vld [vmem:[%s236 + $0x20] sm:$0xf]
        %v284 = vld [vmem:[%s236 + $0x24] sm:$0xf]
        %v285 = vld [vmem:[%s236 + $0x28] sm:$0xf]
        %v286 = vld [vmem:[%s236 + $0x2c] sm:$0xf]
        %v287 = vld [vmem:[%s236 + $0x30] sm:$0xf]
        %v288 = vld [vmem:[%s236 + $0x34] sm:$0xf]
        %v289 = vld [vmem:[%s236 + $0x38] sm:$0xf]
        %v290 = vld [vmem:[%s236 + $0x3c] sm:$0xf]
        %v291 = vld [vmem:[%s236 + $0x40] sm:$0xf]
        %v292 = vld [vmem:[%s236 + $0x44] sm:$0xf]
        %v293 = vld [vmem:[%s236 + $0x48] sm:$0xf]
        %v294 = vld [vmem:[%s236 + $0x4c] sm:$0xf]
        %v295 = vld [vmem:[%s236 + $0x50] sm:$0xf]
        %v296 = vld [vmem:[%s236 + $0x54] sm:$0xf]
        %v297 = vld [vmem:[%s236 + $0x58] sm:$0xf]
        %v298 = vld [vmem:[%s236 + $0x5c] sm:$0xf]
        %v299 = vld [vmem:[%s236 + $0x60] sm:$0xf]
        %v300 = vld [vmem:[%s236 + $0x64] sm:$0xf]
        %v301 = vld [vmem:[%s236 + $0x68] sm:$0xf]
        %v302 = vld [vmem:[%s236 + $0x6c] sm:$0xf]
        %v303 = vld [vmem:[%s236 + $0x70] sm:$0xf]
        %v304 = vld [vmem:[%s236 + $0x74] sm:$0xf]
        %v305 = vld [vmem:[%s236 + $0x78] sm:$0xf]
        %v306 = vld [vmem:[%s236 + $0x7c] sm:$0xf]
        %v307 = vld [vmem:[%s236 + $0x80] sm:$0xf]
        %v308 = vld [vmem:[%s236 + $0x84] sm:$0xf]
        %v309 = vld [vmem:[%s236 + $0x88] sm:$0xf]
        %v310 = vld [vmem:[%s236 + $0x8c] sm:$0xf]
        %v311 = vld [vmem:[%s236 + $0x90] sm:$0xf]
        %v312 = vld [vmem:[%s236 + $0x94] sm:$0xf]
        %v313 = vld [vmem:[%s236 + $0x98] sm:$0xf]
        %v314 = vld [vmem:[%s236 + $0x9c] sm:$0xf]
        %v315 = vld [vmem:[%s236 + $0xa0] sm:$0xf]
        %v316 = vld [vmem:[%s236 + $0xa4] sm:$0xf]
        %v317 = vld [vmem:[%s236 + $0xa8] sm:$0xf]
        %v318 = vld [vmem:[%s236 + $0xac] sm:$0xf]
        %v319 = vld [vmem:[%s236 + $0xb0] sm:$0xf]
        %v320 = vld [vmem:[%s236 + $0xb4] sm:$0xf]
        %v321 = vld [vmem:[%s236 + $0xb8] sm:$0xf]
        %v322 = vld [vmem:[%s236 + $0xbc] sm:$0xf]
        %v323 = vld [vmem:[%s236 + $0xc0] sm:$0xf]
        %v324 = vld [vmem:[%s236 + $0xc4] sm:$0xf]
        %v325 = vld [vmem:[%s236 + $0xc8] sm:$0xf]
        %v326 = vld [vmem:[%s236 + $0xcc] sm:$0xf]
        %v327 = vld [vmem:[%s236 + $0xd0] sm:$0xf]
        %v328 = vld [vmem:[%s236 + $0xd4] sm:$0xf]
        %v329 = vld [vmem:[%s236 + $0xd8] sm:$0xf]
        %v330 = vld [vmem:[%s236 + $0xdc] sm:$0xf]
        %v331 = vld [vmem:[%s236 + $0xe0] sm:$0xf]
        %v332 = vld [vmem:[%s236 + $0xe4] sm:$0xf]
        %v333 = vld [vmem:[%s236 + $0xe8] sm:$0xf]
        %v334 = vld [vmem:[%s236 + $0xec] sm:$0xf]
        %v335 = vld [vmem:[%s236 + $0xf0] sm:$0xf]
        %v336 = vld [vmem:[%s236 + $0xf4] sm:$0xf]
        %v337 = vld [vmem:[%s236 + $0xf8] sm:$0xf]
        %v338 = vld [vmem:[%s236 + $0xfc] sm:$0xf]
        %v339 = vld [vmem:[%s236 + $0x100] sm:$0xf]
        %v340 = vld [vmem:[%s236 + $0x104] sm:$0xf]
        %v341 = vld [vmem:[%s236 + $0x108] sm:$0xf]
        %v342 = vld [vmem:[%s236 + $0x10c] sm:$0xf]
        %v343 = vld [vmem:[%s236 + $0x110] sm:$0xf]
        %v344 = vld [vmem:[%s236 + $0x114] sm:$0xf]
        %v345 = vld [vmem:[%s236 + $0x118] sm:$0xf]
        %v346 = vld [vmem:[%s236 + $0x11c] sm:$0xf]
        %v347 = vld [vmem:[%s236 + $0x120] sm:$0xf]
        %v348 = vld [vmem:[%s236 + $0x124] sm:$0xf]
        %v349 = vld [vmem:[%s236 + $0x128] sm:$0xf]
        %v350 = vld [vmem:[%s236 + $0x12c] sm:$0xf]
        %v351 = vld [vmem:[%s236 + $0x130] sm:$0xf]
        %v352 = vld [vmem:[%s236 + $0x134] sm:$0xf]
        %v353 = vld [vmem:[%s236 + $0x138] sm:$0xf]
        %v354 = vld [vmem:[%s236 + $0x13c] sm:$0xf]
        %v355 = vld [vmem:[%s236 + $0x140] sm:$0xf]
        %v356 = vld [vmem:[%s236 + $0x144] sm:$0xf]
        %v357 = vld [vmem:[%s236 + $0x148] sm:$0xf]
        %v358 = vld [vmem:[%s236 + $0x14c] sm:$0xf]
        %v359 = vld [vmem:[%s236 + $0x150] sm:$0xf]
        %v360 = vld [vmem:[%s236 + $0x154] sm:$0xf]
        %v361 = vld [vmem:[%s236 + $0x158] sm:$0xf]
        %v362 = vld [vmem:[%s236 + $0x15c] sm:$0xf]
        %v363 = vld [vmem:[%s236 + $0x160] sm:$0xf]
        %v364 = vld [vmem:[%s236 + $0x164] sm:$0xf]
        %v365 = vld [vmem:[%s236 + $0x168] sm:$0xf]
        %v366 = vld [vmem:[%s236 + $0x16c] sm:$0xf]
        %v367 = vld [vmem:[%s236 + $0x170] sm:$0xf]
        %v368 = vld [vmem:[%s236 + $0x174] sm:$0xf]
        %v369 = vld [vmem:[%s236 + $0x178] sm:$0xf]
        %v370 = vld [vmem:[%s236 + $0x17c] sm:$0xf]
        %v371 = vld [vmem:[%s236 + $0x180] sm:$0xf]
        %v372 = vld [vmem:[%s236 + $0x184] sm:$0xf]
        %v373 = vld [vmem:[%s236 + $0x188] sm:$0xf]
        %v374 = vld [vmem:[%s236 + $0x18c] sm:$0xf]
        %v375 = vld [vmem:[%s236 + $0x190] sm:$0xf]
        %v376 = vld [vmem:[%s236 + $0x194] sm:$0xf]
        %v377 = vld [vmem:[%s236 + $0x198] sm:$0xf]
        %v378 = vld [vmem:[%s236 + $0x19c] sm:$0xf]
        %v379 = vld [vmem:[%s236 + $0x1a0] sm:$0xf]
        %v380 = vld [vmem:[%s236 + $0x1a4] sm:$0xf]
        %v381 = vld [vmem:[%s236 + $0x1a8] sm:$0xf]
        %v382 = vld [vmem:[%s236 + $0x1ac] sm:$0xf]
        %v383 = vld [vmem:[%s236 + $0x1b0] sm:$0xf]
        %v384 = vld [vmem:[%s236 + $0x1b4] sm:$0xf]
        %v385 = vld [vmem:[%s236 + $0x1b8] sm:$0xf]
        %v386 = vld [vmem:[%s236 + $0x1bc] sm:$0xf]
        %v387 = vld [vmem:[%s236 + $0x1c0] sm:$0xf]
        %v388 = vld [vmem:[%s236 + $0x1c4] sm:$0xf]
        %v389 = vld [vmem:[%s236 + $0x1c8] sm:$0xf]
        %v390 = vld [vmem:[%s236 + $0x1cc] sm:$0xf]
        %v391 = vld [vmem:[%s236 + $0x1d0] sm:$0xf]
        %v392 = vld [vmem:[%s236 + $0x1d4] sm:$0xf]
        %v393 = vld [vmem:[%s236 + $0x1d8] sm:$0xf]
        %v394 = vld [vmem:[%s236 + $0x1dc] sm:$0xf]
        %v395 = vld [vmem:[%s236 + $0x1e0] sm:$0xf]
        %v396 = vld [vmem:[%s236 + $0x1e4] sm:$0xf]
        %v397 = vld [vmem:[%s236 + $0x1e8] sm:$0xf]
        %v398 = vld [vmem:[%s236 + $0x1ec] sm:$0xf]
        %v399 = vld [vmem:[%s236 + $0x1f0] sm:$0xf]
        %v400 = vld [vmem:[%s236 + $0x1f4] sm:$0xf]
        %v401 = vld [vmem:[%s236 + $0x1f8] sm:$0xf]
        %v402 = vld [vmem:[%s236 + $0x1fc] sm:$0xf]
        %v403 = vld [vmem:[%s236 + $0x200] sm:$0xf]
        %v404 = vld [vmem:[%s236 + $0x204] sm:$0xf]
        %v405 = vld [vmem:[%s236 + $0x208] sm:$0xf]
        %v406 = vld [vmem:[%s236 + $0x20c] sm:$0xf]
        %v407 = vld [vmem:[%s236 + $0x210] sm:$0xf]
        %v408 = vld [vmem:[%s236 + $0x214] sm:$0xf]
        %v409 = vld [vmem:[%s236 + $0x218] sm:$0xf]
        %v410 = vld [vmem:[%s236 + $0x21c] sm:$0xf]
        %v411 = vld [vmem:[%s236 + $0x220] sm:$0xf]
        %v412 = vld [vmem:[%s236 + $0x224] sm:$0xf]
        %v413 = vld [vmem:[%s236 + $0x228] sm:$0xf]
        %v414 = vld [vmem:[%s236 + $0x22c] sm:$0xf]
        %v415 = vld [vmem:[%s236 + $0x230] sm:$0xf]
        %v416 = vld [vmem:[%s236 + $0x234] sm:$0xf]
        %v417 = vld [vmem:[%s236 + $0x238] sm:$0xf]
        %v418 = vld [vmem:[%s236 + $0x23c] sm:$0xf]
        %v419 = vld [vmem:[%s236 + $0x240] sm:$0xf]
        %v420 = vld [vmem:[%s236 + $0x244] sm:$0xf]
        %v421 = vld [vmem:[%s236 + $0x248] sm:$0xf]
        %v422 = vld [vmem:[%s236 + $0x24c] sm:$0xf]
        %v423 = vld [vmem:[%s236 + $0x250] sm:$0xf]
        %v424 = vld [vmem:[%s236 + $0x254] sm:$0xf]
        %v425 = vld [vmem:[%s236 + $0x258] sm:$0xf]
        %v426 = vld [vmem:[%s236 + $0x25c] sm:$0xf]
        %v427 = vld [vmem:[%s236 + $0x260] sm:$0xf]
        %v428 = vld [vmem:[%s236 + $0x264] sm:$0xf]
        %v429 = vld [vmem:[%s236 + $0x268] sm:$0xf]
        %v430 = vld [vmem:[%s236 + $0x26c] sm:$0xf]
        %v431 = vld [vmem:[%s236 + $0x270] sm:$0xf]
        %v432 = vld [vmem:[%s236 + $0x274] sm:$0xf]
        %v433 = vld [vmem:[%s236 + $0x278] sm:$0xf]
        %v434 = vld [vmem:[%s236 + $0x27c] sm:$0xf]
        %v435 = vld [vmem:[%s236 + $0x280] sm:$0xf]
        %v436 = vld [vmem:[%s236 + $0x284] sm:$0xf]
        %v437 = vld [vmem:[%s236 + $0x288] sm:$0xf]
        %v438 = vld [vmem:[%s236 + $0x28c] sm:$0xf]
        %v439 = vld [vmem:[%s236 + $0x290] sm:$0xf]
        %v440 = vld [vmem:[%s236 + $0x294] sm:$0xf]
        %v441 = vld [vmem:[%s236 + $0x298] sm:$0xf]
        %v442 = vld [vmem:[%s236 + $0x29c] sm:$0xf]
        %v443 = vld [vmem:[%s236 + $0x2a0] sm:$0xf]
        %v444 = vld [vmem:[%s236 + $0x2a4] sm:$0xf]
        %v445 = vld [vmem:[%s236 + $0x2a8] sm:$0xf]
        %v446 = vld [vmem:[%s236 + $0x2ac] sm:$0xf]
        %v447 = vld [vmem:[%s236 + $0x2b0] sm:$0xf]
        %v448 = vld [vmem:[%s236 + $0x2b4] sm:$0xf]
        %v449 = vld [vmem:[%s236 + $0x2b8] sm:$0xf]
        %v450 = vld [vmem:[%s236 + $0x2bc] sm:$0xf]
        %v451 = vld [vmem:[%s236 + $0x2c0] sm:$0xf]
        %v452 = vld [vmem:[%s236 + $0x2c4] sm:$0xf]
        %v453 = vld [vmem:[%s236 + $0x2c8] sm:$0xf]
        %v454 = vld [vmem:[%s236 + $0x2cc] sm:$0xf]
        %v455 = vld [vmem:[%s236 + $0x2d0] sm:$0xf]
        %v456 = vld [vmem:[%s236 + $0x2d4] sm:$0xf]
        %v457 = vld [vmem:[%s236 + $0x2d8] sm:$0xf]
        %v458 = vld [vmem:[%s236 + $0x2dc] sm:$0xf]
        %v459 = vld [vmem:[%s236 + $0x2e0] sm:$0xf]
        %v460 = vld [vmem:[%s236 + $0x2e4] sm:$0xf]
        %v461 = vld [vmem:[%s236 + $0x2e8] sm:$0xf]
        %v462 = vld [vmem:[%s236 + $0x2ec] sm:$0xf]
        %v463 = vld [vmem:[%s236 + $0x2f0] sm:$0xf]
        %v464 = vld [vmem:[%s236 + $0x2f4] sm:$0xf]
        %v465 = vld [vmem:[%s236 + $0x2f8] sm:$0xf]
        %v466 = vld [vmem:[%s236 + $0x2fc] sm:$0xf]
        %v467 = vld [vmem:[%s236 + $0x300] sm:$0xf]
        %v468 = vld [vmem:[%s236 + $0x304] sm:$0xf]
        %v469 = vld [vmem:[%s236 + $0x308] sm:$0xf]
        %v470 = vld [vmem:[%s236 + $0x30c] sm:$0xf]
        %v471 = vld [vmem:[%s236 + $0x310] sm:$0xf]
        %v472 = vld [vmem:[%s236 + $0x314] sm:$0xf]
        %v473 = vld [vmem:[%s236 + $0x318] sm:$0xf]
        %v474 = vld [vmem:[%s236 + $0x31c] sm:$0xf]
        %v475 = vld [vmem:[%s236 + $0x320] sm:$0xf]
        %v476 = vld [vmem:[%s236 + $0x324] sm:$0xf]
        %v477 = vld [vmem:[%s236 + $0x328] sm:$0xf]
        %v478 = vld [vmem:[%s236 + $0x32c] sm:$0xf]
        %v479 = vld [vmem:[%s236 + $0x330] sm:$0xf]
        %v480 = vld [vmem:[%s236 + $0x334] sm:$0xf]
        %v481 = vld [vmem:[%s236 + $0x338] sm:$0xf]
        %v482 = vld [vmem:[%s236 + $0x33c] sm:$0xf]
        %v483 = vld [vmem:[%s236 + $0x340] sm:$0xf]
        %v484 = vld [vmem:[%s236 + $0x344] sm:$0xf]
        %v485 = vld [vmem:[%s236 + $0x348] sm:$0xf]
        %v486 = vld [vmem:[%s236 + $0x34c] sm:$0xf]
        %v487 = vld [vmem:[%s236 + $0x350] sm:$0xf]
        %v488 = vld [vmem:[%s236 + $0x354] sm:$0xf]
        %v489 = vld [vmem:[%s236 + $0x358] sm:$0xf]
        %v490 = vld [vmem:[%s236 + $0x35c] sm:$0xf]
        %v491 = vld [vmem:[%s236 + $0x360] sm:$0xf]
        %v492 = vld [vmem:[%s236 + $0x364] sm:$0xf]
        %v493 = vld [vmem:[%s236 + $0x368] sm:$0xf]
        %v494 = vld [vmem:[%s236 + $0x36c] sm:$0xf]
        %v495 = vld [vmem:[%s236 + $0x370] sm:$0xf]
        %v496 = vld [vmem:[%s236 + $0x374] sm:$0xf]
        %v497 = vld [vmem:[%s236 + $0x378] sm:$0xf]
        %v498 = vld [vmem:[%s236 + $0x37c] sm:$0xf]
        %v499 = vld [vmem:[%s236 + $0x380] sm:$0xf]
        %v500 = vld [vmem:[%s236 + $0x384] sm:$0xf]
        %v501 = vld [vmem:[%s236 + $0x388] sm:$0xf]
        %v502 = vld [vmem:[%s236 + $0x38c] sm:$0xf]
        %v503 = vld [vmem:[%s236 + $0x390] sm:$0xf]
        %v504 = vld [vmem:[%s236 + $0x394] sm:$0xf]
        %v505 = vld [vmem:[%s236 + $0x398] sm:$0xf]
        %v506 = vld [vmem:[%s236 + $0x39c] sm:$0xf]
        %v507 = vld [vmem:[%s236 + $0x3a0] sm:$0xf]
        %v508 = vld [vmem:[%s236 + $0x3a4] sm:$0xf]
        %v509 = vld [vmem:[%s236 + $0x3a8] sm:$0xf]
        %v510 = vld [vmem:[%s236 + $0x3ac] sm:$0xf]
        %v511 = vld [vmem:[%s236 + $0x3b0] sm:$0xf]
        %v512 = vld [vmem:[%s236 + $0x3b4] sm:$0xf]
        %v513 = vld [vmem:[%s236 + $0x3b8] sm:$0xf]
        %v514 = vld [vmem:[%s236 + $0x3bc] sm:$0xf]
        %v515 = vld [vmem:[%s236 + $0x3c0] sm:$0xf]
        %v516 = vld [vmem:[%s236 + $0x3c4] sm:$0xf]
        %v517 = vld [vmem:[%s236 + $0x3c8] sm:$0xf]
        %v518 = vld [vmem:[%s236 + $0x3cc] sm:$0xf]
        %v519 = vld [vmem:[%s236 + $0x3d0] sm:$0xf]
        %v520 = vld [vmem:[%s236 + $0x3d4] sm:$0xf]
        %v521 = vld [vmem:[%s236 + $0x3d8] sm:$0xf]
        %v522 = vld [vmem:[%s236 + $0x3dc] sm:$0xf]
        %v523 = vld [vmem:[%s236 + $0x3e0] sm:$0xf]
        %v524 = vld [vmem:[%s236 + $0x3e4] sm:$0xf]
        %v525 = vld [vmem:[%s236 + $0x3e8] sm:$0xf]
        %v526 = vld [vmem:[%s236 + $0x3ec] sm:$0xf]
        %v527 = vld [vmem:[%s236 + $0x3f0] sm:$0xf]
        %v528 = vld [vmem:[%s236 + $0x3f4] sm:$0xf]
        %v529 = vld [vmem:[%s236 + $0x3f8] sm:$0xf]
        %v530 = vld [vmem:[%s236 + $0x3fc] sm:$0xf]
        %v531 = vld [vmem:[%s236 + $0x400] sm:$0xf]
        %v532 = vld [vmem:[%s236 + $0x404] sm:$0xf]
        %v533 = vld [vmem:[%s236 + $0x408] sm:$0xf]
        %v534 = vld [vmem:[%s236 + $0x40c] sm:$0xf]
        %v535 = vld [vmem:[%s236 + $0x410] sm:$0xf]
        %v536 = vld [vmem:[%s236 + $0x414] sm:$0xf]
        %v537 = vld [vmem:[%s236 + $0x418] sm:$0xf]
        %v538 = vld [vmem:[%s236 + $0x41c] sm:$0xf]
        %v539 = vld [vmem:[%s236 + $0x420] sm:$0xf]
        %v540 = vld [vmem:[%s236 + $0x424] sm:$0xf]
        %v541 = vld [vmem:[%s236 + $0x428] sm:$0xf]
        %v542 = vld [vmem:[%s236 + $0x42c] sm:$0xf]
        %v543 = vld [vmem:[%s236 + $0x430] sm:$0xf]
        %v544 = vld [vmem:[%s236 + $0x434] sm:$0xf]
        %v545 = vld [vmem:[%s236 + $0x438] sm:$0xf]
        %v546 = vld [vmem:[%s236 + $0x43c] sm:$0xf]
        %v547 = vld [vmem:[%s236 + $0x440] sm:$0xf]
        %v548 = vld [vmem:[%s236 + $0x444] sm:$0xf]
        %v549 = vld [vmem:[%s236 + $0x448] sm:$0xf]
        %v550 = vld [vmem:[%s236 + $0x44c] sm:$0xf]
        %v551 = vld [vmem:[%s236 + $0x450] sm:$0xf]
        %v552 = vld [vmem:[%s236 + $0x454] sm:$0xf]
        %v553 = vld [vmem:[%s236 + $0x458] sm:$0xf]
        %v554 = vld [vmem:[%s236 + $0x45c] sm:$0xf]
        %v555 = vld [vmem:[%s236 + $0x460] sm:$0xf]
        %v556 = vld [vmem:[%s236 + $0x464] sm:$0xf]
        %v557 = vld [vmem:[%s236 + $0x468] sm:$0xf]
        %v558 = vld [vmem:[%s236 + $0x46c] sm:$0xf]
        %v559 = vld [vmem:[%s236 + $0x470] sm:$0xf]
        %v560 = vld [vmem:[%s236 + $0x474] sm:$0xf]
        %v561 = vld [vmem:[%s236 + $0x478] sm:$0xf]
        %v562 = vld [vmem:[%s236 + $0x47c] sm:$0xf]
        %v563 = vld [vmem:[%s236 + $0x480] sm:$0xf]
        %v564 = vld [vmem:[%s236 + $0x484] sm:$0xf]
        %v565 = vld [vmem:[%s236 + $0x488] sm:$0xf]
        %v566 = vld [vmem:[%s236 + $0x48c] sm:$0xf]
        %v567 = vld [vmem:[%s236 + $0x490] sm:$0xf]
        %v568 = vld [vmem:[%s236 + $0x494] sm:$0xf]
        %v569 = vld [vmem:[%s236 + $0x498] sm:$0xf]
        %v570 = vld [vmem:[%s236 + $0x49c] sm:$0xf]
        %v571 = vld [vmem:[%s236 + $0x4a0] sm:$0xf]
        %v572 = vld [vmem:[%s236 + $0x4a4] sm:$0xf]
        %v573 = vld [vmem:[%s236 + $0x4a8] sm:$0xf]
        %v574 = vld [vmem:[%s236 + $0x4ac] sm:$0xf]
        %v575 = vld [vmem:[%s236 + $0x4b0] sm:$0xf]
        %v576 = vld [vmem:[%s236 + $0x4b4] sm:$0xf]
        %v577 = vld [vmem:[%s236 + $0x4b8] sm:$0xf]
        %v578 = vld [vmem:[%s236 + $0x4bc] sm:$0xf]
        %v579 = vld [vmem:[%s236 + $0x4c0] sm:$0xf]
        %v580 = vld [vmem:[%s236 + $0x4c4] sm:$0xf]
        %v581 = vld [vmem:[%s236 + $0x4c8] sm:$0xf]
        %v582 = vld [vmem:[%s236 + $0x4cc] sm:$0xf]
        %v583 = vld [vmem:[%s236 + $0x4d0] sm:$0xf]
        %v584 = vld [vmem:[%s236 + $0x4d4] sm:$0xf]
        %v585 = vld [vmem:[%s236 + $0x4d8] sm:$0xf]
        %v586 = vld [vmem:[%s236 + $0x4dc] sm:$0xf]
        %v587 = vld [vmem:[%s236 + $0x4e0] sm:$0xf]
        %v588 = vld [vmem:[%s236 + $0x4e4] sm:$0xf]
        %v589 = vld [vmem:[%s236 + $0x4e8] sm:$0xf]
        %v590 = vld [vmem:[%s236 + $0x4ec] sm:$0xf]
        %v591 = vld [vmem:[%s236 + $0x4f0] sm:$0xf]
        %v592 = vld [vmem:[%s236 + $0x4f4] sm:$0xf]
        %v593 = vld [vmem:[%s236 + $0x4f8] sm:$0xf]
        %v594 = vld [vmem:[%s236 + $0x4fc] sm:$0xf]
        %v595 = vld [vmem:[%s236 + $0x500] sm:$0xf]
        %v596 = vld [vmem:[%s236 + $0x504] sm:$0x1]
        %v597 = vld [vmem:[%s236 + $0x8] sm:$0xe]
        %v598 = vld [vmem:[%s236 + $0x504] sm:$0xf]
        %v599 = vld [vmem:[%s236 + $0x508] sm:$0xf]
        %v600 = vld [vmem:[%s236 + $0x50c] sm:$0x3]
        %v601 = vld [vmem:[%s236 + $0x10] sm:$0xc]
        %v602 = vld [vmem:[%s236 + $0x50c] sm:$0xf]
        %v603 = vld [vmem:[%s236 + $0x510] sm:$0xf]
        %v604 = vld [vmem:[%s236 + $0x514] sm:$0x7]
        %v605 = vld [vmem:[%s236 + $0xa0] sm:$0x8]
        %v606 = vld [vmem:[%s236 + $0x514] sm:$0xf]
        %v607 = vld [vmem:[%s236 + $0x518] sm:$0xf]
        %v608 = vld [vmem:[%s236 + $0x51c] sm:$0xf]
        %v609 = vld [vmem:[%s236 + $0x520] sm:$0xf]
        %v610 = vld [vmem:[%s236 + $0x524] sm:$0xf]
        %v611 = vld [vmem:[%s236 + $0x528] sm:$0xf]
        %v612 = vld [vmem:[%s236 + $0x52c] sm:$0xf]
        %v613 = vld [vmem:[%s236 + $0x530] sm:$0xf]
        %v614 = vld [vmem:[%s236 + $0x534] sm:$0xf]
        %v615 = vld [vmem:[%s236 + $0x538] sm:$0xf]
        %v616 = vld [vmem:[%s236 + $0x53c] sm:$0xf]
        %v617 = vld [vmem:[%s236 + $0x540] sm:$0xf]
        %v618 = vld [vmem:[%s236 + $0x544] sm:$0xf]
        %v619 = vld [vmem:[%s236 + $0x548] sm:$0xf]
        %v620 = vld [vmem:[%s236 + $0x54c] sm:$0xf]
        %v621 = vld [vmem:[%s236 + $0x550] sm:$0xf]
        %v622 = vld [vmem:[%s236 + $0x554] sm:$0xf]
        %v623 = vld [vmem:[%s236 + $0x558] sm:$0xf]
        %v624 = vld [vmem:[%s236 + $0x55c] sm:$0xf]
        %v625 = vld [vmem:[%s236 + $0x560] sm:$0xf]
        %v626 = vld [vmem:[%s236 + $0x564] sm:$0xf]
        %v627 = vld [vmem:[%s236 + $0x568] sm:$0xf]
        %v628 = vld [vmem:[%s236 + $0x56c] sm:$0xf]
        %v629 = vld [vmem:[%s236 + $0x570] sm:$0xf]
        %v630 = vld [vmem:[%s236 + $0x574] sm:$0xf]
        %v631 = vld [vmem:[%s236 + $0x578] sm:$0xf]
        %v632 = vld [vmem:[%s236 + $0x57c] sm:$0xf]
        %v633 = vld [vmem:[%s236 + $0x580] sm:$0xf]
        %v634 = vld [vmem:[%s236 + $0x584] sm:$0xf]
        %v635 = vld [vmem:[%s236 + $0x588] sm:$0xf]
        %v636 = vld [vmem:[%s236 + $0x58c] sm:$0xf]
        %v637 = vld [vmem:[%s236 + $0x590] sm:$0xf]
        %v638 = vld [vmem:[%s236 + $0x594] sm:$0xf]
        %v639 = vld [vmem:[%s236 + $0x598] sm:$0xf]
        %v640 = vld [vmem:[%s236 + $0x59c] sm:$0xf]
        %v641 = vld [vmem:[%s236 + $0x5a0] sm:$0xf]
        %v642 = vld [vmem:[%s236 + $0x5a4] sm:$0xf]
        %v643 = vld [vmem:[%s236 + $0x5a8] sm:$0xf]
        %v644 = vld [vmem:[%s236 + $0x5ac] sm:$0xf]
        %v645 = vld [vmem:[%s236 + $0x5b0] sm:$0x1]
        %v646 = vld [vmem:[%s236 + $0xb4] sm:$0xe]
        %v647 = vld [vmem:[%s236 + $0x5b0] sm:$0xf]
        %v648 = vld [vmem:[%s236 + $0x5b4] sm:$0xf]
        %v649 = vld [vmem:[%s236 + $0x5b8] sm:$0x3]
        %v650 = vld [vmem:[%s236 + $0x144] sm:$0xc]
        %v651 = vld [vmem:[%s236 + $0x5b8] sm:$0xf]
        %v652 = vld [vmem:[%s236 + $0x5bc] sm:$0xf]
        %v653 = vld [vmem:[%s236 + $0x5c0] sm:$0xf]
        %v654 = vld [vmem:[%s236 + $0x5c4] sm:$0xf]
        %v655 = vld [vmem:[%s236 + $0x5c8] sm:$0xf]
        %v656 = vld [vmem:[%s236 + $0x5cc] sm:$0xf]
        %v657 = vld [vmem:[%s236 + $0x5d0] sm:$0xf]
        %v658 = vld [vmem:[%s236 + $0x5d4] sm:$0xf]
        %v659 = vld [vmem:[%s236 + $0x5d8] sm:$0xf]
        %v660 = vld [vmem:[%s236 + $0x5dc] sm:$0xf]
        %v661 = vld [vmem:[%s236 + $0x5e0] sm:$0xf]
        %v662 = vld [vmem:[%s236 + $0x5e4] sm:$0xf]
        %v663 = vld [vmem:[%s236 + $0x5e8] sm:$0xf]
        %v664 = vld [vmem:[%s236 + $0x5ec] sm:$0xf]
        %v665 = vld [vmem:[%s236 + $0x5f0] sm:$0xf]
        %v666 = vld [vmem:[%s236 + $0x5f4] sm:$0xf]
        %v667 = vld [vmem:[%s236 + $0x5f8] sm:$0xf]
        %v668 = vld [vmem:[%s236 + $0x5fc] sm:$0xf]
        %v669 = vld [vmem:[%s236 + $0x600] sm:$0xf]
        %v670 = vld [vmem:[%s236 + $0x604] sm:$0xf]
        %v671 = vld [vmem:[%s236 + $0x608] sm:$0xf]
        %v672 = vld [vmem:[%s236 + $0x60c] sm:$0xf]
        %v673 = vld [vmem:[%s236 + $0x610] sm:$0xf]
        %v674 = vld [vmem:[%s236 + $0x614] sm:$0xf]
        %v675 = vld [vmem:[%s236 + $0x618] sm:$0xf]
        %v676 = vld [vmem:[%s236 + $0x61c] sm:$0xf]
        %v677 = vld [vmem:[%s236 + $0x620] sm:$0xf]
        %v678 = vld [vmem:[%s236 + $0x624] sm:$0xf]
        %v679 = vld [vmem:[%s236 + $0x628] sm:$0xf]
        %v680 = vld [vmem:[%s236 + $0x62c] sm:$0xf]
        %v681 = vld [vmem:[%s236 + $0x630] sm:$0xf]
        %v682 = vld [vmem:[%s236 + $0x634] sm:$0xf]
        %v683 = vld [vmem:[%s236 + $0x638] sm:$0xf]
        %v684 = vld [vmem:[%s236 + $0x63c] sm:$0xf]
        %v685 = vld [vmem:[%s236 + $0x640] sm:$0xf]
        %v686 = vld [vmem:[%s236 + $0x644] sm:$0xf]
        %v687 = vld [vmem:[%s236 + $0x648] sm:$0x7]
        %v688 = vld [vmem:[%s236 + $0x14c] sm:$0x8]
        %v689 = vld [vmem:[%s236 + $0x648] sm:$0xf]
        %v690 = vld [vmem:[%s236 + $0x64c] sm:$0xf]
        %v691 = vld [vmem:[%s236 + $0x650] sm:$0xf]
        %v692 = vld [vmem:[%s236 + $0x654] sm:$0xf]
        %v693 = vld [vmem:[%s236 + $0x658] sm:$0xf]
        %v694 = vld [vmem:[%s236 + $0x65c] sm:$0x1]
        %v1017 = vunpack.c.l.b16 %v275
        %v1018 = vunpack.c.l.b16 %v276
        %v1019 = vunpack.c.l.b16 %v277
        %v1020 = vunpack.c.l.b16 %v278
        %v1021 = vunpack.c.l.b16 %v279
        %v1022 = vunpack.c.l.b16 %v280
        %v1023 = vunpack.c.l.b16 %v281
        %v1024 = vunpack.c.l.b16 %v282
        %v1025 = vunpack.c.l.b16 %v283
        %v1026 = vunpack.c.l.b16 %v284
        %v1027 = vunpack.c.l.b16 %v285
        %v1028 = vunpack.c.l.b16 %v286
        %v1029 = vunpack.c.l.b16 %v287
        %v1030 = vunpack.c.l.b16 %v288
        %v1031 = vunpack.c.l.b16 %v289
        %v1032 = vunpack.c.l.b16 %v290
        %v1033 = vunpack.c.l.b16 %v291
        %v1034 = vunpack.c.l.b16 %v292
        %v1035 = vunpack.c.l.b16 %v293
        %v1036 = vunpack.c.l.b16 %v294
        %v1037 = vunpack.c.l.b16 %v295
        %v1038 = vunpack.c.l.b16 %v296
        %v1039 = vunpack.c.l.b16 %v297
        %v1040 = vunpack.c.l.b16 %v298
        %v1041 = vunpack.c.l.b16 %v299
        %v1042 = vunpack.c.l.b16 %v300
        %v1043 = vunpack.c.l.b16 %v301
        %v1044 = vunpack.c.l.b16 %v302
        %v1045 = vunpack.c.l.b16 %v303
        %v1046 = vunpack.c.l.b16 %v304
        %v1047 = vunpack.c.l.b16 %v305
        %v1048 = vunpack.c.l.b16 %v306
        %v1049 = vunpack.c.l.b16 %v307
        %v1050 = vunpack.c.l.b16 %v308
        %v1051 = vunpack.c.l.b16 %v309
        %v1052 = vunpack.c.l.b16 %v310
        %v1053 = vunpack.c.l.b16 %v311
        %v1054 = vunpack.c.l.b16 %v312
        %v1055 = vunpack.c.l.b16 %v313
        %v1056 = vunpack.c.l.b16 %v314
        %v1057 = vunpack.c.l.b16 %v315
        %v1058 = vunpack.c.l.b16 %v316
        %v1059 = vunpack.c.l.b16 %v317
        %v1060 = vunpack.c.l.b16 %v318
        %v1061 = vunpack.c.l.b16 %v319
        %v1062 = vunpack.c.l.b16 %v320
        %v1063 = vunpack.c.l.b16 %v321
        %v1064 = vunpack.c.l.b16 %v322
        %v1065 = vunpack.c.l.b16 %v323
        %v1066 = vunpack.c.l.b16 %v324
        %v1067 = vunpack.c.l.b16 %v325
        %v1068 = vunpack.c.l.b16 %v326
        %v1069 = vunpack.c.l.b16 %v327
        %v1070 = vunpack.c.l.b16 %v328
        %v1071 = vunpack.c.l.b16 %v329
        %v1072 = vunpack.c.l.b16 %v330
        %v1073 = vunpack.c.l.b16 %v331
        %v1074 = vunpack.c.l.b16 %v332
        %v1075 = vunpack.c.l.b16 %v333
        %v1076 = vunpack.c.l.b16 %v334
        %v1077 = vunpack.c.l.b16 %v335
        %v1078 = vunpack.c.l.b16 %v336
        %v1079 = vunpack.c.l.b16 %v337
        %v1080 = vunpack.c.l.b16 %v338
        %v1081 = vunpack.c.l.b16 %v339
        %v1082 = vunpack.c.l.b16 %v340
        %v1083 = vunpack.c.l.b16 %v341
        %v1084 = vunpack.c.l.b16 %v342
        %v1085 = vunpack.c.l.b16 %v343
        %v1086 = vunpack.c.l.b16 %v344
        %v1087 = vunpack.c.l.b16 %v345
        %v1088 = vunpack.c.l.b16 %v346
        %v1089 = vunpack.c.l.b16 %v347
        %v1090 = vunpack.c.l.b16 %v348
        %v1091 = vunpack.c.l.b16 %v349
        %v1092 = vunpack.c.l.b16 %v350
        %v1093 = vunpack.c.l.b16 %v351
        %v1094 = vunpack.c.l.b16 %v352
        %v1095 = vunpack.c.l.b16 %v353
        %v1096 = vunpack.c.l.b16 %v354
        %v1097 = vunpack.c.l.b16 %v355
        %v1098 = vunpack.c.l.b16 %v356
        %v1099 = vunpack.c.l.b16 %v357
        %v1100 = vunpack.c.l.b16 %v358
        %v1101 = vunpack.c.l.b16 %v359
        %v1102 = vunpack.c.l.b16 %v360
        %v1103 = vunpack.c.l.b16 %v361
        %v1104 = vunpack.c.l.b16 %v362
        %v1105 = vunpack.c.l.b16 %v363
        %v1106 = vunpack.c.l.b16 %v364
        %v1107 = vunpack.c.l.b16 %v365
        %v1108 = vunpack.c.l.b16 %v366
        %v1109 = vunpack.c.l.b16 %v367
        %v1110 = vunpack.c.l.b16 %v368
        %v1111 = vunpack.c.l.b16 %v369
        %v1112 = vunpack.c.l.b16 %v370
        %v1113 = vunpack.c.l.b16 %v371
        %v1114 = vunpack.c.l.b16 %v372
        %v1115 = vunpack.c.l.b16 %v373
        %v1116 = vunpack.c.l.b16 %v374
        %v1117 = vunpack.c.l.b16 %v375
        %v1118 = vunpack.c.l.b16 %v376
        %v1119 = vunpack.c.l.b16 %v377
        %v1120 = vunpack.c.l.b16 %v378
        %v1121 = vunpack.c.l.b16 %v379
        %v1122 = vunpack.c.l.b16 %v380
        %v1123 = vunpack.c.l.b16 %v381
        %v1124 = vunpack.c.l.b16 %v382
        %v1125 = vunpack.c.l.b16 %v383
        %v1126 = vunpack.c.l.b16 %v384
        %v1127 = vunpack.c.l.b16 %v385
        %v1128 = vunpack.c.l.b16 %v386
        %v1129 = vunpack.c.l.b16 %v387
        %v1130 = vunpack.c.l.b16 %v388
        %v1131 = vunpack.c.l.b16 %v389
        %v1132 = vunpack.c.l.b16 %v390
        %v1133 = vunpack.c.l.b16 %v391
        %v1134 = vunpack.c.l.b16 %v392
        %v1135 = vunpack.c.l.b16 %v393
        %v1136 = vunpack.c.l.b16 %v394
        %v1137 = vunpack.c.l.b16 %v395
        %v1138 = vunpack.c.l.b16 %v396
        %v1139 = vunpack.c.l.b16 %v397
        %v1140 = vunpack.c.l.b16 %v398
        %v1141 = vunpack.c.l.b16 %v399
        %v1142 = vunpack.c.l.b16 %v400
        %v1143 = vunpack.c.l.b16 %v401
        %v1144 = vunpack.c.l.b16 %v402
        %v1145 = vunpack.c.l.b16 %v403
        %v1146 = vunpack.c.l.b16 %v404
        %v1147 = vunpack.c.l.b16 %v405
        %v1148 = vunpack.c.l.b16 %v406
        %v1149 = vunpack.c.l.b16 %v407
        %v1150 = vunpack.c.l.b16 %v408
        %v1151 = vunpack.c.l.b16 %v409
        %v1152 = vunpack.c.l.b16 %v410
        %v1153 = vunpack.c.l.b16 %v411
        %v1154 = vunpack.c.l.b16 %v412
        %v1155 = vunpack.c.l.b16 %v413
        %v1156 = vunpack.c.l.b16 %v414
        %v1157 = vunpack.c.l.b16 %v415
        %v1158 = vunpack.c.l.b16 %v416
        %v1159 = vunpack.c.l.b16 %v417
        %v1160 = vunpack.c.l.b16 %v418
        %v1161 = vunpack.c.l.b16 %v419
        %v1162 = vunpack.c.l.b16 %v420
        %v1163 = vunpack.c.l.b16 %v421
        %v1164 = vunpack.c.l.b16 %v422
        %v1165 = vunpack.c.l.b16 %v423
        %v1166 = vunpack.c.l.b16 %v424
        %v1167 = vunpack.c.l.b16 %v425
        %v1168 = vunpack.c.l.b16 %v426
        %v1169 = vunpack.c.l.b16 %v427
        %v1170 = vunpack.c.l.b16 %v428
        %v1171 = vunpack.c.l.b16 %v429
        %v1172 = vunpack.c.l.b16 %v430
        %v1173 = vunpack.c.l.b16 %v431
        %v1174 = vunpack.c.l.b16 %v432
        %v1175 = vunpack.c.l.b16 %v433
        %v1176 = vunpack.c.l.b16 %v434
        %v1177 = vunpack.c.l.b16 %v435
        %v1178 = vunpack.c.l.b16 %v436
        %v1179 = vunpack.c.l.b16 %v437
        %v1180 = vunpack.c.l.b16 %v438
        %v1181 = vunpack.c.l.b16 %v439
        %v1182 = vunpack.c.l.b16 %v440
        %v1183 = vunpack.c.l.b16 %v441
        %v1184 = vunpack.c.l.b16 %v442
        %v1185 = vunpack.c.l.b16 %v443
        %v1186 = vunpack.c.l.b16 %v444
        %v1187 = vunpack.c.l.b16 %v445
        %v1188 = vunpack.c.l.b16 %v446
        %v1189 = vunpack.c.l.b16 %v447
        %v1190 = vunpack.c.l.b16 %v448
        %v1191 = vunpack.c.l.b16 %v449
        %v1192 = vunpack.c.l.b16 %v450
        %v1193 = vunpack.c.l.b16 %v451
        %v1194 = vunpack.c.l.b16 %v452
        %v1195 = vunpack.c.l.b16 %v453
        %v1196 = vunpack.c.l.b16 %v454
        %v1197 = vunpack.c.l.b16 %v455
        %v1198 = vunpack.c.l.b16 %v456
        %v1199 = vunpack.c.l.b16 %v457
        %v1200 = vunpack.c.l.b16 %v458
        %v1201 = vunpack.c.l.b16 %v459
        %v1202 = vunpack.c.l.b16 %v460
        %v1203 = vunpack.c.l.b16 %v461
        %v1204 = vunpack.c.l.b16 %v462
        %v1205 = vunpack.c.l.b16 %v463
        %v1206 = vunpack.c.l.b16 %v464
        %v1207 = vunpack.c.l.b16 %v465
        %v1208 = vunpack.c.l.b16 %v466
        %v1209 = vunpack.c.l.b16 %v467
        %v1210 = vunpack.c.l.b16 %v468
        %v1211 = vunpack.c.l.b16 %v469
        %v1212 = vunpack.c.l.b16 %v470
        %v1213 = vunpack.c.l.b16 %v471
        %v1214 = vunpack.c.l.b16 %v472
        %v1215 = vunpack.c.l.b16 %v473
        %v1216 = vunpack.c.l.b16 %v474
        %v1217 = vunpack.c.l.b16 %v475
        %v1218 = vunpack.c.l.b16 %v476
        %v1219 = vunpack.c.l.b16 %v477
        %v1220 = vunpack.c.l.b16 %v478
        %v1221 = vunpack.c.l.b16 %v479
        %v1222 = vunpack.c.l.b16 %v480
        %v1223 = vunpack.c.l.b16 %v481
        %v1224 = vunpack.c.l.b16 %v482
        %v1225 = vunpack.c.l.b16 %v483
        %v1226 = vunpack.c.l.b16 %v484
        %v1227 = vunpack.c.l.b16 %v485
        %v1228 = vunpack.c.l.b16 %v486
        %v1229 = vunpack.c.l.b16 %v487
        %v1230 = vunpack.c.l.b16 %v488
        %v1231 = vunpack.c.l.b16 %v489
        %v1232 = vunpack.c.l.b16 %v490
        %v1233 = vunpack.c.l.b16 %v491
        %v1234 = vunpack.c.l.b16 %v492
        %v1235 = vunpack.c.l.b16 %v493
        %v1236 = vunpack.c.l.b16 %v494
        %v1237 = vunpack.c.l.b16 %v495
        %v1238 = vunpack.c.l.b16 %v496
        %v1239 = vunpack.c.l.b16 %v497
        %v1240 = vunpack.c.l.b16 %v498
        %v1241 = vunpack.c.l.b16 %v499
        %v1242 = vunpack.c.l.b16 %v500
        %v1243 = vunpack.c.l.b16 %v501
        %v1244 = vunpack.c.l.b16 %v502
        %v1245 = vunpack.c.l.b16 %v503
        %v1246 = vunpack.c.l.b16 %v504
        %v1247 = vunpack.c.l.b16 %v505
        %v1248 = vunpack.c.l.b16 %v506
        %v1249 = vunpack.c.l.b16 %v507
        %v1250 = vunpack.c.l.b16 %v508
        %v1251 = vunpack.c.l.b16 %v509
        %v1252 = vunpack.c.l.b16 %v510
        %v1253 = vunpack.c.l.b16 %v511
        %v1254 = vunpack.c.l.b16 %v512
        %v1255 = vunpack.c.l.b16 %v513
        %v1256 = vunpack.c.l.b16 %v514
        %v1257 = vunpack.c.l.b16 %v515
        %v1258 = vunpack.c.l.b16 %v516
        %v1259 = vunpack.c.l.b16 %v517
        %v1260 = vunpack.c.l.b16 %v518
        %v1261 = vunpack.c.l.b16 %v519
        %v1262 = vunpack.c.l.b16 %v520
        %v1263 = vunpack.c.l.b16 %v521
        %v1264 = vunpack.c.l.b16 %v522
        %v1265 = vunpack.c.l.b16 %v523
        %v1266 = vunpack.c.l.b16 %v524
        %v1267 = vunpack.c.l.b16 %v525
        %v1268 = vunpack.c.l.b16 %v526
        %v1269 = vunpack.c.l.b16 %v527
        %v1270 = vunpack.c.l.b16 %v528
        %v1271 = vunpack.c.l.b16 %v529
        %v1272 = vunpack.c.l.b16 %v530
        %v1273 = vunpack.c.l.b16 %v531
        %v1274 = vunpack.c.l.b16 %v532
        %v1275 = vunpack.c.l.b16 %v533
        %v1276 = vunpack.c.l.b16 %v534
        %v1277 = vunpack.c.l.b16 %v535
        %v1278 = vunpack.c.l.b16 %v536
        %v1279 = vunpack.c.l.b16 %v537
        %v1280 = vunpack.c.l.b16 %v538
        %v1281 = vunpack.c.l.b16 %v539
        %v1282 = vunpack.c.l.b16 %v540
        %v1283 = vunpack.c.l.b16 %v541
        %v1284 = vunpack.c.l.b16 %v542
        %v1285 = vunpack.c.l.b16 %v543
        %v1286 = vunpack.c.l.b16 %v544
        %v1287 = vunpack.c.l.b16 %v545
        %v1288 = vunpack.c.l.b16 %v546
        %v1289 = vunpack.c.l.b16 %v547
        %v1290 = vunpack.c.l.b16 %v548
        %v1291 = vunpack.c.l.b16 %v549
        %v1292 = vunpack.c.l.b16 %v550
        %v1293 = vunpack.c.l.b16 %v551
        %v1294 = vunpack.c.l.b16 %v552
        %v1295 = vunpack.c.l.b16 %v553
        %v1296 = vunpack.c.l.b16 %v554
        %v1297 = vunpack.c.l.b16 %v555
        %v1298 = vunpack.c.l.b16 %v556
        %v1299 = vunpack.c.l.b16 %v557
        %v1300 = vunpack.c.l.b16 %v558
        %v1301 = vunpack.c.l.b16 %v559
        %v1302 = vunpack.c.l.b16 %v560
        %v1303 = vunpack.c.l.b16 %v561
        %v1304 = vunpack.c.l.b16 %v562
        %v1305 = vunpack.c.l.b16 %v563
        %v1306 = vunpack.c.l.b16 %v564
        %v1307 = vunpack.c.l.b16 %v565
        %v1308 = vunpack.c.l.b16 %v566
        %v1309 = vunpack.c.l.b16 %v567
        %v1310 = vunpack.c.l.b16 %v568
        %v1311 = vunpack.c.l.b16 %v569
        %v1312 = vunpack.c.l.b16 %v570
        %v1313 = vunpack.c.l.b16 %v571
        %v1314 = vunpack.c.l.b16 %v572
        %v1315 = vunpack.c.l.b16 %v573
        %v1316 = vunpack.c.l.b16 %v574
        %v1317 = vunpack.c.l.b16 %v575
        %v1318 = vunpack.c.l.b16 %v576
        %v1319 = vunpack.c.l.b16 %v577
        %v1320 = vunpack.c.l.b16 %v578
        %v1321 = vunpack.c.l.b16 %v579
        %v1322 = vunpack.c.l.b16 %v580
        %v1323 = vunpack.c.l.b16 %v581
        %v1324 = vunpack.c.l.b16 %v582
        %v1325 = vunpack.c.l.b16 %v583
        %v1326 = vunpack.c.l.b16 %v584
        %v1327 = vunpack.c.l.b16 %v585
        %v1328 = vunpack.c.l.b16 %v586
        %v1329 = vunpack.c.l.b16 %v587
        %v1330 = vunpack.c.l.b16 %v588
        %v1331 = vunpack.c.l.b16 %v589
        %v1332 = vunpack.c.l.b16 %v590
        %v1333 = vunpack.c.l.b16 %v591
        %v1334 = vunpack.c.l.b16 %v592
        %v1335 = vunpack.c.l.b16 %v593
        %v1336 = vunpack.c.l.b16 %v594
        %v1337 = vunpack.c.l.b16 %v595
        %v1338 = vunpack.c.l.b16 %v596
        %v1339 = vpack.c.b16 %v1018, %v1017
        %v1340 = vpack.c.b16 %v1020, %v1019
        %v1341 = vpack.c.b16 %v1022, %v1021
        %v1342 = vpack.c.b16 %v1024, %v1023
        %v1343 = vpack.c.b16 %v1026, %v1025
        %v1344 = vpack.c.b16 %v1028, %v1027
        %v1345 = vpack.c.b16 %v1030, %v1029
        %v1346 = vpack.c.b16 %v1032, %v1031
        %v1347 = vpack.c.b16 %v1034, %v1033
        %v1348 = vpack.c.b16 %v1036, %v1035
        %v1349 = vpack.c.b16 %v1038, %v1037
        %v1350 = vpack.c.b16 %v1040, %v1039
        %v1351 = vpack.c.b16 %v1042, %v1041
        %v1352 = vpack.c.b16 %v1044, %v1043
        %v1353 = vpack.c.b16 %v1046, %v1045
        %v1354 = vpack.c.b16 %v1048, %v1047
        %v1355 = vpack.c.b16 %v1050, %v1049
        %v1356 = vpack.c.b16 %v1052, %v1051
        %v1357 = vpack.c.b16 %v1054, %v1053
        %v1358 = vpack.c.b16 %v1056, %v1055
        %v1359 = vpack.c.b16 %v1058, %v1057
        %v1360 = vpack.c.b16 %v1060, %v1059
        %v1361 = vpack.c.b16 %v1062, %v1061
        %v1362 = vpack.c.b16 %v1064, %v1063
        %v1363 = vpack.c.b16 %v1066, %v1065
        %v1364 = vpack.c.b16 %v1068, %v1067
        %v1365 = vpack.c.b16 %v1070, %v1069
        %v1366 = vpack.c.b16 %v1072, %v1071
        %v1367 = vpack.c.b16 %v1074, %v1073
        %v1368 = vpack.c.b16 %v1076, %v1075
        %v1369 = vpack.c.b16 %v1078, %v1077
        %v1370 = vpack.c.b16 %v1080, %v1079
        %v1371 = vpack.c.b16 %v1082, %v1081
        %v1372 = vpack.c.b16 %v1084, %v1083
        %v1373 = vpack.c.b16 %v1086, %v1085
        %v1374 = vpack.c.b16 %v1088, %v1087
        %v1375 = vpack.c.b16 %v1090, %v1089
        %v1376 = vpack.c.b16 %v1092, %v1091
        %v1377 = vpack.c.b16 %v1094, %v1093
        %v1378 = vpack.c.b16 %v1096, %v1095
        %v1379 = vpack.c.b16 %v1098, %v1097
        %v1380 = vpack.c.b16 %v1100, %v1099
        %v1381 = vpack.c.b16 %v1102, %v1101
        %v1382 = vpack.c.b16 %v1104, %v1103
        %v1383 = vpack.c.b16 %v1106, %v1105
        %v1384 = vpack.c.b16 %v1108, %v1107
        %v1385 = vpack.c.b16 %v1110, %v1109
        %v1386 = vpack.c.b16 %v1112, %v1111
        %v1387 = vpack.c.b16 %v1114, %v1113
        %v1388 = vpack.c.b16 %v1116, %v1115
        %v1389 = vpack.c.b16 %v1118, %v1117
        %v1390 = vpack.c.b16 %v1120, %v1119
        %v1391 = vpack.c.b16 %v1122, %v1121
        %v1392 = vpack.c.b16 %v1124, %v1123
        %v1393 = vpack.c.b16 %v1126, %v1125
        %v1394 = vpack.c.b16 %v1128, %v1127
        %v1395 = vpack.c.b16 %v1130, %v1129
        %v1396 = vpack.c.b16 %v1132, %v1131
        %v1397 = vpack.c.b16 %v1134, %v1133
        %v1398 = vpack.c.b16 %v1136, %v1135
        %v1399 = vpack.c.b16 %v1138, %v1137
        %v1400 = vpack.c.b16 %v1140, %v1139
        %v1401 = vpack.c.b16 %v1142, %v1141
        %v1402 = vpack.c.b16 %v1144, %v1143
        %v1403 = vpack.c.b16 %v1146, %v1145
        %v1404 = vpack.c.b16 %v1148, %v1147
        %v1405 = vpack.c.b16 %v1150, %v1149
        %v1406 = vpack.c.b16 %v1152, %v1151
        %v1407 = vpack.c.b16 %v1154, %v1153
        %v1408 = vpack.c.b16 %v1156, %v1155
        %v1409 = vpack.c.b16 %v1158, %v1157
        %v1410 = vpack.c.b16 %v1160, %v1159
        %v1411 = vpack.c.b16 %v1162, %v1161
        %v1412 = vpack.c.b16 %v1164, %v1163
        %v1413 = vpack.c.b16 %v1166, %v1165
        %v1414 = vpack.c.b16 %v1168, %v1167
        %v1415 = vpack.c.b16 %v1170, %v1169
        %v1416 = vpack.c.b16 %v1172, %v1171
        %v1417 = vpack.c.b16 %v1174, %v1173
        %v1418 = vpack.c.b16 %v1176, %v1175
        %v1419 = vpack.c.b16 %v1178, %v1177
        %v1420 = vpack.c.b16 %v1180, %v1179
        %v1421 = vpack.c.b16 %v1182, %v1181
        %v1422 = vpack.c.b16 %v1184, %v1183
        %v1423 = vpack.c.b16 %v1186, %v1185
        %v1424 = vpack.c.b16 %v1188, %v1187
        %v1425 = vpack.c.b16 %v1190, %v1189
        %v1426 = vpack.c.b16 %v1192, %v1191
        %v1427 = vpack.c.b16 %v1194, %v1193
        %v1428 = vpack.c.b16 %v1196, %v1195
        %v1429 = vpack.c.b16 %v1198, %v1197
        %v1430 = vpack.c.b16 %v1200, %v1199
        %v1431 = vpack.c.b16 %v1202, %v1201
        %v1432 = vpack.c.b16 %v1204, %v1203
        %v1433 = vpack.c.b16 %v1206, %v1205
        %v1434 = vpack.c.b16 %v1208, %v1207
        %v1435 = vpack.c.b16 %v1210, %v1209
        %v1436 = vpack.c.b16 %v1212, %v1211
        %v1437 = vpack.c.b16 %v1214, %v1213
        %v1438 = vpack.c.b16 %v1216, %v1215
        %v1439 = vpack.c.b16 %v1218, %v1217
        %v1440 = vpack.c.b16 %v1220, %v1219
        %v1441 = vpack.c.b16 %v1222, %v1221
        %v1442 = vpack.c.b16 %v1224, %v1223
        %v1443 = vpack.c.b16 %v1226, %v1225
        %v1444 = vpack.c.b16 %v1228, %v1227
        %v1445 = vpack.c.b16 %v1230, %v1229
        %v1446 = vpack.c.b16 %v1232, %v1231
        %v1447 = vpack.c.b16 %v1234, %v1233
        %v1448 = vpack.c.b16 %v1236, %v1235
        %v1449 = vpack.c.b16 %v1238, %v1237
        %v1450 = vpack.c.b16 %v1240, %v1239
        %v1451 = vpack.c.b16 %v1242, %v1241
        %v1452 = vpack.c.b16 %v1244, %v1243
        %v1453 = vpack.c.b16 %v1246, %v1245
        %v1454 = vpack.c.b16 %v1248, %v1247
        %v1455 = vpack.c.b16 %v1250, %v1249
        %v1456 = vpack.c.b16 %v1252, %v1251
        %v1457 = vpack.c.b16 %v1254, %v1253
        %v1458 = vpack.c.b16 %v1256, %v1255
        %v1459 = vpack.c.b16 %v1258, %v1257
        %v1460 = vpack.c.b16 %v1260, %v1259
        %v1461 = vpack.c.b16 %v1262, %v1261
        %v1462 = vpack.c.b16 %v1264, %v1263
        %v1463 = vpack.c.b16 %v1266, %v1265
        %v1464 = vpack.c.b16 %v1268, %v1267
        %v1465 = vpack.c.b16 %v1270, %v1269
        %v1466 = vpack.c.b16 %v1272, %v1271
        %v1467 = vpack.c.b16 %v1274, %v1273
        %v1468 = vpack.c.b16 %v1276, %v1275
        %v1469 = vpack.c.b16 %v1278, %v1277
        %v1470 = vpack.c.b16 %v1280, %v1279
        %v1471 = vpack.c.b16 %v1282, %v1281
        %v1472 = vpack.c.b16 %v1284, %v1283
        %v1473 = vpack.c.b16 %v1286, %v1285
        %v1474 = vpack.c.b16 %v1288, %v1287
        %v1475 = vpack.c.b16 %v1290, %v1289
        %v1476 = vpack.c.b16 %v1292, %v1291
        %v1477 = vpack.c.b16 %v1294, %v1293
        %v1478 = vpack.c.b16 %v1296, %v1295
        %v1479 = vpack.c.b16 %v1298, %v1297
        %v1480 = vpack.c.b16 %v1300, %v1299
        %v1481 = vpack.c.b16 %v1302, %v1301
        %v1482 = vpack.c.b16 %v1304, %v1303
        %v1483 = vpack.c.b16 %v1306, %v1305
        %v1484 = vpack.c.b16 %v1308, %v1307
        %v1485 = vpack.c.b16 %v1310, %v1309
        %v1486 = vpack.c.b16 %v1312, %v1311
        %v1487 = vpack.c.b16 %v1314, %v1313
        %v1488 = vpack.c.b16 %v1316, %v1315
        %v1489 = vpack.c.b16 %v1318, %v1317
        %v1490 = vpack.c.b16 %v1320, %v1319
        %v1491 = vpack.c.b16 %v1322, %v1321
        %v1492 = vpack.c.b16 %v1324, %v1323
        %v1493 = vpack.c.b16 %v1326, %v1325
        %v1494 = vpack.c.b16 %v1328, %v1327
        %v1495 = vpack.c.b16 %v1330, %v1329
        %v1496 = vpack.c.b16 %v1332, %v1331
        %v1497 = vpack.c.b16 %v1334, %v1333
        %v1498 = vpack.c.b16 %v1336, %v1335
        %v1499 = vpack.c.b16 %v1338, %v1337
        %v1504 = vunpack.c.l.b16 %v597
        %v1505 = vunpack.c.l.b16 %v598
        %v1506 = vunpack.c.l.b16 %v599
        %v1507 = vunpack.c.l.b16 %v600
        %v1508 = vpack.c.b16 %v1020, %v1504
        %v1509 = vpack.c.b16 %v1505, %v1337
        %v1510 = vpack.c.b16 %v1507, %v1506
        %vm1511 = vcmask 1046528
        %v1512 = vrot.slane %v1508, 1
        %v1513 = vrot.slane %v1341, 1
        %v1514 = vsel %vm1511, %v1512, %v1513
        %v1515 = vrot.slane %v1342, 1
        %v1516 = vsel %vm1511, %v1513, %v1515
        %v1517 = vrot.slane %v1343, 1
        %v1518 = vsel %vm1511, %v1515, %v1517
        %v1519 = vrot.slane %v1344, 1
        %v1520 = vsel %vm1511, %v1517, %v1519
        %v1521 = vrot.slane %v1345, 1
        %v1522 = vsel %vm1511, %v1519, %v1521
        %v1523 = vrot.slane %v1346, 1
        %v1524 = vsel %vm1511, %v1521, %v1523
        %v1525 = vrot.slane %v1347, 1
        %v1526 = vsel %vm1511, %v1523, %v1525
        %v1527 = vrot.slane %v1348, 1
        %v1528 = vsel %vm1511, %v1525, %v1527
        %v1529 = vrot.slane %v1349, 1
        %v1530 = vsel %vm1511, %v1527, %v1529
        %v1531 = vrot.slane %v1350, 1
        %v1532 = vsel %vm1511, %v1529, %v1531
        %v1533 = vrot.slane %v1351, 1
        %v1534 = vsel %vm1511, %v1531, %v1533
        %v1535 = vrot.slane %v1352, 1
        %v1536 = vsel %vm1511, %v1533, %v1535
        %v1537 = vrot.slane %v1353, 1
        %v1538 = vsel %vm1511, %v1535, %v1537
        %v1539 = vrot.slane %v1354, 1
        %v1540 = vsel %vm1511, %v1537, %v1539
        %v1541 = vrot.slane %v1355, 1
        %v1542 = vsel %vm1511, %v1539, %v1541
        %v1543 = vrot.slane %v1356, 1
        %v1544 = vsel %vm1511, %v1541, %v1543
        %v1545 = vrot.slane %v1357, 1
        %v1546 = vsel %vm1511, %v1543, %v1545
        %v1547 = vrot.slane %v1358, 1
        %v1548 = vsel %vm1511, %v1545, %v1547
        %v1549 = vrot.slane %v1359, 1
        %v1550 = vsel %vm1511, %v1547, %v1549
        %v1551 = vrot.slane %v1360, 1
        %v1552 = vsel %vm1511, %v1549, %v1551
        %v1553 = vrot.slane %v1361, 1
        %v1554 = vsel %vm1511, %v1551, %v1553
        %v1555 = vrot.slane %v1362, 1
        %v1556 = vsel %vm1511, %v1553, %v1555
        %v1557 = vrot.slane %v1363, 1
        %v1558 = vsel %vm1511, %v1555, %v1557
        %v1559 = vrot.slane %v1364, 1
        %v1560 = vsel %vm1511, %v1557, %v1559
        %v1561 = vrot.slane %v1365, 1
        %v1562 = vsel %vm1511, %v1559, %v1561
        %v1563 = vrot.slane %v1366, 1
        %v1564 = vsel %vm1511, %v1561, %v1563
        %v1565 = vrot.slane %v1367, 1
        %v1566 = vsel %vm1511, %v1563, %v1565
        %v1567 = vrot.slane %v1368, 1
        %v1568 = vsel %vm1511, %v1565, %v1567
        %v1569 = vrot.slane %v1369, 1
        %v1570 = vsel %vm1511, %v1567, %v1569
        %v1571 = vrot.slane %v1370, 1
        %v1572 = vsel %vm1511, %v1569, %v1571
        %v1573 = vrot.slane %v1371, 1
        %v1574 = vsel %vm1511, %v1571, %v1573
        %v1575 = vrot.slane %v1372, 1
        %v1576 = vsel %vm1511, %v1573, %v1575
        %v1577 = vrot.slane %v1373, 1
        %v1578 = vsel %vm1511, %v1575, %v1577
        %v1579 = vrot.slane %v1374, 1
        %v1580 = vsel %vm1511, %v1577, %v1579
        %v1581 = vrot.slane %v1375, 1
        %v1582 = vsel %vm1511, %v1579, %v1581
        %v1583 = vrot.slane %v1376, 1
        %v1584 = vsel %vm1511, %v1581, %v1583
        %v1585 = vrot.slane %v1377, 1
        %v1586 = vsel %vm1511, %v1583, %v1585
        %v1587 = vrot.slane %v1378, 1
        %v1588 = vsel %vm1511, %v1585, %v1587
        %v1589 = vrot.slane %v1379, 1
        %v1590 = vsel %vm1511, %v1587, %v1589
        %v1591 = vrot.slane %v1380, 1
        %v1592 = vsel %vm1511, %v1589, %v1591
        %v1593 = vrot.slane %v1381, 1
        %v1594 = vsel %vm1511, %v1591, %v1593
        %v1595 = vrot.slane %v1382, 1
        %v1596 = vsel %vm1511, %v1593, %v1595
        %v1597 = vrot.slane %v1383, 1
        %v1598 = vsel %vm1511, %v1595, %v1597
        %v1599 = vrot.slane %v1384, 1
        %v1600 = vsel %vm1511, %v1597, %v1599
        %v1601 = vrot.slane %v1385, 1
        %v1602 = vsel %vm1511, %v1599, %v1601
        %v1603 = vrot.slane %v1386, 1
        %v1604 = vsel %vm1511, %v1601, %v1603
        %v1605 = vrot.slane %v1387, 1
        %v1606 = vsel %vm1511, %v1603, %v1605
        %v1607 = vrot.slane %v1388, 1
        %v1608 = vsel %vm1511, %v1605, %v1607
        %v1609 = vrot.slane %v1389, 1
        %v1610 = vsel %vm1511, %v1607, %v1609
        %v1611 = vrot.slane %v1390, 1
        %v1612 = vsel %vm1511, %v1609, %v1611
        %v1613 = vrot.slane %v1391, 1
        %v1614 = vsel %vm1511, %v1611, %v1613
        %v1615 = vrot.slane %v1392, 1
        %v1616 = vsel %vm1511, %v1613, %v1615
        %v1617 = vrot.slane %v1393, 1
        %v1618 = vsel %vm1511, %v1615, %v1617
        %v1619 = vrot.slane %v1394, 1
        %v1620 = vsel %vm1511, %v1617, %v1619
        %v1621 = vrot.slane %v1395, 1
        %v1622 = vsel %vm1511, %v1619, %v1621
        %v1623 = vrot.slane %v1396, 1
        %v1624 = vsel %vm1511, %v1621, %v1623
        %v1625 = vrot.slane %v1397, 1
        %v1626 = vsel %vm1511, %v1623, %v1625
        %v1627 = vrot.slane %v1398, 1
        %v1628 = vsel %vm1511, %v1625, %v1627
        %v1629 = vrot.slane %v1399, 1
        %v1630 = vsel %vm1511, %v1627, %v1629
        %v1631 = vrot.slane %v1400, 1
        %v1632 = vsel %vm1511, %v1629, %v1631
        %v1633 = vrot.slane %v1401, 1
        %v1634 = vsel %vm1511, %v1631, %v1633
        %v1635 = vrot.slane %v1402, 1
        %v1636 = vsel %vm1511, %v1633, %v1635
        %v1637 = vrot.slane %v1403, 1
        %v1638 = vsel %vm1511, %v1635, %v1637
        %v1639 = vrot.slane %v1404, 1
        %v1640 = vsel %vm1511, %v1637, %v1639
        %v1641 = vrot.slane %v1405, 1
        %v1642 = vsel %vm1511, %v1639, %v1641
        %v1643 = vrot.slane %v1406, 1
        %v1644 = vsel %vm1511, %v1641, %v1643
        %v1645 = vrot.slane %v1407, 1
        %v1646 = vsel %vm1511, %v1643, %v1645
        %v1647 = vrot.slane %v1408, 1
        %v1648 = vsel %vm1511, %v1645, %v1647
        %v1649 = vrot.slane %v1409, 1
        %v1650 = vsel %vm1511, %v1647, %v1649
        %v1651 = vrot.slane %v1410, 1
        %v1652 = vsel %vm1511, %v1649, %v1651
        %v1653 = vrot.slane %v1411, 1
        %v1654 = vsel %vm1511, %v1651, %v1653
        %v1655 = vrot.slane %v1412, 1
        %v1656 = vsel %vm1511, %v1653, %v1655
        %v1657 = vrot.slane %v1413, 1
        %v1658 = vsel %vm1511, %v1655, %v1657
        %v1659 = vrot.slane %v1414, 1
        %v1660 = vsel %vm1511, %v1657, %v1659
        %v1661 = vrot.slane %v1415, 1
        %v1662 = vsel %vm1511, %v1659, %v1661
        %v1663 = vrot.slane %v1416, 1
        %v1664 = vsel %vm1511, %v1661, %v1663
        %v1665 = vrot.slane %v1417, 1
        %v1666 = vsel %vm1511, %v1663, %v1665
        %v1667 = vrot.slane %v1418, 1
        %v1668 = vsel %vm1511, %v1665, %v1667
        %v1669 = vrot.slane %v1419, 1
        %v1670 = vsel %vm1511, %v1667, %v1669
        %v1671 = vrot.slane %v1420, 1
        %v1672 = vsel %vm1511, %v1669, %v1671
        %v1673 = vrot.slane %v1421, 1
        %v1674 = vsel %vm1511, %v1671, %v1673
        %v1675 = vrot.slane %v1422, 1
        %v1676 = vsel %vm1511, %v1673, %v1675
        %v1677 = vrot.slane %v1423, 1
        %v1678 = vsel %vm1511, %v1675, %v1677
        %v1679 = vrot.slane %v1424, 1
        %v1680 = vsel %vm1511, %v1677, %v1679
        %v1681 = vrot.slane %v1425, 1
        %v1682 = vsel %vm1511, %v1679, %v1681
        %v1683 = vrot.slane %v1426, 1
        %v1684 = vsel %vm1511, %v1681, %v1683
        %v1685 = vrot.slane %v1427, 1
        %v1686 = vsel %vm1511, %v1683, %v1685
        %v1687 = vrot.slane %v1428, 1
        %v1688 = vsel %vm1511, %v1685, %v1687
        %v1689 = vrot.slane %v1429, 1
        %v1690 = vsel %vm1511, %v1687, %v1689
        %v1691 = vrot.slane %v1430, 1
        %v1692 = vsel %vm1511, %v1689, %v1691
        %v1693 = vrot.slane %v1431, 1
        %v1694 = vsel %vm1511, %v1691, %v1693
        %v1695 = vrot.slane %v1432, 1
        %v1696 = vsel %vm1511, %v1693, %v1695
        %v1697 = vrot.slane %v1433, 1
        %v1698 = vsel %vm1511, %v1695, %v1697
        %v1699 = vrot.slane %v1434, 1
        %v1700 = vsel %vm1511, %v1697, %v1699
        %v1701 = vrot.slane %v1435, 1
        %v1702 = vsel %vm1511, %v1699, %v1701
        %v1703 = vrot.slane %v1436, 1
        %v1704 = vsel %vm1511, %v1701, %v1703
        %v1705 = vrot.slane %v1437, 1
        %v1706 = vsel %vm1511, %v1703, %v1705
        %v1707 = vrot.slane %v1438, 1
        %v1708 = vsel %vm1511, %v1705, %v1707
        %v1709 = vrot.slane %v1439, 1
        %v1710 = vsel %vm1511, %v1707, %v1709
        %v1711 = vrot.slane %v1440, 1
        %v1712 = vsel %vm1511, %v1709, %v1711
        %v1713 = vrot.slane %v1441, 1
        %v1714 = vsel %vm1511, %v1711, %v1713
        %v1715 = vrot.slane %v1442, 1
        %v1716 = vsel %vm1511, %v1713, %v1715
        %v1717 = vrot.slane %v1443, 1
        %v1718 = vsel %vm1511, %v1715, %v1717
        %v1719 = vrot.slane %v1444, 1
        %v1720 = vsel %vm1511, %v1717, %v1719
        %v1721 = vrot.slane %v1445, 1
        %v1722 = vsel %vm1511, %v1719, %v1721
        %v1723 = vrot.slane %v1446, 1
        %v1724 = vsel %vm1511, %v1721, %v1723
        %v1725 = vrot.slane %v1447, 1
        %v1726 = vsel %vm1511, %v1723, %v1725
        %v1727 = vrot.slane %v1448, 1
        %v1728 = vsel %vm1511, %v1725, %v1727
        %v1729 = vrot.slane %v1449, 1
        %v1730 = vsel %vm1511, %v1727, %v1729
        %v1731 = vrot.slane %v1450, 1
        %v1732 = vsel %vm1511, %v1729, %v1731
        %v1733 = vrot.slane %v1451, 1
        %v1734 = vsel %vm1511, %v1731, %v1733
        %v1735 = vrot.slane %v1452, 1
        %v1736 = vsel %vm1511, %v1733, %v1735
        %v1737 = vrot.slane %v1453, 1
        %v1738 = vsel %vm1511, %v1735, %v1737
        %v1739 = vrot.slane %v1454, 1
        %v1740 = vsel %vm1511, %v1737, %v1739
        %v1741 = vrot.slane %v1455, 1
        %v1742 = vsel %vm1511, %v1739, %v1741
        %v1743 = vrot.slane %v1456, 1
        %v1744 = vsel %vm1511, %v1741, %v1743
        %v1745 = vrot.slane %v1457, 1
        %v1746 = vsel %vm1511, %v1743, %v1745
        %v1747 = vrot.slane %v1458, 1
        %v1748 = vsel %vm1511, %v1745, %v1747
        %v1749 = vrot.slane %v1459, 1
        %v1750 = vsel %vm1511, %v1747, %v1749
        %v1751 = vrot.slane %v1460, 1
        %v1752 = vsel %vm1511, %v1749, %v1751
        %v1753 = vrot.slane %v1461, 1
        %v1754 = vsel %vm1511, %v1751, %v1753
        %v1755 = vrot.slane %v1462, 1
        %v1756 = vsel %vm1511, %v1753, %v1755
        %v1757 = vrot.slane %v1463, 1
        %v1758 = vsel %vm1511, %v1755, %v1757
        %v1759 = vrot.slane %v1464, 1
        %v1760 = vsel %vm1511, %v1757, %v1759
        %v1761 = vrot.slane %v1465, 1
        %v1762 = vsel %vm1511, %v1759, %v1761
        %v1763 = vrot.slane %v1466, 1
        %v1764 = vsel %vm1511, %v1761, %v1763
        %v1765 = vrot.slane %v1467, 1
        %v1766 = vsel %vm1511, %v1763, %v1765
        %v1767 = vrot.slane %v1468, 1
        %v1768 = vsel %vm1511, %v1765, %v1767
        %v1769 = vrot.slane %v1469, 1
        %v1770 = vsel %vm1511, %v1767, %v1769
        %v1771 = vrot.slane %v1470, 1
        %v1772 = vsel %vm1511, %v1769, %v1771
        %v1773 = vrot.slane %v1471, 1
        %v1774 = vsel %vm1511, %v1771, %v1773
        %v1775 = vrot.slane %v1472, 1
        %v1776 = vsel %vm1511, %v1773, %v1775
        %v1777 = vrot.slane %v1473, 1
        %v1778 = vsel %vm1511, %v1775, %v1777
        %v1779 = vrot.slane %v1474, 1
        %v1780 = vsel %vm1511, %v1777, %v1779
        %v1781 = vrot.slane %v1475, 1
        %v1782 = vsel %vm1511, %v1779, %v1781
        %v1783 = vrot.slane %v1476, 1
        %v1784 = vsel %vm1511, %v1781, %v1783
        %v1785 = vrot.slane %v1477, 1
        %v1786 = vsel %vm1511, %v1783, %v1785
        %v1787 = vrot.slane %v1478, 1
        %v1788 = vsel %vm1511, %v1785, %v1787
        %v1789 = vrot.slane %v1479, 1
        %v1790 = vsel %vm1511, %v1787, %v1789
        %v1791 = vrot.slane %v1480, 1
        %v1792 = vsel %vm1511, %v1789, %v1791
        %v1793 = vrot.slane %v1481, 1
        %v1794 = vsel %vm1511, %v1791, %v1793
        %v1795 = vrot.slane %v1482, 1
        %v1796 = vsel %vm1511, %v1793, %v1795
        %v1797 = vrot.slane %v1483, 1
        %v1798 = vsel %vm1511, %v1795, %v1797
        %v1799 = vrot.slane %v1484, 1
        %v1800 = vsel %vm1511, %v1797, %v1799
        %v1801 = vrot.slane %v1485, 1
        %v1802 = vsel %vm1511, %v1799, %v1801
        %v1803 = vrot.slane %v1486, 1
        %v1804 = vsel %vm1511, %v1801, %v1803
        %v1805 = vrot.slane %v1487, 1
        %v1806 = vsel %vm1511, %v1803, %v1805
        %v1807 = vrot.slane %v1488, 1
        %v1808 = vsel %vm1511, %v1805, %v1807
        %v1809 = vrot.slane %v1489, 1
        %v1810 = vsel %vm1511, %v1807, %v1809
        %v1811 = vrot.slane %v1490, 1
        %v1812 = vsel %vm1511, %v1809, %v1811
        %v1813 = vrot.slane %v1491, 1
        %v1814 = vsel %vm1511, %v1811, %v1813
        %v1815 = vrot.slane %v1492, 1
        %v1816 = vsel %vm1511, %v1813, %v1815
        %v1817 = vrot.slane %v1493, 1
        %v1818 = vsel %vm1511, %v1815, %v1817
        %v1819 = vrot.slane %v1494, 1
        %v1820 = vsel %vm1511, %v1817, %v1819
        %v1821 = vrot.slane %v1495, 1
        %v1822 = vsel %vm1511, %v1819, %v1821
        %v1823 = vrot.slane %v1496, 1
        %v1824 = vsel %vm1511, %v1821, %v1823
        %v1825 = vrot.slane %v1497, 1
        %v1826 = vsel %vm1511, %v1823, %v1825
        %v1827 = vrot.slane %v1498, 1
        %v1828 = vsel %vm1511, %v1825, %v1827
        %v1829 = vrot.slane %v1509, 1
        %v1830 = vsel %vm1511, %v1827, %v1829
        %v1831 = vrot.slane %v1510, 1
        %v1832 = vsel %vm1511, %v1829, %v1831
        %1833 = vrot.lane.b32.xlu0 %v1514, 12
        %v1834 = vpop.permute.xlu0 %1833
        %1835 = vrot.lane.b32.xlu0 %v1516, 12
        %v1836 = vpop.permute.xlu0 %1835
        %1837 = vrot.lane.b32.xlu0 %v1518, 12
        %v1838 = vpop.permute.xlu0 %1837
        %1839 = vrot.lane.b32.xlu0 %v1520, 12
        %v1840 = vpop.permute.xlu0 %1839
        %1841 = vrot.lane.b32.xlu0 %v1522, 12
        %v1842 = vpop.permute.xlu0 %1841
        %1843 = vrot.lane.b32.xlu0 %v1524, 12
        %v1844 = vpop.permute.xlu0 %1843
        %1845 = vrot.lane.b32.xlu0 %v1526, 12
        %v1846 = vpop.permute.xlu0 %1845
        %1847 = vrot.lane.b32.xlu0 %v1528, 12
        %v1848 = vpop.permute.xlu0 %1847
        %1849 = vrot.lane.b32.xlu0 %v1530, 12
        %v1850 = vpop.permute.xlu0 %1849
        %1851 = vrot.lane.b32.xlu0 %v1532, 12
        %v1852 = vpop.permute.xlu0 %1851
        %1853 = vrot.lane.b32.xlu0 %v1534, 12
        %v1854 = vpop.permute.xlu0 %1853
        %1855 = vrot.lane.b32.xlu0 %v1536, 12
        %v1856 = vpop.permute.xlu0 %1855
        %1857 = vrot.lane.b32.xlu0 %v1538, 12
        %v1858 = vpop.permute.xlu0 %1857
        %1859 = vrot.lane.b32.xlu0 %v1540, 12
        %v1860 = vpop.permute.xlu0 %1859
        %1861 = vrot.lane.b32.xlu0 %v1542, 12
        %v1862 = vpop.permute.xlu0 %1861
        %1863 = vrot.lane.b32.xlu0 %v1544, 12
        %v1864 = vpop.permute.xlu0 %1863
        %1865 = vrot.lane.b32.xlu0 %v1546, 12
        %v1866 = vpop.permute.xlu0 %1865
        %1867 = vrot.lane.b32.xlu0 %v1548, 12
        %v1868 = vpop.permute.xlu0 %1867
        %1869 = vrot.lane.b32.xlu0 %v1550, 12
        %v1870 = vpop.permute.xlu0 %1869
        %1871 = vrot.lane.b32.xlu0 %v1552, 12
        %v1872 = vpop.permute.xlu0 %1871
        %1873 = vrot.lane.b32.xlu0 %v1554, 12
        %v1874 = vpop.permute.xlu0 %1873
        %1875 = vrot.lane.b32.xlu0 %v1556, 12
        %v1876 = vpop.permute.xlu0 %1875
        %1877 = vrot.lane.b32.xlu0 %v1558, 12
        %v1878 = vpop.permute.xlu0 %1877
        %1879 = vrot.lane.b32.xlu0 %v1560, 12
        %v1880 = vpop.permute.xlu0 %1879
        %1881 = vrot.lane.b32.xlu0 %v1562, 12
        %v1882 = vpop.permute.xlu0 %1881
        %1883 = vrot.lane.b32.xlu0 %v1564, 12
        %v1884 = vpop.permute.xlu0 %1883
        %1885 = vrot.lane.b32.xlu0 %v1566, 12
        %v1886 = vpop.permute.xlu0 %1885
        %1887 = vrot.lane.b32.xlu0 %v1568, 12
        %v1888 = vpop.permute.xlu0 %1887
        %1889 = vrot.lane.b32.xlu0 %v1570, 12
        %v1890 = vpop.permute.xlu0 %1889
        %1891 = vrot.lane.b32.xlu0 %v1572, 12
        %v1892 = vpop.permute.xlu0 %1891
        %1893 = vrot.lane.b32.xlu0 %v1574, 12
        %v1894 = vpop.permute.xlu0 %1893
        %1895 = vrot.lane.b32.xlu0 %v1576, 12
        %v1896 = vpop.permute.xlu0 %1895
        %1897 = vrot.lane.b32.xlu0 %v1578, 12
        %v1898 = vpop.permute.xlu0 %1897
        %1899 = vrot.lane.b32.xlu0 %v1580, 12
        %v1900 = vpop.permute.xlu0 %1899
        %1901 = vrot.lane.b32.xlu0 %v1582, 12
        %v1902 = vpop.permute.xlu0 %1901
        %1903 = vrot.lane.b32.xlu0 %v1584, 12
        %v1904 = vpop.permute.xlu0 %1903
        %1905 = vrot.lane.b32.xlu0 %v1586, 12
        %v1906 = vpop.permute.xlu0 %1905
        %1907 = vrot.lane.b32.xlu0 %v1588, 12
        %v1908 = vpop.permute.xlu0 %1907
        %1909 = vrot.lane.b32.xlu0 %v1590, 12
        %v1910 = vpop.permute.xlu0 %1909
        %1911 = vrot.lane.b32.xlu0 %v1592, 12
        %v1912 = vpop.permute.xlu0 %1911
        %1913 = vrot.lane.b32.xlu0 %v1594, 12
        %v1914 = vpop.permute.xlu0 %1913
        %1915 = vrot.lane.b32.xlu0 %v1596, 12
        %v1916 = vpop.permute.xlu0 %1915
        %1917 = vrot.lane.b32.xlu0 %v1598, 12
        %v1918 = vpop.permute.xlu0 %1917
        %1919 = vrot.lane.b32.xlu0 %v1600, 12
        %v1920 = vpop.permute.xlu0 %1919
        %1921 = vrot.lane.b32.xlu0 %v1602, 12
        %v1922 = vpop.permute.xlu0 %1921
        %1923 = vrot.lane.b32.xlu0 %v1604, 12
        %v1924 = vpop.permute.xlu0 %1923
        %1925 = vrot.lane.b32.xlu0 %v1606, 12
        %v1926 = vpop.permute.xlu0 %1925
        %1927 = vrot.lane.b32.xlu0 %v1608, 12
        %v1928 = vpop.permute.xlu0 %1927
        %1929 = vrot.lane.b32.xlu0 %v1610, 12
        %v1930 = vpop.permute.xlu0 %1929
        %1931 = vrot.lane.b32.xlu0 %v1612, 12
        %v1932 = vpop.permute.xlu0 %1931
        %1933 = vrot.lane.b32.xlu0 %v1614, 12
        %v1934 = vpop.permute.xlu0 %1933
        %1935 = vrot.lane.b32.xlu0 %v1616, 12
        %v1936 = vpop.permute.xlu0 %1935
        %1937 = vrot.lane.b32.xlu0 %v1618, 12
        %v1938 = vpop.permute.xlu0 %1937
        %1939 = vrot.lane.b32.xlu0 %v1620, 12
        %v1940 = vpop.permute.xlu0 %1939
        %1941 = vrot.lane.b32.xlu0 %v1622, 12
        %v1942 = vpop.permute.xlu0 %1941
        %1943 = vrot.lane.b32.xlu0 %v1624, 12
        %v1944 = vpop.permute.xlu0 %1943
        %1945 = vrot.lane.b32.xlu0 %v1626, 12
        %v1946 = vpop.permute.xlu0 %1945
        %1947 = vrot.lane.b32.xlu0 %v1628, 12
        %v1948 = vpop.permute.xlu0 %1947
        %1949 = vrot.lane.b32.xlu0 %v1630, 12
        %v1950 = vpop.permute.xlu0 %1949
        %1951 = vrot.lane.b32.xlu0 %v1632, 12
        %v1952 = vpop.permute.xlu0 %1951
        %1953 = vrot.lane.b32.xlu0 %v1634, 12
        %v1954 = vpop.permute.xlu0 %1953
        %1955 = vrot.lane.b32.xlu0 %v1636, 12
        %v1956 = vpop.permute.xlu0 %1955
        %1957 = vrot.lane.b32.xlu0 %v1638, 12
        %v1958 = vpop.permute.xlu0 %1957
        %1959 = vrot.lane.b32.xlu0 %v1640, 12
        %v1960 = vpop.permute.xlu0 %1959
        %1961 = vrot.lane.b32.xlu0 %v1642, 12
        %v1962 = vpop.permute.xlu0 %1961
        %1963 = vrot.lane.b32.xlu0 %v1644, 12
        %v1964 = vpop.permute.xlu0 %1963
        %1965 = vrot.lane.b32.xlu0 %v1646, 12
        %v1966 = vpop.permute.xlu0 %1965
        %1967 = vrot.lane.b32.xlu0 %v1648, 12
        %v1968 = vpop.permute.xlu0 %1967
        %1969 = vrot.lane.b32.xlu0 %v1650, 12
        %v1970 = vpop.permute.xlu0 %1969
        %1971 = vrot.lane.b32.xlu0 %v1652, 12
        %v1972 = vpop.permute.xlu0 %1971
        %1973 = vrot.lane.b32.xlu0 %v1654, 12
        %v1974 = vpop.permute.xlu0 %1973
        %1975 = vrot.lane.b32.xlu0 %v1656, 12
        %v1976 = vpop.permute.xlu0 %1975
        %1977 = vrot.lane.b32.xlu0 %v1658, 12
        %v1978 = vpop.permute.xlu0 %1977
        %1979 = vrot.lane.b32.xlu0 %v1660, 12
        %v1980 = vpop.permute.xlu0 %1979
        %1981 = vrot.lane.b32.xlu0 %v1662, 12
        %v1982 = vpop.permute.xlu0 %1981
        %1983 = vrot.lane.b32.xlu0 %v1664, 12
        %v1984 = vpop.permute.xlu0 %1983
        %1985 = vrot.lane.b32.xlu0 %v1666, 12
        %v1986 = vpop.permute.xlu0 %1985
        %1987 = vrot.lane.b32.xlu0 %v1668, 12
        %v1988 = vpop.permute.xlu0 %1987
        %1989 = vrot.lane.b32.xlu0 %v1670, 12
        %v1990 = vpop.permute.xlu0 %1989
        %1991 = vrot.lane.b32.xlu0 %v1672, 12
        %v1992 = vpop.permute.xlu0 %1991
        %1993 = vrot.lane.b32.xlu0 %v1674, 12
        %v1994 = vpop.permute.xlu0 %1993
        %1995 = vrot.lane.b32.xlu0 %v1676, 12
        %v1996 = vpop.permute.xlu0 %1995
        %1997 = vrot.lane.b32.xlu0 %v1678, 12
        %v1998 = vpop.permute.xlu0 %1997
        %1999 = vrot.lane.b32.xlu0 %v1680, 12
        %v2000 = vpop.permute.xlu0 %1999
        %2001 = vrot.lane.b32.xlu0 %v1682, 12
        %v2002 = vpop.permute.xlu0 %2001
        %2003 = vrot.lane.b32.xlu0 %v1684, 12
        %v2004 = vpop.permute.xlu0 %2003
        %2005 = vrot.lane.b32.xlu0 %v1686, 12
        %v2006 = vpop.permute.xlu0 %2005
        %2007 = vrot.lane.b32.xlu0 %v1688, 12
        %v2008 = vpop.permute.xlu0 %2007
        %2009 = vrot.lane.b32.xlu0 %v1690, 12
        %v2010 = vpop.permute.xlu0 %2009
        %2011 = vrot.lane.b32.xlu0 %v1692, 12
        %v2012 = vpop.permute.xlu0 %2011
        %2013 = vrot.lane.b32.xlu0 %v1694, 12
        %v2014 = vpop.permute.xlu0 %2013
        %2015 = vrot.lane.b32.xlu0 %v1696, 12
        %v2016 = vpop.permute.xlu0 %2015
        %2017 = vrot.lane.b32.xlu0 %v1698, 12
        %v2018 = vpop.permute.xlu0 %2017
        %2019 = vrot.lane.b32.xlu0 %v1700, 12
        %v2020 = vpop.permute.xlu0 %2019
        %2021 = vrot.lane.b32.xlu0 %v1702, 12
        %v2022 = vpop.permute.xlu0 %2021
        %2023 = vrot.lane.b32.xlu0 %v1704, 12
        %v2024 = vpop.permute.xlu0 %2023
        %2025 = vrot.lane.b32.xlu0 %v1706, 12
        %v2026 = vpop.permute.xlu0 %2025
        %2027 = vrot.lane.b32.xlu0 %v1708, 12
        %v2028 = vpop.permute.xlu0 %2027
        %2029 = vrot.lane.b32.xlu0 %v1710, 12
        %v2030 = vpop.permute.xlu0 %2029
        %2031 = vrot.lane.b32.xlu0 %v1712, 12
        %v2032 = vpop.permute.xlu0 %2031
        %2033 = vrot.lane.b32.xlu0 %v1714, 12
        %v2034 = vpop.permute.xlu0 %2033
        %2035 = vrot.lane.b32.xlu0 %v1716, 12
        %v2036 = vpop.permute.xlu0 %2035
        %2037 = vrot.lane.b32.xlu0 %v1718, 12
        %v2038 = vpop.permute.xlu0 %2037
        %2039 = vrot.lane.b32.xlu0 %v1720, 12
        %v2040 = vpop.permute.xlu0 %2039
        %2041 = vrot.lane.b32.xlu0 %v1722, 12
        %v2042 = vpop.permute.xlu0 %2041
        %2043 = vrot.lane.b32.xlu0 %v1724, 12
        %v2044 = vpop.permute.xlu0 %2043
        %2045 = vrot.lane.b32.xlu0 %v1726, 12
        %v2046 = vpop.permute.xlu0 %2045
        %2047 = vrot.lane.b32.xlu0 %v1728, 12
        %v2048 = vpop.permute.xlu0 %2047
        %2049 = vrot.lane.b32.xlu0 %v1730, 12
        %v2050 = vpop.permute.xlu0 %2049
        %2051 = vrot.lane.b32.xlu0 %v1732, 12
        %v2052 = vpop.permute.xlu0 %2051
        %2053 = vrot.lane.b32.xlu0 %v1734, 12
        %v2054 = vpop.permute.xlu0 %2053
        %2055 = vrot.lane.b32.xlu0 %v1736, 12
        %v2056 = vpop.permute.xlu0 %2055
        %2057 = vrot.lane.b32.xlu0 %v1738, 12
        %v2058 = vpop.permute.xlu0 %2057
        %2059 = vrot.lane.b32.xlu0 %v1740, 12
        %v2060 = vpop.permute.xlu0 %2059
        %2061 = vrot.lane.b32.xlu0 %v1742, 12
        %v2062 = vpop.permute.xlu0 %2061
        %2063 = vrot.lane.b32.xlu0 %v1744, 12
        %v2064 = vpop.permute.xlu0 %2063
        %2065 = vrot.lane.b32.xlu0 %v1746, 12
        %v2066 = vpop.permute.xlu0 %2065
        %2067 = vrot.lane.b32.xlu0 %v1748, 12
        %v2068 = vpop.permute.xlu0 %2067
        %2069 = vrot.lane.b32.xlu0 %v1750, 12
        %v2070 = vpop.permute.xlu0 %2069
        %2071 = vrot.lane.b32.xlu0 %v1752, 12
        %v2072 = vpop.permute.xlu0 %2071
        %2073 = vrot.lane.b32.xlu0 %v1754, 12
        %v2074 = vpop.permute.xlu0 %2073
        %2075 = vrot.lane.b32.xlu0 %v1756, 12
        %v2076 = vpop.permute.xlu0 %2075
        %2077 = vrot.lane.b32.xlu0 %v1758, 12
        %v2078 = vpop.permute.xlu0 %2077
        %2079 = vrot.lane.b32.xlu0 %v1760, 12
        %v2080 = vpop.permute.xlu0 %2079
        %2081 = vrot.lane.b32.xlu0 %v1762, 12
        %v2082 = vpop.permute.xlu0 %2081
        %2083 = vrot.lane.b32.xlu0 %v1764, 12
        %v2084 = vpop.permute.xlu0 %2083
        %2085 = vrot.lane.b32.xlu0 %v1766, 12
        %v2086 = vpop.permute.xlu0 %2085
        %2087 = vrot.lane.b32.xlu0 %v1768, 12
        %v2088 = vpop.permute.xlu0 %2087
        %2089 = vrot.lane.b32.xlu0 %v1770, 12
        %v2090 = vpop.permute.xlu0 %2089
        %2091 = vrot.lane.b32.xlu0 %v1772, 12
        %v2092 = vpop.permute.xlu0 %2091
        %2093 = vrot.lane.b32.xlu0 %v1774, 12
        %v2094 = vpop.permute.xlu0 %2093
        %2095 = vrot.lane.b32.xlu0 %v1776, 12
        %v2096 = vpop.permute.xlu0 %2095
        %2097 = vrot.lane.b32.xlu0 %v1778, 12
        %v2098 = vpop.permute.xlu0 %2097
        %2099 = vrot.lane.b32.xlu0 %v1780, 12
        %v2100 = vpop.permute.xlu0 %2099
        %2101 = vrot.lane.b32.xlu0 %v1782, 12
        %v2102 = vpop.permute.xlu0 %2101
        %2103 = vrot.lane.b32.xlu0 %v1784, 12
        %v2104 = vpop.permute.xlu0 %2103
        %2105 = vrot.lane.b32.xlu0 %v1786, 12
        %v2106 = vpop.permute.xlu0 %2105
        %2107 = vrot.lane.b32.xlu0 %v1788, 12
        %v2108 = vpop.permute.xlu0 %2107
        %2109 = vrot.lane.b32.xlu0 %v1790, 12
        %v2110 = vpop.permute.xlu0 %2109
        %2111 = vrot.lane.b32.xlu0 %v1792, 12
        %v2112 = vpop.permute.xlu0 %2111
        %2113 = vrot.lane.b32.xlu0 %v1794, 12
        %v2114 = vpop.permute.xlu0 %2113
        %2115 = vrot.lane.b32.xlu0 %v1796, 12
        %v2116 = vpop.permute.xlu0 %2115
        %2117 = vrot.lane.b32.xlu0 %v1798, 12
        %v2118 = vpop.permute.xlu0 %2117
        %2119 = vrot.lane.b32.xlu0 %v1800, 12
        %v2120 = vpop.permute.xlu0 %2119
        %2121 = vrot.lane.b32.xlu0 %v1802, 12
        %v2122 = vpop.permute.xlu0 %2121
        %2123 = vrot.lane.b32.xlu0 %v1804, 12
        %v2124 = vpop.permute.xlu0 %2123
        %2125 = vrot.lane.b32.xlu0 %v1806, 12
        %v2126 = vpop.permute.xlu0 %2125
        %2127 = vrot.lane.b32.xlu0 %v1808, 12
        %v2128 = vpop.permute.xlu0 %2127
        %2129 = vrot.lane.b32.xlu0 %v1810, 12
        %v2130 = vpop.permute.xlu0 %2129
        %2131 = vrot.lane.b32.xlu0 %v1812, 12
        %v2132 = vpop.permute.xlu0 %2131
        %2133 = vrot.lane.b32.xlu0 %v1814, 12
        %v2134 = vpop.permute.xlu0 %2133
        %2135 = vrot.lane.b32.xlu0 %v1816, 12
        %v2136 = vpop.permute.xlu0 %2135
        %2137 = vrot.lane.b32.xlu0 %v1818, 12
        %v2138 = vpop.permute.xlu0 %2137
        %2139 = vrot.lane.b32.xlu0 %v1820, 12
        %v2140 = vpop.permute.xlu0 %2139
        %2141 = vrot.lane.b32.xlu0 %v1822, 12
        %v2142 = vpop.permute.xlu0 %2141
        %2143 = vrot.lane.b32.xlu0 %v1824, 12
        %v2144 = vpop.permute.xlu0 %2143
        %2145 = vrot.lane.b32.xlu0 %v1826, 12
        %v2146 = vpop.permute.xlu0 %2145
        %2147 = vrot.lane.b32.xlu0 %v1828, 12
        %v2148 = vpop.permute.xlu0 %2147
        %2149 = vrot.lane.b32.xlu0 %v1830, 12
        %v2150 = vpop.permute.xlu0 %2149
        %2151 = vrot.lane.b32.xlu0 %v1832, 12
        %v2152 = vpop.permute.xlu0 %2151
        %2153 = vrot.lane.b32.xlu0 %v1831, 12
        %v2154 = vpop.permute.xlu0 %2153
        %v2159 = vunpack.c.l.b16 %v601
        %v2160 = vunpack.c.l.b16 %v602
        %v2161 = vunpack.c.l.b16 %v603
        %v2162 = vunpack.c.l.b16 %v604
        %v2163 = vpack.c.b16 %v1022, %v2159
        %v2164 = vpack.c.b16 %v2160, %v1506
        %v2165 = vpack.c.b16 %v2162, %v2161
        %vm2166 = vcmask 1045504
        %v2167 = vrot.slane %v2163, 2
        %v2168 = vrot.slane %v1342, 2
        %v2169 = vsel %vm2166, %v2167, %v2168
        %v2170 = vrot.slane %v1343, 2
        %v2171 = vsel %vm2166, %v2168, %v2170
        %v2172 = vrot.slane %v1344, 2
        %v2173 = vsel %vm2166, %v2170, %v2172
        %v2174 = vrot.slane %v1345, 2
        %v2175 = vsel %vm2166, %v2172, %v2174
        %v2176 = vrot.slane %v1346, 2
        %v2177 = vsel %vm2166, %v2174, %v2176
        %v2178 = vrot.slane %v1347, 2
        %v2179 = vsel %vm2166, %v2176, %v2178
        %v2180 = vrot.slane %v1348, 2
        %v2181 = vsel %vm2166, %v2178, %v2180
        %v2182 = vrot.slane %v1349, 2
        %v2183 = vsel %vm2166, %v2180, %v2182
        %v2184 = vrot.slane %v1350, 2
        %v2185 = vsel %vm2166, %v2182, %v2184
        %v2186 = vrot.slane %v1351, 2
        %v2187 = vsel %vm2166, %v2184, %v2186
        %v2188 = vrot.slane %v1352, 2
        %v2189 = vsel %vm2166, %v2186, %v2188
        %v2190 = vrot.slane %v1353, 2
        %v2191 = vsel %vm2166, %v2188, %v2190
        %v2192 = vrot.slane %v1354, 2
        %v2193 = vsel %vm2166, %v2190, %v2192
        %v2194 = vrot.slane %v1355, 2
        %v2195 = vsel %vm2166, %v2192, %v2194
        %v2196 = vrot.slane %v1356, 2
        %v2197 = vsel %vm2166, %v2194, %v2196
        %v2198 = vrot.slane %v1357, 2
        %v2199 = vsel %vm2166, %v2196, %v2198
        %v2200 = vrot.slane %v1358, 2
        %v2201 = vsel %vm2166, %v2198, %v2200
        %v2202 = vrot.slane %v1359, 2
        %v2203 = vsel %vm2166, %v2200, %v2202
        %v2204 = vrot.slane %v1360, 2
        %v2205 = vsel %vm2166, %v2202, %v2204
        %v2206 = vrot.slane %v1361, 2
        %v2207 = vsel %vm2166, %v2204, %v2206
        %v2208 = vrot.slane %v1362, 2
        %v2209 = vsel %vm2166, %v2206, %v2208
        %v2210 = vrot.slane %v1363, 2
        %v2211 = vsel %vm2166, %v2208, %v2210
        %v2212 = vrot.slane %v1364, 2
        %v2213 = vsel %vm2166, %v2210, %v2212
        %v2214 = vrot.slane %v1365, 2
        %v2215 = vsel %vm2166, %v2212, %v2214
        %v2216 = vrot.slane %v1366, 2
        %v2217 = vsel %vm2166, %v2214, %v2216
        %v2218 = vrot.slane %v1367, 2
        %v2219 = vsel %vm2166, %v2216, %v2218
        %v2220 = vrot.slane %v1368, 2
        %v2221 = vsel %vm2166, %v2218, %v2220
        %v2222 = vrot.slane %v1369, 2
        %v2223 = vsel %vm2166, %v2220, %v2222
        %v2224 = vrot.slane %v1370, 2
        %v2225 = vsel %vm2166, %v2222, %v2224
        %v2226 = vrot.slane %v1371, 2
        %v2227 = vsel %vm2166, %v2224, %v2226
        %v2228 = vrot.slane %v1372, 2
        %v2229 = vsel %vm2166, %v2226, %v2228
        %v2230 = vrot.slane %v1373, 2
        %v2231 = vsel %vm2166, %v2228, %v2230
        %v2232 = vrot.slane %v1374, 2
        %v2233 = vsel %vm2166, %v2230, %v2232
        %v2234 = vrot.slane %v1375, 2
        %v2235 = vsel %vm2166, %v2232, %v2234
        %v2236 = vrot.slane %v1376, 2
        %v2237 = vsel %vm2166, %v2234, %v2236
        %v2238 = vrot.slane %v1377, 2
        %v2239 = vsel %vm2166, %v2236, %v2238
        %v2240 = vrot.slane %v1378, 2
        %v2241 = vsel %vm2166, %v2238, %v2240
        %v2242 = vrot.slane %v1379, 2
        %v2243 = vsel %vm2166, %v2240, %v2242
        %v2244 = vrot.slane %v1380, 2
        %v2245 = vsel %vm2166, %v2242, %v2244
        %v2246 = vrot.slane %v1381, 2
        %v2247 = vsel %vm2166, %v2244, %v2246
        %v2248 = vrot.slane %v1382, 2
        %v2249 = vsel %vm2166, %v2246, %v2248
        %v2250 = vrot.slane %v1383, 2
        %v2251 = vsel %vm2166, %v2248, %v2250
        %v2252 = vrot.slane %v1384, 2
        %v2253 = vsel %vm2166, %v2250, %v2252
        %v2254 = vrot.slane %v1385, 2
        %v2255 = vsel %vm2166, %v2252, %v2254
        %v2256 = vrot.slane %v1386, 2
        %v2257 = vsel %vm2166, %v2254, %v2256
        %v2258 = vrot.slane %v1387, 2
        %v2259 = vsel %vm2166, %v2256, %v2258
        %v2260 = vrot.slane %v1388, 2
        %v2261 = vsel %vm2166, %v2258, %v2260
        %v2262 = vrot.slane %v1389, 2
        %v2263 = vsel %vm2166, %v2260, %v2262
        %v2264 = vrot.slane %v1390, 2
        %v2265 = vsel %vm2166, %v2262, %v2264
        %v2266 = vrot.slane %v1391, 2
        %v2267 = vsel %vm2166, %v2264, %v2266
        %v2268 = vrot.slane %v1392, 2
        %v2269 = vsel %vm2166, %v2266, %v2268
        %v2270 = vrot.slane %v1393, 2
        %v2271 = vsel %vm2166, %v2268, %v2270
        %v2272 = vrot.slane %v1394, 2
        %v2273 = vsel %vm2166, %v2270, %v2272
        %v2274 = vrot.slane %v1395, 2
        %v2275 = vsel %vm2166, %v2272, %v2274
        %v2276 = vrot.slane %v1396, 2
        %v2277 = vsel %vm2166, %v2274, %v2276
        %v2278 = vrot.slane %v1397, 2
        %v2279 = vsel %vm2166, %v2276, %v2278
        %v2280 = vrot.slane %v1398, 2
        %v2281 = vsel %vm2166, %v2278, %v2280
        %v2282 = vrot.slane %v1399, 2
        %v2283 = vsel %vm2166, %v2280, %v2282
        %v2284 = vrot.slane %v1400, 2
        %v2285 = vsel %vm2166, %v2282, %v2284
        %v2286 = vrot.slane %v1401, 2
        %v2287 = vsel %vm2166, %v2284, %v2286
        %v2288 = vrot.slane %v1402, 2
        %v2289 = vsel %vm2166, %v2286, %v2288
        %v2290 = vrot.slane %v1403, 2
        %v2291 = vsel %vm2166, %v2288, %v2290
        %v2292 = vrot.slane %v1404, 2
        %v2293 = vsel %vm2166, %v2290, %v2292
        %v2294 = vrot.slane %v1405, 2
        %v2295 = vsel %vm2166, %v2292, %v2294
        %v2296 = vrot.slane %v1406, 2
        %v2297 = vsel %vm2166, %v2294, %v2296
        %v2298 = vrot.slane %v1407, 2
        %v2299 = vsel %vm2166, %v2296, %v2298
        %v2300 = vrot.slane %v1408, 2
        %v2301 = vsel %vm2166, %v2298, %v2300
        %v2302 = vrot.slane %v1409, 2
        %v2303 = vsel %vm2166, %v2300, %v2302
        %v2304 = vrot.slane %v1410, 2
        %v2305 = vsel %vm2166, %v2302, %v2304
        %v2306 = vrot.slane %v1411, 2
        %v2307 = vsel %vm2166, %v2304, %v2306
        %v2308 = vrot.slane %v1412, 2
        %v2309 = vsel %vm2166, %v2306, %v2308
        %v2310 = vrot.slane %v1413, 2
        %v2311 = vsel %vm2166, %v2308, %v2310
        %v2312 = vrot.slane %v1414, 2
        %v2313 = vsel %vm2166, %v2310, %v2312
        %v2314 = vrot.slane %v1415, 2
        %v2315 = vsel %vm2166, %v2312, %v2314
        %v2316 = vrot.slane %v1416, 2
        %v2317 = vsel %vm2166, %v2314, %v2316
        %v2318 = vrot.slane %v1417, 2
        %v2319 = vsel %vm2166, %v2316, %v2318
        %v2320 = vrot.slane %v1418, 2
        %v2321 = vsel %vm2166, %v2318, %v2320
        %v2322 = vrot.slane %v1419, 2
        %v2323 = vsel %vm2166, %v2320, %v2322
        %v2324 = vrot.slane %v1420, 2
        %v2325 = vsel %vm2166, %v2322, %v2324
        %v2326 = vrot.slane %v1421, 2
        %v2327 = vsel %vm2166, %v2324, %v2326
        %v2328 = vrot.slane %v1422, 2
        %v2329 = vsel %vm2166, %v2326, %v2328
        %v2330 = vrot.slane %v1423, 2
        %v2331 = vsel %vm2166, %v2328, %v2330
        %v2332 = vrot.slane %v1424, 2
        %v2333 = vsel %vm2166, %v2330, %v2332
        %v2334 = vrot.slane %v1425, 2
        %v2335 = vsel %vm2166, %v2332, %v2334
        %v2336 = vrot.slane %v1426, 2
        %v2337 = vsel %vm2166, %v2334, %v2336
        %v2338 = vrot.slane %v1427, 2
        %v2339 = vsel %vm2166, %v2336, %v2338
        %v2340 = vrot.slane %v1428, 2
        %v2341 = vsel %vm2166, %v2338, %v2340
        %v2342 = vrot.slane %v1429, 2
        %v2343 = vsel %vm2166, %v2340, %v2342
        %v2344 = vrot.slane %v1430, 2
        %v2345 = vsel %vm2166, %v2342, %v2344
        %v2346 = vrot.slane %v1431, 2
        %v2347 = vsel %vm2166, %v2344, %v2346
        %v2348 = vrot.slane %v1432, 2
        %v2349 = vsel %vm2166, %v2346, %v2348
        %v2350 = vrot.slane %v1433, 2
        %v2351 = vsel %vm2166, %v2348, %v2350
        %v2352 = vrot.slane %v1434, 2
        %v2353 = vsel %vm2166, %v2350, %v2352
        %v2354 = vrot.slane %v1435, 2
        %v2355 = vsel %vm2166, %v2352, %v2354
        %v2356 = vrot.slane %v1436, 2
        %v2357 = vsel %vm2166, %v2354, %v2356
        %v2358 = vrot.slane %v1437, 2
        %v2359 = vsel %vm2166, %v2356, %v2358
        %v2360 = vrot.slane %v1438, 2
        %v2361 = vsel %vm2166, %v2358, %v2360
        %v2362 = vrot.slane %v1439, 2
        %v2363 = vsel %vm2166, %v2360, %v2362
        %v2364 = vrot.slane %v1440, 2
        %v2365 = vsel %vm2166, %v2362, %v2364
        %v2366 = vrot.slane %v1441, 2
        %v2367 = vsel %vm2166, %v2364, %v2366
        %v2368 = vrot.slane %v1442, 2
        %v2369 = vsel %vm2166, %v2366, %v2368
        %v2370 = vrot.slane %v1443, 2
        %v2371 = vsel %vm2166, %v2368, %v2370
        %v2372 = vrot.slane %v1444, 2
        %v2373 = vsel %vm2166, %v2370, %v2372
        %v2374 = vrot.slane %v1445, 2
        %v2375 = vsel %vm2166, %v2372, %v2374
        %v2376 = vrot.slane %v1446, 2
        %v2377 = vsel %vm2166, %v2374, %v2376
        %v2378 = vrot.slane %v1447, 2
        %v2379 = vsel %vm2166, %v2376, %v2378
        %v2380 = vrot.slane %v1448, 2
        %v2381 = vsel %vm2166, %v2378, %v2380
        %v2382 = vrot.slane %v1449, 2
        %v2383 = vsel %vm2166, %v2380, %v2382
        %v2384 = vrot.slane %v1450, 2
        %v2385 = vsel %vm2166, %v2382, %v2384
        %v2386 = vrot.slane %v1451, 2
        %v2387 = vsel %vm2166, %v2384, %v2386
        %v2388 = vrot.slane %v1452, 2
        %v2389 = vsel %vm2166, %v2386, %v2388
        %v2390 = vrot.slane %v1453, 2
        %v2391 = vsel %vm2166, %v2388, %v2390
        %v2392 = vrot.slane %v1454, 2
        %v2393 = vsel %vm2166, %v2390, %v2392
        %v2394 = vrot.slane %v1455, 2
        %v2395 = vsel %vm2166, %v2392, %v2394
        %v2396 = vrot.slane %v1456, 2
        %v2397 = vsel %vm2166, %v2394, %v2396
        %v2398 = vrot.slane %v1457, 2
        %v2399 = vsel %vm2166, %v2396, %v2398
        %v2400 = vrot.slane %v1458, 2
        %v2401 = vsel %vm2166, %v2398, %v2400
        %v2402 = vrot.slane %v1459, 2
        %v2403 = vsel %vm2166, %v2400, %v2402
        %v2404 = vrot.slane %v1460, 2
        %v2405 = vsel %vm2166, %v2402, %v2404
        %v2406 = vrot.slane %v1461, 2
        %v2407 = vsel %vm2166, %v2404, %v2406
        %v2408 = vrot.slane %v1462, 2
        %v2409 = vsel %vm2166, %v2406, %v2408
        %v2410 = vrot.slane %v1463, 2
        %v2411 = vsel %vm2166, %v2408, %v2410
        %v2412 = vrot.slane %v1464, 2
        %v2413 = vsel %vm2166, %v2410, %v2412
        %v2414 = vrot.slane %v1465, 2
        %v2415 = vsel %vm2166, %v2412, %v2414
        %v2416 = vrot.slane %v1466, 2
        %v2417 = vsel %vm2166, %v2414, %v2416
        %v2418 = vrot.slane %v1467, 2
        %v2419 = vsel %vm2166, %v2416, %v2418
        %v2420 = vrot.slane %v1468, 2
        %v2421 = vsel %vm2166, %v2418, %v2420
        %v2422 = vrot.slane %v1469, 2
        %v2423 = vsel %vm2166, %v2420, %v2422
        %v2424 = vrot.slane %v1470, 2
        %v2425 = vsel %vm2166, %v2422, %v2424
        %v2426 = vrot.slane %v1471, 2
        %v2427 = vsel %vm2166, %v2424, %v2426
        %v2428 = vrot.slane %v1472, 2
        %v2429 = vsel %vm2166, %v2426, %v2428
        %v2430 = vrot.slane %v1473, 2
        %v2431 = vsel %vm2166, %v2428, %v2430
        %v2432 = vrot.slane %v1474, 2
        %v2433 = vsel %vm2166, %v2430, %v2432
        %v2434 = vrot.slane %v1475, 2
        %v2435 = vsel %vm2166, %v2432, %v2434
        %v2436 = vrot.slane %v1476, 2
        %v2437 = vsel %vm2166, %v2434, %v2436
        %v2438 = vrot.slane %v1477, 2
        %v2439 = vsel %vm2166, %v2436, %v2438
        %v2440 = vrot.slane %v1478, 2
        %v2441 = vsel %vm2166, %v2438, %v2440
        %v2442 = vrot.slane %v1479, 2
        %v2443 = vsel %vm2166, %v2440, %v2442
        %v2444 = vrot.slane %v1480, 2
        %v2445 = vsel %vm2166, %v2442, %v2444
        %v2446 = vrot.slane %v1481, 2
        %v2447 = vsel %vm2166, %v2444, %v2446
        %v2448 = vrot.slane %v1482, 2
        %v2449 = vsel %vm2166, %v2446, %v2448
        %v2450 = vrot.slane %v1483, 2
        %v2451 = vsel %vm2166, %v2448, %v2450
        %v2452 = vrot.slane %v1484, 2
        %v2453 = vsel %vm2166, %v2450, %v2452
        %v2454 = vrot.slane %v1485, 2
        %v2455 = vsel %vm2166, %v2452, %v2454
        %v2456 = vrot.slane %v1486, 2
        %v2457 = vsel %vm2166, %v2454, %v2456
        %v2458 = vrot.slane %v1487, 2
        %v2459 = vsel %vm2166, %v2456, %v2458
        %v2460 = vrot.slane %v1488, 2
        %v2461 = vsel %vm2166, %v2458, %v2460
        %v2462 = vrot.slane %v1489, 2
        %v2463 = vsel %vm2166, %v2460, %v2462
        %v2464 = vrot.slane %v1490, 2
        %v2465 = vsel %vm2166, %v2462, %v2464
        %v2466 = vrot.slane %v1491, 2
        %v2467 = vsel %vm2166, %v2464, %v2466
        %v2468 = vrot.slane %v1492, 2
        %v2469 = vsel %vm2166, %v2466, %v2468
        %v2470 = vrot.slane %v1493, 2
        %v2471 = vsel %vm2166, %v2468, %v2470
        %v2472 = vrot.slane %v1494, 2
        %v2473 = vsel %vm2166, %v2470, %v2472
        %v2474 = vrot.slane %v1495, 2
        %v2475 = vsel %vm2166, %v2472, %v2474
        %v2476 = vrot.slane %v1496, 2
        %v2477 = vsel %vm2166, %v2474, %v2476
        %v2478 = vrot.slane %v1497, 2
        %v2479 = vsel %vm2166, %v2476, %v2478
        %v2480 = vrot.slane %v1498, 2
        %v2481 = vsel %vm2166, %v2478, %v2480
        %v2482 = vrot.slane %v1509, 2
        %v2483 = vsel %vm2166, %v2480, %v2482
        %v2484 = vrot.slane %v2164, 2
        %v2485 = vsel %vm2166, %v2482, %v2484
        %v2486 = vrot.slane %v2165, 2
        %v2487 = vsel %vm2166, %v2484, %v2486
        %2488 = vrot.lane.b32.xlu0 %v2169, 24
        %v2489 = vpop.permute.xlu0 %2488
        %2490 = vrot.lane.b32.xlu0 %v2171, 24
        %v2491 = vpop.permute.xlu0 %2490
        %2492 = vrot.lane.b32.xlu0 %v2173, 24
        %v2493 = vpop.permute.xlu0 %2492
        %2494 = vrot.lane.b32.xlu0 %v2175, 24
        %v2495 = vpop.permute.xlu0 %2494
        %2496 = vrot.lane.b32.xlu0 %v2177, 24
        %v2497 = vpop.permute.xlu0 %2496
        %2498 = vrot.lane.b32.xlu0 %v2179, 24
        %v2499 = vpop.permute.xlu0 %2498
        %2500 = vrot.lane.b32.xlu0 %v2181, 24
        %v2501 = vpop.permute.xlu0 %2500
        %2502 = vrot.lane.b32.xlu0 %v2183, 24
        %v2503 = vpop.permute.xlu0 %2502
        %2504 = vrot.lane.b32.xlu0 %v2185, 24
        %v2505 = vpop.permute.xlu0 %2504
        %2506 = vrot.lane.b32.xlu0 %v2187, 24
        %v2507 = vpop.permute.xlu0 %2506
        %2508 = vrot.lane.b32.xlu0 %v2189, 24
        %v2509 = vpop.permute.xlu0 %2508
        %2510 = vrot.lane.b32.xlu0 %v2191, 24
        %v2511 = vpop.permute.xlu0 %2510
        %2512 = vrot.lane.b32.xlu0 %v2193, 24
        %v2513 = vpop.permute.xlu0 %2512
        %2514 = vrot.lane.b32.xlu0 %v2195, 24
        %v2515 = vpop.permute.xlu0 %2514
        %2516 = vrot.lane.b32.xlu0 %v2197, 24
        %v2517 = vpop.permute.xlu0 %2516
        %2518 = vrot.lane.b32.xlu0 %v2199, 24
        %v2519 = vpop.permute.xlu0 %2518
        %2520 = vrot.lane.b32.xlu0 %v2201, 24
        %v2521 = vpop.permute.xlu0 %2520
        %2522 = vrot.lane.b32.xlu0 %v2203, 24
        %v2523 = vpop.permute.xlu0 %2522
        %2524 = vrot.lane.b32.xlu0 %v2205, 24
        %v2525 = vpop.permute.xlu0 %2524
        %2526 = vrot.lane.b32.xlu0 %v2207, 24
        %v2527 = vpop.permute.xlu0 %2526
        %2528 = vrot.lane.b32.xlu0 %v2209, 24
        %v2529 = vpop.permute.xlu0 %2528
        %2530 = vrot.lane.b32.xlu0 %v2211, 24
        %v2531 = vpop.permute.xlu0 %2530
        %2532 = vrot.lane.b32.xlu0 %v2213, 24
        %v2533 = vpop.permute.xlu0 %2532
        %2534 = vrot.lane.b32.xlu0 %v2215, 24
        %v2535 = vpop.permute.xlu0 %2534
        %2536 = vrot.lane.b32.xlu0 %v2217, 24
        %v2537 = vpop.permute.xlu0 %2536
        %2538 = vrot.lane.b32.xlu0 %v2219, 24
        %v2539 = vpop.permute.xlu0 %2538
        %2540 = vrot.lane.b32.xlu0 %v2221, 24
        %v2541 = vpop.permute.xlu0 %2540
        %2542 = vrot.lane.b32.xlu0 %v2223, 24
        %v2543 = vpop.permute.xlu0 %2542
        %2544 = vrot.lane.b32.xlu0 %v2225, 24
        %v2545 = vpop.permute.xlu0 %2544
        %2546 = vrot.lane.b32.xlu0 %v2227, 24
        %v2547 = vpop.permute.xlu0 %2546
        %2548 = vrot.lane.b32.xlu0 %v2229, 24
        %v2549 = vpop.permute.xlu0 %2548
        %2550 = vrot.lane.b32.xlu0 %v2231, 24
        %v2551 = vpop.permute.xlu0 %2550
        %2552 = vrot.lane.b32.xlu0 %v2233, 24
        %v2553 = vpop.permute.xlu0 %2552
        %2554 = vrot.lane.b32.xlu0 %v2235, 24
        %v2555 = vpop.permute.xlu0 %2554
        %2556 = vrot.lane.b32.xlu0 %v2237, 24
        %v2557 = vpop.permute.xlu0 %2556
        %2558 = vrot.lane.b32.xlu0 %v2239, 24
        %v2559 = vpop.permute.xlu0 %2558
        %2560 = vrot.lane.b32.xlu0 %v2241, 24
        %v2561 = vpop.permute.xlu0 %2560
        %2562 = vrot.lane.b32.xlu0 %v2243, 24
        %v2563 = vpop.permute.xlu0 %2562
        %2564 = vrot.lane.b32.xlu0 %v2245, 24
        %v2565 = vpop.permute.xlu0 %2564
        %2566 = vrot.lane.b32.xlu0 %v2247, 24
        %v2567 = vpop.permute.xlu0 %2566
        %2568 = vrot.lane.b32.xlu0 %v2249, 24
        %v2569 = vpop.permute.xlu0 %2568
        %2570 = vrot.lane.b32.xlu0 %v2251, 24
        %v2571 = vpop.permute.xlu0 %2570
        %2572 = vrot.lane.b32.xlu0 %v2253, 24
        %v2573 = vpop.permute.xlu0 %2572
        %2574 = vrot.lane.b32.xlu0 %v2255, 24
        %v2575 = vpop.permute.xlu0 %2574
        %2576 = vrot.lane.b32.xlu0 %v2257, 24
        %v2577 = vpop.permute.xlu0 %2576
        %2578 = vrot.lane.b32.xlu0 %v2259, 24
        %v2579 = vpop.permute.xlu0 %2578
        %2580 = vrot.lane.b32.xlu0 %v2261, 24
        %v2581 = vpop.permute.xlu0 %2580
        %2582 = vrot.lane.b32.xlu0 %v2263, 24
        %v2583 = vpop.permute.xlu0 %2582
        %2584 = vrot.lane.b32.xlu0 %v2265, 24
        %v2585 = vpop.permute.xlu0 %2584
        %2586 = vrot.lane.b32.xlu0 %v2267, 24
        %v2587 = vpop.permute.xlu0 %2586
        %2588 = vrot.lane.b32.xlu0 %v2269, 24
        %v2589 = vpop.permute.xlu0 %2588
        %2590 = vrot.lane.b32.xlu0 %v2271, 24
        %v2591 = vpop.permute.xlu0 %2590
        %2592 = vrot.lane.b32.xlu0 %v2273, 24
        %v2593 = vpop.permute.xlu0 %2592
        %2594 = vrot.lane.b32.xlu0 %v2275, 24
        %v2595 = vpop.permute.xlu0 %2594
        %2596 = vrot.lane.b32.xlu0 %v2277, 24
        %v2597 = vpop.permute.xlu0 %2596
        %2598 = vrot.lane.b32.xlu0 %v2279, 24
        %v2599 = vpop.permute.xlu0 %2598
        %2600 = vrot.lane.b32.xlu0 %v2281, 24
        %v2601 = vpop.permute.xlu0 %2600
        %2602 = vrot.lane.b32.xlu0 %v2283, 24
        %v2603 = vpop.permute.xlu0 %2602
        %2604 = vrot.lane.b32.xlu0 %v2285, 24
        %v2605 = vpop.permute.xlu0 %2604
        %2606 = vrot.lane.b32.xlu0 %v2287, 24
        %v2607 = vpop.permute.xlu0 %2606
        %2608 = vrot.lane.b32.xlu0 %v2289, 24
        %v2609 = vpop.permute.xlu0 %2608
        %2610 = vrot.lane.b32.xlu0 %v2291, 24
        %v2611 = vpop.permute.xlu0 %2610
        %2612 = vrot.lane.b32.xlu0 %v2293, 24
        %v2613 = vpop.permute.xlu0 %2612
        %2614 = vrot.lane.b32.xlu0 %v2295, 24
        %v2615 = vpop.permute.xlu0 %2614
        %2616 = vrot.lane.b32.xlu0 %v2297, 24
        %v2617 = vpop.permute.xlu0 %2616
        %2618 = vrot.lane.b32.xlu0 %v2299, 24
        %v2619 = vpop.permute.xlu0 %2618
        %2620 = vrot.lane.b32.xlu0 %v2301, 24
        %v2621 = vpop.permute.xlu0 %2620
        %2622 = vrot.lane.b32.xlu0 %v2303, 24
        %v2623 = vpop.permute.xlu0 %2622
        %2624 = vrot.lane.b32.xlu0 %v2305, 24
        %v2625 = vpop.permute.xlu0 %2624
        %2626 = vrot.lane.b32.xlu0 %v2307, 24
        %v2627 = vpop.permute.xlu0 %2626
        %2628 = vrot.lane.b32.xlu0 %v2309, 24
        %v2629 = vpop.permute.xlu0 %2628
        %2630 = vrot.lane.b32.xlu0 %v2311, 24
        %v2631 = vpop.permute.xlu0 %2630
        %2632 = vrot.lane.b32.xlu0 %v2313, 24
        %v2633 = vpop.permute.xlu0 %2632
        %2634 = vrot.lane.b32.xlu0 %v2315, 24
        %v2635 = vpop.permute.xlu0 %2634
        %2636 = vrot.lane.b32.xlu0 %v2317, 24
        %v2637 = vpop.permute.xlu0 %2636
        %2638 = vrot.lane.b32.xlu0 %v2319, 24
        %v2639 = vpop.permute.xlu0 %2638
        %2640 = vrot.lane.b32.xlu0 %v2321, 24
        %v2641 = vpop.permute.xlu0 %2640
        %2642 = vrot.lane.b32.xlu0 %v2323, 24
        %v2643 = vpop.permute.xlu0 %2642
        %2644 = vrot.lane.b32.xlu0 %v2325, 24
        %v2645 = vpop.permute.xlu0 %2644
        %2646 = vrot.lane.b32.xlu0 %v2327, 24
        %v2647 = vpop.permute.xlu0 %2646
        %2648 = vrot.lane.b32.xlu0 %v2329, 24
        %v2649 = vpop.permute.xlu0 %2648
        %2650 = vrot.lane.b32.xlu0 %v2331, 24
        %v2651 = vpop.permute.xlu0 %2650
        %2652 = vrot.lane.b32.xlu0 %v2333, 24
        %v2653 = vpop.permute.xlu0 %2652
        %2654 = vrot.lane.b32.xlu0 %v2335, 24
        %v2655 = vpop.permute.xlu0 %2654
        %2656 = vrot.lane.b32.xlu0 %v2337, 24
        %v2657 = vpop.permute.xlu0 %2656
        %2658 = vrot.lane.b32.xlu0 %v2339, 24
        %v2659 = vpop.permute.xlu0 %2658
        %2660 = vrot.lane.b32.xlu0 %v2341, 24
        %v2661 = vpop.permute.xlu0 %2660
        %2662 = vrot.lane.b32.xlu0 %v2343, 24
        %v2663 = vpop.permute.xlu0 %2662
        %2664 = vrot.lane.b32.xlu0 %v2345, 24
        %v2665 = vpop.permute.xlu0 %2664
        %2666 = vrot.lane.b32.xlu0 %v2347, 24
        %v2667 = vpop.permute.xlu0 %2666
        %2668 = vrot.lane.b32.xlu0 %v2349, 24
        %v2669 = vpop.permute.xlu0 %2668
        %2670 = vrot.lane.b32.xlu0 %v2351, 24
        %v2671 = vpop.permute.xlu0 %2670
        %2672 = vrot.lane.b32.xlu0 %v2353, 24
        %v2673 = vpop.permute.xlu0 %2672
        %2674 = vrot.lane.b32.xlu0 %v2355, 24
        %v2675 = vpop.permute.xlu0 %2674
        %2676 = vrot.lane.b32.xlu0 %v2357, 24
        %v2677 = vpop.permute.xlu0 %2676
        %2678 = vrot.lane.b32.xlu0 %v2359, 24
        %v2679 = vpop.permute.xlu0 %2678
        %2680 = vrot.lane.b32.xlu0 %v2361, 24
        %v2681 = vpop.permute.xlu0 %2680
        %2682 = vrot.lane.b32.xlu0 %v2363, 24
        %v2683 = vpop.permute.xlu0 %2682
        %2684 = vrot.lane.b32.xlu0 %v2365, 24
        %v2685 = vpop.permute.xlu0 %2684
        %2686 = vrot.lane.b32.xlu0 %v2367, 24
        %v2687 = vpop.permute.xlu0 %2686
        %2688 = vrot.lane.b32.xlu0 %v2369, 24
        %v2689 = vpop.permute.xlu0 %2688
        %2690 = vrot.lane.b32.xlu0 %v2371, 24
        %v2691 = vpop.permute.xlu0 %2690
        %2692 = vrot.lane.b32.xlu0 %v2373, 24
        %v2693 = vpop.permute.xlu0 %2692
        %2694 = vrot.lane.b32.xlu0 %v2375, 24
        %v2695 = vpop.permute.xlu0 %2694
        %2696 = vrot.lane.b32.xlu0 %v2377, 24
        %v2697 = vpop.permute.xlu0 %2696
        %2698 = vrot.lane.b32.xlu0 %v2379, 24
        %v2699 = vpop.permute.xlu0 %2698
        %2700 = vrot.lane.b32.xlu0 %v2381, 24
        %v2701 = vpop.permute.xlu0 %2700
        %2702 = vrot.lane.b32.xlu0 %v2383, 24
        %v2703 = vpop.permute.xlu0 %2702
        %2704 = vrot.lane.b32.xlu0 %v2385, 24
        %v2705 = vpop.permute.xlu0 %2704
        %2706 = vrot.lane.b32.xlu0 %v2387, 24
        %v2707 = vpop.permute.xlu0 %2706
        %2708 = vrot.lane.b32.xlu0 %v2389, 24
        %v2709 = vpop.permute.xlu0 %2708
        %2710 = vrot.lane.b32.xlu0 %v2391, 24
        %v2711 = vpop.permute.xlu0 %2710
        %2712 = vrot.lane.b32.xlu0 %v2393, 24
        %v2713 = vpop.permute.xlu0 %2712
        %2714 = vrot.lane.b32.xlu0 %v2395, 24
        %v2715 = vpop.permute.xlu0 %2714
        %2716 = vrot.lane.b32.xlu0 %v2397, 24
        %v2717 = vpop.permute.xlu0 %2716
        %2718 = vrot.lane.b32.xlu0 %v2399, 24
        %v2719 = vpop.permute.xlu0 %2718
        %2720 = vrot.lane.b32.xlu0 %v2401, 24
        %v2721 = vpop.permute.xlu0 %2720
        %2722 = vrot.lane.b32.xlu0 %v2403, 24
        %v2723 = vpop.permute.xlu0 %2722
        %2724 = vrot.lane.b32.xlu0 %v2405, 24
        %v2725 = vpop.permute.xlu0 %2724
        %2726 = vrot.lane.b32.xlu0 %v2407, 24
        %v2727 = vpop.permute.xlu0 %2726
        %2728 = vrot.lane.b32.xlu0 %v2409, 24
        %v2729 = vpop.permute.xlu0 %2728
        %2730 = vrot.lane.b32.xlu0 %v2411, 24
        %v2731 = vpop.permute.xlu0 %2730
        %2732 = vrot.lane.b32.xlu0 %v2413, 24
        %v2733 = vpop.permute.xlu0 %2732
        %2734 = vrot.lane.b32.xlu0 %v2415, 24
        %v2735 = vpop.permute.xlu0 %2734
        %2736 = vrot.lane.b32.xlu0 %v2417, 24
        %v2737 = vpop.permute.xlu0 %2736
        %2738 = vrot.lane.b32.xlu0 %v2419, 24
        %v2739 = vpop.permute.xlu0 %2738
        %2740 = vrot.lane.b32.xlu0 %v2421, 24
        %v2741 = vpop.permute.xlu0 %2740
        %2742 = vrot.lane.b32.xlu0 %v2423, 24
        %v2743 = vpop.permute.xlu0 %2742
        %2744 = vrot.lane.b32.xlu0 %v2425, 24
        %v2745 = vpop.permute.xlu0 %2744
        %2746 = vrot.lane.b32.xlu0 %v2427, 24
        %v2747 = vpop.permute.xlu0 %2746
        %2748 = vrot.lane.b32.xlu0 %v2429, 24
        %v2749 = vpop.permute.xlu0 %2748
        %2750 = vrot.lane.b32.xlu0 %v2431, 24
        %v2751 = vpop.permute.xlu0 %2750
        %2752 = vrot.lane.b32.xlu0 %v2433, 24
        %v2753 = vpop.permute.xlu0 %2752
        %2754 = vrot.lane.b32.xlu0 %v2435, 24
        %v2755 = vpop.permute.xlu0 %2754
        %2756 = vrot.lane.b32.xlu0 %v2437, 24
        %v2757 = vpop.permute.xlu0 %2756
        %2758 = vrot.lane.b32.xlu0 %v2439, 24
        %v2759 = vpop.permute.xlu0 %2758
        %2760 = vrot.lane.b32.xlu0 %v2441, 24
        %v2761 = vpop.permute.xlu0 %2760
        %2762 = vrot.lane.b32.xlu0 %v2443, 24
        %v2763 = vpop.permute.xlu0 %2762
        %2764 = vrot.lane.b32.xlu0 %v2445, 24
        %v2765 = vpop.permute.xlu0 %2764
        %2766 = vrot.lane.b32.xlu0 %v2447, 24
        %v2767 = vpop.permute.xlu0 %2766
        %2768 = vrot.lane.b32.xlu0 %v2449, 24
        %v2769 = vpop.permute.xlu0 %2768
        %2770 = vrot.lane.b32.xlu0 %v2451, 24
        %v2771 = vpop.permute.xlu0 %2770
        %2772 = vrot.lane.b32.xlu0 %v2453, 24
        %v2773 = vpop.permute.xlu0 %2772
        %2774 = vrot.lane.b32.xlu0 %v2455, 24
        %v2775 = vpop.permute.xlu0 %2774
        %2776 = vrot.lane.b32.xlu0 %v2457, 24
        %v2777 = vpop.permute.xlu0 %2776
        %2778 = vrot.lane.b32.xlu0 %v2459, 24
        %v2779 = vpop.permute.xlu0 %2778
        %2780 = vrot.lane.b32.xlu0 %v2461, 24
        %v2781 = vpop.permute.xlu0 %2780
        %2782 = vrot.lane.b32.xlu0 %v2463, 24
        %v2783 = vpop.permute.xlu0 %2782
        %2784 = vrot.lane.b32.xlu0 %v2465, 24
        %v2785 = vpop.permute.xlu0 %2784
        %2786 = vrot.lane.b32.xlu0 %v2467, 24
        %v2787 = vpop.permute.xlu0 %2786
        %2788 = vrot.lane.b32.xlu0 %v2469, 24
        %v2789 = vpop.permute.xlu0 %2788
        %2790 = vrot.lane.b32.xlu0 %v2471, 24
        %v2791 = vpop.permute.xlu0 %2790
        %2792 = vrot.lane.b32.xlu0 %v2473, 24
        %v2793 = vpop.permute.xlu0 %2792
        %2794 = vrot.lane.b32.xlu0 %v2475, 24
        %v2795 = vpop.permute.xlu0 %2794
        %2796 = vrot.lane.b32.xlu0 %v2477, 24
        %v2797 = vpop.permute.xlu0 %2796
        %2798 = vrot.lane.b32.xlu0 %v2479, 24
        %v2799 = vpop.permute.xlu0 %2798
        %2800 = vrot.lane.b32.xlu0 %v2481, 24
        %v2801 = vpop.permute.xlu0 %2800
        %2802 = vrot.lane.b32.xlu0 %v2483, 24
        %v2803 = vpop.permute.xlu0 %2802
        %2804 = vrot.lane.b32.xlu0 %v2485, 24
        %v2805 = vpop.permute.xlu0 %2804
        %2806 = vrot.lane.b32.xlu0 %v2487, 24
        %v2807 = vpop.permute.xlu0 %2806
        %2808 = vrot.lane.b32.xlu0 %v2486, 24
        %v2809 = vpop.permute.xlu0 %2808
        %v2848 = vunpack.c.l.b16 %v605
        %v2849 = vunpack.c.l.b16 %v606
        %v2850 = vunpack.c.l.b16 %v607
        %v2851 = vunpack.c.l.b16 %v608
        %v2852 = vunpack.c.l.b16 %v609
        %v2853 = vunpack.c.l.b16 %v610
        %v2854 = vunpack.c.l.b16 %v611
        %v2855 = vunpack.c.l.b16 %v612
        %v2856 = vunpack.c.l.b16 %v613
        %v2857 = vunpack.c.l.b16 %v614
        %v2858 = vunpack.c.l.b16 %v615
        %v2859 = vunpack.c.l.b16 %v616
        %v2860 = vunpack.c.l.b16 %v617
        %v2861 = vunpack.c.l.b16 %v618
        %v2862 = vunpack.c.l.b16 %v619
        %v2863 = vunpack.c.l.b16 %v620
        %v2864 = vunpack.c.l.b16 %v621
        %v2865 = vunpack.c.l.b16 %v622
        %v2866 = vunpack.c.l.b16 %v623
        %v2867 = vunpack.c.l.b16 %v624
        %v2868 = vunpack.c.l.b16 %v625
        %v2869 = vunpack.c.l.b16 %v626
        %v2870 = vunpack.c.l.b16 %v627
        %v2871 = vunpack.c.l.b16 %v628
        %v2872 = vunpack.c.l.b16 %v629
        %v2873 = vunpack.c.l.b16 %v630
        %v2874 = vunpack.c.l.b16 %v631
        %v2875 = vunpack.c.l.b16 %v632
        %v2876 = vunpack.c.l.b16 %v633
        %v2877 = vunpack.c.l.b16 %v634
        %v2878 = vunpack.c.l.b16 %v635
        %v2879 = vunpack.c.l.b16 %v636
        %v2880 = vunpack.c.l.b16 %v637
        %v2881 = vunpack.c.l.b16 %v638
        %v2882 = vunpack.c.l.b16 %v639
        %v2883 = vunpack.c.l.b16 %v640
        %v2884 = vunpack.c.l.b16 %v641
        %v2885 = vunpack.c.l.b16 %v642
        %v2886 = vpack.c.b16 %v1058, %v2848
        %v2887 = vpack.c.b16 %v2849, %v2161
        %v2888 = vpack.c.b16 %v2851, %v2850
        %v2889 = vpack.c.b16 %v2853, %v2852
        %v2890 = vpack.c.b16 %v2855, %v2854
        %v2891 = vpack.c.b16 %v2857, %v2856
        %v2892 = vpack.c.b16 %v2859, %v2858
        %v2893 = vpack.c.b16 %v2861, %v2860
        %v2894 = vpack.c.b16 %v2863, %v2862
        %v2895 = vpack.c.b16 %v2865, %v2864
        %v2896 = vpack.c.b16 %v2867, %v2866
        %v2897 = vpack.c.b16 %v2869, %v2868
        %v2898 = vpack.c.b16 %v2871, %v2870
        %v2899 = vpack.c.b16 %v2873, %v2872
        %v2900 = vpack.c.b16 %v2875, %v2874
        %v2901 = vpack.c.b16 %v2877, %v2876
        %v2902 = vpack.c.b16 %v2879, %v2878
        %v2903 = vpack.c.b16 %v2881, %v2880
        %v2904 = vpack.c.b16 %v2883, %v2882
        %v2905 = vpack.c.b16 %v2885, %v2884
        %vm2906 = vcmask 1044480
        %v2907 = vrot.slane %v2886, 3
        %v2908 = vrot.slane %v1360, 3
        %v2909 = vsel %vm2906, %v2907, %v2908
        %v2910 = vrot.slane %v1361, 3
        %v2911 = vsel %vm2906, %v2908, %v2910
        %v2912 = vrot.slane %v1362, 3
        %v2913 = vsel %vm2906, %v2910, %v2912
        %v2914 = vrot.slane %v1363, 3
        %v2915 = vsel %vm2906, %v2912, %v2914
        %v2916 = vrot.slane %v1364, 3
        %v2917 = vsel %vm2906, %v2914, %v2916
        %v2918 = vrot.slane %v1365, 3
        %v2919 = vsel %vm2906, %v2916, %v2918
        %v2920 = vrot.slane %v1366, 3
        %v2921 = vsel %vm2906, %v2918, %v2920
        %v2922 = vrot.slane %v1367, 3
        %v2923 = vsel %vm2906, %v2920, %v2922
        %v2924 = vrot.slane %v1368, 3
        %v2925 = vsel %vm2906, %v2922, %v2924
        %v2926 = vrot.slane %v1369, 3
        %v2927 = vsel %vm2906, %v2924, %v2926
        %v2928 = vrot.slane %v1370, 3
        %v2929 = vsel %vm2906, %v2926, %v2928
        %v2930 = vrot.slane %v1371, 3
        %v2931 = vsel %vm2906, %v2928, %v2930
        %v2932 = vrot.slane %v1372, 3
        %v2933 = vsel %vm2906, %v2930, %v2932
        %v2934 = vrot.slane %v1373, 3
        %v2935 = vsel %vm2906, %v2932, %v2934
        %v2936 = vrot.slane %v1374, 3
        %v2937 = vsel %vm2906, %v2934, %v2936
        %v2938 = vrot.slane %v1375, 3
        %v2939 = vsel %vm2906, %v2936, %v2938
        %v2940 = vrot.slane %v1376, 3
        %v2941 = vsel %vm2906, %v2938, %v2940
        %v2942 = vrot.slane %v1377, 3
        %v2943 = vsel %vm2906, %v2940, %v2942
        %v2944 = vrot.slane %v1378, 3
        %v2945 = vsel %vm2906, %v2942, %v2944
        %v2946 = vrot.slane %v1379, 3
        %v2947 = vsel %vm2906, %v2944, %v2946
        %v2948 = vrot.slane %v1380, 3
        %v2949 = vsel %vm2906, %v2946, %v2948
        %v2950 = vrot.slane %v1381, 3
        %v2951 = vsel %vm2906, %v2948, %v2950
        %v2952 = vrot.slane %v1382, 3
        %v2953 = vsel %vm2906, %v2950, %v2952
        %v2954 = vrot.slane %v1383, 3
        %v2955 = vsel %vm2906, %v2952, %v2954
        %v2956 = vrot.slane %v1384, 3
        %v2957 = vsel %vm2906, %v2954, %v2956
        %v2958 = vrot.slane %v1385, 3
        %v2959 = vsel %vm2906, %v2956, %v2958
        %v2960 = vrot.slane %v1386, 3
        %v2961 = vsel %vm2906, %v2958, %v2960
        %v2962 = vrot.slane %v1387, 3
        %v2963 = vsel %vm2906, %v2960, %v2962
        %v2964 = vrot.slane %v1388, 3
        %v2965 = vsel %vm2906, %v2962, %v2964
        %v2966 = vrot.slane %v1389, 3
        %v2967 = vsel %vm2906, %v2964, %v2966
        %v2968 = vrot.slane %v1390, 3
        %v2969 = vsel %vm2906, %v2966, %v2968
        %v2970 = vrot.slane %v1391, 3
        %v2971 = vsel %vm2906, %v2968, %v2970
        %v2972 = vrot.slane %v1392, 3
        %v2973 = vsel %vm2906, %v2970, %v2972
        %v2974 = vrot.slane %v1393, 3
        %v2975 = vsel %vm2906, %v2972, %v2974
        %v2976 = vrot.slane %v1394, 3
        %v2977 = vsel %vm2906, %v2974, %v2976
        %v2978 = vrot.slane %v1395, 3
        %v2979 = vsel %vm2906, %v2976, %v2978
        %v2980 = vrot.slane %v1396, 3
        %v2981 = vsel %vm2906, %v2978, %v2980
        %v2982 = vrot.slane %v1397, 3
        %v2983 = vsel %vm2906, %v2980, %v2982
        %v2984 = vrot.slane %v1398, 3
        %v2985 = vsel %vm2906, %v2982, %v2984
        %v2986 = vrot.slane %v1399, 3
        %v2987 = vsel %vm2906, %v2984, %v2986
        %v2988 = vrot.slane %v1400, 3
        %v2989 = vsel %vm2906, %v2986, %v2988
        %v2990 = vrot.slane %v1401, 3
        %v2991 = vsel %vm2906, %v2988, %v2990
        %v2992 = vrot.slane %v1402, 3
        %v2993 = vsel %vm2906, %v2990, %v2992
        %v2994 = vrot.slane %v1403, 3
        %v2995 = vsel %vm2906, %v2992, %v2994
        %v2996 = vrot.slane %v1404, 3
        %v2997 = vsel %vm2906, %v2994, %v2996
        %v2998 = vrot.slane %v1405, 3
        %v2999 = vsel %vm2906, %v2996, %v2998
        %v3000 = vrot.slane %v1406, 3
        %v3001 = vsel %vm2906, %v2998, %v3000
        %v3002 = vrot.slane %v1407, 3
        %v3003 = vsel %vm2906, %v3000, %v3002
        %v3004 = vrot.slane %v1408, 3
        %v3005 = vsel %vm2906, %v3002, %v3004
        %v3006 = vrot.slane %v1409, 3
        %v3007 = vsel %vm2906, %v3004, %v3006
        %v3008 = vrot.slane %v1410, 3
        %v3009 = vsel %vm2906, %v3006, %v3008
        %v3010 = vrot.slane %v1411, 3
        %v3011 = vsel %vm2906, %v3008, %v3010
        %v3012 = vrot.slane %v1412, 3
        %v3013 = vsel %vm2906, %v3010, %v3012
        %v3014 = vrot.slane %v1413, 3
        %v3015 = vsel %vm2906, %v3012, %v3014
        %v3016 = vrot.slane %v1414, 3
        %v3017 = vsel %vm2906, %v3014, %v3016
        %v3018 = vrot.slane %v1415, 3
        %v3019 = vsel %vm2906, %v3016, %v3018
        %v3020 = vrot.slane %v1416, 3
        %v3021 = vsel %vm2906, %v3018, %v3020
        %v3022 = vrot.slane %v1417, 3
        %v3023 = vsel %vm2906, %v3020, %v3022
        %v3024 = vrot.slane %v1418, 3
        %v3025 = vsel %vm2906, %v3022, %v3024
        %v3026 = vrot.slane %v1419, 3
        %v3027 = vsel %vm2906, %v3024, %v3026
        %v3028 = vrot.slane %v1420, 3
        %v3029 = vsel %vm2906, %v3026, %v3028
        %v3030 = vrot.slane %v1421, 3
        %v3031 = vsel %vm2906, %v3028, %v3030
        %v3032 = vrot.slane %v1422, 3
        %v3033 = vsel %vm2906, %v3030, %v3032
        %v3034 = vrot.slane %v1423, 3
        %v3035 = vsel %vm2906, %v3032, %v3034
        %v3036 = vrot.slane %v1424, 3
        %v3037 = vsel %vm2906, %v3034, %v3036
        %v3038 = vrot.slane %v1425, 3
        %v3039 = vsel %vm2906, %v3036, %v3038
        %v3040 = vrot.slane %v1426, 3
        %v3041 = vsel %vm2906, %v3038, %v3040
        %v3042 = vrot.slane %v1427, 3
        %v3043 = vsel %vm2906, %v3040, %v3042
        %v3044 = vrot.slane %v1428, 3
        %v3045 = vsel %vm2906, %v3042, %v3044
        %v3046 = vrot.slane %v1429, 3
        %v3047 = vsel %vm2906, %v3044, %v3046
        %v3048 = vrot.slane %v1430, 3
        %v3049 = vsel %vm2906, %v3046, %v3048
        %v3050 = vrot.slane %v1431, 3
        %v3051 = vsel %vm2906, %v3048, %v3050
        %v3052 = vrot.slane %v1432, 3
        %v3053 = vsel %vm2906, %v3050, %v3052
        %v3054 = vrot.slane %v1433, 3
        %v3055 = vsel %vm2906, %v3052, %v3054
        %v3056 = vrot.slane %v1434, 3
        %v3057 = vsel %vm2906, %v3054, %v3056
        %v3058 = vrot.slane %v1435, 3
        %v3059 = vsel %vm2906, %v3056, %v3058
        %v3060 = vrot.slane %v1436, 3
        %v3061 = vsel %vm2906, %v3058, %v3060
        %v3062 = vrot.slane %v1437, 3
        %v3063 = vsel %vm2906, %v3060, %v3062
        %v3064 = vrot.slane %v1438, 3
        %v3065 = vsel %vm2906, %v3062, %v3064
        %v3066 = vrot.slane %v1439, 3
        %v3067 = vsel %vm2906, %v3064, %v3066
        %v3068 = vrot.slane %v1440, 3
        %v3069 = vsel %vm2906, %v3066, %v3068
        %v3070 = vrot.slane %v1441, 3
        %v3071 = vsel %vm2906, %v3068, %v3070
        %v3072 = vrot.slane %v1442, 3
        %v3073 = vsel %vm2906, %v3070, %v3072
        %v3074 = vrot.slane %v1443, 3
        %v3075 = vsel %vm2906, %v3072, %v3074
        %v3076 = vrot.slane %v1444, 3
        %v3077 = vsel %vm2906, %v3074, %v3076
        %v3078 = vrot.slane %v1445, 3
        %v3079 = vsel %vm2906, %v3076, %v3078
        %v3080 = vrot.slane %v1446, 3
        %v3081 = vsel %vm2906, %v3078, %v3080
        %v3082 = vrot.slane %v1447, 3
        %v3083 = vsel %vm2906, %v3080, %v3082
        %v3084 = vrot.slane %v1448, 3
        %v3085 = vsel %vm2906, %v3082, %v3084
        %v3086 = vrot.slane %v1449, 3
        %v3087 = vsel %vm2906, %v3084, %v3086
        %v3088 = vrot.slane %v1450, 3
        %v3089 = vsel %vm2906, %v3086, %v3088
        %v3090 = vrot.slane %v1451, 3
        %v3091 = vsel %vm2906, %v3088, %v3090
        %v3092 = vrot.slane %v1452, 3
        %v3093 = vsel %vm2906, %v3090, %v3092
        %v3094 = vrot.slane %v1453, 3
        %v3095 = vsel %vm2906, %v3092, %v3094
        %v3096 = vrot.slane %v1454, 3
        %v3097 = vsel %vm2906, %v3094, %v3096
        %v3098 = vrot.slane %v1455, 3
        %v3099 = vsel %vm2906, %v3096, %v3098
        %v3100 = vrot.slane %v1456, 3
        %v3101 = vsel %vm2906, %v3098, %v3100
        %v3102 = vrot.slane %v1457, 3
        %v3103 = vsel %vm2906, %v3100, %v3102
        %v3104 = vrot.slane %v1458, 3
        %v3105 = vsel %vm2906, %v3102, %v3104
        %v3106 = vrot.slane %v1459, 3
        %v3107 = vsel %vm2906, %v3104, %v3106
        %v3108 = vrot.slane %v1460, 3
        %v3109 = vsel %vm2906, %v3106, %v3108
        %v3110 = vrot.slane %v1461, 3
        %v3111 = vsel %vm2906, %v3108, %v3110
        %v3112 = vrot.slane %v1462, 3
        %v3113 = vsel %vm2906, %v3110, %v3112
        %v3114 = vrot.slane %v1463, 3
        %v3115 = vsel %vm2906, %v3112, %v3114
        %v3116 = vrot.slane %v1464, 3
        %v3117 = vsel %vm2906, %v3114, %v3116
        %v3118 = vrot.slane %v1465, 3
        %v3119 = vsel %vm2906, %v3116, %v3118
        %v3120 = vrot.slane %v1466, 3
        %v3121 = vsel %vm2906, %v3118, %v3120
        %v3122 = vrot.slane %v1467, 3
        %v3123 = vsel %vm2906, %v3120, %v3122
        %v3124 = vrot.slane %v1468, 3
        %v3125 = vsel %vm2906, %v3122, %v3124
        %v3126 = vrot.slane %v1469, 3
        %v3127 = vsel %vm2906, %v3124, %v3126
        %v3128 = vrot.slane %v1470, 3
        %v3129 = vsel %vm2906, %v3126, %v3128
        %v3130 = vrot.slane %v1471, 3
        %v3131 = vsel %vm2906, %v3128, %v3130
        %v3132 = vrot.slane %v1472, 3
        %v3133 = vsel %vm2906, %v3130, %v3132
        %v3134 = vrot.slane %v1473, 3
        %v3135 = vsel %vm2906, %v3132, %v3134
        %v3136 = vrot.slane %v1474, 3
        %v3137 = vsel %vm2906, %v3134, %v3136
        %v3138 = vrot.slane %v1475, 3
        %v3139 = vsel %vm2906, %v3136, %v3138
        %v3140 = vrot.slane %v1476, 3
        %v3141 = vsel %vm2906, %v3138, %v3140
        %v3142 = vrot.slane %v1477, 3
        %v3143 = vsel %vm2906, %v3140, %v3142
        %v3144 = vrot.slane %v1478, 3
        %v3145 = vsel %vm2906, %v3142, %v3144
        %v3146 = vrot.slane %v1479, 3
        %v3147 = vsel %vm2906, %v3144, %v3146
        %v3148 = vrot.slane %v1480, 3
        %v3149 = vsel %vm2906, %v3146, %v3148
        %v3150 = vrot.slane %v1481, 3
        %v3151 = vsel %vm2906, %v3148, %v3150
        %v3152 = vrot.slane %v1482, 3
        %v3153 = vsel %vm2906, %v3150, %v3152
        %v3154 = vrot.slane %v1483, 3
        %v3155 = vsel %vm2906, %v3152, %v3154
        %v3156 = vrot.slane %v1484, 3
        %v3157 = vsel %vm2906, %v3154, %v3156
        %v3158 = vrot.slane %v1485, 3
        %v3159 = vsel %vm2906, %v3156, %v3158
        %v3160 = vrot.slane %v1486, 3
        %v3161 = vsel %vm2906, %v3158, %v3160
        %v3162 = vrot.slane %v1487, 3
        %v3163 = vsel %vm2906, %v3160, %v3162
        %v3164 = vrot.slane %v1488, 3
        %v3165 = vsel %vm2906, %v3162, %v3164
        %v3166 = vrot.slane %v1489, 3
        %v3167 = vsel %vm2906, %v3164, %v3166
        %v3168 = vrot.slane %v1490, 3
        %v3169 = vsel %vm2906, %v3166, %v3168
        %v3170 = vrot.slane %v1491, 3
        %v3171 = vsel %vm2906, %v3168, %v3170
        %v3172 = vrot.slane %v1492, 3
        %v3173 = vsel %vm2906, %v3170, %v3172
        %v3174 = vrot.slane %v1493, 3
        %v3175 = vsel %vm2906, %v3172, %v3174
        %v3176 = vrot.slane %v1494, 3
        %v3177 = vsel %vm2906, %v3174, %v3176
        %v3178 = vrot.slane %v1495, 3
        %v3179 = vsel %vm2906, %v3176, %v3178
        %v3180 = vrot.slane %v1496, 3
        %v3181 = vsel %vm2906, %v3178, %v3180
        %v3182 = vrot.slane %v1497, 3
        %v3183 = vsel %vm2906, %v3180, %v3182
        %v3184 = vrot.slane %v1498, 3
        %v3185 = vsel %vm2906, %v3182, %v3184
        %v3186 = vrot.slane %v1509, 3
        %v3187 = vsel %vm2906, %v3184, %v3186
        %v3188 = vrot.slane %v2164, 3
        %v3189 = vsel %vm2906, %v3186, %v3188
        %v3190 = vrot.slane %v2887, 3
        %v3191 = vsel %vm2906, %v3188, %v3190
        %v3192 = vrot.slane %v2888, 3
        %v3193 = vsel %vm2906, %v3190, %v3192
        %v3194 = vrot.slane %v2889, 3
        %v3195 = vsel %vm2906, %v3192, %v3194
        %v3196 = vrot.slane %v2890, 3
        %v3197 = vsel %vm2906, %v3194, %v3196
        %v3198 = vrot.slane %v2891, 3
        %v3199 = vsel %vm2906, %v3196, %v3198
        %v3200 = vrot.slane %v2892, 3
        %v3201 = vsel %vm2906, %v3198, %v3200
        %v3202 = vrot.slane %v2893, 3
        %v3203 = vsel %vm2906, %v3200, %v3202
        %v3204 = vrot.slane %v2894, 3
        %v3205 = vsel %vm2906, %v3202, %v3204
        %v3206 = vrot.slane %v2895, 3
        %v3207 = vsel %vm2906, %v3204, %v3206
        %v3208 = vrot.slane %v2896, 3
        %v3209 = vsel %vm2906, %v3206, %v3208
        %v3210 = vrot.slane %v2897, 3
        %v3211 = vsel %vm2906, %v3208, %v3210
        %v3212 = vrot.slane %v2898, 3
        %v3213 = vsel %vm2906, %v3210, %v3212
        %v3214 = vrot.slane %v2899, 3
        %v3215 = vsel %vm2906, %v3212, %v3214
        %v3216 = vrot.slane %v2900, 3
        %v3217 = vsel %vm2906, %v3214, %v3216
        %v3218 = vrot.slane %v2901, 3
        %v3219 = vsel %vm2906, %v3216, %v3218
        %v3220 = vrot.slane %v2902, 3
        %v3221 = vsel %vm2906, %v3218, %v3220
        %v3222 = vrot.slane %v2903, 3
        %v3223 = vsel %vm2906, %v3220, %v3222
        %v3224 = vrot.slane %v2904, 3
        %v3225 = vsel %vm2906, %v3222, %v3224
        %v3226 = vrot.slane %v2905, 3
        %v3227 = vsel %vm2906, %v3224, %v3226
        %3228 = vrot.lane.b32.xlu0 %v2909, 36
        %v3229 = vpop.permute.xlu0 %3228
        %3230 = vrot.lane.b32.xlu0 %v2911, 36
        %v3231 = vpop.permute.xlu0 %3230
        %3232 = vrot.lane.b32.xlu0 %v2913, 36
        %v3233 = vpop.permute.xlu0 %3232
        %3234 = vrot.lane.b32.xlu0 %v2915, 36
        %v3235 = vpop.permute.xlu0 %3234
        %3236 = vrot.lane.b32.xlu0 %v2917, 36
        %v3237 = vpop.permute.xlu0 %3236
        %3238 = vrot.lane.b32.xlu0 %v2919, 36
        %v3239 = vpop.permute.xlu0 %3238
        %3240 = vrot.lane.b32.xlu0 %v2921, 36
        %v3241 = vpop.permute.xlu0 %3240
        %3242 = vrot.lane.b32.xlu0 %v2923, 36
        %v3243 = vpop.permute.xlu0 %3242
        %3244 = vrot.lane.b32.xlu0 %v2925, 36
        %v3245 = vpop.permute.xlu0 %3244
        %3246 = vrot.lane.b32.xlu0 %v2927, 36
        %v3247 = vpop.permute.xlu0 %3246
        %3248 = vrot.lane.b32.xlu0 %v2929, 36
        %v3249 = vpop.permute.xlu0 %3248
        %3250 = vrot.lane.b32.xlu0 %v2931, 36
        %v3251 = vpop.permute.xlu0 %3250
        %3252 = vrot.lane.b32.xlu0 %v2933, 36
        %v3253 = vpop.permute.xlu0 %3252
        %3254 = vrot.lane.b32.xlu0 %v2935, 36
        %v3255 = vpop.permute.xlu0 %3254
        %3256 = vrot.lane.b32.xlu0 %v2937, 36
        %v3257 = vpop.permute.xlu0 %3256
        %3258 = vrot.lane.b32.xlu0 %v2939, 36
        %v3259 = vpop.permute.xlu0 %3258
        %3260 = vrot.lane.b32.xlu0 %v2941, 36
        %v3261 = vpop.permute.xlu0 %3260
        %3262 = vrot.lane.b32.xlu0 %v2943, 36
        %v3263 = vpop.permute.xlu0 %3262
        %3264 = vrot.lane.b32.xlu0 %v2945, 36
        %v3265 = vpop.permute.xlu0 %3264
        %3266 = vrot.lane.b32.xlu0 %v2947, 36
        %v3267 = vpop.permute.xlu0 %3266
        %3268 = vrot.lane.b32.xlu0 %v2949, 36
        %v3269 = vpop.permute.xlu0 %3268
        %3270 = vrot.lane.b32.xlu0 %v2951, 36
        %v3271 = vpop.permute.xlu0 %3270
        %3272 = vrot.lane.b32.xlu0 %v2953, 36
        %v3273 = vpop.permute.xlu0 %3272
        %3274 = vrot.lane.b32.xlu0 %v2955, 36
        %v3275 = vpop.permute.xlu0 %3274
        %3276 = vrot.lane.b32.xlu0 %v2957, 36
        %v3277 = vpop.permute.xlu0 %3276
        %3278 = vrot.lane.b32.xlu0 %v2959, 36
        %v3279 = vpop.permute.xlu0 %3278
        %3280 = vrot.lane.b32.xlu0 %v2961, 36
        %v3281 = vpop.permute.xlu0 %3280
        %3282 = vrot.lane.b32.xlu0 %v2963, 36
        %v3283 = vpop.permute.xlu0 %3282
        %3284 = vrot.lane.b32.xlu0 %v2965, 36
        %v3285 = vpop.permute.xlu0 %3284
        %3286 = vrot.lane.b32.xlu0 %v2967, 36
        %v3287 = vpop.permute.xlu0 %3286
        %3288 = vrot.lane.b32.xlu0 %v2969, 36
        %v3289 = vpop.permute.xlu0 %3288
        %3290 = vrot.lane.b32.xlu0 %v2971, 36
        %v3291 = vpop.permute.xlu0 %3290
        %3292 = vrot.lane.b32.xlu0 %v2973, 36
        %v3293 = vpop.permute.xlu0 %3292
        %3294 = vrot.lane.b32.xlu0 %v2975, 36
        %v3295 = vpop.permute.xlu0 %3294
        %3296 = vrot.lane.b32.xlu0 %v2977, 36
        %v3297 = vpop.permute.xlu0 %3296
        %3298 = vrot.lane.b32.xlu0 %v2979, 36
        %v3299 = vpop.permute.xlu0 %3298
        %3300 = vrot.lane.b32.xlu0 %v2981, 36
        %v3301 = vpop.permute.xlu0 %3300
        %3302 = vrot.lane.b32.xlu0 %v2983, 36
        %v3303 = vpop.permute.xlu0 %3302
        %3304 = vrot.lane.b32.xlu0 %v2985, 36
        %v3305 = vpop.permute.xlu0 %3304
        %3306 = vrot.lane.b32.xlu0 %v2987, 36
        %v3307 = vpop.permute.xlu0 %3306
        %3308 = vrot.lane.b32.xlu0 %v2989, 36
        %v3309 = vpop.permute.xlu0 %3308
        %3310 = vrot.lane.b32.xlu0 %v2991, 36
        %v3311 = vpop.permute.xlu0 %3310
        %3312 = vrot.lane.b32.xlu0 %v2993, 36
        %v3313 = vpop.permute.xlu0 %3312
        %3314 = vrot.lane.b32.xlu0 %v2995, 36
        %v3315 = vpop.permute.xlu0 %3314
        %3316 = vrot.lane.b32.xlu0 %v2997, 36
        %v3317 = vpop.permute.xlu0 %3316
        %3318 = vrot.lane.b32.xlu0 %v2999, 36
        %v3319 = vpop.permute.xlu0 %3318
        %3320 = vrot.lane.b32.xlu0 %v3001, 36
        %v3321 = vpop.permute.xlu0 %3320
        %3322 = vrot.lane.b32.xlu0 %v3003, 36
        %v3323 = vpop.permute.xlu0 %3322
        %3324 = vrot.lane.b32.xlu0 %v3005, 36
        %v3325 = vpop.permute.xlu0 %3324
        %3326 = vrot.lane.b32.xlu0 %v3007, 36
        %v3327 = vpop.permute.xlu0 %3326
        %3328 = vrot.lane.b32.xlu0 %v3009, 36
        %v3329 = vpop.permute.xlu0 %3328
        %3330 = vrot.lane.b32.xlu0 %v3011, 36
        %v3331 = vpop.permute.xlu0 %3330
        %3332 = vrot.lane.b32.xlu0 %v3013, 36
        %v3333 = vpop.permute.xlu0 %3332
        %3334 = vrot.lane.b32.xlu0 %v3015, 36
        %v3335 = vpop.permute.xlu0 %3334
        %3336 = vrot.lane.b32.xlu0 %v3017, 36
        %v3337 = vpop.permute.xlu0 %3336
        %3338 = vrot.lane.b32.xlu0 %v3019, 36
        %v3339 = vpop.permute.xlu0 %3338
        %3340 = vrot.lane.b32.xlu0 %v3021, 36
        %v3341 = vpop.permute.xlu0 %3340
        %3342 = vrot.lane.b32.xlu0 %v3023, 36
        %v3343 = vpop.permute.xlu0 %3342
        %3344 = vrot.lane.b32.xlu0 %v3025, 36
        %v3345 = vpop.permute.xlu0 %3344
        %3346 = vrot.lane.b32.xlu0 %v3027, 36
        %v3347 = vpop.permute.xlu0 %3346
        %3348 = vrot.lane.b32.xlu0 %v3029, 36
        %v3349 = vpop.permute.xlu0 %3348
        %3350 = vrot.lane.b32.xlu0 %v3031, 36
        %v3351 = vpop.permute.xlu0 %3350
        %3352 = vrot.lane.b32.xlu0 %v3033, 36
        %v3353 = vpop.permute.xlu0 %3352
        %3354 = vrot.lane.b32.xlu0 %v3035, 36
        %v3355 = vpop.permute.xlu0 %3354
        %3356 = vrot.lane.b32.xlu0 %v3037, 36
        %v3357 = vpop.permute.xlu0 %3356
        %3358 = vrot.lane.b32.xlu0 %v3039, 36
        %v3359 = vpop.permute.xlu0 %3358
        %3360 = vrot.lane.b32.xlu0 %v3041, 36
        %v3361 = vpop.permute.xlu0 %3360
        %3362 = vrot.lane.b32.xlu0 %v3043, 36
        %v3363 = vpop.permute.xlu0 %3362
        %3364 = vrot.lane.b32.xlu0 %v3045, 36
        %v3365 = vpop.permute.xlu0 %3364
        %3366 = vrot.lane.b32.xlu0 %v3047, 36
        %v3367 = vpop.permute.xlu0 %3366
        %3368 = vrot.lane.b32.xlu0 %v3049, 36
        %v3369 = vpop.permute.xlu0 %3368
        %3370 = vrot.lane.b32.xlu0 %v3051, 36
        %v3371 = vpop.permute.xlu0 %3370
        %3372 = vrot.lane.b32.xlu0 %v3053, 36
        %v3373 = vpop.permute.xlu0 %3372
        %3374 = vrot.lane.b32.xlu0 %v3055, 36
        %v3375 = vpop.permute.xlu0 %3374
        %3376 = vrot.lane.b32.xlu0 %v3057, 36
        %v3377 = vpop.permute.xlu0 %3376
        %3378 = vrot.lane.b32.xlu0 %v3059, 36
        %v3379 = vpop.permute.xlu0 %3378
        %3380 = vrot.lane.b32.xlu0 %v3061, 36
        %v3381 = vpop.permute.xlu0 %3380
        %3382 = vrot.lane.b32.xlu0 %v3063, 36
        %v3383 = vpop.permute.xlu0 %3382
        %3384 = vrot.lane.b32.xlu0 %v3065, 36
        %v3385 = vpop.permute.xlu0 %3384
        %3386 = vrot.lane.b32.xlu0 %v3067, 36
        %v3387 = vpop.permute.xlu0 %3386
        %3388 = vrot.lane.b32.xlu0 %v3069, 36
        %v3389 = vpop.permute.xlu0 %3388
        %3390 = vrot.lane.b32.xlu0 %v3071, 36
        %v3391 = vpop.permute.xlu0 %3390
        %3392 = vrot.lane.b32.xlu0 %v3073, 36
        %v3393 = vpop.permute.xlu0 %3392
        %3394 = vrot.lane.b32.xlu0 %v3075, 36
        %v3395 = vpop.permute.xlu0 %3394
        %3396 = vrot.lane.b32.xlu0 %v3077, 36
        %v3397 = vpop.permute.xlu0 %3396
        %3398 = vrot.lane.b32.xlu0 %v3079, 36
        %v3399 = vpop.permute.xlu0 %3398
        %3400 = vrot.lane.b32.xlu0 %v3081, 36
        %v3401 = vpop.permute.xlu0 %3400
        %3402 = vrot.lane.b32.xlu0 %v3083, 36
        %v3403 = vpop.permute.xlu0 %3402
        %3404 = vrot.lane.b32.xlu0 %v3085, 36
        %v3405 = vpop.permute.xlu0 %3404
        %3406 = vrot.lane.b32.xlu0 %v3087, 36
        %v3407 = vpop.permute.xlu0 %3406
        %3408 = vrot.lane.b32.xlu0 %v3089, 36
        %v3409 = vpop.permute.xlu0 %3408
        %3410 = vrot.lane.b32.xlu0 %v3091, 36
        %v3411 = vpop.permute.xlu0 %3410
        %3412 = vrot.lane.b32.xlu0 %v3093, 36
        %v3413 = vpop.permute.xlu0 %3412
        %3414 = vrot.lane.b32.xlu0 %v3095, 36
        %v3415 = vpop.permute.xlu0 %3414
        %3416 = vrot.lane.b32.xlu0 %v3097, 36
        %v3417 = vpop.permute.xlu0 %3416
        %3418 = vrot.lane.b32.xlu0 %v3099, 36
        %v3419 = vpop.permute.xlu0 %3418
        %3420 = vrot.lane.b32.xlu0 %v3101, 36
        %v3421 = vpop.permute.xlu0 %3420
        %3422 = vrot.lane.b32.xlu0 %v3103, 36
        %v3423 = vpop.permute.xlu0 %3422
        %3424 = vrot.lane.b32.xlu0 %v3105, 36
        %v3425 = vpop.permute.xlu0 %3424
        %3426 = vrot.lane.b32.xlu0 %v3107, 36
        %v3427 = vpop.permute.xlu0 %3426
        %3428 = vrot.lane.b32.xlu0 %v3109, 36
        %v3429 = vpop.permute.xlu0 %3428
        %3430 = vrot.lane.b32.xlu0 %v3111, 36
        %v3431 = vpop.permute.xlu0 %3430
        %3432 = vrot.lane.b32.xlu0 %v3113, 36
        %v3433 = vpop.permute.xlu0 %3432
        %3434 = vrot.lane.b32.xlu0 %v3115, 36
        %v3435 = vpop.permute.xlu0 %3434
        %3436 = vrot.lane.b32.xlu0 %v3117, 36
        %v3437 = vpop.permute.xlu0 %3436
        %3438 = vrot.lane.b32.xlu0 %v3119, 36
        %v3439 = vpop.permute.xlu0 %3438
        %3440 = vrot.lane.b32.xlu0 %v3121, 36
        %v3441 = vpop.permute.xlu0 %3440
        %3442 = vrot.lane.b32.xlu0 %v3123, 36
        %v3443 = vpop.permute.xlu0 %3442
        %3444 = vrot.lane.b32.xlu0 %v3125, 36
        %v3445 = vpop.permute.xlu0 %3444
        %3446 = vrot.lane.b32.xlu0 %v3127, 36
        %v3447 = vpop.permute.xlu0 %3446
        %3448 = vrot.lane.b32.xlu0 %v3129, 36
        %v3449 = vpop.permute.xlu0 %3448
        %3450 = vrot.lane.b32.xlu0 %v3131, 36
        %v3451 = vpop.permute.xlu0 %3450
        %3452 = vrot.lane.b32.xlu0 %v3133, 36
        %v3453 = vpop.permute.xlu0 %3452
        %3454 = vrot.lane.b32.xlu0 %v3135, 36
        %v3455 = vpop.permute.xlu0 %3454
        %3456 = vrot.lane.b32.xlu0 %v3137, 36
        %v3457 = vpop.permute.xlu0 %3456
        %3458 = vrot.lane.b32.xlu0 %v3139, 36
        %v3459 = vpop.permute.xlu0 %3458
        %3460 = vrot.lane.b32.xlu0 %v3141, 36
        %v3461 = vpop.permute.xlu0 %3460
        %3462 = vrot.lane.b32.xlu0 %v3143, 36
        %v3463 = vpop.permute.xlu0 %3462
        %3464 = vrot.lane.b32.xlu0 %v3145, 36
        %v3465 = vpop.permute.xlu0 %3464
        %3466 = vrot.lane.b32.xlu0 %v3147, 36
        %v3467 = vpop.permute.xlu0 %3466
        %3468 = vrot.lane.b32.xlu0 %v3149, 36
        %v3469 = vpop.permute.xlu0 %3468
        %3470 = vrot.lane.b32.xlu0 %v3151, 36
        %v3471 = vpop.permute.xlu0 %3470
        %3472 = vrot.lane.b32.xlu0 %v3153, 36
        %v3473 = vpop.permute.xlu0 %3472
        %3474 = vrot.lane.b32.xlu0 %v3155, 36
        %v3475 = vpop.permute.xlu0 %3474
        %3476 = vrot.lane.b32.xlu0 %v3157, 36
        %v3477 = vpop.permute.xlu0 %3476
        %3478 = vrot.lane.b32.xlu0 %v3159, 36
        %v3479 = vpop.permute.xlu0 %3478
        %3480 = vrot.lane.b32.xlu0 %v3161, 36
        %v3481 = vpop.permute.xlu0 %3480
        %3482 = vrot.lane.b32.xlu0 %v3163, 36
        %v3483 = vpop.permute.xlu0 %3482
        %3484 = vrot.lane.b32.xlu0 %v3165, 36
        %v3485 = vpop.permute.xlu0 %3484
        %3486 = vrot.lane.b32.xlu0 %v3167, 36
        %v3487 = vpop.permute.xlu0 %3486
        %3488 = vrot.lane.b32.xlu0 %v3169, 36
        %v3489 = vpop.permute.xlu0 %3488
        %3490 = vrot.lane.b32.xlu0 %v3171, 36
        %v3491 = vpop.permute.xlu0 %3490
        %3492 = vrot.lane.b32.xlu0 %v3173, 36
        %v3493 = vpop.permute.xlu0 %3492
        %3494 = vrot.lane.b32.xlu0 %v3175, 36
        %v3495 = vpop.permute.xlu0 %3494
        %3496 = vrot.lane.b32.xlu0 %v3177, 36
        %v3497 = vpop.permute.xlu0 %3496
        %3498 = vrot.lane.b32.xlu0 %v3179, 36
        %v3499 = vpop.permute.xlu0 %3498
        %3500 = vrot.lane.b32.xlu0 %v3181, 36
        %v3501 = vpop.permute.xlu0 %3500
        %3502 = vrot.lane.b32.xlu0 %v3183, 36
        %v3503 = vpop.permute.xlu0 %3502
        %3504 = vrot.lane.b32.xlu0 %v3185, 36
        %v3505 = vpop.permute.xlu0 %3504
        %3506 = vrot.lane.b32.xlu0 %v3187, 36
        %v3507 = vpop.permute.xlu0 %3506
        %3508 = vrot.lane.b32.xlu0 %v3189, 36
        %v3509 = vpop.permute.xlu0 %3508
        %3510 = vrot.lane.b32.xlu0 %v3191, 36
        %v3511 = vpop.permute.xlu0 %3510
        %3512 = vrot.lane.b32.xlu0 %v3193, 36
        %v3513 = vpop.permute.xlu0 %3512
        %3514 = vrot.lane.b32.xlu0 %v3195, 36
        %v3515 = vpop.permute.xlu0 %3514
        %3516 = vrot.lane.b32.xlu0 %v3197, 36
        %v3517 = vpop.permute.xlu0 %3516
        %3518 = vrot.lane.b32.xlu0 %v3199, 36
        %v3519 = vpop.permute.xlu0 %3518
        %3520 = vrot.lane.b32.xlu0 %v3201, 36
        %v3521 = vpop.permute.xlu0 %3520
        %3522 = vrot.lane.b32.xlu0 %v3203, 36
        %v3523 = vpop.permute.xlu0 %3522
        %3524 = vrot.lane.b32.xlu0 %v3205, 36
        %v3525 = vpop.permute.xlu0 %3524
        %3526 = vrot.lane.b32.xlu0 %v3207, 36
        %v3527 = vpop.permute.xlu0 %3526
        %3528 = vrot.lane.b32.xlu0 %v3209, 36
        %v3529 = vpop.permute.xlu0 %3528
        %3530 = vrot.lane.b32.xlu0 %v3211, 36
        %v3531 = vpop.permute.xlu0 %3530
        %3532 = vrot.lane.b32.xlu0 %v3213, 36
        %v3533 = vpop.permute.xlu0 %3532
        %3534 = vrot.lane.b32.xlu0 %v3215, 36
        %v3535 = vpop.permute.xlu0 %3534
        %3536 = vrot.lane.b32.xlu0 %v3217, 36
        %v3537 = vpop.permute.xlu0 %3536
        %3538 = vrot.lane.b32.xlu0 %v3219, 36
        %v3539 = vpop.permute.xlu0 %3538
        %3540 = vrot.lane.b32.xlu0 %v3221, 36
        %v3541 = vpop.permute.xlu0 %3540
        %3542 = vrot.lane.b32.xlu0 %v3223, 36
        %v3543 = vpop.permute.xlu0 %3542
        %3544 = vrot.lane.b32.xlu0 %v3225, 36
        %v3545 = vpop.permute.xlu0 %3544
        %3546 = vrot.lane.b32.xlu0 %v3227, 36
        %v3547 = vpop.permute.xlu0 %3546
        %3548 = vrot.lane.b32.xlu0 %v3226, 36
        %v3549 = vpop.permute.xlu0 %3548
        %v3553 = vunpack.c.l.b16 %v643
        %v3554 = vunpack.c.l.b16 %v644
        %v3555 = vunpack.c.l.b16 %v645
        %v3556 = vpack.c.b16 %v1061, %v1060
        %v3557 = vpack.c.b16 %v1063, %v1062
        %v3558 = vpack.c.b16 %v1065, %v1064
        %v3559 = vpack.c.b16 %v1067, %v1066
        %v3560 = vpack.c.b16 %v1069, %v1068
        %v3561 = vpack.c.b16 %v1071, %v1070
        %v3562 = vpack.c.b16 %v1073, %v1072
        %v3563 = vpack.c.b16 %v1075, %v1074
        %v3564 = vpack.c.b16 %v1077, %v1076
        %v3565 = vpack.c.b16 %v1079, %v1078
        %v3566 = vpack.c.b16 %v1081, %v1080
        %v3567 = vpack.c.b16 %v1083, %v1082
        %v3568 = vpack.c.b16 %v1085, %v1084
        %v3569 = vpack.c.b16 %v1087, %v1086
        %v3570 = vpack.c.b16 %v1089, %v1088
        %v3571 = vpack.c.b16 %v1091, %v1090
        %v3572 = vpack.c.b16 %v1093, %v1092
        %v3573 = vpack.c.b16 %v1095, %v1094
        %v3574 = vpack.c.b16 %v1097, %v1096
        %v3575 = vpack.c.b16 %v1099, %v1098
        %v3576 = vpack.c.b16 %v1101, %v1100
        %v3577 = vpack.c.b16 %v1103, %v1102
        %v3578 = vpack.c.b16 %v1105, %v1104
        %v3579 = vpack.c.b16 %v1107, %v1106
        %v3580 = vpack.c.b16 %v1109, %v1108
        %v3581 = vpack.c.b16 %v1111, %v1110
        %v3582 = vpack.c.b16 %v1113, %v1112
        %v3583 = vpack.c.b16 %v1115, %v1114
        %v3584 = vpack.c.b16 %v1117, %v1116
        %v3585 = vpack.c.b16 %v1119, %v1118
        %v3586 = vpack.c.b16 %v1121, %v1120
        %v3587 = vpack.c.b16 %v1123, %v1122
        %v3588 = vpack.c.b16 %v1125, %v1124
        %v3589 = vpack.c.b16 %v1127, %v1126
        %v3590 = vpack.c.b16 %v1129, %v1128
        %v3591 = vpack.c.b16 %v1131, %v1130
        %v3592 = vpack.c.b16 %v1133, %v1132
        %v3593 = vpack.c.b16 %v1135, %v1134
        %v3594 = vpack.c.b16 %v1137, %v1136
        %v3595 = vpack.c.b16 %v1139, %v1138
        %v3596 = vpack.c.b16 %v1141, %v1140
        %v3597 = vpack.c.b16 %v1143, %v1142
        %v3598 = vpack.c.b16 %v1145, %v1144
        %v3599 = vpack.c.b16 %v1147, %v1146
        %v3600 = vpack.c.b16 %v1149, %v1148
        %v3601 = vpack.c.b16 %v1151, %v1150
        %v3602 = vpack.c.b16 %v1153, %v1152
        %v3603 = vpack.c.b16 %v1155, %v1154
        %v3604 = vpack.c.b16 %v1157, %v1156
        %v3605 = vpack.c.b16 %v1159, %v1158
        %v3606 = vpack.c.b16 %v1161, %v1160
        %v3607 = vpack.c.b16 %v1163, %v1162
        %v3608 = vpack.c.b16 %v1165, %v1164
        %v3609 = vpack.c.b16 %v1167, %v1166
        %v3610 = vpack.c.b16 %v1169, %v1168
        %v3611 = vpack.c.b16 %v1171, %v1170
        %v3612 = vpack.c.b16 %v1173, %v1172
        %v3613 = vpack.c.b16 %v1175, %v1174
        %v3614 = vpack.c.b16 %v1177, %v1176
        %v3615 = vpack.c.b16 %v1179, %v1178
        %v3616 = vpack.c.b16 %v1181, %v1180
        %v3617 = vpack.c.b16 %v1183, %v1182
        %v3618 = vpack.c.b16 %v1185, %v1184
        %v3619 = vpack.c.b16 %v1187, %v1186
        %v3620 = vpack.c.b16 %v1189, %v1188
        %v3621 = vpack.c.b16 %v1191, %v1190
        %v3622 = vpack.c.b16 %v1193, %v1192
        %v3623 = vpack.c.b16 %v1195, %v1194
        %v3624 = vpack.c.b16 %v1197, %v1196
        %v3625 = vpack.c.b16 %v1199, %v1198
        %v3626 = vpack.c.b16 %v1201, %v1200
        %v3627 = vpack.c.b16 %v1203, %v1202
        %v3628 = vpack.c.b16 %v1205, %v1204
        %v3629 = vpack.c.b16 %v1207, %v1206
        %v3630 = vpack.c.b16 %v1209, %v1208
        %v3631 = vpack.c.b16 %v1211, %v1210
        %v3632 = vpack.c.b16 %v1213, %v1212
        %v3633 = vpack.c.b16 %v1215, %v1214
        %v3634 = vpack.c.b16 %v1217, %v1216
        %v3635 = vpack.c.b16 %v1219, %v1218
        %v3636 = vpack.c.b16 %v1221, %v1220
        %v3637 = vpack.c.b16 %v1223, %v1222
        %v3638 = vpack.c.b16 %v1225, %v1224
        %v3639 = vpack.c.b16 %v1227, %v1226
        %v3640 = vpack.c.b16 %v1229, %v1228
        %v3641 = vpack.c.b16 %v1231, %v1230
        %v3642 = vpack.c.b16 %v1233, %v1232
        %v3643 = vpack.c.b16 %v1235, %v1234
        %v3644 = vpack.c.b16 %v1237, %v1236
        %v3645 = vpack.c.b16 %v1239, %v1238
        %v3646 = vpack.c.b16 %v1241, %v1240
        %v3647 = vpack.c.b16 %v1243, %v1242
        %v3648 = vpack.c.b16 %v1245, %v1244
        %v3649 = vpack.c.b16 %v1247, %v1246
        %v3650 = vpack.c.b16 %v1249, %v1248
        %v3651 = vpack.c.b16 %v1251, %v1250
        %v3652 = vpack.c.b16 %v1253, %v1252
        %v3653 = vpack.c.b16 %v1255, %v1254
        %v3654 = vpack.c.b16 %v1257, %v1256
        %v3655 = vpack.c.b16 %v1259, %v1258
        %v3656 = vpack.c.b16 %v1261, %v1260
        %v3657 = vpack.c.b16 %v1263, %v1262
        %v3658 = vpack.c.b16 %v1265, %v1264
        %v3659 = vpack.c.b16 %v1267, %v1266
        %v3660 = vpack.c.b16 %v1269, %v1268
        %v3661 = vpack.c.b16 %v1271, %v1270
        %v3662 = vpack.c.b16 %v1273, %v1272
        %v3663 = vpack.c.b16 %v1275, %v1274
        %v3664 = vpack.c.b16 %v1277, %v1276
        %v3665 = vpack.c.b16 %v1279, %v1278
        %v3666 = vpack.c.b16 %v1281, %v1280
        %v3667 = vpack.c.b16 %v1283, %v1282
        %v3668 = vpack.c.b16 %v1285, %v1284
        %v3669 = vpack.c.b16 %v1287, %v1286
        %v3670 = vpack.c.b16 %v1289, %v1288
        %v3671 = vpack.c.b16 %v1291, %v1290
        %v3672 = vpack.c.b16 %v1293, %v1292
        %v3673 = vpack.c.b16 %v1295, %v1294
        %v3674 = vpack.c.b16 %v1297, %v1296
        %v3675 = vpack.c.b16 %v1299, %v1298
        %v3676 = vpack.c.b16 %v1301, %v1300
        %v3677 = vpack.c.b16 %v1303, %v1302
        %v3678 = vpack.c.b16 %v1305, %v1304
        %v3679 = vpack.c.b16 %v1307, %v1306
        %v3680 = vpack.c.b16 %v1309, %v1308
        %v3681 = vpack.c.b16 %v1311, %v1310
        %v3682 = vpack.c.b16 %v1313, %v1312
        %v3683 = vpack.c.b16 %v1315, %v1314
        %v3684 = vpack.c.b16 %v1317, %v1316
        %v3685 = vpack.c.b16 %v1319, %v1318
        %v3686 = vpack.c.b16 %v1321, %v1320
        %v3687 = vpack.c.b16 %v1323, %v1322
        %v3688 = vpack.c.b16 %v1325, %v1324
        %v3689 = vpack.c.b16 %v1327, %v1326
        %v3690 = vpack.c.b16 %v1329, %v1328
        %v3691 = vpack.c.b16 %v1331, %v1330
        %v3692 = vpack.c.b16 %v1333, %v1332
        %v3693 = vpack.c.b16 %v1335, %v1334
        %v3694 = vpack.c.b16 %v1337, %v1336
        %v3695 = vpack.c.b16 %v1506, %v1505
        %v3696 = vpack.c.b16 %v2161, %v2160
        %v3697 = vpack.c.b16 %v2850, %v2849
        %v3698 = vpack.c.b16 %v2852, %v2851
        %v3699 = vpack.c.b16 %v2854, %v2853
        %v3700 = vpack.c.b16 %v2856, %v2855
        %v3701 = vpack.c.b16 %v2858, %v2857
        %v3702 = vpack.c.b16 %v2860, %v2859
        %v3703 = vpack.c.b16 %v2862, %v2861
        %v3704 = vpack.c.b16 %v2864, %v2863
        %v3705 = vpack.c.b16 %v2866, %v2865
        %v3706 = vpack.c.b16 %v2868, %v2867
        %v3707 = vpack.c.b16 %v2870, %v2869
        %v3708 = vpack.c.b16 %v2872, %v2871
        %v3709 = vpack.c.b16 %v2874, %v2873
        %v3710 = vpack.c.b16 %v2876, %v2875
        %v3711 = vpack.c.b16 %v2878, %v2877
        %v3712 = vpack.c.b16 %v2880, %v2879
        %v3713 = vpack.c.b16 %v2882, %v2881
        %v3714 = vpack.c.b16 %v2884, %v2883
        %v3715 = vpack.c.b16 %v3553, %v2885
        %v3716 = vpack.c.b16 %v3555, %v3554
        %3717 = vrot.lane.b32.xlu0 %v3556, 48
        %v3718 = vpop.permute.xlu0 %3717
        %3719 = vrot.lane.b32.xlu0 %v3557, 48
        %v3720 = vpop.permute.xlu0 %3719
        %3721 = vrot.lane.b32.xlu0 %v3558, 48
        %v3722 = vpop.permute.xlu0 %3721
        %3723 = vrot.lane.b32.xlu0 %v3559, 48
        %v3724 = vpop.permute.xlu0 %3723
        %3725 = vrot.lane.b32.xlu0 %v3560, 48
        %v3726 = vpop.permute.xlu0 %3725
        %3727 = vrot.lane.b32.xlu0 %v3561, 48
        %v3728 = vpop.permute.xlu0 %3727
        %3729 = vrot.lane.b32.xlu0 %v3562, 48
        %v3730 = vpop.permute.xlu0 %3729
        %3731 = vrot.lane.b32.xlu0 %v3563, 48
        %v3732 = vpop.permute.xlu0 %3731
        %3733 = vrot.lane.b32.xlu0 %v3564, 48
        %v3734 = vpop.permute.xlu0 %3733
        %3735 = vrot.lane.b32.xlu0 %v3565, 48
        %v3736 = vpop.permute.xlu0 %3735
        %3737 = vrot.lane.b32.xlu0 %v3566, 48
        %v3738 = vpop.permute.xlu0 %3737
        %3739 = vrot.lane.b32.xlu0 %v3567, 48
        %v3740 = vpop.permute.xlu0 %3739
        %3741 = vrot.lane.b32.xlu0 %v3568, 48
        %v3742 = vpop.permute.xlu0 %3741
        %3743 = vrot.lane.b32.xlu0 %v3569, 48
        %v3744 = vpop.permute.xlu0 %3743
        %3745 = vrot.lane.b32.xlu0 %v3570, 48
        %v3746 = vpop.permute.xlu0 %3745
        %3747 = vrot.lane.b32.xlu0 %v3571, 48
        %v3748 = vpop.permute.xlu0 %3747
        %3749 = vrot.lane.b32.xlu0 %v3572, 48
        %v3750 = vpop.permute.xlu0 %3749
        %3751 = vrot.lane.b32.xlu0 %v3573, 48
        %v3752 = vpop.permute.xlu0 %3751
        %3753 = vrot.lane.b32.xlu0 %v3574, 48
        %v3754 = vpop.permute.xlu0 %3753
        %3755 = vrot.lane.b32.xlu0 %v3575, 48
        %v3756 = vpop.permute.xlu0 %3755
        %3757 = vrot.lane.b32.xlu0 %v3576, 48
        %v3758 = vpop.permute.xlu0 %3757
        %3759 = vrot.lane.b32.xlu0 %v3577, 48
        %v3760 = vpop.permute.xlu0 %3759
        %3761 = vrot.lane.b32.xlu0 %v3578, 48
        %v3762 = vpop.permute.xlu0 %3761
        %3763 = vrot.lane.b32.xlu0 %v3579, 48
        %v3764 = vpop.permute.xlu0 %3763
        %3765 = vrot.lane.b32.xlu0 %v3580, 48
        %v3766 = vpop.permute.xlu0 %3765
        %3767 = vrot.lane.b32.xlu0 %v3581, 48
        %v3768 = vpop.permute.xlu0 %3767
        %3769 = vrot.lane.b32.xlu0 %v3582, 48
        %v3770 = vpop.permute.xlu0 %3769
        %3771 = vrot.lane.b32.xlu0 %v3583, 48
        %v3772 = vpop.permute.xlu0 %3771
        %3773 = vrot.lane.b32.xlu0 %v3584, 48
        %v3774 = vpop.permute.xlu0 %3773
        %3775 = vrot.lane.b32.xlu0 %v3585, 48
        %v3776 = vpop.permute.xlu0 %3775
        %3777 = vrot.lane.b32.xlu0 %v3586, 48
        %v3778 = vpop.permute.xlu0 %3777
        %3779 = vrot.lane.b32.xlu0 %v3587, 48
        %v3780 = vpop.permute.xlu0 %3779
        %3781 = vrot.lane.b32.xlu0 %v3588, 48
        %v3782 = vpop.permute.xlu0 %3781
        %3783 = vrot.lane.b32.xlu0 %v3589, 48
        %v3784 = vpop.permute.xlu0 %3783
        %3785 = vrot.lane.b32.xlu0 %v3590, 48
        %v3786 = vpop.permute.xlu0 %3785
        %3787 = vrot.lane.b32.xlu0 %v3591, 48
        %v3788 = vpop.permute.xlu0 %3787
        %3789 = vrot.lane.b32.xlu0 %v3592, 48
        %v3790 = vpop.permute.xlu0 %3789
        %3791 = vrot.lane.b32.xlu0 %v3593, 48
        %v3792 = vpop.permute.xlu0 %3791
        %3793 = vrot.lane.b32.xlu0 %v3594, 48
        %v3794 = vpop.permute.xlu0 %3793
        %3795 = vrot.lane.b32.xlu0 %v3595, 48
        %v3796 = vpop.permute.xlu0 %3795
        %3797 = vrot.lane.b32.xlu0 %v3596, 48
        %v3798 = vpop.permute.xlu0 %3797
        %3799 = vrot.lane.b32.xlu0 %v3597, 48
        %v3800 = vpop.permute.xlu0 %3799
        %3801 = vrot.lane.b32.xlu0 %v3598, 48
        %v3802 = vpop.permute.xlu0 %3801
        %3803 = vrot.lane.b32.xlu0 %v3599, 48
        %v3804 = vpop.permute.xlu0 %3803
        %3805 = vrot.lane.b32.xlu0 %v3600, 48
        %v3806 = vpop.permute.xlu0 %3805
        %3807 = vrot.lane.b32.xlu0 %v3601, 48
        %v3808 = vpop.permute.xlu0 %3807
        %3809 = vrot.lane.b32.xlu0 %v3602, 48
        %v3810 = vpop.permute.xlu0 %3809
        %3811 = vrot.lane.b32.xlu0 %v3603, 48
        %v3812 = vpop.permute.xlu0 %3811
        %3813 = vrot.lane.b32.xlu0 %v3604, 48
        %v3814 = vpop.permute.xlu0 %3813
        %3815 = vrot.lane.b32.xlu0 %v3605, 48
        %v3816 = vpop.permute.xlu0 %3815
        %3817 = vrot.lane.b32.xlu0 %v3606, 48
        %v3818 = vpop.permute.xlu0 %3817
        %3819 = vrot.lane.b32.xlu0 %v3607, 48
        %v3820 = vpop.permute.xlu0 %3819
        %3821 = vrot.lane.b32.xlu0 %v3608, 48
        %v3822 = vpop.permute.xlu0 %3821
        %3823 = vrot.lane.b32.xlu0 %v3609, 48
        %v3824 = vpop.permute.xlu0 %3823
        %3825 = vrot.lane.b32.xlu0 %v3610, 48
        %v3826 = vpop.permute.xlu0 %3825
        %3827 = vrot.lane.b32.xlu0 %v3611, 48
        %v3828 = vpop.permute.xlu0 %3827
        %3829 = vrot.lane.b32.xlu0 %v3612, 48
        %v3830 = vpop.permute.xlu0 %3829
        %3831 = vrot.lane.b32.xlu0 %v3613, 48
        %v3832 = vpop.permute.xlu0 %3831
        %3833 = vrot.lane.b32.xlu0 %v3614, 48
        %v3834 = vpop.permute.xlu0 %3833
        %3835 = vrot.lane.b32.xlu0 %v3615, 48
        %v3836 = vpop.permute.xlu0 %3835
        %3837 = vrot.lane.b32.xlu0 %v3616, 48
        %v3838 = vpop.permute.xlu0 %3837
        %3839 = vrot.lane.b32.xlu0 %v3617, 48
        %v3840 = vpop.permute.xlu0 %3839
        %3841 = vrot.lane.b32.xlu0 %v3618, 48
        %v3842 = vpop.permute.xlu0 %3841
        %3843 = vrot.lane.b32.xlu0 %v3619, 48
        %v3844 = vpop.permute.xlu0 %3843
        %3845 = vrot.lane.b32.xlu0 %v3620, 48
        %v3846 = vpop.permute.xlu0 %3845
        %3847 = vrot.lane.b32.xlu0 %v3621, 48
        %v3848 = vpop.permute.xlu0 %3847
        %3849 = vrot.lane.b32.xlu0 %v3622, 48
        %v3850 = vpop.permute.xlu0 %3849
        %3851 = vrot.lane.b32.xlu0 %v3623, 48
        %v3852 = vpop.permute.xlu0 %3851
        %3853 = vrot.lane.b32.xlu0 %v3624, 48
        %v3854 = vpop.permute.xlu0 %3853
        %3855 = vrot.lane.b32.xlu0 %v3625, 48
        %v3856 = vpop.permute.xlu0 %3855
        %3857 = vrot.lane.b32.xlu0 %v3626, 48
        %v3858 = vpop.permute.xlu0 %3857
        %3859 = vrot.lane.b32.xlu0 %v3627, 48
        %v3860 = vpop.permute.xlu0 %3859
        %3861 = vrot.lane.b32.xlu0 %v3628, 48
        %v3862 = vpop.permute.xlu0 %3861
        %3863 = vrot.lane.b32.xlu0 %v3629, 48
        %v3864 = vpop.permute.xlu0 %3863
        %3865 = vrot.lane.b32.xlu0 %v3630, 48
        %v3866 = vpop.permute.xlu0 %3865
        %3867 = vrot.lane.b32.xlu0 %v3631, 48
        %v3868 = vpop.permute.xlu0 %3867
        %3869 = vrot.lane.b32.xlu0 %v3632, 48
        %v3870 = vpop.permute.xlu0 %3869
        %3871 = vrot.lane.b32.xlu0 %v3633, 48
        %v3872 = vpop.permute.xlu0 %3871
        %3873 = vrot.lane.b32.xlu0 %v3634, 48
        %v3874 = vpop.permute.xlu0 %3873
        %3875 = vrot.lane.b32.xlu0 %v3635, 48
        %v3876 = vpop.permute.xlu0 %3875
        %3877 = vrot.lane.b32.xlu0 %v3636, 48
        %v3878 = vpop.permute.xlu0 %3877
        %3879 = vrot.lane.b32.xlu0 %v3637, 48
        %v3880 = vpop.permute.xlu0 %3879
        %3881 = vrot.lane.b32.xlu0 %v3638, 48
        %v3882 = vpop.permute.xlu0 %3881
        %3883 = vrot.lane.b32.xlu0 %v3639, 48
        %v3884 = vpop.permute.xlu0 %3883
        %3885 = vrot.lane.b32.xlu0 %v3640, 48
        %v3886 = vpop.permute.xlu0 %3885
        %3887 = vrot.lane.b32.xlu0 %v3641, 48
        %v3888 = vpop.permute.xlu0 %3887
        %3889 = vrot.lane.b32.xlu0 %v3642, 48
        %v3890 = vpop.permute.xlu0 %3889
        %3891 = vrot.lane.b32.xlu0 %v3643, 48
        %v3892 = vpop.permute.xlu0 %3891
        %3893 = vrot.lane.b32.xlu0 %v3644, 48
        %v3894 = vpop.permute.xlu0 %3893
        %3895 = vrot.lane.b32.xlu0 %v3645, 48
        %v3896 = vpop.permute.xlu0 %3895
        %3897 = vrot.lane.b32.xlu0 %v3646, 48
        %v3898 = vpop.permute.xlu0 %3897
        %3899 = vrot.lane.b32.xlu0 %v3647, 48
        %v3900 = vpop.permute.xlu0 %3899
        %3901 = vrot.lane.b32.xlu0 %v3648, 48
        %v3902 = vpop.permute.xlu0 %3901
        %3903 = vrot.lane.b32.xlu0 %v3649, 48
        %v3904 = vpop.permute.xlu0 %3903
        %3905 = vrot.lane.b32.xlu0 %v3650, 48
        %v3906 = vpop.permute.xlu0 %3905
        %3907 = vrot.lane.b32.xlu0 %v3651, 48
        %v3908 = vpop.permute.xlu0 %3907
        %3909 = vrot.lane.b32.xlu0 %v3652, 48
        %v3910 = vpop.permute.xlu0 %3909
        %3911 = vrot.lane.b32.xlu0 %v3653, 48
        %v3912 = vpop.permute.xlu0 %3911
        %3913 = vrot.lane.b32.xlu0 %v3654, 48
        %v3914 = vpop.permute.xlu0 %3913
        %3915 = vrot.lane.b32.xlu0 %v3655, 48
        %v3916 = vpop.permute.xlu0 %3915
        %3917 = vrot.lane.b32.xlu0 %v3656, 48
        %v3918 = vpop.permute.xlu0 %3917
        %3919 = vrot.lane.b32.xlu0 %v3657, 48
        %v3920 = vpop.permute.xlu0 %3919
        %3921 = vrot.lane.b32.xlu0 %v3658, 48
        %v3922 = vpop.permute.xlu0 %3921
        %3923 = vrot.lane.b32.xlu0 %v3659, 48
        %v3924 = vpop.permute.xlu0 %3923
        %3925 = vrot.lane.b32.xlu0 %v3660, 48
        %v3926 = vpop.permute.xlu0 %3925
        %3927 = vrot.lane.b32.xlu0 %v3661, 48
        %v3928 = vpop.permute.xlu0 %3927
        %3929 = vrot.lane.b32.xlu0 %v3662, 48
        %v3930 = vpop.permute.xlu0 %3929
        %3931 = vrot.lane.b32.xlu0 %v3663, 48
        %v3932 = vpop.permute.xlu0 %3931
        %3933 = vrot.lane.b32.xlu0 %v3664, 48
        %v3934 = vpop.permute.xlu0 %3933
        %3935 = vrot.lane.b32.xlu0 %v3665, 48
        %v3936 = vpop.permute.xlu0 %3935
        %3937 = vrot.lane.b32.xlu0 %v3666, 48
        %v3938 = vpop.permute.xlu0 %3937
        %3939 = vrot.lane.b32.xlu0 %v3667, 48
        %v3940 = vpop.permute.xlu0 %3939
        %3941 = vrot.lane.b32.xlu0 %v3668, 48
        %v3942 = vpop.permute.xlu0 %3941
        %3943 = vrot.lane.b32.xlu0 %v3669, 48
        %v3944 = vpop.permute.xlu0 %3943
        %3945 = vrot.lane.b32.xlu0 %v3670, 48
        %v3946 = vpop.permute.xlu0 %3945
        %3947 = vrot.lane.b32.xlu0 %v3671, 48
        %v3948 = vpop.permute.xlu0 %3947
        %3949 = vrot.lane.b32.xlu0 %v3672, 48
        %v3950 = vpop.permute.xlu0 %3949
        %3951 = vrot.lane.b32.xlu0 %v3673, 48
        %v3952 = vpop.permute.xlu0 %3951
        %3953 = vrot.lane.b32.xlu0 %v3674, 48
        %v3954 = vpop.permute.xlu0 %3953
        %3955 = vrot.lane.b32.xlu0 %v3675, 48
        %v3956 = vpop.permute.xlu0 %3955
        %3957 = vrot.lane.b32.xlu0 %v3676, 48
        %v3958 = vpop.permute.xlu0 %3957
        %3959 = vrot.lane.b32.xlu0 %v3677, 48
        %v3960 = vpop.permute.xlu0 %3959
        %3961 = vrot.lane.b32.xlu0 %v3678, 48
        %v3962 = vpop.permute.xlu0 %3961
        %3963 = vrot.lane.b32.xlu0 %v3679, 48
        %v3964 = vpop.permute.xlu0 %3963
        %3965 = vrot.lane.b32.xlu0 %v3680, 48
        %v3966 = vpop.permute.xlu0 %3965
        %3967 = vrot.lane.b32.xlu0 %v3681, 48
        %v3968 = vpop.permute.xlu0 %3967
        %3969 = vrot.lane.b32.xlu0 %v3682, 48
        %v3970 = vpop.permute.xlu0 %3969
        %3971 = vrot.lane.b32.xlu0 %v3683, 48
        %v3972 = vpop.permute.xlu0 %3971
        %3973 = vrot.lane.b32.xlu0 %v3684, 48
        %v3974 = vpop.permute.xlu0 %3973
        %3975 = vrot.lane.b32.xlu0 %v3685, 48
        %v3976 = vpop.permute.xlu0 %3975
        %3977 = vrot.lane.b32.xlu0 %v3686, 48
        %v3978 = vpop.permute.xlu0 %3977
        %3979 = vrot.lane.b32.xlu0 %v3687, 48
        %v3980 = vpop.permute.xlu0 %3979
        %3981 = vrot.lane.b32.xlu0 %v3688, 48
        %v3982 = vpop.permute.xlu0 %3981
        %3983 = vrot.lane.b32.xlu0 %v3689, 48
        %v3984 = vpop.permute.xlu0 %3983
        %3985 = vrot.lane.b32.xlu0 %v3690, 48
        %v3986 = vpop.permute.xlu0 %3985
        %3987 = vrot.lane.b32.xlu0 %v3691, 48
        %v3988 = vpop.permute.xlu0 %3987
        %3989 = vrot.lane.b32.xlu0 %v3692, 48
        %v3990 = vpop.permute.xlu0 %3989
        %3991 = vrot.lane.b32.xlu0 %v3693, 48
        %v3992 = vpop.permute.xlu0 %3991
        %3993 = vrot.lane.b32.xlu0 %v3694, 48
        %v3994 = vpop.permute.xlu0 %3993
        %3995 = vrot.lane.b32.xlu0 %v3695, 48
        %v3996 = vpop.permute.xlu0 %3995
        %3997 = vrot.lane.b32.xlu0 %v3696, 48
        %v3998 = vpop.permute.xlu0 %3997
        %3999 = vrot.lane.b32.xlu0 %v3697, 48
        %v4000 = vpop.permute.xlu0 %3999
        %4001 = vrot.lane.b32.xlu0 %v3698, 48
        %v4002 = vpop.permute.xlu0 %4001
        %4003 = vrot.lane.b32.xlu0 %v3699, 48
        %v4004 = vpop.permute.xlu0 %4003
        %4005 = vrot.lane.b32.xlu0 %v3700, 48
        %v4006 = vpop.permute.xlu0 %4005
        %4007 = vrot.lane.b32.xlu0 %v3701, 48
        %v4008 = vpop.permute.xlu0 %4007
        %4009 = vrot.lane.b32.xlu0 %v3702, 48
        %v4010 = vpop.permute.xlu0 %4009
        %4011 = vrot.lane.b32.xlu0 %v3703, 48
        %v4012 = vpop.permute.xlu0 %4011
        %4013 = vrot.lane.b32.xlu0 %v3704, 48
        %v4014 = vpop.permute.xlu0 %4013
        %4015 = vrot.lane.b32.xlu0 %v3705, 48
        %v4016 = vpop.permute.xlu0 %4015
        %4017 = vrot.lane.b32.xlu0 %v3706, 48
        %v4018 = vpop.permute.xlu0 %4017
        %4019 = vrot.lane.b32.xlu0 %v3707, 48
        %v4020 = vpop.permute.xlu0 %4019
        %4021 = vrot.lane.b32.xlu0 %v3708, 48
        %v4022 = vpop.permute.xlu0 %4021
        %4023 = vrot.lane.b32.xlu0 %v3709, 48
        %v4024 = vpop.permute.xlu0 %4023
        %4025 = vrot.lane.b32.xlu0 %v3710, 48
        %v4026 = vpop.permute.xlu0 %4025
        %4027 = vrot.lane.b32.xlu0 %v3711, 48
        %v4028 = vpop.permute.xlu0 %4027
        %4029 = vrot.lane.b32.xlu0 %v3712, 48
        %v4030 = vpop.permute.xlu0 %4029
        %4031 = vrot.lane.b32.xlu0 %v3713, 48
        %v4032 = vpop.permute.xlu0 %4031
        %4033 = vrot.lane.b32.xlu0 %v3714, 48
        %v4034 = vpop.permute.xlu0 %4033
        %4035 = vrot.lane.b32.xlu0 %v3715, 48
        %v4036 = vpop.permute.xlu0 %4035
        %4037 = vrot.lane.b32.xlu0 %v3716, 48
        %v4038 = vpop.permute.xlu0 %4037
        %v4043 = vunpack.c.l.b16 %v646
        %v4044 = vunpack.c.l.b16 %v647
        %v4045 = vunpack.c.l.b16 %v648
        %v4046 = vunpack.c.l.b16 %v649
        %v4047 = vpack.c.b16 %v1063, %v4043
        %v4048 = vpack.c.b16 %v4044, %v3554
        %v4049 = vpack.c.b16 %v4046, %v4045
        %v4050 = vrot.slane %v4047, 1
        %v4051 = vrot.slane %v3558, 1
        %v4052 = vsel %vm1511, %v4050, %v4051
        %v4053 = vrot.slane %v3559, 1
        %v4054 = vsel %vm1511, %v4051, %v4053
        %v4055 = vrot.slane %v3560, 1
        %v4056 = vsel %vm1511, %v4053, %v4055
        %v4057 = vrot.slane %v3561, 1
        %v4058 = vsel %vm1511, %v4055, %v4057
        %v4059 = vrot.slane %v3562, 1
        %v4060 = vsel %vm1511, %v4057, %v4059
        %v4061 = vrot.slane %v3563, 1
        %v4062 = vsel %vm1511, %v4059, %v4061
        %v4063 = vrot.slane %v3564, 1
        %v4064 = vsel %vm1511, %v4061, %v4063
        %v4065 = vrot.slane %v3565, 1
        %v4066 = vsel %vm1511, %v4063, %v4065
        %v4067 = vrot.slane %v3566, 1
        %v4068 = vsel %vm1511, %v4065, %v4067
        %v4069 = vrot.slane %v3567, 1
        %v4070 = vsel %vm1511, %v4067, %v4069
        %v4071 = vrot.slane %v3568, 1
        %v4072 = vsel %vm1511, %v4069, %v4071
        %v4073 = vrot.slane %v3569, 1
        %v4074 = vsel %vm1511, %v4071, %v4073
        %v4075 = vrot.slane %v3570, 1
        %v4076 = vsel %vm1511, %v4073, %v4075
        %v4077 = vrot.slane %v3571, 1
        %v4078 = vsel %vm1511, %v4075, %v4077
        %v4079 = vrot.slane %v3572, 1
        %v4080 = vsel %vm1511, %v4077, %v4079
        %v4081 = vrot.slane %v3573, 1
        %v4082 = vsel %vm1511, %v4079, %v4081
        %v4083 = vrot.slane %v3574, 1
        %v4084 = vsel %vm1511, %v4081, %v4083
        %v4085 = vrot.slane %v3575, 1
        %v4086 = vsel %vm1511, %v4083, %v4085
        %v4087 = vrot.slane %v3576, 1
        %v4088 = vsel %vm1511, %v4085, %v4087
        %v4089 = vrot.slane %v3577, 1
        %v4090 = vsel %vm1511, %v4087, %v4089
        %v4091 = vrot.slane %v3578, 1
        %v4092 = vsel %vm1511, %v4089, %v4091
        %v4093 = vrot.slane %v3579, 1
        %v4094 = vsel %vm1511, %v4091, %v4093
        %v4095 = vrot.slane %v3580, 1
        %v4096 = vsel %vm1511, %v4093, %v4095
        %v4097 = vrot.slane %v3581, 1
        %v4098 = vsel %vm1511, %v4095, %v4097
        %v4099 = vrot.slane %v3582, 1
        %v4100 = vsel %vm1511, %v4097, %v4099
        %v4101 = vrot.slane %v3583, 1
        %v4102 = vsel %vm1511, %v4099, %v4101
        %v4103 = vrot.slane %v3584, 1
        %v4104 = vsel %vm1511, %v4101, %v4103
        %v4105 = vrot.slane %v3585, 1
        %v4106 = vsel %vm1511, %v4103, %v4105
        %v4107 = vrot.slane %v3586, 1
        %v4108 = vsel %vm1511, %v4105, %v4107
        %v4109 = vrot.slane %v3587, 1
        %v4110 = vsel %vm1511, %v4107, %v4109
        %v4111 = vrot.slane %v3588, 1
        %v4112 = vsel %vm1511, %v4109, %v4111
        %v4113 = vrot.slane %v3589, 1
        %v4114 = vsel %vm1511, %v4111, %v4113
        %v4115 = vrot.slane %v3590, 1
        %v4116 = vsel %vm1511, %v4113, %v4115
        %v4117 = vrot.slane %v3591, 1
        %v4118 = vsel %vm1511, %v4115, %v4117
        %v4119 = vrot.slane %v3592, 1
        %v4120 = vsel %vm1511, %v4117, %v4119
        %v4121 = vrot.slane %v3593, 1
        %v4122 = vsel %vm1511, %v4119, %v4121
        %v4123 = vrot.slane %v3594, 1
        %v4124 = vsel %vm1511, %v4121, %v4123
        %v4125 = vrot.slane %v3595, 1
        %v4126 = vsel %vm1511, %v4123, %v4125
        %v4127 = vrot.slane %v3596, 1
        %v4128 = vsel %vm1511, %v4125, %v4127
        %v4129 = vrot.slane %v3597, 1
        %v4130 = vsel %vm1511, %v4127, %v4129
        %v4131 = vrot.slane %v3598, 1
        %v4132 = vsel %vm1511, %v4129, %v4131
        %v4133 = vrot.slane %v3599, 1
        %v4134 = vsel %vm1511, %v4131, %v4133
        %v4135 = vrot.slane %v3600, 1
        %v4136 = vsel %vm1511, %v4133, %v4135
        %v4137 = vrot.slane %v3601, 1
        %v4138 = vsel %vm1511, %v4135, %v4137
        %v4139 = vrot.slane %v3602, 1
        %v4140 = vsel %vm1511, %v4137, %v4139
        %v4141 = vrot.slane %v3603, 1
        %v4142 = vsel %vm1511, %v4139, %v4141
        %v4143 = vrot.slane %v3604, 1
        %v4144 = vsel %vm1511, %v4141, %v4143
        %v4145 = vrot.slane %v3605, 1
        %v4146 = vsel %vm1511, %v4143, %v4145
        %v4147 = vrot.slane %v3606, 1
        %v4148 = vsel %vm1511, %v4145, %v4147
        %v4149 = vrot.slane %v3607, 1
        %v4150 = vsel %vm1511, %v4147, %v4149
        %v4151 = vrot.slane %v3608, 1
        %v4152 = vsel %vm1511, %v4149, %v4151
        %v4153 = vrot.slane %v3609, 1
        %v4154 = vsel %vm1511, %v4151, %v4153
        %v4155 = vrot.slane %v3610, 1
        %v4156 = vsel %vm1511, %v4153, %v4155
        %v4157 = vrot.slane %v3611, 1
        %v4158 = vsel %vm1511, %v4155, %v4157
        %v4159 = vrot.slane %v3612, 1
        %v4160 = vsel %vm1511, %v4157, %v4159
        %v4161 = vrot.slane %v3613, 1
        %v4162 = vsel %vm1511, %v4159, %v4161
        %v4163 = vrot.slane %v3614, 1
        %v4164 = vsel %vm1511, %v4161, %v4163
        %v4165 = vrot.slane %v3615, 1
        %v4166 = vsel %vm1511, %v4163, %v4165
        %v4167 = vrot.slane %v3616, 1
        %v4168 = vsel %vm1511, %v4165, %v4167
        %v4169 = vrot.slane %v3617, 1
        %v4170 = vsel %vm1511, %v4167, %v4169
        %v4171 = vrot.slane %v3618, 1
        %v4172 = vsel %vm1511, %v4169, %v4171
        %v4173 = vrot.slane %v3619, 1
        %v4174 = vsel %vm1511, %v4171, %v4173
        %v4175 = vrot.slane %v3620, 1
        %v4176 = vsel %vm1511, %v4173, %v4175
        %v4177 = vrot.slane %v3621, 1
        %v4178 = vsel %vm1511, %v4175, %v4177
        %v4179 = vrot.slane %v3622, 1
        %v4180 = vsel %vm1511, %v4177, %v4179
        %v4181 = vrot.slane %v3623, 1
        %v4182 = vsel %vm1511, %v4179, %v4181
        %v4183 = vrot.slane %v3624, 1
        %v4184 = vsel %vm1511, %v4181, %v4183
        %v4185 = vrot.slane %v3625, 1
        %v4186 = vsel %vm1511, %v4183, %v4185
        %v4187 = vrot.slane %v3626, 1
        %v4188 = vsel %vm1511, %v4185, %v4187
        %v4189 = vrot.slane %v3627, 1
        %v4190 = vsel %vm1511, %v4187, %v4189
        %v4191 = vrot.slane %v3628, 1
        %v4192 = vsel %vm1511, %v4189, %v4191
        %v4193 = vrot.slane %v3629, 1
        %v4194 = vsel %vm1511, %v4191, %v4193
        %v4195 = vrot.slane %v3630, 1
        %v4196 = vsel %vm1511, %v4193, %v4195
        %v4197 = vrot.slane %v3631, 1
        %v4198 = vsel %vm1511, %v4195, %v4197
        %v4199 = vrot.slane %v3632, 1
        %v4200 = vsel %vm1511, %v4197, %v4199
        %v4201 = vrot.slane %v3633, 1
        %v4202 = vsel %vm1511, %v4199, %v4201
        %v4203 = vrot.slane %v3634, 1
        %v4204 = vsel %vm1511, %v4201, %v4203
        %v4205 = vrot.slane %v3635, 1
        %v4206 = vsel %vm1511, %v4203, %v4205
        %v4207 = vrot.slane %v3636, 1
        %v4208 = vsel %vm1511, %v4205, %v4207
        %v4209 = vrot.slane %v3637, 1
        %v4210 = vsel %vm1511, %v4207, %v4209
        %v4211 = vrot.slane %v3638, 1
        %v4212 = vsel %vm1511, %v4209, %v4211
        %v4213 = vrot.slane %v3639, 1
        %v4214 = vsel %vm1511, %v4211, %v4213
        %v4215 = vrot.slane %v3640, 1
        %v4216 = vsel %vm1511, %v4213, %v4215
        %v4217 = vrot.slane %v3641, 1
        %v4218 = vsel %vm1511, %v4215, %v4217
        %v4219 = vrot.slane %v3642, 1
        %v4220 = vsel %vm1511, %v4217, %v4219
        %v4221 = vrot.slane %v3643, 1
        %v4222 = vsel %vm1511, %v4219, %v4221
        %v4223 = vrot.slane %v3644, 1
        %v4224 = vsel %vm1511, %v4221, %v4223
        %v4225 = vrot.slane %v3645, 1
        %v4226 = vsel %vm1511, %v4223, %v4225
        %v4227 = vrot.slane %v3646, 1
        %v4228 = vsel %vm1511, %v4225, %v4227
        %v4229 = vrot.slane %v3647, 1
        %v4230 = vsel %vm1511, %v4227, %v4229
        %v4231 = vrot.slane %v3648, 1
        %v4232 = vsel %vm1511, %v4229, %v4231
        %v4233 = vrot.slane %v3649, 1
        %v4234 = vsel %vm1511, %v4231, %v4233
        %v4235 = vrot.slane %v3650, 1
        %v4236 = vsel %vm1511, %v4233, %v4235
        %v4237 = vrot.slane %v3651, 1
        %v4238 = vsel %vm1511, %v4235, %v4237
        %v4239 = vrot.slane %v3652, 1
        %v4240 = vsel %vm1511, %v4237, %v4239
        %v4241 = vrot.slane %v3653, 1
        %v4242 = vsel %vm1511, %v4239, %v4241
        %v4243 = vrot.slane %v3654, 1
        %v4244 = vsel %vm1511, %v4241, %v4243
        %v4245 = vrot.slane %v3655, 1
        %v4246 = vsel %vm1511, %v4243, %v4245
        %v4247 = vrot.slane %v3656, 1
        %v4248 = vsel %vm1511, %v4245, %v4247
        %v4249 = vrot.slane %v3657, 1
        %v4250 = vsel %vm1511, %v4247, %v4249
        %v4251 = vrot.slane %v3658, 1
        %v4252 = vsel %vm1511, %v4249, %v4251
        %v4253 = vrot.slane %v3659, 1
        %v4254 = vsel %vm1511, %v4251, %v4253
        %v4255 = vrot.slane %v3660, 1
        %v4256 = vsel %vm1511, %v4253, %v4255
        %v4257 = vrot.slane %v3661, 1
        %v4258 = vsel %vm1511, %v4255, %v4257
        %v4259 = vrot.slane %v3662, 1
        %v4260 = vsel %vm1511, %v4257, %v4259
        %v4261 = vrot.slane %v3663, 1
        %v4262 = vsel %vm1511, %v4259, %v4261
        %v4263 = vrot.slane %v3664, 1
        %v4264 = vsel %vm1511, %v4261, %v4263
        %v4265 = vrot.slane %v3665, 1
        %v4266 = vsel %vm1511, %v4263, %v4265
        %v4267 = vrot.slane %v3666, 1
        %v4268 = vsel %vm1511, %v4265, %v4267
        %v4269 = vrot.slane %v3667, 1
        %v4270 = vsel %vm1511, %v4267, %v4269
        %v4271 = vrot.slane %v3668, 1
        %v4272 = vsel %vm1511, %v4269, %v4271
        %v4273 = vrot.slane %v3669, 1
        %v4274 = vsel %vm1511, %v4271, %v4273
        %v4275 = vrot.slane %v3670, 1
        %v4276 = vsel %vm1511, %v4273, %v4275
        %v4277 = vrot.slane %v3671, 1
        %v4278 = vsel %vm1511, %v4275, %v4277
        %v4279 = vrot.slane %v3672, 1
        %v4280 = vsel %vm1511, %v4277, %v4279
        %v4281 = vrot.slane %v3673, 1
        %v4282 = vsel %vm1511, %v4279, %v4281
        %v4283 = vrot.slane %v3674, 1
        %v4284 = vsel %vm1511, %v4281, %v4283
        %v4285 = vrot.slane %v3675, 1
        %v4286 = vsel %vm1511, %v4283, %v4285
        %v4287 = vrot.slane %v3676, 1
        %v4288 = vsel %vm1511, %v4285, %v4287
        %v4289 = vrot.slane %v3677, 1
        %v4290 = vsel %vm1511, %v4287, %v4289
        %v4291 = vrot.slane %v3678, 1
        %v4292 = vsel %vm1511, %v4289, %v4291
        %v4293 = vrot.slane %v3679, 1
        %v4294 = vsel %vm1511, %v4291, %v4293
        %v4295 = vrot.slane %v3680, 1
        %v4296 = vsel %vm1511, %v4293, %v4295
        %v4297 = vrot.slane %v3681, 1
        %v4298 = vsel %vm1511, %v4295, %v4297
        %v4299 = vrot.slane %v3682, 1
        %v4300 = vsel %vm1511, %v4297, %v4299
        %v4301 = vrot.slane %v3683, 1
        %v4302 = vsel %vm1511, %v4299, %v4301
        %v4303 = vrot.slane %v3684, 1
        %v4304 = vsel %vm1511, %v4301, %v4303
        %v4305 = vrot.slane %v3685, 1
        %v4306 = vsel %vm1511, %v4303, %v4305
        %v4307 = vrot.slane %v3686, 1
        %v4308 = vsel %vm1511, %v4305, %v4307
        %v4309 = vrot.slane %v3687, 1
        %v4310 = vsel %vm1511, %v4307, %v4309
        %v4311 = vrot.slane %v3688, 1
        %v4312 = vsel %vm1511, %v4309, %v4311
        %v4313 = vrot.slane %v3689, 1
        %v4314 = vsel %vm1511, %v4311, %v4313
        %v4315 = vrot.slane %v3690, 1
        %v4316 = vsel %vm1511, %v4313, %v4315
        %v4317 = vrot.slane %v3691, 1
        %v4318 = vsel %vm1511, %v4315, %v4317
        %v4319 = vrot.slane %v3692, 1
        %v4320 = vsel %vm1511, %v4317, %v4319
        %v4321 = vrot.slane %v3693, 1
        %v4322 = vsel %vm1511, %v4319, %v4321
        %v4323 = vrot.slane %v3694, 1
        %v4324 = vsel %vm1511, %v4321, %v4323
        %v4325 = vrot.slane %v3695, 1
        %v4326 = vsel %vm1511, %v4323, %v4325
        %v4327 = vrot.slane %v3696, 1
        %v4328 = vsel %vm1511, %v4325, %v4327
        %v4329 = vrot.slane %v3697, 1
        %v4330 = vsel %vm1511, %v4327, %v4329
        %v4331 = vrot.slane %v3698, 1
        %v4332 = vsel %vm1511, %v4329, %v4331
        %v4333 = vrot.slane %v3699, 1
        %v4334 = vsel %vm1511, %v4331, %v4333
        %v4335 = vrot.slane %v3700, 1
        %v4336 = vsel %vm1511, %v4333, %v4335
        %v4337 = vrot.slane %v3701, 1
        %v4338 = vsel %vm1511, %v4335, %v4337
        %v4339 = vrot.slane %v3702, 1
        %v4340 = vsel %vm1511, %v4337, %v4339
        %v4341 = vrot.slane %v3703, 1
        %v4342 = vsel %vm1511, %v4339, %v4341
        %v4343 = vrot.slane %v3704, 1
        %v4344 = vsel %vm1511, %v4341, %v4343
        %v4345 = vrot.slane %v3705, 1
        %v4346 = vsel %vm1511, %v4343, %v4345
        %v4347 = vrot.slane %v3706, 1
        %v4348 = vsel %vm1511, %v4345, %v4347
        %v4349 = vrot.slane %v3707, 1
        %v4350 = vsel %vm1511, %v4347, %v4349
        %v4351 = vrot.slane %v3708, 1
        %v4352 = vsel %vm1511, %v4349, %v4351
        %v4353 = vrot.slane %v3709, 1
        %v4354 = vsel %vm1511, %v4351, %v4353
        %v4355 = vrot.slane %v3710, 1
        %v4356 = vsel %vm1511, %v4353, %v4355
        %v4357 = vrot.slane %v3711, 1
        %v4358 = vsel %vm1511, %v4355, %v4357
        %v4359 = vrot.slane %v3712, 1
        %v4360 = vsel %vm1511, %v4357, %v4359
        %v4361 = vrot.slane %v3713, 1
        %v4362 = vsel %vm1511, %v4359, %v4361
        %v4363 = vrot.slane %v3714, 1
        %v4364 = vsel %vm1511, %v4361, %v4363
        %v4365 = vrot.slane %v3715, 1
        %v4366 = vsel %vm1511, %v4363, %v4365
        %v4367 = vrot.slane %v4048, 1
        %v4368 = vsel %vm1511, %v4365, %v4367
        %v4369 = vrot.slane %v4049, 1
        %v4370 = vsel %vm1511, %v4367, %v4369
        %4371 = vrot.lane.b32.xlu0 %v4052, 60
        %v4372 = vpop.permute.xlu0 %4371
        %4373 = vrot.lane.b32.xlu0 %v4054, 60
        %v4374 = vpop.permute.xlu0 %4373
        %4375 = vrot.lane.b32.xlu0 %v4056, 60
        %v4376 = vpop.permute.xlu0 %4375
        %4377 = vrot.lane.b32.xlu0 %v4058, 60
        %v4378 = vpop.permute.xlu0 %4377
        %4379 = vrot.lane.b32.xlu0 %v4060, 60
        %v4380 = vpop.permute.xlu0 %4379
        %4381 = vrot.lane.b32.xlu0 %v4062, 60
        %v4382 = vpop.permute.xlu0 %4381
        %4383 = vrot.lane.b32.xlu0 %v4064, 60
        %v4384 = vpop.permute.xlu0 %4383
        %4385 = vrot.lane.b32.xlu0 %v4066, 60
        %v4386 = vpop.permute.xlu0 %4385
        %4387 = vrot.lane.b32.xlu0 %v4068, 60
        %v4388 = vpop.permute.xlu0 %4387
        %4389 = vrot.lane.b32.xlu0 %v4070, 60
        %v4390 = vpop.permute.xlu0 %4389
        %4391 = vrot.lane.b32.xlu0 %v4072, 60
        %v4392 = vpop.permute.xlu0 %4391
        %4393 = vrot.lane.b32.xlu0 %v4074, 60
        %v4394 = vpop.permute.xlu0 %4393
        %4395 = vrot.lane.b32.xlu0 %v4076, 60
        %v4396 = vpop.permute.xlu0 %4395
        %4397 = vrot.lane.b32.xlu0 %v4078, 60
        %v4398 = vpop.permute.xlu0 %4397
        %4399 = vrot.lane.b32.xlu0 %v4080, 60
        %v4400 = vpop.permute.xlu0 %4399
        %4401 = vrot.lane.b32.xlu0 %v4082, 60
        %v4402 = vpop.permute.xlu0 %4401
        %4403 = vrot.lane.b32.xlu0 %v4084, 60
        %v4404 = vpop.permute.xlu0 %4403
        %4405 = vrot.lane.b32.xlu0 %v4086, 60
        %v4406 = vpop.permute.xlu0 %4405
        %4407 = vrot.lane.b32.xlu0 %v4088, 60
        %v4408 = vpop.permute.xlu0 %4407
        %4409 = vrot.lane.b32.xlu0 %v4090, 60
        %v4410 = vpop.permute.xlu0 %4409
        %4411 = vrot.lane.b32.xlu0 %v4092, 60
        %v4412 = vpop.permute.xlu0 %4411
        %4413 = vrot.lane.b32.xlu0 %v4094, 60
        %v4414 = vpop.permute.xlu0 %4413
        %4415 = vrot.lane.b32.xlu0 %v4096, 60
        %v4416 = vpop.permute.xlu0 %4415
        %4417 = vrot.lane.b32.xlu0 %v4098, 60
        %v4418 = vpop.permute.xlu0 %4417
        %4419 = vrot.lane.b32.xlu0 %v4100, 60
        %v4420 = vpop.permute.xlu0 %4419
        %4421 = vrot.lane.b32.xlu0 %v4102, 60
        %v4422 = vpop.permute.xlu0 %4421
        %4423 = vrot.lane.b32.xlu0 %v4104, 60
        %v4424 = vpop.permute.xlu0 %4423
        %4425 = vrot.lane.b32.xlu0 %v4106, 60
        %v4426 = vpop.permute.xlu0 %4425
        %4427 = vrot.lane.b32.xlu0 %v4108, 60
        %v4428 = vpop.permute.xlu0 %4427
        %4429 = vrot.lane.b32.xlu0 %v4110, 60
        %v4430 = vpop.permute.xlu0 %4429
        %4431 = vrot.lane.b32.xlu0 %v4112, 60
        %v4432 = vpop.permute.xlu0 %4431
        %4433 = vrot.lane.b32.xlu0 %v4114, 60
        %v4434 = vpop.permute.xlu0 %4433
        %4435 = vrot.lane.b32.xlu0 %v4116, 60
        %v4436 = vpop.permute.xlu0 %4435
        %4437 = vrot.lane.b32.xlu0 %v4118, 60
        %v4438 = vpop.permute.xlu0 %4437
        %4439 = vrot.lane.b32.xlu0 %v4120, 60
        %v4440 = vpop.permute.xlu0 %4439
        %4441 = vrot.lane.b32.xlu0 %v4122, 60
        %v4442 = vpop.permute.xlu0 %4441
        %4443 = vrot.lane.b32.xlu0 %v4124, 60
        %v4444 = vpop.permute.xlu0 %4443
        %4445 = vrot.lane.b32.xlu0 %v4126, 60
        %v4446 = vpop.permute.xlu0 %4445
        %4447 = vrot.lane.b32.xlu0 %v4128, 60
        %v4448 = vpop.permute.xlu0 %4447
        %4449 = vrot.lane.b32.xlu0 %v4130, 60
        %v4450 = vpop.permute.xlu0 %4449
        %4451 = vrot.lane.b32.xlu0 %v4132, 60
        %v4452 = vpop.permute.xlu0 %4451
        %4453 = vrot.lane.b32.xlu0 %v4134, 60
        %v4454 = vpop.permute.xlu0 %4453
        %4455 = vrot.lane.b32.xlu0 %v4136, 60
        %v4456 = vpop.permute.xlu0 %4455
        %4457 = vrot.lane.b32.xlu0 %v4138, 60
        %v4458 = vpop.permute.xlu0 %4457
        %4459 = vrot.lane.b32.xlu0 %v4140, 60
        %v4460 = vpop.permute.xlu0 %4459
        %4461 = vrot.lane.b32.xlu0 %v4142, 60
        %v4462 = vpop.permute.xlu0 %4461
        %4463 = vrot.lane.b32.xlu0 %v4144, 60
        %v4464 = vpop.permute.xlu0 %4463
        %4465 = vrot.lane.b32.xlu0 %v4146, 60
        %v4466 = vpop.permute.xlu0 %4465
        %4467 = vrot.lane.b32.xlu0 %v4148, 60
        %v4468 = vpop.permute.xlu0 %4467
        %4469 = vrot.lane.b32.xlu0 %v4150, 60
        %v4470 = vpop.permute.xlu0 %4469
        %4471 = vrot.lane.b32.xlu0 %v4152, 60
        %v4472 = vpop.permute.xlu0 %4471
        %4473 = vrot.lane.b32.xlu0 %v4154, 60
        %v4474 = vpop.permute.xlu0 %4473
        %4475 = vrot.lane.b32.xlu0 %v4156, 60
        %v4476 = vpop.permute.xlu0 %4475
        %4477 = vrot.lane.b32.xlu0 %v4158, 60
        %v4478 = vpop.permute.xlu0 %4477
        %4479 = vrot.lane.b32.xlu0 %v4160, 60
        %v4480 = vpop.permute.xlu0 %4479
        %4481 = vrot.lane.b32.xlu0 %v4162, 60
        %v4482 = vpop.permute.xlu0 %4481
        %4483 = vrot.lane.b32.xlu0 %v4164, 60
        %v4484 = vpop.permute.xlu0 %4483
        %4485 = vrot.lane.b32.xlu0 %v4166, 60
        %v4486 = vpop.permute.xlu0 %4485
        %4487 = vrot.lane.b32.xlu0 %v4168, 60
        %v4488 = vpop.permute.xlu0 %4487
        %4489 = vrot.lane.b32.xlu0 %v4170, 60
        %v4490 = vpop.permute.xlu0 %4489
        %4491 = vrot.lane.b32.xlu0 %v4172, 60
        %v4492 = vpop.permute.xlu0 %4491
        %4493 = vrot.lane.b32.xlu0 %v4174, 60
        %v4494 = vpop.permute.xlu0 %4493
        %4495 = vrot.lane.b32.xlu0 %v4176, 60
        %v4496 = vpop.permute.xlu0 %4495
        %4497 = vrot.lane.b32.xlu0 %v4178, 60
        %v4498 = vpop.permute.xlu0 %4497
        %4499 = vrot.lane.b32.xlu0 %v4180, 60
        %v4500 = vpop.permute.xlu0 %4499
        %4501 = vrot.lane.b32.xlu0 %v4182, 60
        %v4502 = vpop.permute.xlu0 %4501
        %4503 = vrot.lane.b32.xlu0 %v4184, 60
        %v4504 = vpop.permute.xlu0 %4503
        %4505 = vrot.lane.b32.xlu0 %v4186, 60
        %v4506 = vpop.permute.xlu0 %4505
        %4507 = vrot.lane.b32.xlu0 %v4188, 60
        %v4508 = vpop.permute.xlu0 %4507
        %4509 = vrot.lane.b32.xlu0 %v4190, 60
        %v4510 = vpop.permute.xlu0 %4509
        %4511 = vrot.lane.b32.xlu0 %v4192, 60
        %v4512 = vpop.permute.xlu0 %4511
        %4513 = vrot.lane.b32.xlu0 %v4194, 60
        %v4514 = vpop.permute.xlu0 %4513
        %4515 = vrot.lane.b32.xlu0 %v4196, 60
        %v4516 = vpop.permute.xlu0 %4515
        %4517 = vrot.lane.b32.xlu0 %v4198, 60
        %v4518 = vpop.permute.xlu0 %4517
        %4519 = vrot.lane.b32.xlu0 %v4200, 60
        %v4520 = vpop.permute.xlu0 %4519
        %4521 = vrot.lane.b32.xlu0 %v4202, 60
        %v4522 = vpop.permute.xlu0 %4521
        %4523 = vrot.lane.b32.xlu0 %v4204, 60
        %v4524 = vpop.permute.xlu0 %4523
        %4525 = vrot.lane.b32.xlu0 %v4206, 60
        %v4526 = vpop.permute.xlu0 %4525
        %4527 = vrot.lane.b32.xlu0 %v4208, 60
        %v4528 = vpop.permute.xlu0 %4527
        %4529 = vrot.lane.b32.xlu0 %v4210, 60
        %v4530 = vpop.permute.xlu0 %4529
        %4531 = vrot.lane.b32.xlu0 %v4212, 60
        %v4532 = vpop.permute.xlu0 %4531
        %4533 = vrot.lane.b32.xlu0 %v4214, 60
        %v4534 = vpop.permute.xlu0 %4533
        %4535 = vrot.lane.b32.xlu0 %v4216, 60
        %v4536 = vpop.permute.xlu0 %4535
        %4537 = vrot.lane.b32.xlu0 %v4218, 60
        %v4538 = vpop.permute.xlu0 %4537
        %4539 = vrot.lane.b32.xlu0 %v4220, 60
        %v4540 = vpop.permute.xlu0 %4539
        %4541 = vrot.lane.b32.xlu0 %v4222, 60
        %v4542 = vpop.permute.xlu0 %4541
        %4543 = vrot.lane.b32.xlu0 %v4224, 60
        %v4544 = vpop.permute.xlu0 %4543
        %4545 = vrot.lane.b32.xlu0 %v4226, 60
        %v4546 = vpop.permute.xlu0 %4545
        %4547 = vrot.lane.b32.xlu0 %v4228, 60
        %v4548 = vpop.permute.xlu0 %4547
        %4549 = vrot.lane.b32.xlu0 %v4230, 60
        %v4550 = vpop.permute.xlu0 %4549
        %4551 = vrot.lane.b32.xlu0 %v4232, 60
        %v4552 = vpop.permute.xlu0 %4551
        %4553 = vrot.lane.b32.xlu0 %v4234, 60
        %v4554 = vpop.permute.xlu0 %4553
        %4555 = vrot.lane.b32.xlu0 %v4236, 60
        %v4556 = vpop.permute.xlu0 %4555
        %4557 = vrot.lane.b32.xlu0 %v4238, 60
        %v4558 = vpop.permute.xlu0 %4557
        %4559 = vrot.lane.b32.xlu0 %v4240, 60
        %v4560 = vpop.permute.xlu0 %4559
        %4561 = vrot.lane.b32.xlu0 %v4242, 60
        %v4562 = vpop.permute.xlu0 %4561
        %4563 = vrot.lane.b32.xlu0 %v4244, 60
        %v4564 = vpop.permute.xlu0 %4563
        %4565 = vrot.lane.b32.xlu0 %v4246, 60
        %v4566 = vpop.permute.xlu0 %4565
        %4567 = vrot.lane.b32.xlu0 %v4248, 60
        %v4568 = vpop.permute.xlu0 %4567
        %4569 = vrot.lane.b32.xlu0 %v4250, 60
        %v4570 = vpop.permute.xlu0 %4569
        %4571 = vrot.lane.b32.xlu0 %v4252, 60
        %v4572 = vpop.permute.xlu0 %4571
        %4573 = vrot.lane.b32.xlu0 %v4254, 60
        %v4574 = vpop.permute.xlu0 %4573
        %4575 = vrot.lane.b32.xlu0 %v4256, 60
        %v4576 = vpop.permute.xlu0 %4575
        %4577 = vrot.lane.b32.xlu0 %v4258, 60
        %v4578 = vpop.permute.xlu0 %4577
        %4579 = vrot.lane.b32.xlu0 %v4260, 60
        %v4580 = vpop.permute.xlu0 %4579
        %4581 = vrot.lane.b32.xlu0 %v4262, 60
        %v4582 = vpop.permute.xlu0 %4581
        %4583 = vrot.lane.b32.xlu0 %v4264, 60
        %v4584 = vpop.permute.xlu0 %4583
        %4585 = vrot.lane.b32.xlu0 %v4266, 60
        %v4586 = vpop.permute.xlu0 %4585
        %4587 = vrot.lane.b32.xlu0 %v4268, 60
        %v4588 = vpop.permute.xlu0 %4587
        %4589 = vrot.lane.b32.xlu0 %v4270, 60
        %v4590 = vpop.permute.xlu0 %4589
        %4591 = vrot.lane.b32.xlu0 %v4272, 60
        %v4592 = vpop.permute.xlu0 %4591
        %4593 = vrot.lane.b32.xlu0 %v4274, 60
        %v4594 = vpop.permute.xlu0 %4593
        %4595 = vrot.lane.b32.xlu0 %v4276, 60
        %v4596 = vpop.permute.xlu0 %4595
        %4597 = vrot.lane.b32.xlu0 %v4278, 60
        %v4598 = vpop.permute.xlu0 %4597
        %4599 = vrot.lane.b32.xlu0 %v4280, 60
        %v4600 = vpop.permute.xlu0 %4599
        %4601 = vrot.lane.b32.xlu0 %v4282, 60
        %v4602 = vpop.permute.xlu0 %4601
        %4603 = vrot.lane.b32.xlu0 %v4284, 60
        %v4604 = vpop.permute.xlu0 %4603
        %4605 = vrot.lane.b32.xlu0 %v4286, 60
        %v4606 = vpop.permute.xlu0 %4605
        %4607 = vrot.lane.b32.xlu0 %v4288, 60
        %v4608 = vpop.permute.xlu0 %4607
        %4609 = vrot.lane.b32.xlu0 %v4290, 60
        %v4610 = vpop.permute.xlu0 %4609
        %4611 = vrot.lane.b32.xlu0 %v4292, 60
        %v4612 = vpop.permute.xlu0 %4611
        %4613 = vrot.lane.b32.xlu0 %v4294, 60
        %v4614 = vpop.permute.xlu0 %4613
        %4615 = vrot.lane.b32.xlu0 %v4296, 60
        %v4616 = vpop.permute.xlu0 %4615
        %4617 = vrot.lane.b32.xlu0 %v4298, 60
        %v4618 = vpop.permute.xlu0 %4617
        %4619 = vrot.lane.b32.xlu0 %v4300, 60
        %v4620 = vpop.permute.xlu0 %4619
        %4621 = vrot.lane.b32.xlu0 %v4302, 60
        %v4622 = vpop.permute.xlu0 %4621
        %4623 = vrot.lane.b32.xlu0 %v4304, 60
        %v4624 = vpop.permute.xlu0 %4623
        %4625 = vrot.lane.b32.xlu0 %v4306, 60
        %v4626 = vpop.permute.xlu0 %4625
        %4627 = vrot.lane.b32.xlu0 %v4308, 60
        %v4628 = vpop.permute.xlu0 %4627
        %4629 = vrot.lane.b32.xlu0 %v4310, 60
        %v4630 = vpop.permute.xlu0 %4629
        %4631 = vrot.lane.b32.xlu0 %v4312, 60
        %v4632 = vpop.permute.xlu0 %4631
        %4633 = vrot.lane.b32.xlu0 %v4314, 60
        %v4634 = vpop.permute.xlu0 %4633
        %4635 = vrot.lane.b32.xlu0 %v4316, 60
        %v4636 = vpop.permute.xlu0 %4635
        %4637 = vrot.lane.b32.xlu0 %v4318, 60
        %v4638 = vpop.permute.xlu0 %4637
        %4639 = vrot.lane.b32.xlu0 %v4320, 60
        %v4640 = vpop.permute.xlu0 %4639
        %4641 = vrot.lane.b32.xlu0 %v4322, 60
        %v4642 = vpop.permute.xlu0 %4641
        %4643 = vrot.lane.b32.xlu0 %v4324, 60
        %v4644 = vpop.permute.xlu0 %4643
        %4645 = vrot.lane.b32.xlu0 %v4326, 60
        %v4646 = vpop.permute.xlu0 %4645
        %4647 = vrot.lane.b32.xlu0 %v4328, 60
        %v4648 = vpop.permute.xlu0 %4647
        %4649 = vrot.lane.b32.xlu0 %v4330, 60
        %v4650 = vpop.permute.xlu0 %4649
        %4651 = vrot.lane.b32.xlu0 %v4332, 60
        %v4652 = vpop.permute.xlu0 %4651
        %4653 = vrot.lane.b32.xlu0 %v4334, 60
        %v4654 = vpop.permute.xlu0 %4653
        %4655 = vrot.lane.b32.xlu0 %v4336, 60
        %v4656 = vpop.permute.xlu0 %4655
        %4657 = vrot.lane.b32.xlu0 %v4338, 60
        %v4658 = vpop.permute.xlu0 %4657
        %4659 = vrot.lane.b32.xlu0 %v4340, 60
        %v4660 = vpop.permute.xlu0 %4659
        %4661 = vrot.lane.b32.xlu0 %v4342, 60
        %v4662 = vpop.permute.xlu0 %4661
        %4663 = vrot.lane.b32.xlu0 %v4344, 60
        %v4664 = vpop.permute.xlu0 %4663
        %4665 = vrot.lane.b32.xlu0 %v4346, 60
        %v4666 = vpop.permute.xlu0 %4665
        %4667 = vrot.lane.b32.xlu0 %v4348, 60
        %v4668 = vpop.permute.xlu0 %4667
        %4669 = vrot.lane.b32.xlu0 %v4350, 60
        %v4670 = vpop.permute.xlu0 %4669
        %4671 = vrot.lane.b32.xlu0 %v4352, 60
        %v4672 = vpop.permute.xlu0 %4671
        %4673 = vrot.lane.b32.xlu0 %v4354, 60
        %v4674 = vpop.permute.xlu0 %4673
        %4675 = vrot.lane.b32.xlu0 %v4356, 60
        %v4676 = vpop.permute.xlu0 %4675
        %4677 = vrot.lane.b32.xlu0 %v4358, 60
        %v4678 = vpop.permute.xlu0 %4677
        %4679 = vrot.lane.b32.xlu0 %v4360, 60
        %v4680 = vpop.permute.xlu0 %4679
        %4681 = vrot.lane.b32.xlu0 %v4362, 60
        %v4682 = vpop.permute.xlu0 %4681
        %4683 = vrot.lane.b32.xlu0 %v4364, 60
        %v4684 = vpop.permute.xlu0 %4683
        %4685 = vrot.lane.b32.xlu0 %v4366, 60
        %v4686 = vpop.permute.xlu0 %4685
        %4687 = vrot.lane.b32.xlu0 %v4368, 60
        %v4688 = vpop.permute.xlu0 %4687
        %4689 = vrot.lane.b32.xlu0 %v4370, 60
        %v4690 = vpop.permute.xlu0 %4689
        %4691 = vrot.lane.b32.xlu0 %v4369, 60
        %v4692 = vpop.permute.xlu0 %4691
        %v4731 = vunpack.c.l.b16 %v650
        %v4732 = vunpack.c.l.b16 %v651
        %v4733 = vunpack.c.l.b16 %v652
        %v4734 = vunpack.c.l.b16 %v653
        %v4735 = vunpack.c.l.b16 %v654
        %v4736 = vunpack.c.l.b16 %v655
        %v4737 = vunpack.c.l.b16 %v656
        %v4738 = vunpack.c.l.b16 %v657
        %v4739 = vunpack.c.l.b16 %v658
        %v4740 = vunpack.c.l.b16 %v659
        %v4741 = vunpack.c.l.b16 %v660
        %v4742 = vunpack.c.l.b16 %v661
        %v4743 = vunpack.c.l.b16 %v662
        %v4744 = vunpack.c.l.b16 %v663
        %v4745 = vunpack.c.l.b16 %v664
        %v4746 = vunpack.c.l.b16 %v665
        %v4747 = vunpack.c.l.b16 %v666
        %v4748 = vunpack.c.l.b16 %v667
        %v4749 = vunpack.c.l.b16 %v668
        %v4750 = vunpack.c.l.b16 %v669
        %v4751 = vunpack.c.l.b16 %v670
        %v4752 = vunpack.c.l.b16 %v671
        %v4753 = vunpack.c.l.b16 %v672
        %v4754 = vunpack.c.l.b16 %v673
        %v4755 = vunpack.c.l.b16 %v674
        %v4756 = vunpack.c.l.b16 %v675
        %v4757 = vunpack.c.l.b16 %v676
        %v4758 = vunpack.c.l.b16 %v677
        %v4759 = vunpack.c.l.b16 %v678
        %v4760 = vunpack.c.l.b16 %v679
        %v4761 = vunpack.c.l.b16 %v680
        %v4762 = vunpack.c.l.b16 %v681
        %v4763 = vunpack.c.l.b16 %v682
        %v4764 = vunpack.c.l.b16 %v683
        %v4765 = vunpack.c.l.b16 %v684
        %v4766 = vunpack.c.l.b16 %v685
        %v4767 = vunpack.c.l.b16 %v686
        %v4768 = vunpack.c.l.b16 %v687
        %v4769 = vpack.c.b16 %v1099, %v4731
        %v4770 = vpack.c.b16 %v4732, %v4045
        %v4771 = vpack.c.b16 %v4734, %v4733
        %v4772 = vpack.c.b16 %v4736, %v4735
        %v4773 = vpack.c.b16 %v4738, %v4737
        %v4774 = vpack.c.b16 %v4740, %v4739
        %v4775 = vpack.c.b16 %v4742, %v4741
        %v4776 = vpack.c.b16 %v4744, %v4743
        %v4777 = vpack.c.b16 %v4746, %v4745
        %v4778 = vpack.c.b16 %v4748, %v4747
        %v4779 = vpack.c.b16 %v4750, %v4749
        %v4780 = vpack.c.b16 %v4752, %v4751
        %v4781 = vpack.c.b16 %v4754, %v4753
        %v4782 = vpack.c.b16 %v4756, %v4755
        %v4783 = vpack.c.b16 %v4758, %v4757
        %v4784 = vpack.c.b16 %v4760, %v4759
        %v4785 = vpack.c.b16 %v4762, %v4761
        %v4786 = vpack.c.b16 %v4764, %v4763
        %v4787 = vpack.c.b16 %v4766, %v4765
        %v4788 = vpack.c.b16 %v4768, %v4767
        %v4789 = vrot.slane %v4769, 2
        %v4790 = vrot.slane %v3576, 2
        %v4791 = vsel %vm2166, %v4789, %v4790
        %v4792 = vrot.slane %v3577, 2
        %v4793 = vsel %vm2166, %v4790, %v4792
        %v4794 = vrot.slane %v3578, 2
        %v4795 = vsel %vm2166, %v4792, %v4794
        %v4796 = vrot.slane %v3579, 2
        %v4797 = vsel %vm2166, %v4794, %v4796
        %v4798 = vrot.slane %v3580, 2
        %v4799 = vsel %vm2166, %v4796, %v4798
        %v4800 = vrot.slane %v3581, 2
        %v4801 = vsel %vm2166, %v4798, %v4800
        %v4802 = vrot.slane %v3582, 2
        %v4803 = vsel %vm2166, %v4800, %v4802
        %v4804 = vrot.slane %v3583, 2
        %v4805 = vsel %vm2166, %v4802, %v4804
        %v4806 = vrot.slane %v3584, 2
        %v4807 = vsel %vm2166, %v4804, %v4806
        %v4808 = vrot.slane %v3585, 2
        %v4809 = vsel %vm2166, %v4806, %v4808
        %v4810 = vrot.slane %v3586, 2
        %v4811 = vsel %vm2166, %v4808, %v4810
        %v4812 = vrot.slane %v3587, 2
        %v4813 = vsel %vm2166, %v4810, %v4812
        %v4814 = vrot.slane %v3588, 2
        %v4815 = vsel %vm2166, %v4812, %v4814
        %v4816 = vrot.slane %v3589, 2
        %v4817 = vsel %vm2166, %v4814, %v4816
        %v4818 = vrot.slane %v3590, 2
        %v4819 = vsel %vm2166, %v4816, %v4818
        %v4820 = vrot.slane %v3591, 2
        %v4821 = vsel %vm2166, %v4818, %v4820
        %v4822 = vrot.slane %v3592, 2
        %v4823 = vsel %vm2166, %v4820, %v4822
        %v4824 = vrot.slane %v3593, 2
        %v4825 = vsel %vm2166, %v4822, %v4824
        %v4826 = vrot.slane %v3594, 2
        %v4827 = vsel %vm2166, %v4824, %v4826
        %v4828 = vrot.slane %v3595, 2
        %v4829 = vsel %vm2166, %v4826, %v4828
        %v4830 = vrot.slane %v3596, 2
        %v4831 = vsel %vm2166, %v4828, %v4830
        %v4832 = vrot.slane %v3597, 2
        %v4833 = vsel %vm2166, %v4830, %v4832
        %v4834 = vrot.slane %v3598, 2
        %v4835 = vsel %vm2166, %v4832, %v4834
        %v4836 = vrot.slane %v3599, 2
        %v4837 = vsel %vm2166, %v4834, %v4836
        %v4838 = vrot.slane %v3600, 2
        %v4839 = vsel %vm2166, %v4836, %v4838
        %v4840 = vrot.slane %v3601, 2
        %v4841 = vsel %vm2166, %v4838, %v4840
        %v4842 = vrot.slane %v3602, 2
        %v4843 = vsel %vm2166, %v4840, %v4842
        %v4844 = vrot.slane %v3603, 2
        %v4845 = vsel %vm2166, %v4842, %v4844
        %v4846 = vrot.slane %v3604, 2
        %v4847 = vsel %vm2166, %v4844, %v4846
        %v4848 = vrot.slane %v3605, 2
        %v4849 = vsel %vm2166, %v4846, %v4848
        %v4850 = vrot.slane %v3606, 2
        %v4851 = vsel %vm2166, %v4848, %v4850
        %v4852 = vrot.slane %v3607, 2
        %v4853 = vsel %vm2166, %v4850, %v4852
        %v4854 = vrot.slane %v3608, 2
        %v4855 = vsel %vm2166, %v4852, %v4854
        %v4856 = vrot.slane %v3609, 2
        %v4857 = vsel %vm2166, %v4854, %v4856
        %v4858 = vrot.slane %v3610, 2
        %v4859 = vsel %vm2166, %v4856, %v4858
        %v4860 = vrot.slane %v3611, 2
        %v4861 = vsel %vm2166, %v4858, %v4860
        %v4862 = vrot.slane %v3612, 2
        %v4863 = vsel %vm2166, %v4860, %v4862
        %v4864 = vrot.slane %v3613, 2
        %v4865 = vsel %vm2166, %v4862, %v4864
        %v4866 = vrot.slane %v3614, 2
        %v4867 = vsel %vm2166, %v4864, %v4866
        %v4868 = vrot.slane %v3615, 2
        %v4869 = vsel %vm2166, %v4866, %v4868
        %v4870 = vrot.slane %v3616, 2
        %v4871 = vsel %vm2166, %v4868, %v4870
        %v4872 = vrot.slane %v3617, 2
        %v4873 = vsel %vm2166, %v4870, %v4872
        %v4874 = vrot.slane %v3618, 2
        %v4875 = vsel %vm2166, %v4872, %v4874
        %v4876 = vrot.slane %v3619, 2
        %v4877 = vsel %vm2166, %v4874, %v4876
        %v4878 = vrot.slane %v3620, 2
        %v4879 = vsel %vm2166, %v4876, %v4878
        %v4880 = vrot.slane %v3621, 2
        %v4881 = vsel %vm2166, %v4878, %v4880
        %v4882 = vrot.slane %v3622, 2
        %v4883 = vsel %vm2166, %v4880, %v4882
        %v4884 = vrot.slane %v3623, 2
        %v4885 = vsel %vm2166, %v4882, %v4884
        %v4886 = vrot.slane %v3624, 2
        %v4887 = vsel %vm2166, %v4884, %v4886
        %v4888 = vrot.slane %v3625, 2
        %v4889 = vsel %vm2166, %v4886, %v4888
        %v4890 = vrot.slane %v3626, 2
        %v4891 = vsel %vm2166, %v4888, %v4890
        %v4892 = vrot.slane %v3627, 2
        %v4893 = vsel %vm2166, %v4890, %v4892
        %v4894 = vrot.slane %v3628, 2
        %v4895 = vsel %vm2166, %v4892, %v4894
        %v4896 = vrot.slane %v3629, 2
        %v4897 = vsel %vm2166, %v4894, %v4896
        %v4898 = vrot.slane %v3630, 2
        %v4899 = vsel %vm2166, %v4896, %v4898
        %v4900 = vrot.slane %v3631, 2
        %v4901 = vsel %vm2166, %v4898, %v4900
        %v4902 = vrot.slane %v3632, 2
        %v4903 = vsel %vm2166, %v4900, %v4902
        %v4904 = vrot.slane %v3633, 2
        %v4905 = vsel %vm2166, %v4902, %v4904
        %v4906 = vrot.slane %v3634, 2
        %v4907 = vsel %vm2166, %v4904, %v4906
        %v4908 = vrot.slane %v3635, 2
        %v4909 = vsel %vm2166, %v4906, %v4908
        %v4910 = vrot.slane %v3636, 2
        %v4911 = vsel %vm2166, %v4908, %v4910
        %v4912 = vrot.slane %v3637, 2
        %v4913 = vsel %vm2166, %v4910, %v4912
        %v4914 = vrot.slane %v3638, 2
        %v4915 = vsel %vm2166, %v4912, %v4914
        %v4916 = vrot.slane %v3639, 2
        %v4917 = vsel %vm2166, %v4914, %v4916
        %v4918 = vrot.slane %v3640, 2
        %v4919 = vsel %vm2166, %v4916, %v4918
        %v4920 = vrot.slane %v3641, 2
        %v4921 = vsel %vm2166, %v4918, %v4920
        %v4922 = vrot.slane %v3642, 2
        %v4923 = vsel %vm2166, %v4920, %v4922
        %v4924 = vrot.slane %v3643, 2
        %v4925 = vsel %vm2166, %v4922, %v4924
        %v4926 = vrot.slane %v3644, 2
        %v4927 = vsel %vm2166, %v4924, %v4926
        %v4928 = vrot.slane %v3645, 2
        %v4929 = vsel %vm2166, %v4926, %v4928
        %v4930 = vrot.slane %v3646, 2
        %v4931 = vsel %vm2166, %v4928, %v4930
        %v4932 = vrot.slane %v3647, 2
        %v4933 = vsel %vm2166, %v4930, %v4932
        %v4934 = vrot.slane %v3648, 2
        %v4935 = vsel %vm2166, %v4932, %v4934
        %v4936 = vrot.slane %v3649, 2
        %v4937 = vsel %vm2166, %v4934, %v4936
        %v4938 = vrot.slane %v3650, 2
        %v4939 = vsel %vm2166, %v4936, %v4938
        %v4940 = vrot.slane %v3651, 2
        %v4941 = vsel %vm2166, %v4938, %v4940
        %v4942 = vrot.slane %v3652, 2
        %v4943 = vsel %vm2166, %v4940, %v4942
        %v4944 = vrot.slane %v3653, 2
        %v4945 = vsel %vm2166, %v4942, %v4944
        %v4946 = vrot.slane %v3654, 2
        %v4947 = vsel %vm2166, %v4944, %v4946
        %v4948 = vrot.slane %v3655, 2
        %v4949 = vsel %vm2166, %v4946, %v4948
        %v4950 = vrot.slane %v3656, 2
        %v4951 = vsel %vm2166, %v4948, %v4950
        %v4952 = vrot.slane %v3657, 2
        %v4953 = vsel %vm2166, %v4950, %v4952
        %v4954 = vrot.slane %v3658, 2
        %v4955 = vsel %vm2166, %v4952, %v4954
        %v4956 = vrot.slane %v3659, 2
        %v4957 = vsel %vm2166, %v4954, %v4956
        %v4958 = vrot.slane %v3660, 2
        %v4959 = vsel %vm2166, %v4956, %v4958
        %v4960 = vrot.slane %v3661, 2
        %v4961 = vsel %vm2166, %v4958, %v4960
        %v4962 = vrot.slane %v3662, 2
        %v4963 = vsel %vm2166, %v4960, %v4962
        %v4964 = vrot.slane %v3663, 2
        %v4965 = vsel %vm2166, %v4962, %v4964
        %v4966 = vrot.slane %v3664, 2
        %v4967 = vsel %vm2166, %v4964, %v4966
        %v4968 = vrot.slane %v3665, 2
        %v4969 = vsel %vm2166, %v4966, %v4968
        %v4970 = vrot.slane %v3666, 2
        %v4971 = vsel %vm2166, %v4968, %v4970
        %v4972 = vrot.slane %v3667, 2
        %v4973 = vsel %vm2166, %v4970, %v4972
        %v4974 = vrot.slane %v3668, 2
        %v4975 = vsel %vm2166, %v4972, %v4974
        %v4976 = vrot.slane %v3669, 2
        %v4977 = vsel %vm2166, %v4974, %v4976
        %v4978 = vrot.slane %v3670, 2
        %v4979 = vsel %vm2166, %v4976, %v4978
        %v4980 = vrot.slane %v3671, 2
        %v4981 = vsel %vm2166, %v4978, %v4980
        %v4982 = vrot.slane %v3672, 2
        %v4983 = vsel %vm2166, %v4980, %v4982
        %v4984 = vrot.slane %v3673, 2
        %v4985 = vsel %vm2166, %v4982, %v4984
        %v4986 = vrot.slane %v3674, 2
        %v4987 = vsel %vm2166, %v4984, %v4986
        %v4988 = vrot.slane %v3675, 2
        %v4989 = vsel %vm2166, %v4986, %v4988
        %v4990 = vrot.slane %v3676, 2
        %v4991 = vsel %vm2166, %v4988, %v4990
        %v4992 = vrot.slane %v3677, 2
        %v4993 = vsel %vm2166, %v4990, %v4992
        %v4994 = vrot.slane %v3678, 2
        %v4995 = vsel %vm2166, %v4992, %v4994
        %v4996 = vrot.slane %v3679, 2
        %v4997 = vsel %vm2166, %v4994, %v4996
        %v4998 = vrot.slane %v3680, 2
        %v4999 = vsel %vm2166, %v4996, %v4998
        %v5000 = vrot.slane %v3681, 2
        %v5001 = vsel %vm2166, %v4998, %v5000
        %v5002 = vrot.slane %v3682, 2
        %v5003 = vsel %vm2166, %v5000, %v5002
        %v5004 = vrot.slane %v3683, 2
        %v5005 = vsel %vm2166, %v5002, %v5004
        %v5006 = vrot.slane %v3684, 2
        %v5007 = vsel %vm2166, %v5004, %v5006
        %v5008 = vrot.slane %v3685, 2
        %v5009 = vsel %vm2166, %v5006, %v5008
        %v5010 = vrot.slane %v3686, 2
        %v5011 = vsel %vm2166, %v5008, %v5010
        %v5012 = vrot.slane %v3687, 2
        %v5013 = vsel %vm2166, %v5010, %v5012
        %v5014 = vrot.slane %v3688, 2
        %v5015 = vsel %vm2166, %v5012, %v5014
        %v5016 = vrot.slane %v3689, 2
        %v5017 = vsel %vm2166, %v5014, %v5016
        %v5018 = vrot.slane %v3690, 2
        %v5019 = vsel %vm2166, %v5016, %v5018
        %v5020 = vrot.slane %v3691, 2
        %v5021 = vsel %vm2166, %v5018, %v5020
        %v5022 = vrot.slane %v3692, 2
        %v5023 = vsel %vm2166, %v5020, %v5022
        %v5024 = vrot.slane %v3693, 2
        %v5025 = vsel %vm2166, %v5022, %v5024
        %v5026 = vrot.slane %v3694, 2
        %v5027 = vsel %vm2166, %v5024, %v5026
        %v5028 = vrot.slane %v3695, 2
        %v5029 = vsel %vm2166, %v5026, %v5028
        %v5030 = vrot.slane %v3696, 2
        %v5031 = vsel %vm2166, %v5028, %v5030
        %v5032 = vrot.slane %v3697, 2
        %v5033 = vsel %vm2166, %v5030, %v5032
        %v5034 = vrot.slane %v3698, 2
        %v5035 = vsel %vm2166, %v5032, %v5034
        %v5036 = vrot.slane %v3699, 2
        %v5037 = vsel %vm2166, %v5034, %v5036
        %v5038 = vrot.slane %v3700, 2
        %v5039 = vsel %vm2166, %v5036, %v5038
        %v5040 = vrot.slane %v3701, 2
        %v5041 = vsel %vm2166, %v5038, %v5040
        %v5042 = vrot.slane %v3702, 2
        %v5043 = vsel %vm2166, %v5040, %v5042
        %v5044 = vrot.slane %v3703, 2
        %v5045 = vsel %vm2166, %v5042, %v5044
        %v5046 = vrot.slane %v3704, 2
        %v5047 = vsel %vm2166, %v5044, %v5046
        %v5048 = vrot.slane %v3705, 2
        %v5049 = vsel %vm2166, %v5046, %v5048
        %v5050 = vrot.slane %v3706, 2
        %v5051 = vsel %vm2166, %v5048, %v5050
        %v5052 = vrot.slane %v3707, 2
        %v5053 = vsel %vm2166, %v5050, %v5052
        %v5054 = vrot.slane %v3708, 2
        %v5055 = vsel %vm2166, %v5052, %v5054
        %v5056 = vrot.slane %v3709, 2
        %v5057 = vsel %vm2166, %v5054, %v5056
        %v5058 = vrot.slane %v3710, 2
        %v5059 = vsel %vm2166, %v5056, %v5058
        %v5060 = vrot.slane %v3711, 2
        %v5061 = vsel %vm2166, %v5058, %v5060
        %v5062 = vrot.slane %v3712, 2
        %v5063 = vsel %vm2166, %v5060, %v5062
        %v5064 = vrot.slane %v3713, 2
        %v5065 = vsel %vm2166, %v5062, %v5064
        %v5066 = vrot.slane %v3714, 2
        %v5067 = vsel %vm2166, %v5064, %v5066
        %v5068 = vrot.slane %v3715, 2
        %v5069 = vsel %vm2166, %v5066, %v5068
        %v5070 = vrot.slane %v4048, 2
        %v5071 = vsel %vm2166, %v5068, %v5070
        %v5072 = vrot.slane %v4770, 2
        %v5073 = vsel %vm2166, %v5070, %v5072
        %v5074 = vrot.slane %v4771, 2
        %v5075 = vsel %vm2166, %v5072, %v5074
        %v5076 = vrot.slane %v4772, 2
        %v5077 = vsel %vm2166, %v5074, %v5076
        %v5078 = vrot.slane %v4773, 2
        %v5079 = vsel %vm2166, %v5076, %v5078
        %v5080 = vrot.slane %v4774, 2
        %v5081 = vsel %vm2166, %v5078, %v5080
        %v5082 = vrot.slane %v4775, 2
        %v5083 = vsel %vm2166, %v5080, %v5082
        %v5084 = vrot.slane %v4776, 2
        %v5085 = vsel %vm2166, %v5082, %v5084
        %v5086 = vrot.slane %v4777, 2
        %v5087 = vsel %vm2166, %v5084, %v5086
        %v5088 = vrot.slane %v4778, 2
        %v5089 = vsel %vm2166, %v5086, %v5088
        %v5090 = vrot.slane %v4779, 2
        %v5091 = vsel %vm2166, %v5088, %v5090
        %v5092 = vrot.slane %v4780, 2
        %v5093 = vsel %vm2166, %v5090, %v5092
        %v5094 = vrot.slane %v4781, 2
        %v5095 = vsel %vm2166, %v5092, %v5094
        %v5096 = vrot.slane %v4782, 2
        %v5097 = vsel %vm2166, %v5094, %v5096
        %v5098 = vrot.slane %v4783, 2
        %v5099 = vsel %vm2166, %v5096, %v5098
        %v5100 = vrot.slane %v4784, 2
        %v5101 = vsel %vm2166, %v5098, %v5100
        %v5102 = vrot.slane %v4785, 2
        %v5103 = vsel %vm2166, %v5100, %v5102
        %v5104 = vrot.slane %v4786, 2
        %v5105 = vsel %vm2166, %v5102, %v5104
        %v5106 = vrot.slane %v4787, 2
        %v5107 = vsel %vm2166, %v5104, %v5106
        %v5108 = vrot.slane %v4788, 2
        %v5109 = vsel %vm2166, %v5106, %v5108
        %5110 = vrot.lane.b32.xlu0 %v4791, 72
        %v5111 = vpop.permute.xlu0 %5110
        %5112 = vrot.lane.b32.xlu0 %v4793, 72
        %v5113 = vpop.permute.xlu0 %5112
        %5114 = vrot.lane.b32.xlu0 %v4795, 72
        %v5115 = vpop.permute.xlu0 %5114
        %5116 = vrot.lane.b32.xlu0 %v4797, 72
        %v5117 = vpop.permute.xlu0 %5116
        %5118 = vrot.lane.b32.xlu0 %v4799, 72
        %v5119 = vpop.permute.xlu0 %5118
        %5120 = vrot.lane.b32.xlu0 %v4801, 72
        %v5121 = vpop.permute.xlu0 %5120
        %5122 = vrot.lane.b32.xlu0 %v4803, 72
        %v5123 = vpop.permute.xlu0 %5122
        %5124 = vrot.lane.b32.xlu0 %v4805, 72
        %v5125 = vpop.permute.xlu0 %5124
        %5126 = vrot.lane.b32.xlu0 %v4807, 72
        %v5127 = vpop.permute.xlu0 %5126
        %5128 = vrot.lane.b32.xlu0 %v4809, 72
        %v5129 = vpop.permute.xlu0 %5128
        %5130 = vrot.lane.b32.xlu0 %v4811, 72
        %v5131 = vpop.permute.xlu0 %5130
        %5132 = vrot.lane.b32.xlu0 %v4813, 72
        %v5133 = vpop.permute.xlu0 %5132
        %5134 = vrot.lane.b32.xlu0 %v4815, 72
        %v5135 = vpop.permute.xlu0 %5134
        %5136 = vrot.lane.b32.xlu0 %v4817, 72
        %v5137 = vpop.permute.xlu0 %5136
        %5138 = vrot.lane.b32.xlu0 %v4819, 72
        %v5139 = vpop.permute.xlu0 %5138
        %5140 = vrot.lane.b32.xlu0 %v4821, 72
        %v5141 = vpop.permute.xlu0 %5140
        %5142 = vrot.lane.b32.xlu0 %v4823, 72
        %v5143 = vpop.permute.xlu0 %5142
        %5144 = vrot.lane.b32.xlu0 %v4825, 72
        %v5145 = vpop.permute.xlu0 %5144
        %5146 = vrot.lane.b32.xlu0 %v4827, 72
        %v5147 = vpop.permute.xlu0 %5146
        %5148 = vrot.lane.b32.xlu0 %v4829, 72
        %v5149 = vpop.permute.xlu0 %5148
        %5150 = vrot.lane.b32.xlu0 %v4831, 72
        %v5151 = vpop.permute.xlu0 %5150
        %5152 = vrot.lane.b32.xlu0 %v4833, 72
        %v5153 = vpop.permute.xlu0 %5152
        %5154 = vrot.lane.b32.xlu0 %v4835, 72
        %v5155 = vpop.permute.xlu0 %5154
        %5156 = vrot.lane.b32.xlu0 %v4837, 72
        %v5157 = vpop.permute.xlu0 %5156
        %5158 = vrot.lane.b32.xlu0 %v4839, 72
        %v5159 = vpop.permute.xlu0 %5158
        %5160 = vrot.lane.b32.xlu0 %v4841, 72
        %v5161 = vpop.permute.xlu0 %5160
        %5162 = vrot.lane.b32.xlu0 %v4843, 72
        %v5163 = vpop.permute.xlu0 %5162
        %5164 = vrot.lane.b32.xlu0 %v4845, 72
        %v5165 = vpop.permute.xlu0 %5164
        %5166 = vrot.lane.b32.xlu0 %v4847, 72
        %v5167 = vpop.permute.xlu0 %5166
        %5168 = vrot.lane.b32.xlu0 %v4849, 72
        %v5169 = vpop.permute.xlu0 %5168
        %5170 = vrot.lane.b32.xlu0 %v4851, 72
        %v5171 = vpop.permute.xlu0 %5170
        %5172 = vrot.lane.b32.xlu0 %v4853, 72
        %v5173 = vpop.permute.xlu0 %5172
        %5174 = vrot.lane.b32.xlu0 %v4855, 72
        %v5175 = vpop.permute.xlu0 %5174
        %5176 = vrot.lane.b32.xlu0 %v4857, 72
        %v5177 = vpop.permute.xlu0 %5176
        %5178 = vrot.lane.b32.xlu0 %v4859, 72
        %v5179 = vpop.permute.xlu0 %5178
        %5180 = vrot.lane.b32.xlu0 %v4861, 72
        %v5181 = vpop.permute.xlu0 %5180
        %5182 = vrot.lane.b32.xlu0 %v4863, 72
        %v5183 = vpop.permute.xlu0 %5182
        %5184 = vrot.lane.b32.xlu0 %v4865, 72
        %v5185 = vpop.permute.xlu0 %5184
        %5186 = vrot.lane.b32.xlu0 %v4867, 72
        %v5187 = vpop.permute.xlu0 %5186
        %5188 = vrot.lane.b32.xlu0 %v4869, 72
        %v5189 = vpop.permute.xlu0 %5188
        %5190 = vrot.lane.b32.xlu0 %v4871, 72
        %v5191 = vpop.permute.xlu0 %5190
        %5192 = vrot.lane.b32.xlu0 %v4873, 72
        %v5193 = vpop.permute.xlu0 %5192
        %5194 = vrot.lane.b32.xlu0 %v4875, 72
        %v5195 = vpop.permute.xlu0 %5194
        %5196 = vrot.lane.b32.xlu0 %v4877, 72
        %v5197 = vpop.permute.xlu0 %5196
        %5198 = vrot.lane.b32.xlu0 %v4879, 72
        %v5199 = vpop.permute.xlu0 %5198
        %5200 = vrot.lane.b32.xlu0 %v4881, 72
        %v5201 = vpop.permute.xlu0 %5200
        %5202 = vrot.lane.b32.xlu0 %v4883, 72
        %v5203 = vpop.permute.xlu0 %5202
        %5204 = vrot.lane.b32.xlu0 %v4885, 72
        %v5205 = vpop.permute.xlu0 %5204
        %5206 = vrot.lane.b32.xlu0 %v4887, 72
        %v5207 = vpop.permute.xlu0 %5206
        %5208 = vrot.lane.b32.xlu0 %v4889, 72
        %v5209 = vpop.permute.xlu0 %5208
        %5210 = vrot.lane.b32.xlu0 %v4891, 72
        %v5211 = vpop.permute.xlu0 %5210
        %5212 = vrot.lane.b32.xlu0 %v4893, 72
        %v5213 = vpop.permute.xlu0 %5212
        %5214 = vrot.lane.b32.xlu0 %v4895, 72
        %v5215 = vpop.permute.xlu0 %5214
        %5216 = vrot.lane.b32.xlu0 %v4897, 72
        %v5217 = vpop.permute.xlu0 %5216
        %5218 = vrot.lane.b32.xlu0 %v4899, 72
        %v5219 = vpop.permute.xlu0 %5218
        %5220 = vrot.lane.b32.xlu0 %v4901, 72
        %v5221 = vpop.permute.xlu0 %5220
        %5222 = vrot.lane.b32.xlu0 %v4903, 72
        %v5223 = vpop.permute.xlu0 %5222
        %5224 = vrot.lane.b32.xlu0 %v4905, 72
        %v5225 = vpop.permute.xlu0 %5224
        %5226 = vrot.lane.b32.xlu0 %v4907, 72
        %v5227 = vpop.permute.xlu0 %5226
        %5228 = vrot.lane.b32.xlu0 %v4909, 72
        %v5229 = vpop.permute.xlu0 %5228
        %5230 = vrot.lane.b32.xlu0 %v4911, 72
        %v5231 = vpop.permute.xlu0 %5230
        %5232 = vrot.lane.b32.xlu0 %v4913, 72
        %v5233 = vpop.permute.xlu0 %5232
        %5234 = vrot.lane.b32.xlu0 %v4915, 72
        %v5235 = vpop.permute.xlu0 %5234
        %5236 = vrot.lane.b32.xlu0 %v4917, 72
        %v5237 = vpop.permute.xlu0 %5236
        %5238 = vrot.lane.b32.xlu0 %v4919, 72
        %v5239 = vpop.permute.xlu0 %5238
        %5240 = vrot.lane.b32.xlu0 %v4921, 72
        %v5241 = vpop.permute.xlu0 %5240
        %5242 = vrot.lane.b32.xlu0 %v4923, 72
        %v5243 = vpop.permute.xlu0 %5242
        %5244 = vrot.lane.b32.xlu0 %v4925, 72
        %v5245 = vpop.permute.xlu0 %5244
        %5246 = vrot.lane.b32.xlu0 %v4927, 72
        %v5247 = vpop.permute.xlu0 %5246
        %5248 = vrot.lane.b32.xlu0 %v4929, 72
        %v5249 = vpop.permute.xlu0 %5248
        %5250 = vrot.lane.b32.xlu0 %v4931, 72
        %v5251 = vpop.permute.xlu0 %5250
        %5252 = vrot.lane.b32.xlu0 %v4933, 72
        %v5253 = vpop.permute.xlu0 %5252
        %5254 = vrot.lane.b32.xlu0 %v4935, 72
        %v5255 = vpop.permute.xlu0 %5254
        %5256 = vrot.lane.b32.xlu0 %v4937, 72
        %v5257 = vpop.permute.xlu0 %5256
        %5258 = vrot.lane.b32.xlu0 %v4939, 72
        %v5259 = vpop.permute.xlu0 %5258
        %5260 = vrot.lane.b32.xlu0 %v4941, 72
        %v5261 = vpop.permute.xlu0 %5260
        %5262 = vrot.lane.b32.xlu0 %v4943, 72
        %v5263 = vpop.permute.xlu0 %5262
        %5264 = vrot.lane.b32.xlu0 %v4945, 72
        %v5265 = vpop.permute.xlu0 %5264
        %5266 = vrot.lane.b32.xlu0 %v4947, 72
        %v5267 = vpop.permute.xlu0 %5266
        %5268 = vrot.lane.b32.xlu0 %v4949, 72
        %v5269 = vpop.permute.xlu0 %5268
        %5270 = vrot.lane.b32.xlu0 %v4951, 72
        %v5271 = vpop.permute.xlu0 %5270
        %5272 = vrot.lane.b32.xlu0 %v4953, 72
        %v5273 = vpop.permute.xlu0 %5272
        %5274 = vrot.lane.b32.xlu0 %v4955, 72
        %v5275 = vpop.permute.xlu0 %5274
        %5276 = vrot.lane.b32.xlu0 %v4957, 72
        %v5277 = vpop.permute.xlu0 %5276
        %5278 = vrot.lane.b32.xlu0 %v4959, 72
        %v5279 = vpop.permute.xlu0 %5278
        %5280 = vrot.lane.b32.xlu0 %v4961, 72
        %v5281 = vpop.permute.xlu0 %5280
        %5282 = vrot.lane.b32.xlu0 %v4963, 72
        %v5283 = vpop.permute.xlu0 %5282
        %5284 = vrot.lane.b32.xlu0 %v4965, 72
        %v5285 = vpop.permute.xlu0 %5284
        %5286 = vrot.lane.b32.xlu0 %v4967, 72
        %v5287 = vpop.permute.xlu0 %5286
        %5288 = vrot.lane.b32.xlu0 %v4969, 72
        %v5289 = vpop.permute.xlu0 %5288
        %5290 = vrot.lane.b32.xlu0 %v4971, 72
        %v5291 = vpop.permute.xlu0 %5290
        %5292 = vrot.lane.b32.xlu0 %v4973, 72
        %v5293 = vpop.permute.xlu0 %5292
        %5294 = vrot.lane.b32.xlu0 %v4975, 72
        %v5295 = vpop.permute.xlu0 %5294
        %5296 = vrot.lane.b32.xlu0 %v4977, 72
        %v5297 = vpop.permute.xlu0 %5296
        %5298 = vrot.lane.b32.xlu0 %v4979, 72
        %v5299 = vpop.permute.xlu0 %5298
        %5300 = vrot.lane.b32.xlu0 %v4981, 72
        %v5301 = vpop.permute.xlu0 %5300
        %5302 = vrot.lane.b32.xlu0 %v4983, 72
        %v5303 = vpop.permute.xlu0 %5302
        %5304 = vrot.lane.b32.xlu0 %v4985, 72
        %v5305 = vpop.permute.xlu0 %5304
        %5306 = vrot.lane.b32.xlu0 %v4987, 72
        %v5307 = vpop.permute.xlu0 %5306
        %5308 = vrot.lane.b32.xlu0 %v4989, 72
        %v5309 = vpop.permute.xlu0 %5308
        %5310 = vrot.lane.b32.xlu0 %v4991, 72
        %v5311 = vpop.permute.xlu0 %5310
        %5312 = vrot.lane.b32.xlu0 %v4993, 72
        %v5313 = vpop.permute.xlu0 %5312
        %5314 = vrot.lane.b32.xlu0 %v4995, 72
        %v5315 = vpop.permute.xlu0 %5314
        %5316 = vrot.lane.b32.xlu0 %v4997, 72
        %v5317 = vpop.permute.xlu0 %5316
        %5318 = vrot.lane.b32.xlu0 %v4999, 72
        %v5319 = vpop.permute.xlu0 %5318
        %5320 = vrot.lane.b32.xlu0 %v5001, 72
        %v5321 = vpop.permute.xlu0 %5320
        %5322 = vrot.lane.b32.xlu0 %v5003, 72
        %v5323 = vpop.permute.xlu0 %5322
        %5324 = vrot.lane.b32.xlu0 %v5005, 72
        %v5325 = vpop.permute.xlu0 %5324
        %5326 = vrot.lane.b32.xlu0 %v5007, 72
        %v5327 = vpop.permute.xlu0 %5326
        %5328 = vrot.lane.b32.xlu0 %v5009, 72
        %v5329 = vpop.permute.xlu0 %5328
        %5330 = vrot.lane.b32.xlu0 %v5011, 72
        %v5331 = vpop.permute.xlu0 %5330
        %5332 = vrot.lane.b32.xlu0 %v5013, 72
        %v5333 = vpop.permute.xlu0 %5332
        %5334 = vrot.lane.b32.xlu0 %v5015, 72
        %v5335 = vpop.permute.xlu0 %5334
        %5336 = vrot.lane.b32.xlu0 %v5017, 72
        %v5337 = vpop.permute.xlu0 %5336
        %5338 = vrot.lane.b32.xlu0 %v5019, 72
        %v5339 = vpop.permute.xlu0 %5338
        %5340 = vrot.lane.b32.xlu0 %v5021, 72
        %v5341 = vpop.permute.xlu0 %5340
        %5342 = vrot.lane.b32.xlu0 %v5023, 72
        %v5343 = vpop.permute.xlu0 %5342
        %5344 = vrot.lane.b32.xlu0 %v5025, 72
        %v5345 = vpop.permute.xlu0 %5344
        %5346 = vrot.lane.b32.xlu0 %v5027, 72
        %v5347 = vpop.permute.xlu0 %5346
        %5348 = vrot.lane.b32.xlu0 %v5029, 72
        %v5349 = vpop.permute.xlu0 %5348
        %5350 = vrot.lane.b32.xlu0 %v5031, 72
        %v5351 = vpop.permute.xlu0 %5350
        %5352 = vrot.lane.b32.xlu0 %v5033, 72
        %v5353 = vpop.permute.xlu0 %5352
        %5354 = vrot.lane.b32.xlu0 %v5035, 72
        %v5355 = vpop.permute.xlu0 %5354
        %5356 = vrot.lane.b32.xlu0 %v5037, 72
        %v5357 = vpop.permute.xlu0 %5356
        %5358 = vrot.lane.b32.xlu0 %v5039, 72
        %v5359 = vpop.permute.xlu0 %5358
        %5360 = vrot.lane.b32.xlu0 %v5041, 72
        %v5361 = vpop.permute.xlu0 %5360
        %5362 = vrot.lane.b32.xlu0 %v5043, 72
        %v5363 = vpop.permute.xlu0 %5362
        %5364 = vrot.lane.b32.xlu0 %v5045, 72
        %v5365 = vpop.permute.xlu0 %5364
        %5366 = vrot.lane.b32.xlu0 %v5047, 72
        %v5367 = vpop.permute.xlu0 %5366
        %5368 = vrot.lane.b32.xlu0 %v5049, 72
        %v5369 = vpop.permute.xlu0 %5368
        %5370 = vrot.lane.b32.xlu0 %v5051, 72
        %v5371 = vpop.permute.xlu0 %5370
        %5372 = vrot.lane.b32.xlu0 %v5053, 72
        %v5373 = vpop.permute.xlu0 %5372
        %5374 = vrot.lane.b32.xlu0 %v5055, 72
        %v5375 = vpop.permute.xlu0 %5374
        %5376 = vrot.lane.b32.xlu0 %v5057, 72
        %v5377 = vpop.permute.xlu0 %5376
        %5378 = vrot.lane.b32.xlu0 %v5059, 72
        %v5379 = vpop.permute.xlu0 %5378
        %5380 = vrot.lane.b32.xlu0 %v5061, 72
        %v5381 = vpop.permute.xlu0 %5380
        %5382 = vrot.lane.b32.xlu0 %v5063, 72
        %v5383 = vpop.permute.xlu0 %5382
        %5384 = vrot.lane.b32.xlu0 %v5065, 72
        %v5385 = vpop.permute.xlu0 %5384
        %5386 = vrot.lane.b32.xlu0 %v5067, 72
        %v5387 = vpop.permute.xlu0 %5386
        %5388 = vrot.lane.b32.xlu0 %v5069, 72
        %v5389 = vpop.permute.xlu0 %5388
        %5390 = vrot.lane.b32.xlu0 %v5071, 72
        %v5391 = vpop.permute.xlu0 %5390
        %5392 = vrot.lane.b32.xlu0 %v5073, 72
        %v5393 = vpop.permute.xlu0 %5392
        %5394 = vrot.lane.b32.xlu0 %v5075, 72
        %v5395 = vpop.permute.xlu0 %5394
        %5396 = vrot.lane.b32.xlu0 %v5077, 72
        %v5397 = vpop.permute.xlu0 %5396
        %5398 = vrot.lane.b32.xlu0 %v5079, 72
        %v5399 = vpop.permute.xlu0 %5398
        %5400 = vrot.lane.b32.xlu0 %v5081, 72
        %v5401 = vpop.permute.xlu0 %5400
        %5402 = vrot.lane.b32.xlu0 %v5083, 72
        %v5403 = vpop.permute.xlu0 %5402
        %5404 = vrot.lane.b32.xlu0 %v5085, 72
        %v5405 = vpop.permute.xlu0 %5404
        %5406 = vrot.lane.b32.xlu0 %v5087, 72
        %v5407 = vpop.permute.xlu0 %5406
        %5408 = vrot.lane.b32.xlu0 %v5089, 72
        %v5409 = vpop.permute.xlu0 %5408
        %5410 = vrot.lane.b32.xlu0 %v5091, 72
        %v5411 = vpop.permute.xlu0 %5410
        %5412 = vrot.lane.b32.xlu0 %v5093, 72
        %v5413 = vpop.permute.xlu0 %5412
        %5414 = vrot.lane.b32.xlu0 %v5095, 72
        %v5415 = vpop.permute.xlu0 %5414
        %5416 = vrot.lane.b32.xlu0 %v5097, 72
        %v5417 = vpop.permute.xlu0 %5416
        %5418 = vrot.lane.b32.xlu0 %v5099, 72
        %v5419 = vpop.permute.xlu0 %5418
        %5420 = vrot.lane.b32.xlu0 %v5101, 72
        %v5421 = vpop.permute.xlu0 %5420
        %5422 = vrot.lane.b32.xlu0 %v5103, 72
        %v5423 = vpop.permute.xlu0 %5422
        %5424 = vrot.lane.b32.xlu0 %v5105, 72
        %v5425 = vpop.permute.xlu0 %5424
        %5426 = vrot.lane.b32.xlu0 %v5107, 72
        %v5427 = vpop.permute.xlu0 %5426
        %5428 = vrot.lane.b32.xlu0 %v5109, 72
        %v5429 = vpop.permute.xlu0 %5428
        %5430 = vrot.lane.b32.xlu0 %v5108, 72
        %v5431 = vpop.permute.xlu0 %5430
        %v5436 = vunpack.c.l.b16 %v688
        %v5437 = vunpack.c.l.b16 %v689
        %v5438 = vunpack.c.l.b16 %v690
        %v5439 = vunpack.c.l.b16 %v691
        %v5440 = vpack.c.b16 %v1101, %v5436
        %v5441 = vpack.c.b16 %v5437, %v4767
        %v5442 = vpack.c.b16 %v5439, %v5438
        %v5443 = vrot.slane %v5440, 3
        %v5444 = vrot.slane %v3577, 3
        %v5445 = vsel %vm2906, %v5443, %v5444
        %v5446 = vrot.slane %v3578, 3
        %v5447 = vsel %vm2906, %v5444, %v5446
        %v5448 = vrot.slane %v3579, 3
        %v5449 = vsel %vm2906, %v5446, %v5448
        %v5450 = vrot.slane %v3580, 3
        %v5451 = vsel %vm2906, %v5448, %v5450
        %v5452 = vrot.slane %v3581, 3
        %v5453 = vsel %vm2906, %v5450, %v5452
        %v5454 = vrot.slane %v3582, 3
        %v5455 = vsel %vm2906, %v5452, %v5454
        %v5456 = vrot.slane %v3583, 3
        %v5457 = vsel %vm2906, %v5454, %v5456
        %v5458 = vrot.slane %v3584, 3
        %v5459 = vsel %vm2906, %v5456, %v5458
        %v5460 = vrot.slane %v3585, 3
        %v5461 = vsel %vm2906, %v5458, %v5460
        %v5462 = vrot.slane %v3586, 3
        %v5463 = vsel %vm2906, %v5460, %v5462
        %v5464 = vrot.slane %v3587, 3
        %v5465 = vsel %vm2906, %v5462, %v5464
        %v5466 = vrot.slane %v3588, 3
        %v5467 = vsel %vm2906, %v5464, %v5466
        %v5468 = vrot.slane %v3589, 3
        %v5469 = vsel %vm2906, %v5466, %v5468
        %v5470 = vrot.slane %v3590, 3
        %v5471 = vsel %vm2906, %v5468, %v5470
        %v5472 = vrot.slane %v3591, 3
        %v5473 = vsel %vm2906, %v5470, %v5472
        %v5474 = vrot.slane %v3592, 3
        %v5475 = vsel %vm2906, %v5472, %v5474
        %v5476 = vrot.slane %v3593, 3
        %v5477 = vsel %vm2906, %v5474, %v5476
        %v5478 = vrot.slane %v3594, 3
        %v5479 = vsel %vm2906, %v5476, %v5478
        %v5480 = vrot.slane %v3595, 3
        %v5481 = vsel %vm2906, %v5478, %v5480
        %v5482 = vrot.slane %v3596, 3
        %v5483 = vsel %vm2906, %v5480, %v5482
        %v5484 = vrot.slane %v3597, 3
        %v5485 = vsel %vm2906, %v5482, %v5484
        %v5486 = vrot.slane %v3598, 3
        %v5487 = vsel %vm2906, %v5484, %v5486
        %v5488 = vrot.slane %v3599, 3
        %v5489 = vsel %vm2906, %v5486, %v5488
        %v5490 = vrot.slane %v3600, 3
        %v5491 = vsel %vm2906, %v5488, %v5490
        %v5492 = vrot.slane %v3601, 3
        %v5493 = vsel %vm2906, %v5490, %v5492
        %v5494 = vrot.slane %v3602, 3
        %v5495 = vsel %vm2906, %v5492, %v5494
        %v5496 = vrot.slane %v3603, 3
        %v5497 = vsel %vm2906, %v5494, %v5496
        %v5498 = vrot.slane %v3604, 3
        %v5499 = vsel %vm2906, %v5496, %v5498
        %v5500 = vrot.slane %v3605, 3
        %v5501 = vsel %vm2906, %v5498, %v5500
        %v5502 = vrot.slane %v3606, 3
        %v5503 = vsel %vm2906, %v5500, %v5502
        %v5504 = vrot.slane %v3607, 3
        %v5505 = vsel %vm2906, %v5502, %v5504
        %v5506 = vrot.slane %v3608, 3
        %v5507 = vsel %vm2906, %v5504, %v5506
        %v5508 = vrot.slane %v3609, 3
        %v5509 = vsel %vm2906, %v5506, %v5508
        %v5510 = vrot.slane %v3610, 3
        %v5511 = vsel %vm2906, %v5508, %v5510
        %v5512 = vrot.slane %v3611, 3
        %v5513 = vsel %vm2906, %v5510, %v5512
        %v5514 = vrot.slane %v3612, 3
        %v5515 = vsel %vm2906, %v5512, %v5514
        %v5516 = vrot.slane %v3613, 3
        %v5517 = vsel %vm2906, %v5514, %v5516
        %v5518 = vrot.slane %v3614, 3
        %v5519 = vsel %vm2906, %v5516, %v5518
        %v5520 = vrot.slane %v3615, 3
        %v5521 = vsel %vm2906, %v5518, %v5520
        %v5522 = vrot.slane %v3616, 3
        %v5523 = vsel %vm2906, %v5520, %v5522
        %v5524 = vrot.slane %v3617, 3
        %v5525 = vsel %vm2906, %v5522, %v5524
        %v5526 = vrot.slane %v3618, 3
        %v5527 = vsel %vm2906, %v5524, %v5526
        %v5528 = vrot.slane %v3619, 3
        %v5529 = vsel %vm2906, %v5526, %v5528
        %v5530 = vrot.slane %v3620, 3
        %v5531 = vsel %vm2906, %v5528, %v5530
        %v5532 = vrot.slane %v3621, 3
        %v5533 = vsel %vm2906, %v5530, %v5532
        %v5534 = vrot.slane %v3622, 3
        %v5535 = vsel %vm2906, %v5532, %v5534
        %v5536 = vrot.slane %v3623, 3
        %v5537 = vsel %vm2906, %v5534, %v5536
        %v5538 = vrot.slane %v3624, 3
        %v5539 = vsel %vm2906, %v5536, %v5538
        %v5540 = vrot.slane %v3625, 3
        %v5541 = vsel %vm2906, %v5538, %v5540
        %v5542 = vrot.slane %v3626, 3
        %v5543 = vsel %vm2906, %v5540, %v5542
        %v5544 = vrot.slane %v3627, 3
        %v5545 = vsel %vm2906, %v5542, %v5544
        %v5546 = vrot.slane %v3628, 3
        %v5547 = vsel %vm2906, %v5544, %v5546
        %v5548 = vrot.slane %v3629, 3
        %v5549 = vsel %vm2906, %v5546, %v5548
        %v5550 = vrot.slane %v3630, 3
        %v5551 = vsel %vm2906, %v5548, %v5550
        %v5552 = vrot.slane %v3631, 3
        %v5553 = vsel %vm2906, %v5550, %v5552
        %v5554 = vrot.slane %v3632, 3
        %v5555 = vsel %vm2906, %v5552, %v5554
        %v5556 = vrot.slane %v3633, 3
        %v5557 = vsel %vm2906, %v5554, %v5556
        %v5558 = vrot.slane %v3634, 3
        %v5559 = vsel %vm2906, %v5556, %v5558
        %v5560 = vrot.slane %v3635, 3
        %v5561 = vsel %vm2906, %v5558, %v5560
        %v5562 = vrot.slane %v3636, 3
        %v5563 = vsel %vm2906, %v5560, %v5562
        %v5564 = vrot.slane %v3637, 3
        %v5565 = vsel %vm2906, %v5562, %v5564
        %v5566 = vrot.slane %v3638, 3
        %v5567 = vsel %vm2906, %v5564, %v5566
        %v5568 = vrot.slane %v3639, 3
        %v5569 = vsel %vm2906, %v5566, %v5568
        %v5570 = vrot.slane %v3640, 3
        %v5571 = vsel %vm2906, %v5568, %v5570
        %v5572 = vrot.slane %v3641, 3
        %v5573 = vsel %vm2906, %v5570, %v5572
        %v5574 = vrot.slane %v3642, 3
        %v5575 = vsel %vm2906, %v5572, %v5574
        %v5576 = vrot.slane %v3643, 3
        %v5577 = vsel %vm2906, %v5574, %v5576
        %v5578 = vrot.slane %v3644, 3
        %v5579 = vsel %vm2906, %v5576, %v5578
        %v5580 = vrot.slane %v3645, 3
        %v5581 = vsel %vm2906, %v5578, %v5580
        %v5582 = vrot.slane %v3646, 3
        %v5583 = vsel %vm2906, %v5580, %v5582
        %v5584 = vrot.slane %v3647, 3
        %v5585 = vsel %vm2906, %v5582, %v5584
        %v5586 = vrot.slane %v3648, 3
        %v5587 = vsel %vm2906, %v5584, %v5586
        %v5588 = vrot.slane %v3649, 3
        %v5589 = vsel %vm2906, %v5586, %v5588
        %v5590 = vrot.slane %v3650, 3
        %v5591 = vsel %vm2906, %v5588, %v5590
        %v5592 = vrot.slane %v3651, 3
        %v5593 = vsel %vm2906, %v5590, %v5592
        %v5594 = vrot.slane %v3652, 3
        %v5595 = vsel %vm2906, %v5592, %v5594
        %v5596 = vrot.slane %v3653, 3
        %v5597 = vsel %vm2906, %v5594, %v5596
        %v5598 = vrot.slane %v3654, 3
        %v5599 = vsel %vm2906, %v5596, %v5598
        %v5600 = vrot.slane %v3655, 3
        %v5601 = vsel %vm2906, %v5598, %v5600
        %v5602 = vrot.slane %v3656, 3
        %v5603 = vsel %vm2906, %v5600, %v5602
        %v5604 = vrot.slane %v3657, 3
        %v5605 = vsel %vm2906, %v5602, %v5604
        %v5606 = vrot.slane %v3658, 3
        %v5607 = vsel %vm2906, %v5604, %v5606
        %v5608 = vrot.slane %v3659, 3
        %v5609 = vsel %vm2906, %v5606, %v5608
        %v5610 = vrot.slane %v3660, 3
        %v5611 = vsel %vm2906, %v5608, %v5610
        %v5612 = vrot.slane %v3661, 3
        %v5613 = vsel %vm2906, %v5610, %v5612
        %v5614 = vrot.slane %v3662, 3
        %v5615 = vsel %vm2906, %v5612, %v5614
        %v5616 = vrot.slane %v3663, 3
        %v5617 = vsel %vm2906, %v5614, %v5616
        %v5618 = vrot.slane %v3664, 3
        %v5619 = vsel %vm2906, %v5616, %v5618
        %v5620 = vrot.slane %v3665, 3
        %v5621 = vsel %vm2906, %v5618, %v5620
        %v5622 = vrot.slane %v3666, 3
        %v5623 = vsel %vm2906, %v5620, %v5622
        %v5624 = vrot.slane %v3667, 3
        %v5625 = vsel %vm2906, %v5622, %v5624
        %v5626 = vrot.slane %v3668, 3
        %v5627 = vsel %vm2906, %v5624, %v5626
        %v5628 = vrot.slane %v3669, 3
        %v5629 = vsel %vm2906, %v5626, %v5628
        %v5630 = vrot.slane %v3670, 3
        %v5631 = vsel %vm2906, %v5628, %v5630
        %v5632 = vrot.slane %v3671, 3
        %v5633 = vsel %vm2906, %v5630, %v5632
        %v5634 = vrot.slane %v3672, 3
        %v5635 = vsel %vm2906, %v5632, %v5634
        %v5636 = vrot.slane %v3673, 3
        %v5637 = vsel %vm2906, %v5634, %v5636
        %v5638 = vrot.slane %v3674, 3
        %v5639 = vsel %vm2906, %v5636, %v5638
        %v5640 = vrot.slane %v3675, 3
        %v5641 = vsel %vm2906, %v5638, %v5640
        %v5642 = vrot.slane %v3676, 3
        %v5643 = vsel %vm2906, %v5640, %v5642
        %v5644 = vrot.slane %v3677, 3
        %v5645 = vsel %vm2906, %v5642, %v5644
        %v5646 = vrot.slane %v3678, 3
        %v5647 = vsel %vm2906, %v5644, %v5646
        %v5648 = vrot.slane %v3679, 3
        %v5649 = vsel %vm2906, %v5646, %v5648
        %v5650 = vrot.slane %v3680, 3
        %v5651 = vsel %vm2906, %v5648, %v5650
        %v5652 = vrot.slane %v3681, 3
        %v5653 = vsel %vm2906, %v5650, %v5652
        %v5654 = vrot.slane %v3682, 3
        %v5655 = vsel %vm2906, %v5652, %v5654
        %v5656 = vrot.slane %v3683, 3
        %v5657 = vsel %vm2906, %v5654, %v5656
        %v5658 = vrot.slane %v3684, 3
        %v5659 = vsel %vm2906, %v5656, %v5658
        %v5660 = vrot.slane %v3685, 3
        %v5661 = vsel %vm2906, %v5658, %v5660
        %v5662 = vrot.slane %v3686, 3
        %v5663 = vsel %vm2906, %v5660, %v5662
        %v5664 = vrot.slane %v3687, 3
        %v5665 = vsel %vm2906, %v5662, %v5664
        %v5666 = vrot.slane %v3688, 3
        %v5667 = vsel %vm2906, %v5664, %v5666
        %v5668 = vrot.slane %v3689, 3
        %v5669 = vsel %vm2906, %v5666, %v5668
        %v5670 = vrot.slane %v3690, 3
        %v5671 = vsel %vm2906, %v5668, %v5670
        %v5672 = vrot.slane %v3691, 3
        %v5673 = vsel %vm2906, %v5670, %v5672
        %v5674 = vrot.slane %v3692, 3
        %v5675 = vsel %vm2906, %v5672, %v5674
        %v5676 = vrot.slane %v3693, 3
        %v5677 = vsel %vm2906, %v5674, %v5676
        %v5678 = vrot.slane %v3694, 3
        %v5679 = vsel %vm2906, %v5676, %v5678
        %v5680 = vrot.slane %v3695, 3
        %v5681 = vsel %vm2906, %v5678, %v5680
        %v5682 = vrot.slane %v3696, 3
        %v5683 = vsel %vm2906, %v5680, %v5682
        %v5684 = vrot.slane %v3697, 3
        %v5685 = vsel %vm2906, %v5682, %v5684
        %v5686 = vrot.slane %v3698, 3
        %v5687 = vsel %vm2906, %v5684, %v5686
        %v5688 = vrot.slane %v3699, 3
        %v5689 = vsel %vm2906, %v5686, %v5688
        %v5690 = vrot.slane %v3700, 3
        %v5691 = vsel %vm2906, %v5688, %v5690
        %v5692 = vrot.slane %v3701, 3
        %v5693 = vsel %vm2906, %v5690, %v5692
        %v5694 = vrot.slane %v3702, 3
        %v5695 = vsel %vm2906, %v5692, %v5694
        %v5696 = vrot.slane %v3703, 3
        %v5697 = vsel %vm2906, %v5694, %v5696
        %v5698 = vrot.slane %v3704, 3
        %v5699 = vsel %vm2906, %v5696, %v5698
        %v5700 = vrot.slane %v3705, 3
        %v5701 = vsel %vm2906, %v5698, %v5700
        %v5702 = vrot.slane %v3706, 3
        %v5703 = vsel %vm2906, %v5700, %v5702
        %v5704 = vrot.slane %v3707, 3
        %v5705 = vsel %vm2906, %v5702, %v5704
        %v5706 = vrot.slane %v3708, 3
        %v5707 = vsel %vm2906, %v5704, %v5706
        %v5708 = vrot.slane %v3709, 3
        %v5709 = vsel %vm2906, %v5706, %v5708
        %v5710 = vrot.slane %v3710, 3
        %v5711 = vsel %vm2906, %v5708, %v5710
        %v5712 = vrot.slane %v3711, 3
        %v5713 = vsel %vm2906, %v5710, %v5712
        %v5714 = vrot.slane %v3712, 3
        %v5715 = vsel %vm2906, %v5712, %v5714
        %v5716 = vrot.slane %v3713, 3
        %v5717 = vsel %vm2906, %v5714, %v5716
        %v5718 = vrot.slane %v3714, 3
        %v5719 = vsel %vm2906, %v5716, %v5718
        %v5720 = vrot.slane %v3715, 3
        %v5721 = vsel %vm2906, %v5718, %v5720
        %v5722 = vrot.slane %v4048, 3
        %v5723 = vsel %vm2906, %v5720, %v5722
        %v5724 = vrot.slane %v4770, 3
        %v5725 = vsel %vm2906, %v5722, %v5724
        %v5726 = vrot.slane %v4771, 3
        %v5727 = vsel %vm2906, %v5724, %v5726
        %v5728 = vrot.slane %v4772, 3
        %v5729 = vsel %vm2906, %v5726, %v5728
        %v5730 = vrot.slane %v4773, 3
        %v5731 = vsel %vm2906, %v5728, %v5730
        %v5732 = vrot.slane %v4774, 3
        %v5733 = vsel %vm2906, %v5730, %v5732
        %v5734 = vrot.slane %v4775, 3
        %v5735 = vsel %vm2906, %v5732, %v5734
        %v5736 = vrot.slane %v4776, 3
        %v5737 = vsel %vm2906, %v5734, %v5736
        %v5738 = vrot.slane %v4777, 3
        %v5739 = vsel %vm2906, %v5736, %v5738
        %v5740 = vrot.slane %v4778, 3
        %v5741 = vsel %vm2906, %v5738, %v5740
        %v5742 = vrot.slane %v4779, 3
        %v5743 = vsel %vm2906, %v5740, %v5742
        %v5744 = vrot.slane %v4780, 3
        %v5745 = vsel %vm2906, %v5742, %v5744
        %v5746 = vrot.slane %v4781, 3
        %v5747 = vsel %vm2906, %v5744, %v5746
        %v5748 = vrot.slane %v4782, 3
        %v5749 = vsel %vm2906, %v5746, %v5748
        %v5750 = vrot.slane %v4783, 3
        %v5751 = vsel %vm2906, %v5748, %v5750
        %v5752 = vrot.slane %v4784, 3
        %v5753 = vsel %vm2906, %v5750, %v5752
        %v5754 = vrot.slane %v4785, 3
        %v5755 = vsel %vm2906, %v5752, %v5754
        %v5756 = vrot.slane %v4786, 3
        %v5757 = vsel %vm2906, %v5754, %v5756
        %v5758 = vrot.slane %v4787, 3
        %v5759 = vsel %vm2906, %v5756, %v5758
        %v5760 = vrot.slane %v5441, 3
        %v5761 = vsel %vm2906, %v5758, %v5760
        %v5762 = vrot.slane %v5442, 3
        %v5763 = vsel %vm2906, %v5760, %v5762
        %5764 = vrot.lane.b32.xlu0 %v5445, 84
        %v5765 = vpop.permute.xlu0 %5764
        %5766 = vrot.lane.b32.xlu0 %v5447, 84
        %v5767 = vpop.permute.xlu0 %5766
        %5768 = vrot.lane.b32.xlu0 %v5449, 84
        %v5769 = vpop.permute.xlu0 %5768
        %5770 = vrot.lane.b32.xlu0 %v5451, 84
        %v5771 = vpop.permute.xlu0 %5770
        %5772 = vrot.lane.b32.xlu0 %v5453, 84
        %v5773 = vpop.permute.xlu0 %5772
        %5774 = vrot.lane.b32.xlu0 %v5455, 84
        %v5775 = vpop.permute.xlu0 %5774
        %5776 = vrot.lane.b32.xlu0 %v5457, 84
        %v5777 = vpop.permute.xlu0 %5776
        %5778 = vrot.lane.b32.xlu0 %v5459, 84
        %v5779 = vpop.permute.xlu0 %5778
        %5780 = vrot.lane.b32.xlu0 %v5461, 84
        %v5781 = vpop.permute.xlu0 %5780
        %5782 = vrot.lane.b32.xlu0 %v5463, 84
        %v5783 = vpop.permute.xlu0 %5782
        %5784 = vrot.lane.b32.xlu0 %v5465, 84
        %v5785 = vpop.permute.xlu0 %5784
        %5786 = vrot.lane.b32.xlu0 %v5467, 84
        %v5787 = vpop.permute.xlu0 %5786
        %5788 = vrot.lane.b32.xlu0 %v5469, 84
        %v5789 = vpop.permute.xlu0 %5788
        %5790 = vrot.lane.b32.xlu0 %v5471, 84
        %v5791 = vpop.permute.xlu0 %5790
        %5792 = vrot.lane.b32.xlu0 %v5473, 84
        %v5793 = vpop.permute.xlu0 %5792
        %5794 = vrot.lane.b32.xlu0 %v5475, 84
        %v5795 = vpop.permute.xlu0 %5794
        %5796 = vrot.lane.b32.xlu0 %v5477, 84
        %v5797 = vpop.permute.xlu0 %5796
        %5798 = vrot.lane.b32.xlu0 %v5479, 84
        %v5799 = vpop.permute.xlu0 %5798
        %5800 = vrot.lane.b32.xlu0 %v5481, 84
        %v5801 = vpop.permute.xlu0 %5800
        %5802 = vrot.lane.b32.xlu0 %v5483, 84
        %v5803 = vpop.permute.xlu0 %5802
        %5804 = vrot.lane.b32.xlu0 %v5485, 84
        %v5805 = vpop.permute.xlu0 %5804
        %5806 = vrot.lane.b32.xlu0 %v5487, 84
        %v5807 = vpop.permute.xlu0 %5806
        %5808 = vrot.lane.b32.xlu0 %v5489, 84
        %v5809 = vpop.permute.xlu0 %5808
        %5810 = vrot.lane.b32.xlu0 %v5491, 84
        %v5811 = vpop.permute.xlu0 %5810
        %5812 = vrot.lane.b32.xlu0 %v5493, 84
        %v5813 = vpop.permute.xlu0 %5812
        %5814 = vrot.lane.b32.xlu0 %v5495, 84
        %v5815 = vpop.permute.xlu0 %5814
        %5816 = vrot.lane.b32.xlu0 %v5497, 84
        %v5817 = vpop.permute.xlu0 %5816
        %5818 = vrot.lane.b32.xlu0 %v5499, 84
        %v5819 = vpop.permute.xlu0 %5818
        %5820 = vrot.lane.b32.xlu0 %v5501, 84
        %v5821 = vpop.permute.xlu0 %5820
        %5822 = vrot.lane.b32.xlu0 %v5503, 84
        %v5823 = vpop.permute.xlu0 %5822
        %5824 = vrot.lane.b32.xlu0 %v5505, 84
        %v5825 = vpop.permute.xlu0 %5824
        %5826 = vrot.lane.b32.xlu0 %v5507, 84
        %v5827 = vpop.permute.xlu0 %5826
        %5828 = vrot.lane.b32.xlu0 %v5509, 84
        %v5829 = vpop.permute.xlu0 %5828
        %5830 = vrot.lane.b32.xlu0 %v5511, 84
        %v5831 = vpop.permute.xlu0 %5830
        %5832 = vrot.lane.b32.xlu0 %v5513, 84
        %v5833 = vpop.permute.xlu0 %5832
        %5834 = vrot.lane.b32.xlu0 %v5515, 84
        %v5835 = vpop.permute.xlu0 %5834
        %5836 = vrot.lane.b32.xlu0 %v5517, 84
        %v5837 = vpop.permute.xlu0 %5836
        %5838 = vrot.lane.b32.xlu0 %v5519, 84
        %v5839 = vpop.permute.xlu0 %5838
        %5840 = vrot.lane.b32.xlu0 %v5521, 84
        %v5841 = vpop.permute.xlu0 %5840
        %5842 = vrot.lane.b32.xlu0 %v5523, 84
        %v5843 = vpop.permute.xlu0 %5842
        %5844 = vrot.lane.b32.xlu0 %v5525, 84
        %v5845 = vpop.permute.xlu0 %5844
        %5846 = vrot.lane.b32.xlu0 %v5527, 84
        %v5847 = vpop.permute.xlu0 %5846
        %5848 = vrot.lane.b32.xlu0 %v5529, 84
        %v5849 = vpop.permute.xlu0 %5848
        %5850 = vrot.lane.b32.xlu0 %v5531, 84
        %v5851 = vpop.permute.xlu0 %5850
        %5852 = vrot.lane.b32.xlu0 %v5533, 84
        %v5853 = vpop.permute.xlu0 %5852
        %5854 = vrot.lane.b32.xlu0 %v5535, 84
        %v5855 = vpop.permute.xlu0 %5854
        %5856 = vrot.lane.b32.xlu0 %v5537, 84
        %v5857 = vpop.permute.xlu0 %5856
        %5858 = vrot.lane.b32.xlu0 %v5539, 84
        %v5859 = vpop.permute.xlu0 %5858
        %5860 = vrot.lane.b32.xlu0 %v5541, 84
        %v5861 = vpop.permute.xlu0 %5860
        %5862 = vrot.lane.b32.xlu0 %v5543, 84
        %v5863 = vpop.permute.xlu0 %5862
        %5864 = vrot.lane.b32.xlu0 %v5545, 84
        %v5865 = vpop.permute.xlu0 %5864
        %5866 = vrot.lane.b32.xlu0 %v5547, 84
        %v5867 = vpop.permute.xlu0 %5866
        %5868 = vrot.lane.b32.xlu0 %v5549, 84
        %v5869 = vpop.permute.xlu0 %5868
        %5870 = vrot.lane.b32.xlu0 %v5551, 84
        %v5871 = vpop.permute.xlu0 %5870
        %5872 = vrot.lane.b32.xlu0 %v5553, 84
        %v5873 = vpop.permute.xlu0 %5872
        %5874 = vrot.lane.b32.xlu0 %v5555, 84
        %v5875 = vpop.permute.xlu0 %5874
        %5876 = vrot.lane.b32.xlu0 %v5557, 84
        %v5877 = vpop.permute.xlu0 %5876
        %5878 = vrot.lane.b32.xlu0 %v5559, 84
        %v5879 = vpop.permute.xlu0 %5878
        %5880 = vrot.lane.b32.xlu0 %v5561, 84
        %v5881 = vpop.permute.xlu0 %5880
        %5882 = vrot.lane.b32.xlu0 %v5563, 84
        %v5883 = vpop.permute.xlu0 %5882
        %5884 = vrot.lane.b32.xlu0 %v5565, 84
        %v5885 = vpop.permute.xlu0 %5884
        %5886 = vrot.lane.b32.xlu0 %v5567, 84
        %v5887 = vpop.permute.xlu0 %5886
        %5888 = vrot.lane.b32.xlu0 %v5569, 84
        %v5889 = vpop.permute.xlu0 %5888
        %5890 = vrot.lane.b32.xlu0 %v5571, 84
        %v5891 = vpop.permute.xlu0 %5890
        %5892 = vrot.lane.b32.xlu0 %v5573, 84
        %v5893 = vpop.permute.xlu0 %5892
        %5894 = vrot.lane.b32.xlu0 %v5575, 84
        %v5895 = vpop.permute.xlu0 %5894
        %5896 = vrot.lane.b32.xlu0 %v5577, 84
        %v5897 = vpop.permute.xlu0 %5896
        %5898 = vrot.lane.b32.xlu0 %v5579, 84
        %v5899 = vpop.permute.xlu0 %5898
        %5900 = vrot.lane.b32.xlu0 %v5581, 84
        %v5901 = vpop.permute.xlu0 %5900
        %5902 = vrot.lane.b32.xlu0 %v5583, 84
        %v5903 = vpop.permute.xlu0 %5902
        %5904 = vrot.lane.b32.xlu0 %v5585, 84
        %v5905 = vpop.permute.xlu0 %5904
        %5906 = vrot.lane.b32.xlu0 %v5587, 84
        %v5907 = vpop.permute.xlu0 %5906
        %5908 = vrot.lane.b32.xlu0 %v5589, 84
        %v5909 = vpop.permute.xlu0 %5908
        %5910 = vrot.lane.b32.xlu0 %v5591, 84
        %v5911 = vpop.permute.xlu0 %5910
        %5912 = vrot.lane.b32.xlu0 %v5593, 84
        %v5913 = vpop.permute.xlu0 %5912
        %5914 = vrot.lane.b32.xlu0 %v5595, 84
        %v5915 = vpop.permute.xlu0 %5914
        %5916 = vrot.lane.b32.xlu0 %v5597, 84
        %v5917 = vpop.permute.xlu0 %5916
        %5918 = vrot.lane.b32.xlu0 %v5599, 84
        %v5919 = vpop.permute.xlu0 %5918
        %5920 = vrot.lane.b32.xlu0 %v5601, 84
        %v5921 = vpop.permute.xlu0 %5920
        %5922 = vrot.lane.b32.xlu0 %v5603, 84
        %v5923 = vpop.permute.xlu0 %5922
        %5924 = vrot.lane.b32.xlu0 %v5605, 84
        %v5925 = vpop.permute.xlu0 %5924
        %5926 = vrot.lane.b32.xlu0 %v5607, 84
        %v5927 = vpop.permute.xlu0 %5926
        %5928 = vrot.lane.b32.xlu0 %v5609, 84
        %v5929 = vpop.permute.xlu0 %5928
        %5930 = vrot.lane.b32.xlu0 %v5611, 84
        %v5931 = vpop.permute.xlu0 %5930
        %5932 = vrot.lane.b32.xlu0 %v5613, 84
        %v5933 = vpop.permute.xlu0 %5932
        %5934 = vrot.lane.b32.xlu0 %v5615, 84
        %v5935 = vpop.permute.xlu0 %5934
        %5936 = vrot.lane.b32.xlu0 %v5617, 84
        %v5937 = vpop.permute.xlu0 %5936
        %5938 = vrot.lane.b32.xlu0 %v5619, 84
        %v5939 = vpop.permute.xlu0 %5938
        %5940 = vrot.lane.b32.xlu0 %v5621, 84
        %v5941 = vpop.permute.xlu0 %5940
        %5942 = vrot.lane.b32.xlu0 %v5623, 84
        %v5943 = vpop.permute.xlu0 %5942
        %5944 = vrot.lane.b32.xlu0 %v5625, 84
        %v5945 = vpop.permute.xlu0 %5944
        %5946 = vrot.lane.b32.xlu0 %v5627, 84
        %v5947 = vpop.permute.xlu0 %5946
        %5948 = vrot.lane.b32.xlu0 %v5629, 84
        %v5949 = vpop.permute.xlu0 %5948
        %5950 = vrot.lane.b32.xlu0 %v5631, 84
        %v5951 = vpop.permute.xlu0 %5950
        %5952 = vrot.lane.b32.xlu0 %v5633, 84
        %v5953 = vpop.permute.xlu0 %5952
        %5954 = vrot.lane.b32.xlu0 %v5635, 84
        %v5955 = vpop.permute.xlu0 %5954
        %5956 = vrot.lane.b32.xlu0 %v5637, 84
        %v5957 = vpop.permute.xlu0 %5956
        %5958 = vrot.lane.b32.xlu0 %v5639, 84
        %v5959 = vpop.permute.xlu0 %5958
        %5960 = vrot.lane.b32.xlu0 %v5641, 84
        %v5961 = vpop.permute.xlu0 %5960
        %5962 = vrot.lane.b32.xlu0 %v5643, 84
        %v5963 = vpop.permute.xlu0 %5962
        %5964 = vrot.lane.b32.xlu0 %v5645, 84
        %v5965 = vpop.permute.xlu0 %5964
        %5966 = vrot.lane.b32.xlu0 %v5647, 84
        %v5967 = vpop.permute.xlu0 %5966
        %5968 = vrot.lane.b32.xlu0 %v5649, 84
        %v5969 = vpop.permute.xlu0 %5968
        %5970 = vrot.lane.b32.xlu0 %v5651, 84
        %v5971 = vpop.permute.xlu0 %5970
        %5972 = vrot.lane.b32.xlu0 %v5653, 84
        %v5973 = vpop.permute.xlu0 %5972
        %5974 = vrot.lane.b32.xlu0 %v5655, 84
        %v5975 = vpop.permute.xlu0 %5974
        %5976 = vrot.lane.b32.xlu0 %v5657, 84
        %v5977 = vpop.permute.xlu0 %5976
        %5978 = vrot.lane.b32.xlu0 %v5659, 84
        %v5979 = vpop.permute.xlu0 %5978
        %5980 = vrot.lane.b32.xlu0 %v5661, 84
        %v5981 = vpop.permute.xlu0 %5980
        %5982 = vrot.lane.b32.xlu0 %v5663, 84
        %v5983 = vpop.permute.xlu0 %5982
        %5984 = vrot.lane.b32.xlu0 %v5665, 84
        %v5985 = vpop.permute.xlu0 %5984
        %5986 = vrot.lane.b32.xlu0 %v5667, 84
        %v5987 = vpop.permute.xlu0 %5986
        %5988 = vrot.lane.b32.xlu0 %v5669, 84
        %v5989 = vpop.permute.xlu0 %5988
        %5990 = vrot.lane.b32.xlu0 %v5671, 84
        %v5991 = vpop.permute.xlu0 %5990
        %5992 = vrot.lane.b32.xlu0 %v5673, 84
        %v5993 = vpop.permute.xlu0 %5992
        %5994 = vrot.lane.b32.xlu0 %v5675, 84
        %v5995 = vpop.permute.xlu0 %5994
        %5996 = vrot.lane.b32.xlu0 %v5677, 84
        %v5997 = vpop.permute.xlu0 %5996
        %5998 = vrot.lane.b32.xlu0 %v5679, 84
        %v5999 = vpop.permute.xlu0 %5998
        %6000 = vrot.lane.b32.xlu0 %v5681, 84
        %v6001 = vpop.permute.xlu0 %6000
        %6002 = vrot.lane.b32.xlu0 %v5683, 84
        %v6003 = vpop.permute.xlu0 %6002
        %6004 = vrot.lane.b32.xlu0 %v5685, 84
        %v6005 = vpop.permute.xlu0 %6004
        %6006 = vrot.lane.b32.xlu0 %v5687, 84
        %v6007 = vpop.permute.xlu0 %6006
        %6008 = vrot.lane.b32.xlu0 %v5689, 84
        %v6009 = vpop.permute.xlu0 %6008
        %6010 = vrot.lane.b32.xlu0 %v5691, 84
        %v6011 = vpop.permute.xlu0 %6010
        %6012 = vrot.lane.b32.xlu0 %v5693, 84
        %v6013 = vpop.permute.xlu0 %6012
        %6014 = vrot.lane.b32.xlu0 %v5695, 84
        %v6015 = vpop.permute.xlu0 %6014
        %6016 = vrot.lane.b32.xlu0 %v5697, 84
        %v6017 = vpop.permute.xlu0 %6016
        %6018 = vrot.lane.b32.xlu0 %v5699, 84
        %v6019 = vpop.permute.xlu0 %6018
        %6020 = vrot.lane.b32.xlu0 %v5701, 84
        %v6021 = vpop.permute.xlu0 %6020
        %6022 = vrot.lane.b32.xlu0 %v5703, 84
        %v6023 = vpop.permute.xlu0 %6022
        %6024 = vrot.lane.b32.xlu0 %v5705, 84
        %v6025 = vpop.permute.xlu0 %6024
        %6026 = vrot.lane.b32.xlu0 %v5707, 84
        %v6027 = vpop.permute.xlu0 %6026
        %6028 = vrot.lane.b32.xlu0 %v5709, 84
        %v6029 = vpop.permute.xlu0 %6028
        %6030 = vrot.lane.b32.xlu0 %v5711, 84
        %v6031 = vpop.permute.xlu0 %6030
        %6032 = vrot.lane.b32.xlu0 %v5713, 84
        %v6033 = vpop.permute.xlu0 %6032
        %6034 = vrot.lane.b32.xlu0 %v5715, 84
        %v6035 = vpop.permute.xlu0 %6034
        %6036 = vrot.lane.b32.xlu0 %v5717, 84
        %v6037 = vpop.permute.xlu0 %6036
        %6038 = vrot.lane.b32.xlu0 %v5719, 84
        %v6039 = vpop.permute.xlu0 %6038
        %6040 = vrot.lane.b32.xlu0 %v5721, 84
        %v6041 = vpop.permute.xlu0 %6040
        %6042 = vrot.lane.b32.xlu0 %v5723, 84
        %v6043 = vpop.permute.xlu0 %6042
        %6044 = vrot.lane.b32.xlu0 %v5725, 84
        %v6045 = vpop.permute.xlu0 %6044
        %6046 = vrot.lane.b32.xlu0 %v5727, 84
        %v6047 = vpop.permute.xlu0 %6046
        %6048 = vrot.lane.b32.xlu0 %v5729, 84
        %v6049 = vpop.permute.xlu0 %6048
        %6050 = vrot.lane.b32.xlu0 %v5731, 84
        %v6051 = vpop.permute.xlu0 %6050
        %6052 = vrot.lane.b32.xlu0 %v5733, 84
        %v6053 = vpop.permute.xlu0 %6052
        %6054 = vrot.lane.b32.xlu0 %v5735, 84
        %v6055 = vpop.permute.xlu0 %6054
        %6056 = vrot.lane.b32.xlu0 %v5737, 84
        %v6057 = vpop.permute.xlu0 %6056
        %6058 = vrot.lane.b32.xlu0 %v5739, 84
        %v6059 = vpop.permute.xlu0 %6058
        %6060 = vrot.lane.b32.xlu0 %v5741, 84
        %v6061 = vpop.permute.xlu0 %6060
        %6062 = vrot.lane.b32.xlu0 %v5743, 84
        %v6063 = vpop.permute.xlu0 %6062
        %6064 = vrot.lane.b32.xlu0 %v5745, 84
        %v6065 = vpop.permute.xlu0 %6064
        %6066 = vrot.lane.b32.xlu0 %v5747, 84
        %v6067 = vpop.permute.xlu0 %6066
        %6068 = vrot.lane.b32.xlu0 %v5749, 84
        %v6069 = vpop.permute.xlu0 %6068
        %6070 = vrot.lane.b32.xlu0 %v5751, 84
        %v6071 = vpop.permute.xlu0 %6070
        %6072 = vrot.lane.b32.xlu0 %v5753, 84
        %v6073 = vpop.permute.xlu0 %6072
        %6074 = vrot.lane.b32.xlu0 %v5755, 84
        %v6075 = vpop.permute.xlu0 %6074
        %6076 = vrot.lane.b32.xlu0 %v5757, 84
        %v6077 = vpop.permute.xlu0 %6076
        %6078 = vrot.lane.b32.xlu0 %v5759, 84
        %v6079 = vpop.permute.xlu0 %6078
        %6080 = vrot.lane.b32.xlu0 %v5761, 84
        %v6081 = vpop.permute.xlu0 %6080
        %6082 = vrot.lane.b32.xlu0 %v5763, 84
        %v6083 = vpop.permute.xlu0 %6082
        %6084 = vrot.lane.b32.xlu0 %v5762, 84
        %v6085 = vpop.permute.xlu0 %6084
        %v6089 = vunpack.c.l.b16 %v692
        %v6090 = vunpack.c.l.b16 %v693
        %v6091 = vunpack.c.l.b16 %v694
        %v6092 = vpack.c.b16 %v3554, %v3553
        %v6093 = vpack.c.b16 %v4045, %v4044
        %v6094 = vpack.c.b16 %v4733, %v4732
        %v6095 = vpack.c.b16 %v4735, %v4734
        %v6096 = vpack.c.b16 %v4737, %v4736
        %v6097 = vpack.c.b16 %v4739, %v4738
        %v6098 = vpack.c.b16 %v4741, %v4740
        %v6099 = vpack.c.b16 %v4743, %v4742
        %v6100 = vpack.c.b16 %v4745, %v4744
        %v6101 = vpack.c.b16 %v4747, %v4746
        %v6102 = vpack.c.b16 %v4749, %v4748
        %v6103 = vpack.c.b16 %v4751, %v4750
        %v6104 = vpack.c.b16 %v4753, %v4752
        %v6105 = vpack.c.b16 %v4755, %v4754
        %v6106 = vpack.c.b16 %v4757, %v4756
        %v6107 = vpack.c.b16 %v4759, %v4758
        %v6108 = vpack.c.b16 %v4761, %v4760
        %v6109 = vpack.c.b16 %v4763, %v4762
        %v6110 = vpack.c.b16 %v4765, %v4764
        %v6111 = vpack.c.b16 %v4767, %v4766
        %v6112 = vpack.c.b16 %v5438, %v5437
        %v6113 = vpack.c.b16 %v6089, %v5439
        %v6114 = vpack.c.b16 %v6091, %v6090
        %6115 = vrot.lane.b32.xlu0 %v1382, 96
        %v6116 = vpop.permute.xlu0 %6115
        %6117 = vrot.lane.b32.xlu0 %v1383, 96
        %v6118 = vpop.permute.xlu0 %6117
        %6119 = vrot.lane.b32.xlu0 %v1384, 96
        %v6120 = vpop.permute.xlu0 %6119
        %6121 = vrot.lane.b32.xlu0 %v1385, 96
        %v6122 = vpop.permute.xlu0 %6121
        %6123 = vrot.lane.b32.xlu0 %v1386, 96
        %v6124 = vpop.permute.xlu0 %6123
        %6125 = vrot.lane.b32.xlu0 %v1387, 96
        %v6126 = vpop.permute.xlu0 %6125
        %6127 = vrot.lane.b32.xlu0 %v1388, 96
        %v6128 = vpop.permute.xlu0 %6127
        %6129 = vrot.lane.b32.xlu0 %v1389, 96
        %v6130 = vpop.permute.xlu0 %6129
        %6131 = vrot.lane.b32.xlu0 %v1390, 96
        %v6132 = vpop.permute.xlu0 %6131
        %6133 = vrot.lane.b32.xlu0 %v1391, 96
        %v6134 = vpop.permute.xlu0 %6133
        %6135 = vrot.lane.b32.xlu0 %v1392, 96
        %v6136 = vpop.permute.xlu0 %6135
        %6137 = vrot.lane.b32.xlu0 %v1393, 96
        %v6138 = vpop.permute.xlu0 %6137
        %6139 = vrot.lane.b32.xlu0 %v1394, 96
        %v6140 = vpop.permute.xlu0 %6139
        %6141 = vrot.lane.b32.xlu0 %v1395, 96
        %v6142 = vpop.permute.xlu0 %6141
        %6143 = vrot.lane.b32.xlu0 %v1396, 96
        %v6144 = vpop.permute.xlu0 %6143
        %6145 = vrot.lane.b32.xlu0 %v1397, 96
        %v6146 = vpop.permute.xlu0 %6145
        %6147 = vrot.lane.b32.xlu0 %v1398, 96
        %v6148 = vpop.permute.xlu0 %6147
        %6149 = vrot.lane.b32.xlu0 %v1399, 96
        %v6150 = vpop.permute.xlu0 %6149
        %6151 = vrot.lane.b32.xlu0 %v1400, 96
        %v6152 = vpop.permute.xlu0 %6151
        %6153 = vrot.lane.b32.xlu0 %v1401, 96
        %v6154 = vpop.permute.xlu0 %6153
        %6155 = vrot.lane.b32.xlu0 %v1402, 96
        %v6156 = vpop.permute.xlu0 %6155
        %6157 = vrot.lane.b32.xlu0 %v1403, 96
        %v6158 = vpop.permute.xlu0 %6157
        %6159 = vrot.lane.b32.xlu0 %v1404, 96
        %v6160 = vpop.permute.xlu0 %6159
        %6161 = vrot.lane.b32.xlu0 %v1405, 96
        %v6162 = vpop.permute.xlu0 %6161
        %6163 = vrot.lane.b32.xlu0 %v1406, 96
        %v6164 = vpop.permute.xlu0 %6163
        %6165 = vrot.lane.b32.xlu0 %v1407, 96
        %v6166 = vpop.permute.xlu0 %6165
        %6167 = vrot.lane.b32.xlu0 %v1408, 96
        %v6168 = vpop.permute.xlu0 %6167
        %6169 = vrot.lane.b32.xlu0 %v1409, 96
        %v6170 = vpop.permute.xlu0 %6169
        %6171 = vrot.lane.b32.xlu0 %v1410, 96
        %v6172 = vpop.permute.xlu0 %6171
        %6173 = vrot.lane.b32.xlu0 %v1411, 96
        %v6174 = vpop.permute.xlu0 %6173
        %6175 = vrot.lane.b32.xlu0 %v1412, 96
        %v6176 = vpop.permute.xlu0 %6175
        %6177 = vrot.lane.b32.xlu0 %v1413, 96
        %v6178 = vpop.permute.xlu0 %6177
        %6179 = vrot.lane.b32.xlu0 %v1414, 96
        %v6180 = vpop.permute.xlu0 %6179
        %6181 = vrot.lane.b32.xlu0 %v1415, 96
        %v6182 = vpop.permute.xlu0 %6181
        %6183 = vrot.lane.b32.xlu0 %v1416, 96
        %v6184 = vpop.permute.xlu0 %6183
        %6185 = vrot.lane.b32.xlu0 %v1417, 96
        %v6186 = vpop.permute.xlu0 %6185
        %6187 = vrot.lane.b32.xlu0 %v1418, 96
        %v6188 = vpop.permute.xlu0 %6187
        %6189 = vrot.lane.b32.xlu0 %v1419, 96
        %v6190 = vpop.permute.xlu0 %6189
        %6191 = vrot.lane.b32.xlu0 %v1420, 96
        %v6192 = vpop.permute.xlu0 %6191
        %6193 = vrot.lane.b32.xlu0 %v1421, 96
        %v6194 = vpop.permute.xlu0 %6193
        %6195 = vrot.lane.b32.xlu0 %v1422, 96
        %v6196 = vpop.permute.xlu0 %6195
        %6197 = vrot.lane.b32.xlu0 %v1423, 96
        %v6198 = vpop.permute.xlu0 %6197
        %6199 = vrot.lane.b32.xlu0 %v1424, 96
        %v6200 = vpop.permute.xlu0 %6199
        %6201 = vrot.lane.b32.xlu0 %v1425, 96
        %v6202 = vpop.permute.xlu0 %6201
        %6203 = vrot.lane.b32.xlu0 %v1426, 96
        %v6204 = vpop.permute.xlu0 %6203
        %6205 = vrot.lane.b32.xlu0 %v1427, 96
        %v6206 = vpop.permute.xlu0 %6205
        %6207 = vrot.lane.b32.xlu0 %v1428, 96
        %v6208 = vpop.permute.xlu0 %6207
        %6209 = vrot.lane.b32.xlu0 %v1429, 96
        %v6210 = vpop.permute.xlu0 %6209
        %6211 = vrot.lane.b32.xlu0 %v1430, 96
        %v6212 = vpop.permute.xlu0 %6211
        %6213 = vrot.lane.b32.xlu0 %v1431, 96
        %v6214 = vpop.permute.xlu0 %6213
        %6215 = vrot.lane.b32.xlu0 %v1432, 96
        %v6216 = vpop.permute.xlu0 %6215
        %6217 = vrot.lane.b32.xlu0 %v1433, 96
        %v6218 = vpop.permute.xlu0 %6217
        %6219 = vrot.lane.b32.xlu0 %v1434, 96
        %v6220 = vpop.permute.xlu0 %6219
        %6221 = vrot.lane.b32.xlu0 %v1435, 96
        %v6222 = vpop.permute.xlu0 %6221
        %6223 = vrot.lane.b32.xlu0 %v1436, 96
        %v6224 = vpop.permute.xlu0 %6223
        %6225 = vrot.lane.b32.xlu0 %v1437, 96
        %v6226 = vpop.permute.xlu0 %6225
        %6227 = vrot.lane.b32.xlu0 %v1438, 96
        %v6228 = vpop.permute.xlu0 %6227
        %6229 = vrot.lane.b32.xlu0 %v1439, 96
        %v6230 = vpop.permute.xlu0 %6229
        %6231 = vrot.lane.b32.xlu0 %v1440, 96
        %v6232 = vpop.permute.xlu0 %6231
        %6233 = vrot.lane.b32.xlu0 %v1441, 96
        %v6234 = vpop.permute.xlu0 %6233
        %6235 = vrot.lane.b32.xlu0 %v1442, 96
        %v6236 = vpop.permute.xlu0 %6235
        %6237 = vrot.lane.b32.xlu0 %v1443, 96
        %v6238 = vpop.permute.xlu0 %6237
        %6239 = vrot.lane.b32.xlu0 %v1444, 96
        %v6240 = vpop.permute.xlu0 %6239
        %6241 = vrot.lane.b32.xlu0 %v1445, 96
        %v6242 = vpop.permute.xlu0 %6241
        %6243 = vrot.lane.b32.xlu0 %v1446, 96
        %v6244 = vpop.permute.xlu0 %6243
        %6245 = vrot.lane.b32.xlu0 %v1447, 96
        %v6246 = vpop.permute.xlu0 %6245
        %6247 = vrot.lane.b32.xlu0 %v1448, 96
        %v6248 = vpop.permute.xlu0 %6247
        %6249 = vrot.lane.b32.xlu0 %v1449, 96
        %v6250 = vpop.permute.xlu0 %6249
        %6251 = vrot.lane.b32.xlu0 %v1450, 96
        %v6252 = vpop.permute.xlu0 %6251
        %6253 = vrot.lane.b32.xlu0 %v1451, 96
        %v6254 = vpop.permute.xlu0 %6253
        %6255 = vrot.lane.b32.xlu0 %v1452, 96
        %v6256 = vpop.permute.xlu0 %6255
        %6257 = vrot.lane.b32.xlu0 %v1453, 96
        %v6258 = vpop.permute.xlu0 %6257
        %6259 = vrot.lane.b32.xlu0 %v1454, 96
        %v6260 = vpop.permute.xlu0 %6259
        %6261 = vrot.lane.b32.xlu0 %v1455, 96
        %v6262 = vpop.permute.xlu0 %6261
        %6263 = vrot.lane.b32.xlu0 %v1456, 96
        %v6264 = vpop.permute.xlu0 %6263
        %6265 = vrot.lane.b32.xlu0 %v1457, 96
        %v6266 = vpop.permute.xlu0 %6265
        %6267 = vrot.lane.b32.xlu0 %v1458, 96
        %v6268 = vpop.permute.xlu0 %6267
        %6269 = vrot.lane.b32.xlu0 %v1459, 96
        %v6270 = vpop.permute.xlu0 %6269
        %6271 = vrot.lane.b32.xlu0 %v1460, 96
        %v6272 = vpop.permute.xlu0 %6271
        %6273 = vrot.lane.b32.xlu0 %v1461, 96
        %v6274 = vpop.permute.xlu0 %6273
        %6275 = vrot.lane.b32.xlu0 %v1462, 96
        %v6276 = vpop.permute.xlu0 %6275
        %6277 = vrot.lane.b32.xlu0 %v1463, 96
        %v6278 = vpop.permute.xlu0 %6277
        %6279 = vrot.lane.b32.xlu0 %v1464, 96
        %v6280 = vpop.permute.xlu0 %6279
        %6281 = vrot.lane.b32.xlu0 %v1465, 96
        %v6282 = vpop.permute.xlu0 %6281
        %6283 = vrot.lane.b32.xlu0 %v1466, 96
        %v6284 = vpop.permute.xlu0 %6283
        %6285 = vrot.lane.b32.xlu0 %v1467, 96
        %v6286 = vpop.permute.xlu0 %6285
        %6287 = vrot.lane.b32.xlu0 %v1468, 96
        %v6288 = vpop.permute.xlu0 %6287
        %6289 = vrot.lane.b32.xlu0 %v1469, 96
        %v6290 = vpop.permute.xlu0 %6289
        %6291 = vrot.lane.b32.xlu0 %v1470, 96
        %v6292 = vpop.permute.xlu0 %6291
        %6293 = vrot.lane.b32.xlu0 %v1471, 96
        %v6294 = vpop.permute.xlu0 %6293
        %6295 = vrot.lane.b32.xlu0 %v1472, 96
        %v6296 = vpop.permute.xlu0 %6295
        %6297 = vrot.lane.b32.xlu0 %v1473, 96
        %v6298 = vpop.permute.xlu0 %6297
        %6299 = vrot.lane.b32.xlu0 %v1474, 96
        %v6300 = vpop.permute.xlu0 %6299
        %6301 = vrot.lane.b32.xlu0 %v1475, 96
        %v6302 = vpop.permute.xlu0 %6301
        %6303 = vrot.lane.b32.xlu0 %v1476, 96
        %v6304 = vpop.permute.xlu0 %6303
        %6305 = vrot.lane.b32.xlu0 %v1477, 96
        %v6306 = vpop.permute.xlu0 %6305
        %6307 = vrot.lane.b32.xlu0 %v1478, 96
        %v6308 = vpop.permute.xlu0 %6307
        %6309 = vrot.lane.b32.xlu0 %v1479, 96
        %v6310 = vpop.permute.xlu0 %6309
        %6311 = vrot.lane.b32.xlu0 %v1480, 96
        %v6312 = vpop.permute.xlu0 %6311
        %6313 = vrot.lane.b32.xlu0 %v1481, 96
        %v6314 = vpop.permute.xlu0 %6313
        %6315 = vrot.lane.b32.xlu0 %v1482, 96
        %v6316 = vpop.permute.xlu0 %6315
        %6317 = vrot.lane.b32.xlu0 %v1483, 96
        %v6318 = vpop.permute.xlu0 %6317
        %6319 = vrot.lane.b32.xlu0 %v1484, 96
        %v6320 = vpop.permute.xlu0 %6319
        %6321 = vrot.lane.b32.xlu0 %v1485, 96
        %v6322 = vpop.permute.xlu0 %6321
        %6323 = vrot.lane.b32.xlu0 %v1486, 96
        %v6324 = vpop.permute.xlu0 %6323
        %6325 = vrot.lane.b32.xlu0 %v1487, 96
        %v6326 = vpop.permute.xlu0 %6325
        %6327 = vrot.lane.b32.xlu0 %v1488, 96
        %v6328 = vpop.permute.xlu0 %6327
        %6329 = vrot.lane.b32.xlu0 %v1489, 96
        %v6330 = vpop.permute.xlu0 %6329
        %6331 = vrot.lane.b32.xlu0 %v1490, 96
        %v6332 = vpop.permute.xlu0 %6331
        %6333 = vrot.lane.b32.xlu0 %v1491, 96
        %v6334 = vpop.permute.xlu0 %6333
        %6335 = vrot.lane.b32.xlu0 %v1492, 96
        %v6336 = vpop.permute.xlu0 %6335
        %6337 = vrot.lane.b32.xlu0 %v1493, 96
        %v6338 = vpop.permute.xlu0 %6337
        %6339 = vrot.lane.b32.xlu0 %v1494, 96
        %v6340 = vpop.permute.xlu0 %6339
        %6341 = vrot.lane.b32.xlu0 %v1495, 96
        %v6342 = vpop.permute.xlu0 %6341
        %6343 = vrot.lane.b32.xlu0 %v1496, 96
        %v6344 = vpop.permute.xlu0 %6343
        %6345 = vrot.lane.b32.xlu0 %v1497, 96
        %v6346 = vpop.permute.xlu0 %6345
        %6347 = vrot.lane.b32.xlu0 %v1498, 96
        %v6348 = vpop.permute.xlu0 %6347
        %6349 = vrot.lane.b32.xlu0 %v1509, 96
        %v6350 = vpop.permute.xlu0 %6349
        %6351 = vrot.lane.b32.xlu0 %v2164, 96
        %v6352 = vpop.permute.xlu0 %6351
        %6353 = vrot.lane.b32.xlu0 %v2887, 96
        %v6354 = vpop.permute.xlu0 %6353
        %6355 = vrot.lane.b32.xlu0 %v2888, 96
        %v6356 = vpop.permute.xlu0 %6355
        %6357 = vrot.lane.b32.xlu0 %v2889, 96
        %v6358 = vpop.permute.xlu0 %6357
        %6359 = vrot.lane.b32.xlu0 %v2890, 96
        %v6360 = vpop.permute.xlu0 %6359
        %6361 = vrot.lane.b32.xlu0 %v2891, 96
        %v6362 = vpop.permute.xlu0 %6361
        %6363 = vrot.lane.b32.xlu0 %v2892, 96
        %v6364 = vpop.permute.xlu0 %6363
        %6365 = vrot.lane.b32.xlu0 %v2893, 96
        %v6366 = vpop.permute.xlu0 %6365
        %6367 = vrot.lane.b32.xlu0 %v2894, 96
        %v6368 = vpop.permute.xlu0 %6367
        %6369 = vrot.lane.b32.xlu0 %v2895, 96
        %v6370 = vpop.permute.xlu0 %6369
        %6371 = vrot.lane.b32.xlu0 %v2896, 96
        %v6372 = vpop.permute.xlu0 %6371
        %6373 = vrot.lane.b32.xlu0 %v2897, 96
        %v6374 = vpop.permute.xlu0 %6373
        %6375 = vrot.lane.b32.xlu0 %v2898, 96
        %v6376 = vpop.permute.xlu0 %6375
        %6377 = vrot.lane.b32.xlu0 %v2899, 96
        %v6378 = vpop.permute.xlu0 %6377
        %6379 = vrot.lane.b32.xlu0 %v2900, 96
        %v6380 = vpop.permute.xlu0 %6379
        %6381 = vrot.lane.b32.xlu0 %v2901, 96
        %v6382 = vpop.permute.xlu0 %6381
        %6383 = vrot.lane.b32.xlu0 %v2902, 96
        %v6384 = vpop.permute.xlu0 %6383
        %6385 = vrot.lane.b32.xlu0 %v2903, 96
        %v6386 = vpop.permute.xlu0 %6385
        %6387 = vrot.lane.b32.xlu0 %v2904, 96
        %v6388 = vpop.permute.xlu0 %6387
        %6389 = vrot.lane.b32.xlu0 %v2905, 96
        %v6390 = vpop.permute.xlu0 %6389
        %6391 = vrot.lane.b32.xlu0 %v6092, 96
        %v6392 = vpop.permute.xlu0 %6391
        %6393 = vrot.lane.b32.xlu0 %v6093, 96
        %v6394 = vpop.permute.xlu0 %6393
        %6395 = vrot.lane.b32.xlu0 %v6094, 96
        %v6396 = vpop.permute.xlu0 %6395
        %6397 = vrot.lane.b32.xlu0 %v6095, 96
        %v6398 = vpop.permute.xlu0 %6397
        %6399 = vrot.lane.b32.xlu0 %v6096, 96
        %v6400 = vpop.permute.xlu0 %6399
        %6401 = vrot.lane.b32.xlu0 %v6097, 96
        %v6402 = vpop.permute.xlu0 %6401
        %6403 = vrot.lane.b32.xlu0 %v6098, 96
        %v6404 = vpop.permute.xlu0 %6403
        %6405 = vrot.lane.b32.xlu0 %v6099, 96
        %v6406 = vpop.permute.xlu0 %6405
        %6407 = vrot.lane.b32.xlu0 %v6100, 96
        %v6408 = vpop.permute.xlu0 %6407
        %6409 = vrot.lane.b32.xlu0 %v6101, 96
        %v6410 = vpop.permute.xlu0 %6409
        %6411 = vrot.lane.b32.xlu0 %v6102, 96
        %v6412 = vpop.permute.xlu0 %6411
        %6413 = vrot.lane.b32.xlu0 %v6103, 96
        %v6414 = vpop.permute.xlu0 %6413
        %6415 = vrot.lane.b32.xlu0 %v6104, 96
        %v6416 = vpop.permute.xlu0 %6415
        %6417 = vrot.lane.b32.xlu0 %v6105, 96
        %v6418 = vpop.permute.xlu0 %6417
        %6419 = vrot.lane.b32.xlu0 %v6106, 96
        %v6420 = vpop.permute.xlu0 %6419
        %6421 = vrot.lane.b32.xlu0 %v6107, 96
        %v6422 = vpop.permute.xlu0 %6421
        %6423 = vrot.lane.b32.xlu0 %v6108, 96
        %v6424 = vpop.permute.xlu0 %6423
        %6425 = vrot.lane.b32.xlu0 %v6109, 96
        %v6426 = vpop.permute.xlu0 %6425
        %6427 = vrot.lane.b32.xlu0 %v6110, 96
        %v6428 = vpop.permute.xlu0 %6427
        %6429 = vrot.lane.b32.xlu0 %v6111, 96
        %v6430 = vpop.permute.xlu0 %6429
        %6431 = vrot.lane.b32.xlu0 %v6112, 96
        %v6432 = vpop.permute.xlu0 %6431
        %6433 = vrot.lane.b32.xlu0 %v6113, 96
        %v6434 = vpop.permute.xlu0 %6433
        %6435 = vrot.lane.b32.xlu0 %v6114, 96
        %v6436 = vpop.permute.xlu0 %6435
        %vm6437 = vcmask 97280
        %v6440 = vsel %vm6437, %v1339, %v1834
        %v6443 = vsel %vm6437, %v1340, %v1836
        %v6446 = vsel %vm6437, %v1341, %v1838
        %v6449 = vsel %vm6437, %v1342, %v1840
        %v6452 = vsel %vm6437, %v1343, %v1842
        %v6455 = vsel %vm6437, %v1344, %v1844
        %v6458 = vsel %vm6437, %v1345, %v1846
        %v6461 = vsel %vm6437, %v1346, %v1848
        %v6464 = vsel %vm6437, %v1347, %v1850
        %v6467 = vsel %vm6437, %v1348, %v1852
        %v6470 = vsel %vm6437, %v1349, %v1854
        %v6473 = vsel %vm6437, %v1350, %v1856
        %v6476 = vsel %vm6437, %v1351, %v1858
        %v6479 = vsel %vm6437, %v1352, %v1860
        %v6482 = vsel %vm6437, %v1353, %v1862
        %v6485 = vsel %vm6437, %v1354, %v1864
        %v6488 = vsel %vm6437, %v1355, %v1866
        %v6491 = vsel %vm6437, %v1356, %v1868
        %v6494 = vsel %vm6437, %v1357, %v1870
        %v6497 = vsel %vm6437, %v1358, %v1872
        %v6500 = vsel %vm6437, %v1359, %v1874
        %v6503 = vsel %vm6437, %v1360, %v1876
        %v6506 = vsel %vm6437, %v1361, %v1878
        %v6509 = vsel %vm6437, %v1362, %v1880
        %v6512 = vsel %vm6437, %v1363, %v1882
        %v6515 = vsel %vm6437, %v1364, %v1884
        %v6518 = vsel %vm6437, %v1365, %v1886
        %v6521 = vsel %vm6437, %v1366, %v1888
        %v6524 = vsel %vm6437, %v1367, %v1890
        %v6527 = vsel %vm6437, %v1368, %v1892
        %v6530 = vsel %vm6437, %v1369, %v1894
        %v6533 = vsel %vm6437, %v1370, %v1896
        %v6536 = vsel %vm6437, %v1371, %v1898
        %v6539 = vsel %vm6437, %v1372, %v1900
        %v6542 = vsel %vm6437, %v1373, %v1902
        %v6545 = vsel %vm6437, %v1374, %v1904
        %v6548 = vsel %vm6437, %v1375, %v1906
        %v6551 = vsel %vm6437, %v1376, %v1908
        %v6554 = vsel %vm6437, %v1377, %v1910
        %v6557 = vsel %vm6437, %v1378, %v1912
        %v6560 = vsel %vm6437, %v1379, %v1914
        %v6563 = vsel %vm6437, %v1380, %v1916
        %v6566 = vsel %vm6437, %v1381, %v1918
        %v6569 = vsel %vm6437, %v1382, %v1920
        %v6572 = vsel %vm6437, %v1383, %v1922
        %v6575 = vsel %vm6437, %v1384, %v1924
        %v6578 = vsel %vm6437, %v1385, %v1926
        %v6581 = vsel %vm6437, %v1386, %v1928
        %v6584 = vsel %vm6437, %v1387, %v1930
        %v6587 = vsel %vm6437, %v1388, %v1932
        %v6590 = vsel %vm6437, %v1389, %v1934
        %v6593 = vsel %vm6437, %v1390, %v1936
        %v6596 = vsel %vm6437, %v1391, %v1938
        %v6599 = vsel %vm6437, %v1392, %v1940
        %v6602 = vsel %vm6437, %v1393, %v1942
        %v6605 = vsel %vm6437, %v1394, %v1944
        %v6608 = vsel %vm6437, %v1395, %v1946
        %v6611 = vsel %vm6437, %v1396, %v1948
        %v6614 = vsel %vm6437, %v1397, %v1950
        %v6617 = vsel %vm6437, %v1398, %v1952
        %v6620 = vsel %vm6437, %v1399, %v1954
        %v6623 = vsel %vm6437, %v1400, %v1956
        %v6626 = vsel %vm6437, %v1401, %v1958
        %v6629 = vsel %vm6437, %v1402, %v1960
        %v6632 = vsel %vm6437, %v1403, %v1962
        %v6635 = vsel %vm6437, %v1404, %v1964
        %v6638 = vsel %vm6437, %v1405, %v1966
        %v6641 = vsel %vm6437, %v1406, %v1968
        %v6644 = vsel %vm6437, %v1407, %v1970
        %v6647 = vsel %vm6437, %v1408, %v1972
        %v6650 = vsel %vm6437, %v1409, %v1974
        %v6653 = vsel %vm6437, %v1410, %v1976
        %v6656 = vsel %vm6437, %v1411, %v1978
        %v6659 = vsel %vm6437, %v1412, %v1980
        %v6662 = vsel %vm6437, %v1413, %v1982
        %v6665 = vsel %vm6437, %v1414, %v1984
        %v6668 = vsel %vm6437, %v1415, %v1986
        %v6671 = vsel %vm6437, %v1416, %v1988
        %v6674 = vsel %vm6437, %v1417, %v1990
        %v6677 = vsel %vm6437, %v1418, %v1992
        %v6680 = vsel %vm6437, %v1419, %v1994
        %v6683 = vsel %vm6437, %v1420, %v1996
        %v6686 = vsel %vm6437, %v1421, %v1998
        %v6689 = vsel %vm6437, %v1422, %v2000
        %v6692 = vsel %vm6437, %v1423, %v2002
        %v6695 = vsel %vm6437, %v1424, %v2004
        %v6698 = vsel %vm6437, %v1425, %v2006
        %v6701 = vsel %vm6437, %v1426, %v2008
        %v6704 = vsel %vm6437, %v1427, %v2010
        %v6707 = vsel %vm6437, %v1428, %v2012
        %v6710 = vsel %vm6437, %v1429, %v2014
        %v6713 = vsel %vm6437, %v1430, %v2016
        %v6716 = vsel %vm6437, %v1431, %v2018
        %v6719 = vsel %vm6437, %v1432, %v2020
        %v6722 = vsel %vm6437, %v1433, %v2022
        %v6725 = vsel %vm6437, %v1434, %v2024
        %v6728 = vsel %vm6437, %v1435, %v2026
        %v6731 = vsel %vm6437, %v1436, %v2028
        %v6734 = vsel %vm6437, %v1437, %v2030
        %v6737 = vsel %vm6437, %v1438, %v2032
        %v6740 = vsel %vm6437, %v1439, %v2034
        %v6743 = vsel %vm6437, %v1440, %v2036
        %v6746 = vsel %vm6437, %v1441, %v2038
        %v6749 = vsel %vm6437, %v1442, %v2040
        %v6752 = vsel %vm6437, %v1443, %v2042
        %v6755 = vsel %vm6437, %v1444, %v2044
        %v6758 = vsel %vm6437, %v1445, %v2046
        %v6761 = vsel %vm6437, %v1446, %v2048
        %v6764 = vsel %vm6437, %v1447, %v2050
        %v6767 = vsel %vm6437, %v1448, %v2052
        %v6770 = vsel %vm6437, %v1449, %v2054
        %v6773 = vsel %vm6437, %v1450, %v2056
        %v6776 = vsel %vm6437, %v1451, %v2058
        %v6779 = vsel %vm6437, %v1452, %v2060
        %v6782 = vsel %vm6437, %v1453, %v2062
        %v6785 = vsel %vm6437, %v1454, %v2064
        %v6788 = vsel %vm6437, %v1455, %v2066
        %v6791 = vsel %vm6437, %v1456, %v2068
        %v6794 = vsel %vm6437, %v1457, %v2070
        %v6797 = vsel %vm6437, %v1458, %v2072
        %v6800 = vsel %vm6437, %v1459, %v2074
        %v6803 = vsel %vm6437, %v1460, %v2076
        %v6806 = vsel %vm6437, %v1461, %v2078
        %v6809 = vsel %vm6437, %v1462, %v2080
        %v6812 = vsel %vm6437, %v1463, %v2082
        %v6815 = vsel %vm6437, %v1464, %v2084
        %v6818 = vsel %vm6437, %v1465, %v2086
        %v6821 = vsel %vm6437, %v1466, %v2088
        %v6824 = vsel %vm6437, %v1467, %v2090
        %v6827 = vsel %vm6437, %v1468, %v2092
        %v6830 = vsel %vm6437, %v1469, %v2094
        %v6833 = vsel %vm6437, %v1470, %v2096
        %v6836 = vsel %vm6437, %v1471, %v2098
        %v6839 = vsel %vm6437, %v1472, %v2100
        %v6842 = vsel %vm6437, %v1473, %v2102
        %v6845 = vsel %vm6437, %v1474, %v2104
        %v6848 = vsel %vm6437, %v1475, %v2106
        %v6851 = vsel %vm6437, %v1476, %v2108
        %v6854 = vsel %vm6437, %v1477, %v2110
        %v6857 = vsel %vm6437, %v1478, %v2112
        %v6860 = vsel %vm6437, %v1479, %v2114
        %v6863 = vsel %vm6437, %v1480, %v2116
        %v6866 = vsel %vm6437, %v1481, %v2118
        %v6869 = vsel %vm6437, %v1482, %v2120
        %v6872 = vsel %vm6437, %v1483, %v2122
        %v6875 = vsel %vm6437, %v1484, %v2124
        %v6878 = vsel %vm6437, %v1485, %v2126
        %v6881 = vsel %vm6437, %v1486, %v2128
        %v6884 = vsel %vm6437, %v1487, %v2130
        %v6887 = vsel %vm6437, %v1488, %v2132
        %v6890 = vsel %vm6437, %v1489, %v2134
        %v6893 = vsel %vm6437, %v1490, %v2136
        %v6896 = vsel %vm6437, %v1491, %v2138
        %v6899 = vsel %vm6437, %v1492, %v2140
        %v6902 = vsel %vm6437, %v1493, %v2142
        %v6905 = vsel %vm6437, %v1494, %v2144
        %v6908 = vsel %vm6437, %v1495, %v2146
        %v6911 = vsel %vm6437, %v1496, %v2148
        %v6914 = vsel %vm6437, %v1497, %v2150
        %v6917 = vsel %vm6437, %v1498, %v2152
        %v6920 = vsel %vm6437, %v1499, %v2154
        %vm6921 = vcmask 195584
        %v6923 = vsel %vm6921, %v6440, %v2489
        %v6925 = vsel %vm6921, %v6443, %v2491
        %v6927 = vsel %vm6921, %v6446, %v2493
        %v6929 = vsel %vm6921, %v6449, %v2495
        %v6931 = vsel %vm6921, %v6452, %v2497
        %v6933 = vsel %vm6921, %v6455, %v2499
        %v6935 = vsel %vm6921, %v6458, %v2501
        %v6937 = vsel %vm6921, %v6461, %v2503
        %v6939 = vsel %vm6921, %v6464, %v2505
        %v6941 = vsel %vm6921, %v6467, %v2507
        %v6943 = vsel %vm6921, %v6470, %v2509
        %v6945 = vsel %vm6921, %v6473, %v2511
        %v6947 = vsel %vm6921, %v6476, %v2513
        %v6949 = vsel %vm6921, %v6479, %v2515
        %v6951 = vsel %vm6921, %v6482, %v2517
        %v6953 = vsel %vm6921, %v6485, %v2519
        %v6955 = vsel %vm6921, %v6488, %v2521
        %v6957 = vsel %vm6921, %v6491, %v2523
        %v6959 = vsel %vm6921, %v6494, %v2525
        %v6961 = vsel %vm6921, %v6497, %v2527
        %v6963 = vsel %vm6921, %v6500, %v2529
        %v6965 = vsel %vm6921, %v6503, %v2531
        %v6967 = vsel %vm6921, %v6506, %v2533
        %v6969 = vsel %vm6921, %v6509, %v2535
        %v6971 = vsel %vm6921, %v6512, %v2537
        %v6973 = vsel %vm6921, %v6515, %v2539
        %v6975 = vsel %vm6921, %v6518, %v2541
        %v6977 = vsel %vm6921, %v6521, %v2543
        %v6979 = vsel %vm6921, %v6524, %v2545
        %v6981 = vsel %vm6921, %v6527, %v2547
        %v6983 = vsel %vm6921, %v6530, %v2549
        %v6985 = vsel %vm6921, %v6533, %v2551
        %v6987 = vsel %vm6921, %v6536, %v2553
        %v6989 = vsel %vm6921, %v6539, %v2555
        %v6991 = vsel %vm6921, %v6542, %v2557
        %v6993 = vsel %vm6921, %v6545, %v2559
        %v6995 = vsel %vm6921, %v6548, %v2561
        %v6997 = vsel %vm6921, %v6551, %v2563
        %v6999 = vsel %vm6921, %v6554, %v2565
        %v7001 = vsel %vm6921, %v6557, %v2567
        %v7003 = vsel %vm6921, %v6560, %v2569
        %v7005 = vsel %vm6921, %v6563, %v2571
        %v7007 = vsel %vm6921, %v6566, %v2573
        %v7009 = vsel %vm6921, %v6569, %v2575
        %v7011 = vsel %vm6921, %v6572, %v2577
        %v7013 = vsel %vm6921, %v6575, %v2579
        %v7015 = vsel %vm6921, %v6578, %v2581
        %v7017 = vsel %vm6921, %v6581, %v2583
        %v7019 = vsel %vm6921, %v6584, %v2585
        %v7021 = vsel %vm6921, %v6587, %v2587
        %v7023 = vsel %vm6921, %v6590, %v2589
        %v7025 = vsel %vm6921, %v6593, %v2591
        %v7027 = vsel %vm6921, %v6596, %v2593
        %v7029 = vsel %vm6921, %v6599, %v2595
        %v7031 = vsel %vm6921, %v6602, %v2597
        %v7033 = vsel %vm6921, %v6605, %v2599
        %v7035 = vsel %vm6921, %v6608, %v2601
        %v7037 = vsel %vm6921, %v6611, %v2603
        %v7039 = vsel %vm6921, %v6614, %v2605
        %v7041 = vsel %vm6921, %v6617, %v2607
        %v7043 = vsel %vm6921, %v6620, %v2609
        %v7045 = vsel %vm6921, %v6623, %v2611
        %v7047 = vsel %vm6921, %v6626, %v2613
        %v7049 = vsel %vm6921, %v6629, %v2615
        %v7051 = vsel %vm6921, %v6632, %v2617
        %v7053 = vsel %vm6921, %v6635, %v2619
        %v7055 = vsel %vm6921, %v6638, %v2621
        %v7057 = vsel %vm6921, %v6641, %v2623
        %v7059 = vsel %vm6921, %v6644, %v2625
        %v7061 = vsel %vm6921, %v6647, %v2627
        %v7063 = vsel %vm6921, %v6650, %v2629
        %v7065 = vsel %vm6921, %v6653, %v2631
        %v7067 = vsel %vm6921, %v6656, %v2633
        %v7069 = vsel %vm6921, %v6659, %v2635
        %v7071 = vsel %vm6921, %v6662, %v2637
        %v7073 = vsel %vm6921, %v6665, %v2639
        %v7075 = vsel %vm6921, %v6668, %v2641
        %v7077 = vsel %vm6921, %v6671, %v2643
        %v7079 = vsel %vm6921, %v6674, %v2645
        %v7081 = vsel %vm6921, %v6677, %v2647
        %v7083 = vsel %vm6921, %v6680, %v2649
        %v7085 = vsel %vm6921, %v6683, %v2651
        %v7087 = vsel %vm6921, %v6686, %v2653
        %v7089 = vsel %vm6921, %v6689, %v2655
        %v7091 = vsel %vm6921, %v6692, %v2657
        %v7093 = vsel %vm6921, %v6695, %v2659
        %v7095 = vsel %vm6921, %v6698, %v2661
        %v7097 = vsel %vm6921, %v6701, %v2663
        %v7099 = vsel %vm6921, %v6704, %v2665
        %v7101 = vsel %vm6921, %v6707, %v2667
        %v7103 = vsel %vm6921, %v6710, %v2669
        %v7105 = vsel %vm6921, %v6713, %v2671
        %v7107 = vsel %vm6921, %v6716, %v2673
        %v7109 = vsel %vm6921, %v6719, %v2675
        %v7111 = vsel %vm6921, %v6722, %v2677
        %v7113 = vsel %vm6921, %v6725, %v2679
        %v7115 = vsel %vm6921, %v6728, %v2681
        %v7117 = vsel %vm6921, %v6731, %v2683
        %v7119 = vsel %vm6921, %v6734, %v2685
        %v7121 = vsel %vm6921, %v6737, %v2687
        %v7123 = vsel %vm6921, %v6740, %v2689
        %v7125 = vsel %vm6921, %v6743, %v2691
        %v7127 = vsel %vm6921, %v6746, %v2693
        %v7129 = vsel %vm6921, %v6749, %v2695
        %v7131 = vsel %vm6921, %v6752, %v2697
        %v7133 = vsel %vm6921, %v6755, %v2699
        %v7135 = vsel %vm6921, %v6758, %v2701
        %v7137 = vsel %vm6921, %v6761, %v2703
        %v7139 = vsel %vm6921, %v6764, %v2705
        %v7141 = vsel %vm6921, %v6767, %v2707
        %v7143 = vsel %vm6921, %v6770, %v2709
        %v7145 = vsel %vm6921, %v6773, %v2711
        %v7147 = vsel %vm6921, %v6776, %v2713
        %v7149 = vsel %vm6921, %v6779, %v2715
        %v7151 = vsel %vm6921, %v6782, %v2717
        %v7153 = vsel %vm6921, %v6785, %v2719
        %v7155 = vsel %vm6921, %v6788, %v2721
        %v7157 = vsel %vm6921, %v6791, %v2723
        %v7159 = vsel %vm6921, %v6794, %v2725
        %v7161 = vsel %vm6921, %v6797, %v2727
        %v7163 = vsel %vm6921, %v6800, %v2729
        %v7165 = vsel %vm6921, %v6803, %v2731
        %v7167 = vsel %vm6921, %v6806, %v2733
        %v7169 = vsel %vm6921, %v6809, %v2735
        %v7171 = vsel %vm6921, %v6812, %v2737
        %v7173 = vsel %vm6921, %v6815, %v2739
        %v7175 = vsel %vm6921, %v6818, %v2741
        %v7177 = vsel %vm6921, %v6821, %v2743
        %v7179 = vsel %vm6921, %v6824, %v2745
        %v7181 = vsel %vm6921, %v6827, %v2747
        %v7183 = vsel %vm6921, %v6830, %v2749
        %v7185 = vsel %vm6921, %v6833, %v2751
        %v7187 = vsel %vm6921, %v6836, %v2753
        %v7189 = vsel %vm6921, %v6839, %v2755
        %v7191 = vsel %vm6921, %v6842, %v2757
        %v7193 = vsel %vm6921, %v6845, %v2759
        %v7195 = vsel %vm6921, %v6848, %v2761
        %v7197 = vsel %vm6921, %v6851, %v2763
        %v7199 = vsel %vm6921, %v6854, %v2765
        %v7201 = vsel %vm6921, %v6857, %v2767
        %v7203 = vsel %vm6921, %v6860, %v2769
        %v7205 = vsel %vm6921, %v6863, %v2771
        %v7207 = vsel %vm6921, %v6866, %v2773
        %v7209 = vsel %vm6921, %v6869, %v2775
        %v7211 = vsel %vm6921, %v6872, %v2777
        %v7213 = vsel %vm6921, %v6875, %v2779
        %v7215 = vsel %vm6921, %v6878, %v2781
        %v7217 = vsel %vm6921, %v6881, %v2783
        %v7219 = vsel %vm6921, %v6884, %v2785
        %v7221 = vsel %vm6921, %v6887, %v2787
        %v7223 = vsel %vm6921, %v6890, %v2789
        %v7225 = vsel %vm6921, %v6893, %v2791
        %v7227 = vsel %vm6921, %v6896, %v2793
        %v7229 = vsel %vm6921, %v6899, %v2795
        %v7231 = vsel %vm6921, %v6902, %v2797
        %v7233 = vsel %vm6921, %v6905, %v2799
        %v7235 = vsel %vm6921, %v6908, %v2801
        %v7237 = vsel %vm6921, %v6911, %v2803
        %v7239 = vsel %vm6921, %v6914, %v2805
        %v7241 = vsel %vm6921, %v6917, %v2807
        %v7243 = vsel %vm6921, %v6920, %v2809
        %vm7244 = vcmask 293888
        %v7246 = vsel %vm7244, %v6923, %v3229
        %v7248 = vsel %vm7244, %v6925, %v3231
        %v7250 = vsel %vm7244, %v6927, %v3233
        %v7252 = vsel %vm7244, %v6929, %v3235
        %v7254 = vsel %vm7244, %v6931, %v3237
        %v7256 = vsel %vm7244, %v6933, %v3239
        %v7258 = vsel %vm7244, %v6935, %v3241
        %v7260 = vsel %vm7244, %v6937, %v3243
        %v7262 = vsel %vm7244, %v6939, %v3245
        %v7264 = vsel %vm7244, %v6941, %v3247
        %v7266 = vsel %vm7244, %v6943, %v3249
        %v7268 = vsel %vm7244, %v6945, %v3251
        %v7270 = vsel %vm7244, %v6947, %v3253
        %v7272 = vsel %vm7244, %v6949, %v3255
        %v7274 = vsel %vm7244, %v6951, %v3257
        %v7276 = vsel %vm7244, %v6953, %v3259
        %v7278 = vsel %vm7244, %v6955, %v3261
        %v7280 = vsel %vm7244, %v6957, %v3263
        %v7282 = vsel %vm7244, %v6959, %v3265
        %v7284 = vsel %vm7244, %v6961, %v3267
        %v7286 = vsel %vm7244, %v6963, %v3269
        %v7288 = vsel %vm7244, %v6965, %v3271
        %v7290 = vsel %vm7244, %v6967, %v3273
        %v7292 = vsel %vm7244, %v6969, %v3275
        %v7294 = vsel %vm7244, %v6971, %v3277
        %v7296 = vsel %vm7244, %v6973, %v3279
        %v7298 = vsel %vm7244, %v6975, %v3281
        %v7300 = vsel %vm7244, %v6977, %v3283
        %v7302 = vsel %vm7244, %v6979, %v3285
        %v7304 = vsel %vm7244, %v6981, %v3287
        %v7306 = vsel %vm7244, %v6983, %v3289
        %v7308 = vsel %vm7244, %v6985, %v3291
        %v7310 = vsel %vm7244, %v6987, %v3293
        %v7312 = vsel %vm7244, %v6989, %v3295
        %v7314 = vsel %vm7244, %v6991, %v3297
        %v7316 = vsel %vm7244, %v6993, %v3299
        %v7318 = vsel %vm7244, %v6995, %v3301
        %v7320 = vsel %vm7244, %v6997, %v3303
        %v7322 = vsel %vm7244, %v6999, %v3305
        %v7324 = vsel %vm7244, %v7001, %v3307
        %v7326 = vsel %vm7244, %v7003, %v3309
        %v7328 = vsel %vm7244, %v7005, %v3311
        %v7330 = vsel %vm7244, %v7007, %v3313
        %v7332 = vsel %vm7244, %v7009, %v3315
        %v7334 = vsel %vm7244, %v7011, %v3317
        %v7336 = vsel %vm7244, %v7013, %v3319
        %v7338 = vsel %vm7244, %v7015, %v3321
        %v7340 = vsel %vm7244, %v7017, %v3323
        %v7342 = vsel %vm7244, %v7019, %v3325
        %v7344 = vsel %vm7244, %v7021, %v3327
        %v7346 = vsel %vm7244, %v7023, %v3329
        %v7348 = vsel %vm7244, %v7025, %v3331
        %v7350 = vsel %vm7244, %v7027, %v3333
        %v7352 = vsel %vm7244, %v7029, %v3335
        %v7354 = vsel %vm7244, %v7031, %v3337
        %v7356 = vsel %vm7244, %v7033, %v3339
        %v7358 = vsel %vm7244, %v7035, %v3341
        %v7360 = vsel %vm7244, %v7037, %v3343
        %v7362 = vsel %vm7244, %v7039, %v3345
        %v7364 = vsel %vm7244, %v7041, %v3347
        %v7366 = vsel %vm7244, %v7043, %v3349
        %v7368 = vsel %vm7244, %v7045, %v3351
        %v7370 = vsel %vm7244, %v7047, %v3353
        %v7372 = vsel %vm7244, %v7049, %v3355
        %v7374 = vsel %vm7244, %v7051, %v3357
        %v7376 = vsel %vm7244, %v7053, %v3359
        %v7378 = vsel %vm7244, %v7055, %v3361
        %v7380 = vsel %vm7244, %v7057, %v3363
        %v7382 = vsel %vm7244, %v7059, %v3365
        %v7384 = vsel %vm7244, %v7061, %v3367
        %v7386 = vsel %vm7244, %v7063, %v3369
        %v7388 = vsel %vm7244, %v7065, %v3371
        %v7390 = vsel %vm7244, %v7067, %v3373
        %v7392 = vsel %vm7244, %v7069, %v3375
        %v7394 = vsel %vm7244, %v7071, %v3377
        %v7396 = vsel %vm7244, %v7073, %v3379
        %v7398 = vsel %vm7244, %v7075, %v3381
        %v7400 = vsel %vm7244, %v7077, %v3383
        %v7402 = vsel %vm7244, %v7079, %v3385
        %v7404 = vsel %vm7244, %v7081, %v3387
        %v7406 = vsel %vm7244, %v7083, %v3389
        %v7408 = vsel %vm7244, %v7085, %v3391
        %v7410 = vsel %vm7244, %v7087, %v3393
        %v7412 = vsel %vm7244, %v7089, %v3395
        %v7414 = vsel %vm7244, %v7091, %v3397
        %v7416 = vsel %vm7244, %v7093, %v3399
        %v7418 = vsel %vm7244, %v7095, %v3401
        %v7420 = vsel %vm7244, %v7097, %v3403
        %v7422 = vsel %vm7244, %v7099, %v3405
        %v7424 = vsel %vm7244, %v7101, %v3407
        %v7426 = vsel %vm7244, %v7103, %v3409
        %v7428 = vsel %vm7244, %v7105, %v3411
        %v7430 = vsel %vm7244, %v7107, %v3413
        %v7432 = vsel %vm7244, %v7109, %v3415
        %v7434 = vsel %vm7244, %v7111, %v3417
        %v7436 = vsel %vm7244, %v7113, %v3419
        %v7438 = vsel %vm7244, %v7115, %v3421
        %v7440 = vsel %vm7244, %v7117, %v3423
        %v7442 = vsel %vm7244, %v7119, %v3425
        %v7444 = vsel %vm7244, %v7121, %v3427
        %v7446 = vsel %vm7244, %v7123, %v3429
        %v7448 = vsel %vm7244, %v7125, %v3431
        %v7450 = vsel %vm7244, %v7127, %v3433
        %v7452 = vsel %vm7244, %v7129, %v3435
        %v7454 = vsel %vm7244, %v7131, %v3437
        %v7456 = vsel %vm7244, %v7133, %v3439
        %v7458 = vsel %vm7244, %v7135, %v3441
        %v7460 = vsel %vm7244, %v7137, %v3443
        %v7462 = vsel %vm7244, %v7139, %v3445
        %v7464 = vsel %vm7244, %v7141, %v3447
        %v7466 = vsel %vm7244, %v7143, %v3449
        %v7468 = vsel %vm7244, %v7145, %v3451
        %v7470 = vsel %vm7244, %v7147, %v3453
        %v7472 = vsel %vm7244, %v7149, %v3455
        %v7474 = vsel %vm7244, %v7151, %v3457
        %v7476 = vsel %vm7244, %v7153, %v3459
        %v7478 = vsel %vm7244, %v7155, %v3461
        %v7480 = vsel %vm7244, %v7157, %v3463
        %v7482 = vsel %vm7244, %v7159, %v3465
        %v7484 = vsel %vm7244, %v7161, %v3467
        %v7486 = vsel %vm7244, %v7163, %v3469
        %v7488 = vsel %vm7244, %v7165, %v3471
        %v7490 = vsel %vm7244, %v7167, %v3473
        %v7492 = vsel %vm7244, %v7169, %v3475
        %v7494 = vsel %vm7244, %v7171, %v3477
        %v7496 = vsel %vm7244, %v7173, %v3479
        %v7498 = vsel %vm7244, %v7175, %v3481
        %v7500 = vsel %vm7244, %v7177, %v3483
        %v7502 = vsel %vm7244, %v7179, %v3485
        %v7504 = vsel %vm7244, %v7181, %v3487
        %v7506 = vsel %vm7244, %v7183, %v3489
        %v7508 = vsel %vm7244, %v7185, %v3491
        %v7510 = vsel %vm7244, %v7187, %v3493
        %v7512 = vsel %vm7244, %v7189, %v3495
        %v7514 = vsel %vm7244, %v7191, %v3497
        %v7516 = vsel %vm7244, %v7193, %v3499
        %v7518 = vsel %vm7244, %v7195, %v3501
        %v7520 = vsel %vm7244, %v7197, %v3503
        %v7522 = vsel %vm7244, %v7199, %v3505
        %v7524 = vsel %vm7244, %v7201, %v3507
        %v7526 = vsel %vm7244, %v7203, %v3509
        %v7528 = vsel %vm7244, %v7205, %v3511
        %v7530 = vsel %vm7244, %v7207, %v3513
        %v7532 = vsel %vm7244, %v7209, %v3515
        %v7534 = vsel %vm7244, %v7211, %v3517
        %v7536 = vsel %vm7244, %v7213, %v3519
        %v7538 = vsel %vm7244, %v7215, %v3521
        %v7540 = vsel %vm7244, %v7217, %v3523
        %v7542 = vsel %vm7244, %v7219, %v3525
        %v7544 = vsel %vm7244, %v7221, %v3527
        %v7546 = vsel %vm7244, %v7223, %v3529
        %v7548 = vsel %vm7244, %v7225, %v3531
        %v7550 = vsel %vm7244, %v7227, %v3533
        %v7552 = vsel %vm7244, %v7229, %v3535
        %v7554 = vsel %vm7244, %v7231, %v3537
        %v7556 = vsel %vm7244, %v7233, %v3539
        %v7558 = vsel %vm7244, %v7235, %v3541
        %v7560 = vsel %vm7244, %v7237, %v3543
        %v7562 = vsel %vm7244, %v7239, %v3545
        %v7564 = vsel %vm7244, %v7241, %v3547
        %v7566 = vsel %vm7244, %v7243, %v3549
        %vm7567 = vcmask 392192
        %v7569 = vsel %vm7567, %v7246, %v3718
        %v7571 = vsel %vm7567, %v7248, %v3720
        %v7573 = vsel %vm7567, %v7250, %v3722
        %v7575 = vsel %vm7567, %v7252, %v3724
        %v7577 = vsel %vm7567, %v7254, %v3726
        %v7579 = vsel %vm7567, %v7256, %v3728
        %v7581 = vsel %vm7567, %v7258, %v3730
        %v7583 = vsel %vm7567, %v7260, %v3732
        %v7585 = vsel %vm7567, %v7262, %v3734
        %v7587 = vsel %vm7567, %v7264, %v3736
        %v7589 = vsel %vm7567, %v7266, %v3738
        %v7591 = vsel %vm7567, %v7268, %v3740
        %v7593 = vsel %vm7567, %v7270, %v3742
        %v7595 = vsel %vm7567, %v7272, %v3744
        %v7597 = vsel %vm7567, %v7274, %v3746
        %v7599 = vsel %vm7567, %v7276, %v3748
        %v7601 = vsel %vm7567, %v7278, %v3750
        %v7603 = vsel %vm7567, %v7280, %v3752
        %v7605 = vsel %vm7567, %v7282, %v3754
        %v7607 = vsel %vm7567, %v7284, %v3756
        %v7609 = vsel %vm7567, %v7286, %v3758
        %v7611 = vsel %vm7567, %v7288, %v3760
        %v7613 = vsel %vm7567, %v7290, %v3762
        %v7615 = vsel %vm7567, %v7292, %v3764
        %v7617 = vsel %vm7567, %v7294, %v3766
        %v7619 = vsel %vm7567, %v7296, %v3768
        %v7621 = vsel %vm7567, %v7298, %v3770
        %v7623 = vsel %vm7567, %v7300, %v3772
        %v7625 = vsel %vm7567, %v7302, %v3774
        %v7627 = vsel %vm7567, %v7304, %v3776
        %v7629 = vsel %vm7567, %v7306, %v3778
        %v7631 = vsel %vm7567, %v7308, %v3780
        %v7633 = vsel %vm7567, %v7310, %v3782
        %v7635 = vsel %vm7567, %v7312, %v3784
        %v7637 = vsel %vm7567, %v7314, %v3786
        %v7639 = vsel %vm7567, %v7316, %v3788
        %v7641 = vsel %vm7567, %v7318, %v3790
        %v7643 = vsel %vm7567, %v7320, %v3792
        %v7645 = vsel %vm7567, %v7322, %v3794
        %v7647 = vsel %vm7567, %v7324, %v3796
        %v7649 = vsel %vm7567, %v7326, %v3798
        %v7651 = vsel %vm7567, %v7328, %v3800
        %v7653 = vsel %vm7567, %v7330, %v3802
        %v7655 = vsel %vm7567, %v7332, %v3804
        %v7657 = vsel %vm7567, %v7334, %v3806
        %v7659 = vsel %vm7567, %v7336, %v3808
        %v7661 = vsel %vm7567, %v7338, %v3810
        %v7663 = vsel %vm7567, %v7340, %v3812
        %v7665 = vsel %vm7567, %v7342, %v3814
        %v7667 = vsel %vm7567, %v7344, %v3816
        %v7669 = vsel %vm7567, %v7346, %v3818
        %v7671 = vsel %vm7567, %v7348, %v3820
        %v7673 = vsel %vm7567, %v7350, %v3822
        %v7675 = vsel %vm7567, %v7352, %v3824
        %v7677 = vsel %vm7567, %v7354, %v3826
        %v7679 = vsel %vm7567, %v7356, %v3828
        %v7681 = vsel %vm7567, %v7358, %v3830
        %v7683 = vsel %vm7567, %v7360, %v3832
        %v7685 = vsel %vm7567, %v7362, %v3834
        %v7687 = vsel %vm7567, %v7364, %v3836
        %v7689 = vsel %vm7567, %v7366, %v3838
        %v7691 = vsel %vm7567, %v7368, %v3840
        %v7693 = vsel %vm7567, %v7370, %v3842
        %v7695 = vsel %vm7567, %v7372, %v3844
        %v7697 = vsel %vm7567, %v7374, %v3846
        %v7699 = vsel %vm7567, %v7376, %v3848
        %v7701 = vsel %vm7567, %v7378, %v3850
        %v7703 = vsel %vm7567, %v7380, %v3852
        %v7705 = vsel %vm7567, %v7382, %v3854
        %v7707 = vsel %vm7567, %v7384, %v3856
        %v7709 = vsel %vm7567, %v7386, %v3858
        %v7711 = vsel %vm7567, %v7388, %v3860
        %v7713 = vsel %vm7567, %v7390, %v3862
        %v7715 = vsel %vm7567, %v7392, %v3864
        %v7717 = vsel %vm7567, %v7394, %v3866
        %v7719 = vsel %vm7567, %v7396, %v3868
        %v7721 = vsel %vm7567, %v7398, %v3870
        %v7723 = vsel %vm7567, %v7400, %v3872
        %v7725 = vsel %vm7567, %v7402, %v3874
        %v7727 = vsel %vm7567, %v7404, %v3876
        %v7729 = vsel %vm7567, %v7406, %v3878
        %v7731 = vsel %vm7567, %v7408, %v3880
        %v7733 = vsel %vm7567, %v7410, %v3882
        %v7735 = vsel %vm7567, %v7412, %v3884
        %v7737 = vsel %vm7567, %v7414, %v3886
        %v7739 = vsel %vm7567, %v7416, %v3888
        %v7741 = vsel %vm7567, %v7418, %v3890
        %v7743 = vsel %vm7567, %v7420, %v3892
        %v7745 = vsel %vm7567, %v7422, %v3894
        %v7747 = vsel %vm7567, %v7424, %v3896
        %v7749 = vsel %vm7567, %v7426, %v3898
        %v7751 = vsel %vm7567, %v7428, %v3900
        %v7753 = vsel %vm7567, %v7430, %v3902
        %v7755 = vsel %vm7567, %v7432, %v3904
        %v7757 = vsel %vm7567, %v7434, %v3906
        %v7759 = vsel %vm7567, %v7436, %v3908
        %v7761 = vsel %vm7567, %v7438, %v3910
        %v7763 = vsel %vm7567, %v7440, %v3912
        %v7765 = vsel %vm7567, %v7442, %v3914
        %v7767 = vsel %vm7567, %v7444, %v3916
        %v7769 = vsel %vm7567, %v7446, %v3918
        %v7771 = vsel %vm7567, %v7448, %v3920
        %v7773 = vsel %vm7567, %v7450, %v3922
        %v7775 = vsel %vm7567, %v7452, %v3924
        %v7777 = vsel %vm7567, %v7454, %v3926
        %v7779 = vsel %vm7567, %v7456, %v3928
        %v7781 = vsel %vm7567, %v7458, %v3930
        %v7783 = vsel %vm7567, %v7460, %v3932
        %v7785 = vsel %vm7567, %v7462, %v3934
        %v7787 = vsel %vm7567, %v7464, %v3936
        %v7789 = vsel %vm7567, %v7466, %v3938
        %v7791 = vsel %vm7567, %v7468, %v3940
        %v7793 = vsel %vm7567, %v7470, %v3942
        %v7795 = vsel %vm7567, %v7472, %v3944
        %v7797 = vsel %vm7567, %v7474, %v3946
        %v7799 = vsel %vm7567, %v7476, %v3948
        %v7801 = vsel %vm7567, %v7478, %v3950
        %v7803 = vsel %vm7567, %v7480, %v3952
        %v7805 = vsel %vm7567, %v7482, %v3954
        %v7807 = vsel %vm7567, %v7484, %v3956
        %v7809 = vsel %vm7567, %v7486, %v3958
        %v7811 = vsel %vm7567, %v7488, %v3960
        %v7813 = vsel %vm7567, %v7490, %v3962
        %v7815 = vsel %vm7567, %v7492, %v3964
        %v7817 = vsel %vm7567, %v7494, %v3966
        %v7819 = vsel %vm7567, %v7496, %v3968
        %v7821 = vsel %vm7567, %v7498, %v3970
        %v7823 = vsel %vm7567, %v7500, %v3972
        %v7825 = vsel %vm7567, %v7502, %v3974
        %v7827 = vsel %vm7567, %v7504, %v3976
        %v7829 = vsel %vm7567, %v7506, %v3978
        %v7831 = vsel %vm7567, %v7508, %v3980
        %v7833 = vsel %vm7567, %v7510, %v3982
        %v7835 = vsel %vm7567, %v7512, %v3984
        %v7837 = vsel %vm7567, %v7514, %v3986
        %v7839 = vsel %vm7567, %v7516, %v3988
        %v7841 = vsel %vm7567, %v7518, %v3990
        %v7843 = vsel %vm7567, %v7520, %v3992
        %v7845 = vsel %vm7567, %v7522, %v3994
        %v7847 = vsel %vm7567, %v7524, %v3996
        %v7849 = vsel %vm7567, %v7526, %v3998
        %v7851 = vsel %vm7567, %v7528, %v4000
        %v7853 = vsel %vm7567, %v7530, %v4002
        %v7855 = vsel %vm7567, %v7532, %v4004
        %v7857 = vsel %vm7567, %v7534, %v4006
        %v7859 = vsel %vm7567, %v7536, %v4008
        %v7861 = vsel %vm7567, %v7538, %v4010
        %v7863 = vsel %vm7567, %v7540, %v4012
        %v7865 = vsel %vm7567, %v7542, %v4014
        %v7867 = vsel %vm7567, %v7544, %v4016
        %v7869 = vsel %vm7567, %v7546, %v4018
        %v7871 = vsel %vm7567, %v7548, %v4020
        %v7873 = vsel %vm7567, %v7550, %v4022
        %v7875 = vsel %vm7567, %v7552, %v4024
        %v7877 = vsel %vm7567, %v7554, %v4026
        %v7879 = vsel %vm7567, %v7556, %v4028
        %v7881 = vsel %vm7567, %v7558, %v4030
        %v7883 = vsel %vm7567, %v7560, %v4032
        %v7885 = vsel %vm7567, %v7562, %v4034
        %v7887 = vsel %vm7567, %v7564, %v4036
        %v7889 = vsel %vm7567, %v7566, %v4038
        %vm7890 = vcmask 490496
        %v7892 = vsel %vm7890, %v7569, %v4372
        %v7894 = vsel %vm7890, %v7571, %v4374
        %v7896 = vsel %vm7890, %v7573, %v4376
        %v7898 = vsel %vm7890, %v7575, %v4378
        %v7900 = vsel %vm7890, %v7577, %v4380
        %v7902 = vsel %vm7890, %v7579, %v4382
        %v7904 = vsel %vm7890, %v7581, %v4384
        %v7906 = vsel %vm7890, %v7583, %v4386
        %v7908 = vsel %vm7890, %v7585, %v4388
        %v7910 = vsel %vm7890, %v7587, %v4390
        %v7912 = vsel %vm7890, %v7589, %v4392
        %v7914 = vsel %vm7890, %v7591, %v4394
        %v7916 = vsel %vm7890, %v7593, %v4396
        %v7918 = vsel %vm7890, %v7595, %v4398
        %v7920 = vsel %vm7890, %v7597, %v4400
        %v7922 = vsel %vm7890, %v7599, %v4402
        %v7924 = vsel %vm7890, %v7601, %v4404
        %v7926 = vsel %vm7890, %v7603, %v4406
        %v7928 = vsel %vm7890, %v7605, %v4408
        %v7930 = vsel %vm7890, %v7607, %v4410
        %v7932 = vsel %vm7890, %v7609, %v4412
        %v7934 = vsel %vm7890, %v7611, %v4414
        %v7936 = vsel %vm7890, %v7613, %v4416
        %v7938 = vsel %vm7890, %v7615, %v4418
        %v7940 = vsel %vm7890, %v7617, %v4420
        %v7942 = vsel %vm7890, %v7619, %v4422
        %v7944 = vsel %vm7890, %v7621, %v4424
        %v7946 = vsel %vm7890, %v7623, %v4426
        %v7948 = vsel %vm7890, %v7625, %v4428
        %v7950 = vsel %vm7890, %v7627, %v4430
        %v7952 = vsel %vm7890, %v7629, %v4432
        %v7954 = vsel %vm7890, %v7631, %v4434
        %v7956 = vsel %vm7890, %v7633, %v4436
        %v7958 = vsel %vm7890, %v7635, %v4438
        %v7960 = vsel %vm7890, %v7637, %v4440
        %v7962 = vsel %vm7890, %v7639, %v4442
        %v7964 = vsel %vm7890, %v7641, %v4444
        %v7966 = vsel %vm7890, %v7643, %v4446
        %v7968 = vsel %vm7890, %v7645, %v4448
        %v7970 = vsel %vm7890, %v7647, %v4450
        %v7972 = vsel %vm7890, %v7649, %v4452
        %v7974 = vsel %vm7890, %v7651, %v4454
        %v7976 = vsel %vm7890, %v7653, %v4456
        %v7978 = vsel %vm7890, %v7655, %v4458
        %v7980 = vsel %vm7890, %v7657, %v4460
        %v7982 = vsel %vm7890, %v7659, %v4462
        %v7984 = vsel %vm7890, %v7661, %v4464
        %v7986 = vsel %vm7890, %v7663, %v4466
        %v7988 = vsel %vm7890, %v7665, %v4468
        %v7990 = vsel %vm7890, %v7667, %v4470
        %v7992 = vsel %vm7890, %v7669, %v4472
        %v7994 = vsel %vm7890, %v7671, %v4474
        %v7996 = vsel %vm7890, %v7673, %v4476
        %v7998 = vsel %vm7890, %v7675, %v4478
        %v8000 = vsel %vm7890, %v7677, %v4480
        %v8002 = vsel %vm7890, %v7679, %v4482
        %v8004 = vsel %vm7890, %v7681, %v4484
        %v8006 = vsel %vm7890, %v7683, %v4486
        %v8008 = vsel %vm7890, %v7685, %v4488
        %v8010 = vsel %vm7890, %v7687, %v4490
        %v8012 = vsel %vm7890, %v7689, %v4492
        %v8014 = vsel %vm7890, %v7691, %v4494
        %v8016 = vsel %vm7890, %v7693, %v4496
        %v8018 = vsel %vm7890, %v7695, %v4498
        %v8020 = vsel %vm7890, %v7697, %v4500
        %v8022 = vsel %vm7890, %v7699, %v4502
        %v8024 = vsel %vm7890, %v7701, %v4504
        %v8026 = vsel %vm7890, %v7703, %v4506
        %v8028 = vsel %vm7890, %v7705, %v4508
        %v8030 = vsel %vm7890, %v7707, %v4510
        %v8032 = vsel %vm7890, %v7709, %v4512
        %v8034 = vsel %vm7890, %v7711, %v4514
        %v8036 = vsel %vm7890, %v7713, %v4516
        %v8038 = vsel %vm7890, %v7715, %v4518
        %v8040 = vsel %vm7890, %v7717, %v4520
        %v8042 = vsel %vm7890, %v7719, %v4522
        %v8044 = vsel %vm7890, %v7721, %v4524
        %v8046 = vsel %vm7890, %v7723, %v4526
        %v8048 = vsel %vm7890, %v7725, %v4528
        %v8050 = vsel %vm7890, %v7727, %v4530
        %v8052 = vsel %vm7890, %v7729, %v4532
        %v8054 = vsel %vm7890, %v7731, %v4534
        %v8056 = vsel %vm7890, %v7733, %v4536
        %v8058 = vsel %vm7890, %v7735, %v4538
        %v8060 = vsel %vm7890, %v7737, %v4540
        %v8062 = vsel %vm7890, %v7739, %v4542
        %v8064 = vsel %vm7890, %v7741, %v4544
        %v8066 = vsel %vm7890, %v7743, %v4546
        %v8068 = vsel %vm7890, %v7745, %v4548
        %v8070 = vsel %vm7890, %v7747, %v4550
        %v8072 = vsel %vm7890, %v7749, %v4552
        %v8074 = vsel %vm7890, %v7751, %v4554
        %v8076 = vsel %vm7890, %v7753, %v4556
        %v8078 = vsel %vm7890, %v7755, %v4558
        %v8080 = vsel %vm7890, %v7757, %v4560
        %v8082 = vsel %vm7890, %v7759, %v4562
        %v8084 = vsel %vm7890, %v7761, %v4564
        %v8086 = vsel %vm7890, %v7763, %v4566
        %v8088 = vsel %vm7890, %v7765, %v4568
        %v8090 = vsel %vm7890, %v7767, %v4570
        %v8092 = vsel %vm7890, %v7769, %v4572
        %v8094 = vsel %vm7890, %v7771, %v4574
        %v8096 = vsel %vm7890, %v7773, %v4576
        %v8098 = vsel %vm7890, %v7775, %v4578
        %v8100 = vsel %vm7890, %v7777, %v4580
        %v8102 = vsel %vm7890, %v7779, %v4582
        %v8104 = vsel %vm7890, %v7781, %v4584
        %v8106 = vsel %vm7890, %v7783, %v4586
        %v8108 = vsel %vm7890, %v7785, %v4588
        %v8110 = vsel %vm7890, %v7787, %v4590
        %v8112 = vsel %vm7890, %v7789, %v4592
        %v8114 = vsel %vm7890, %v7791, %v4594
        %v8116 = vsel %vm7890, %v7793, %v4596
        %v8118 = vsel %vm7890, %v7795, %v4598
        %v8120 = vsel %vm7890, %v7797, %v4600
        %v8122 = vsel %vm7890, %v7799, %v4602
        %v8124 = vsel %vm7890, %v7801, %v4604
        %v8126 = vsel %vm7890, %v7803, %v4606
        %v8128 = vsel %vm7890, %v7805, %v4608
        %v8130 = vsel %vm7890, %v7807, %v4610
        %v8132 = vsel %vm7890, %v7809, %v4612
        %v8134 = vsel %vm7890, %v7811, %v4614
        %v8136 = vsel %vm7890, %v7813, %v4616
        %v8138 = vsel %vm7890, %v7815, %v4618
        %v8140 = vsel %vm7890, %v7817, %v4620
        %v8142 = vsel %vm7890, %v7819, %v4622
        %v8144 = vsel %vm7890, %v7821, %v4624
        %v8146 = vsel %vm7890, %v7823, %v4626
        %v8148 = vsel %vm7890, %v7825, %v4628
        %v8150 = vsel %vm7890, %v7827, %v4630
        %v8152 = vsel %vm7890, %v7829, %v4632
        %v8154 = vsel %vm7890, %v7831, %v4634
        %v8156 = vsel %vm7890, %v7833, %v4636
        %v8158 = vsel %vm7890, %v7835, %v4638
        %v8160 = vsel %vm7890, %v7837, %v4640
        %v8162 = vsel %vm7890, %v7839, %v4642
        %v8164 = vsel %vm7890, %v7841, %v4644
        %v8166 = vsel %vm7890, %v7843, %v4646
        %v8168 = vsel %vm7890, %v7845, %v4648
        %v8170 = vsel %vm7890, %v7847, %v4650
        %v8172 = vsel %vm7890, %v7849, %v4652
        %v8174 = vsel %vm7890, %v7851, %v4654
        %v8176 = vsel %vm7890, %v7853, %v4656
        %v8178 = vsel %vm7890, %v7855, %v4658
        %v8180 = vsel %vm7890, %v7857, %v4660
        %v8182 = vsel %vm7890, %v7859, %v4662
        %v8184 = vsel %vm7890, %v7861, %v4664
        %v8186 = vsel %vm7890, %v7863, %v4666
        %v8188 = vsel %vm7890, %v7865, %v4668
        %v8190 = vsel %vm7890, %v7867, %v4670
        %v8192 = vsel %vm7890, %v7869, %v4672
        %v8194 = vsel %vm7890, %v7871, %v4674
        %v8196 = vsel %vm7890, %v7873, %v4676
        %v8198 = vsel %vm7890, %v7875, %v4678
        %v8200 = vsel %vm7890, %v7877, %v4680
        %v8202 = vsel %vm7890, %v7879, %v4682
        %v8204 = vsel %vm7890, %v7881, %v4684
        %v8206 = vsel %vm7890, %v7883, %v4686
        %v8208 = vsel %vm7890, %v7885, %v4688
        %v8210 = vsel %vm7890, %v7887, %v4690
        %v8212 = vsel %vm7890, %v7889, %v4692
        %vm8213 = vcmask 588800
        %v8215 = vsel %vm8213, %v7892, %v5111
        %v8217 = vsel %vm8213, %v7894, %v5113
        %v8219 = vsel %vm8213, %v7896, %v5115
        %v8221 = vsel %vm8213, %v7898, %v5117
        %v8223 = vsel %vm8213, %v7900, %v5119
        %v8225 = vsel %vm8213, %v7902, %v5121
        %v8227 = vsel %vm8213, %v7904, %v5123
        %v8229 = vsel %vm8213, %v7906, %v5125
        %v8231 = vsel %vm8213, %v7908, %v5127
        %v8233 = vsel %vm8213, %v7910, %v5129
        %v8235 = vsel %vm8213, %v7912, %v5131
        %v8237 = vsel %vm8213, %v7914, %v5133
        %v8239 = vsel %vm8213, %v7916, %v5135
        %v8241 = vsel %vm8213, %v7918, %v5137
        %v8243 = vsel %vm8213, %v7920, %v5139
        %v8245 = vsel %vm8213, %v7922, %v5141
        %v8247 = vsel %vm8213, %v7924, %v5143
        %v8249 = vsel %vm8213, %v7926, %v5145
        %v8251 = vsel %vm8213, %v7928, %v5147
        %v8253 = vsel %vm8213, %v7930, %v5149
        %v8255 = vsel %vm8213, %v7932, %v5151
        %v8257 = vsel %vm8213, %v7934, %v5153
        %v8259 = vsel %vm8213, %v7936, %v5155
        %v8261 = vsel %vm8213, %v7938, %v5157
        %v8263 = vsel %vm8213, %v7940, %v5159
        %v8265 = vsel %vm8213, %v7942, %v5161
        %v8267 = vsel %vm8213, %v7944, %v5163
        %v8269 = vsel %vm8213, %v7946, %v5165
        %v8271 = vsel %vm8213, %v7948, %v5167
        %v8273 = vsel %vm8213, %v7950, %v5169
        %v8275 = vsel %vm8213, %v7952, %v5171
        %v8277 = vsel %vm8213, %v7954, %v5173
        %v8279 = vsel %vm8213, %v7956, %v5175
        %v8281 = vsel %vm8213, %v7958, %v5177
        %v8283 = vsel %vm8213, %v7960, %v5179
        %v8285 = vsel %vm8213, %v7962, %v5181
        %v8287 = vsel %vm8213, %v7964, %v5183
        %v8289 = vsel %vm8213, %v7966, %v5185
        %v8291 = vsel %vm8213, %v7968, %v5187
        %v8293 = vsel %vm8213, %v7970, %v5189
        %v8295 = vsel %vm8213, %v7972, %v5191
        %v8297 = vsel %vm8213, %v7974, %v5193
        %v8299 = vsel %vm8213, %v7976, %v5195
        %v8301 = vsel %vm8213, %v7978, %v5197
        %v8303 = vsel %vm8213, %v7980, %v5199
        %v8305 = vsel %vm8213, %v7982, %v5201
        %v8307 = vsel %vm8213, %v7984, %v5203
        %v8309 = vsel %vm8213, %v7986, %v5205
        %v8311 = vsel %vm8213, %v7988, %v5207
        %v8313 = vsel %vm8213, %v7990, %v5209
        %v8315 = vsel %vm8213, %v7992, %v5211
        %v8317 = vsel %vm8213, %v7994, %v5213
        %v8319 = vsel %vm8213, %v7996, %v5215
        %v8321 = vsel %vm8213, %v7998, %v5217
        %v8323 = vsel %vm8213, %v8000, %v5219
        %v8325 = vsel %vm8213, %v8002, %v5221
        %v8327 = vsel %vm8213, %v8004, %v5223
        %v8329 = vsel %vm8213, %v8006, %v5225
        %v8331 = vsel %vm8213, %v8008, %v5227
        %v8333 = vsel %vm8213, %v8010, %v5229
        %v8335 = vsel %vm8213, %v8012, %v5231
        %v8337 = vsel %vm8213, %v8014, %v5233
        %v8339 = vsel %vm8213, %v8016, %v5235
        %v8341 = vsel %vm8213, %v8018, %v5237
        %v8343 = vsel %vm8213, %v8020, %v5239
        %v8345 = vsel %vm8213, %v8022, %v5241
        %v8347 = vsel %vm8213, %v8024, %v5243
        %v8349 = vsel %vm8213, %v8026, %v5245
        %v8351 = vsel %vm8213, %v8028, %v5247
        %v8353 = vsel %vm8213, %v8030, %v5249
        %v8355 = vsel %vm8213, %v8032, %v5251
        %v8357 = vsel %vm8213, %v8034, %v5253
        %v8359 = vsel %vm8213, %v8036, %v5255
        %v8361 = vsel %vm8213, %v8038, %v5257
        %v8363 = vsel %vm8213, %v8040, %v5259
        %v8365 = vsel %vm8213, %v8042, %v5261
        %v8367 = vsel %vm8213, %v8044, %v5263
        %v8369 = vsel %vm8213, %v8046, %v5265
        %v8371 = vsel %vm8213, %v8048, %v5267
        %v8373 = vsel %vm8213, %v8050, %v5269
        %v8375 = vsel %vm8213, %v8052, %v5271
        %v8377 = vsel %vm8213, %v8054, %v5273
        %v8379 = vsel %vm8213, %v8056, %v5275
        %v8381 = vsel %vm8213, %v8058, %v5277
        %v8383 = vsel %vm8213, %v8060, %v5279
        %v8385 = vsel %vm8213, %v8062, %v5281
        %v8387 = vsel %vm8213, %v8064, %v5283
        %v8389 = vsel %vm8213, %v8066, %v5285
        %v8391 = vsel %vm8213, %v8068, %v5287
        %v8393 = vsel %vm8213, %v8070, %v5289
        %v8395 = vsel %vm8213, %v8072, %v5291
        %v8397 = vsel %vm8213, %v8074, %v5293
        %v8399 = vsel %vm8213, %v8076, %v5295
        %v8401 = vsel %vm8213, %v8078, %v5297
        %v8403 = vsel %vm8213, %v8080, %v5299
        %v8405 = vsel %vm8213, %v8082, %v5301
        %v8407 = vsel %vm8213, %v8084, %v5303
        %v8409 = vsel %vm8213, %v8086, %v5305
        %v8411 = vsel %vm8213, %v8088, %v5307
        %v8413 = vsel %vm8213, %v8090, %v5309
        %v8415 = vsel %vm8213, %v8092, %v5311
        %v8417 = vsel %vm8213, %v8094, %v5313
        %v8419 = vsel %vm8213, %v8096, %v5315
        %v8421 = vsel %vm8213, %v8098, %v5317
        %v8423 = vsel %vm8213, %v8100, %v5319
        %v8425 = vsel %vm8213, %v8102, %v5321
        %v8427 = vsel %vm8213, %v8104, %v5323
        %v8429 = vsel %vm8213, %v8106, %v5325
        %v8431 = vsel %vm8213, %v8108, %v5327
        %v8433 = vsel %vm8213, %v8110, %v5329
        %v8435 = vsel %vm8213, %v8112, %v5331
        %v8437 = vsel %vm8213, %v8114, %v5333
        %v8439 = vsel %vm8213, %v8116, %v5335
        %v8441 = vsel %vm8213, %v8118, %v5337
        %v8443 = vsel %vm8213, %v8120, %v5339
        %v8445 = vsel %vm8213, %v8122, %v5341
        %v8447 = vsel %vm8213, %v8124, %v5343
        %v8449 = vsel %vm8213, %v8126, %v5345
        %v8451 = vsel %vm8213, %v8128, %v5347
        %v8453 = vsel %vm8213, %v8130, %v5349
        %v8455 = vsel %vm8213, %v8132, %v5351
        %v8457 = vsel %vm8213, %v8134, %v5353
        %v8459 = vsel %vm8213, %v8136, %v5355
        %v8461 = vsel %vm8213, %v8138, %v5357
        %v8463 = vsel %vm8213, %v8140, %v5359
        %v8465 = vsel %vm8213, %v8142, %v5361
        %v8467 = vsel %vm8213, %v8144, %v5363
        %v8469 = vsel %vm8213, %v8146, %v5365
        %v8471 = vsel %vm8213, %v8148, %v5367
        %v8473 = vsel %vm8213, %v8150, %v5369
        %v8475 = vsel %vm8213, %v8152, %v5371
        %v8477 = vsel %vm8213, %v8154, %v5373
        %v8479 = vsel %vm8213, %v8156, %v5375
        %v8481 = vsel %vm8213, %v8158, %v5377
        %v8483 = vsel %vm8213, %v8160, %v5379
        %v8485 = vsel %vm8213, %v8162, %v5381
        %v8487 = vsel %vm8213, %v8164, %v5383
        %v8489 = vsel %vm8213, %v8166, %v5385
        %v8491 = vsel %vm8213, %v8168, %v5387
        %v8493 = vsel %vm8213, %v8170, %v5389
        %v8495 = vsel %vm8213, %v8172, %v5391
        %v8497 = vsel %vm8213, %v8174, %v5393
        %v8499 = vsel %vm8213, %v8176, %v5395
        %v8501 = vsel %vm8213, %v8178, %v5397
        %v8503 = vsel %vm8213, %v8180, %v5399
        %v8505 = vsel %vm8213, %v8182, %v5401
        %v8507 = vsel %vm8213, %v8184, %v5403
        %v8509 = vsel %vm8213, %v8186, %v5405
        %v8511 = vsel %vm8213, %v8188, %v5407
        %v8513 = vsel %vm8213, %v8190, %v5409
        %v8515 = vsel %vm8213, %v8192, %v5411
        %v8517 = vsel %vm8213, %v8194, %v5413
        %v8519 = vsel %vm8213, %v8196, %v5415
        %v8521 = vsel %vm8213, %v8198, %v5417
        %v8523 = vsel %vm8213, %v8200, %v5419
        %v8525 = vsel %vm8213, %v8202, %v5421
        %v8527 = vsel %vm8213, %v8204, %v5423
        %v8529 = vsel %vm8213, %v8206, %v5425
        %v8531 = vsel %vm8213, %v8208, %v5427
        %v8533 = vsel %vm8213, %v8210, %v5429
        %v8535 = vsel %vm8213, %v8212, %v5431
        %vm8536 = vcmask 687104
        %v8538 = vsel %vm8536, %v8215, %v5765
        %v8540 = vsel %vm8536, %v8217, %v5767
        %v8542 = vsel %vm8536, %v8219, %v5769
        %v8544 = vsel %vm8536, %v8221, %v5771
        %v8546 = vsel %vm8536, %v8223, %v5773
        %v8548 = vsel %vm8536, %v8225, %v5775
        %v8550 = vsel %vm8536, %v8227, %v5777
        %v8552 = vsel %vm8536, %v8229, %v5779
        %v8554 = vsel %vm8536, %v8231, %v5781
        %v8556 = vsel %vm8536, %v8233, %v5783
        %v8558 = vsel %vm8536, %v8235, %v5785
        %v8560 = vsel %vm8536, %v8237, %v5787
        %v8562 = vsel %vm8536, %v8239, %v5789
        %v8564 = vsel %vm8536, %v8241, %v5791
        %v8566 = vsel %vm8536, %v8243, %v5793
        %v8568 = vsel %vm8536, %v8245, %v5795
        %v8570 = vsel %vm8536, %v8247, %v5797
        %v8572 = vsel %vm8536, %v8249, %v5799
        %v8574 = vsel %vm8536, %v8251, %v5801
        %v8576 = vsel %vm8536, %v8253, %v5803
        %v8578 = vsel %vm8536, %v8255, %v5805
        %v8580 = vsel %vm8536, %v8257, %v5807
        %v8582 = vsel %vm8536, %v8259, %v5809
        %v8584 = vsel %vm8536, %v8261, %v5811
        %v8586 = vsel %vm8536, %v8263, %v5813
        %v8588 = vsel %vm8536, %v8265, %v5815
        %v8590 = vsel %vm8536, %v8267, %v5817
        %v8592 = vsel %vm8536, %v8269, %v5819
        %v8594 = vsel %vm8536, %v8271, %v5821
        %v8596 = vsel %vm8536, %v8273, %v5823
        %v8598 = vsel %vm8536, %v8275, %v5825
        %v8600 = vsel %vm8536, %v8277, %v5827
        %v8602 = vsel %vm8536, %v8279, %v5829
        %v8604 = vsel %vm8536, %v8281, %v5831
        %v8606 = vsel %vm8536, %v8283, %v5833
        %v8608 = vsel %vm8536, %v8285, %v5835
        %v8610 = vsel %vm8536, %v8287, %v5837
        %v8612 = vsel %vm8536, %v8289, %v5839
        %v8614 = vsel %vm8536, %v8291, %v5841
        %v8616 = vsel %vm8536, %v8293, %v5843
        %v8618 = vsel %vm8536, %v8295, %v5845
        %v8620 = vsel %vm8536, %v8297, %v5847
        %v8622 = vsel %vm8536, %v8299, %v5849
        %v8624 = vsel %vm8536, %v8301, %v5851
        %v8626 = vsel %vm8536, %v8303, %v5853
        %v8628 = vsel %vm8536, %v8305, %v5855
        %v8630 = vsel %vm8536, %v8307, %v5857
        %v8632 = vsel %vm8536, %v8309, %v5859
        %v8634 = vsel %vm8536, %v8311, %v5861
        %v8636 = vsel %vm8536, %v8313, %v5863
        %v8638 = vsel %vm8536, %v8315, %v5865
        %v8640 = vsel %vm8536, %v8317, %v5867
        %v8642 = vsel %vm8536, %v8319, %v5869
        %v8644 = vsel %vm8536, %v8321, %v5871
        %v8646 = vsel %vm8536, %v8323, %v5873
        %v8648 = vsel %vm8536, %v8325, %v5875
        %v8650 = vsel %vm8536, %v8327, %v5877
        %v8652 = vsel %vm8536, %v8329, %v5879
        %v8654 = vsel %vm8536, %v8331, %v5881
        %v8656 = vsel %vm8536, %v8333, %v5883
        %v8658 = vsel %vm8536, %v8335, %v5885
        %v8660 = vsel %vm8536, %v8337, %v5887
        %v8662 = vsel %vm8536, %v8339, %v5889
        %v8664 = vsel %vm8536, %v8341, %v5891
        %v8666 = vsel %vm8536, %v8343, %v5893
        %v8668 = vsel %vm8536, %v8345, %v5895
        %v8670 = vsel %vm8536, %v8347, %v5897
        %v8672 = vsel %vm8536, %v8349, %v5899
        %v8674 = vsel %vm8536, %v8351, %v5901
        %v8676 = vsel %vm8536, %v8353, %v5903
        %v8678 = vsel %vm8536, %v8355, %v5905
        %v8680 = vsel %vm8536, %v8357, %v5907
        %v8682 = vsel %vm8536, %v8359, %v5909
        %v8684 = vsel %vm8536, %v8361, %v5911
        %v8686 = vsel %vm8536, %v8363, %v5913
        %v8688 = vsel %vm8536, %v8365, %v5915
        %v8690 = vsel %vm8536, %v8367, %v5917
        %v8692 = vsel %vm8536, %v8369, %v5919
        %v8694 = vsel %vm8536, %v8371, %v5921
        %v8696 = vsel %vm8536, %v8373, %v5923
        %v8698 = vsel %vm8536, %v8375, %v5925
        %v8700 = vsel %vm8536, %v8377, %v5927
        %v8702 = vsel %vm8536, %v8379, %v5929
        %v8704 = vsel %vm8536, %v8381, %v5931
        %v8706 = vsel %vm8536, %v8383, %v5933
        %v8708 = vsel %vm8536, %v8385, %v5935
        %v8710 = vsel %vm8536, %v8387, %v5937
        %v8712 = vsel %vm8536, %v8389, %v5939
        %v8714 = vsel %vm8536, %v8391, %v5941
        %v8716 = vsel %vm8536, %v8393, %v5943
        %v8718 = vsel %vm8536, %v8395, %v5945
        %v8720 = vsel %vm8536, %v8397, %v5947
        %v8722 = vsel %vm8536, %v8399, %v5949
        %v8724 = vsel %vm8536, %v8401, %v5951
        %v8726 = vsel %vm8536, %v8403, %v5953
        %v8728 = vsel %vm8536, %v8405, %v5955
        %v8730 = vsel %vm8536, %v8407, %v5957
        %v8732 = vsel %vm8536, %v8409, %v5959
        %v8734 = vsel %vm8536, %v8411, %v5961
        %v8736 = vsel %vm8536, %v8413, %v5963
        %v8738 = vsel %vm8536, %v8415, %v5965
        %v8740 = vsel %vm8536, %v8417, %v5967
        %v8742 = vsel %vm8536, %v8419, %v5969
        %v8744 = vsel %vm8536, %v8421, %v5971
        %v8746 = vsel %vm8536, %v8423, %v5973
        %v8748 = vsel %vm8536, %v8425, %v5975
        %v8750 = vsel %vm8536, %v8427, %v5977
        %v8752 = vsel %vm8536, %v8429, %v5979
        %v8754 = vsel %vm8536, %v8431, %v5981
        %v8756 = vsel %vm8536, %v8433, %v5983
        %v8758 = vsel %vm8536, %v8435, %v5985
        %v8760 = vsel %vm8536, %v8437, %v5987
        %v8762 = vsel %vm8536, %v8439, %v5989
        %v8764 = vsel %vm8536, %v8441, %v5991
        %v8766 = vsel %vm8536, %v8443, %v5993
        %v8768 = vsel %vm8536, %v8445, %v5995
        %v8770 = vsel %vm8536, %v8447, %v5997
        %v8772 = vsel %vm8536, %v8449, %v5999
        %v8774 = vsel %vm8536, %v8451, %v6001
        %v8776 = vsel %vm8536, %v8453, %v6003
        %v8778 = vsel %vm8536, %v8455, %v6005
        %v8780 = vsel %vm8536, %v8457, %v6007
        %v8782 = vsel %vm8536, %v8459, %v6009
        %v8784 = vsel %vm8536, %v8461, %v6011
        %v8786 = vsel %vm8536, %v8463, %v6013
        %v8788 = vsel %vm8536, %v8465, %v6015
        %v8790 = vsel %vm8536, %v8467, %v6017
        %v8792 = vsel %vm8536, %v8469, %v6019
        %v8794 = vsel %vm8536, %v8471, %v6021
        %v8796 = vsel %vm8536, %v8473, %v6023
        %v8798 = vsel %vm8536, %v8475, %v6025
        %v8800 = vsel %vm8536, %v8477, %v6027
        %v8802 = vsel %vm8536, %v8479, %v6029
        %v8804 = vsel %vm8536, %v8481, %v6031
        %v8806 = vsel %vm8536, %v8483, %v6033
        %v8808 = vsel %vm8536, %v8485, %v6035
        %v8810 = vsel %vm8536, %v8487, %v6037
        %v8812 = vsel %vm8536, %v8489, %v6039
        %v8814 = vsel %vm8536, %v8491, %v6041
        %v8816 = vsel %vm8536, %v8493, %v6043
        %v8818 = vsel %vm8536, %v8495, %v6045
        %v8820 = vsel %vm8536, %v8497, %v6047
        %v8822 = vsel %vm8536, %v8499, %v6049
        %v8824 = vsel %vm8536, %v8501, %v6051
        %v8826 = vsel %vm8536, %v8503, %v6053
        %v8828 = vsel %vm8536, %v8505, %v6055
        %v8830 = vsel %vm8536, %v8507, %v6057
        %v8832 = vsel %vm8536, %v8509, %v6059
        %v8834 = vsel %vm8536, %v8511, %v6061
        %v8836 = vsel %vm8536, %v8513, %v6063
        %v8838 = vsel %vm8536, %v8515, %v6065
        %v8840 = vsel %vm8536, %v8517, %v6067
        %v8842 = vsel %vm8536, %v8519, %v6069
        %v8844 = vsel %vm8536, %v8521, %v6071
        %v8846 = vsel %vm8536, %v8523, %v6073
        %v8848 = vsel %vm8536, %v8525, %v6075
        %v8850 = vsel %vm8536, %v8527, %v6077
        %v8852 = vsel %vm8536, %v8529, %v6079
        %v8854 = vsel %vm8536, %v8531, %v6081
        %v8856 = vsel %vm8536, %v8533, %v6083
        %v8858 = vsel %vm8536, %v8535, %v6085
        %vm8859 = vcmask 785408
        %v8861 = vsel %vm8859, %v8538, %v6116
        %v8863 = vsel %vm8859, %v8540, %v6118
        %v8865 = vsel %vm8859, %v8542, %v6120
        %v8867 = vsel %vm8859, %v8544, %v6122
        %v8869 = vsel %vm8859, %v8546, %v6124
        %v8871 = vsel %vm8859, %v8548, %v6126
        %v8873 = vsel %vm8859, %v8550, %v6128
        %v8875 = vsel %vm8859, %v8552, %v6130
        %v8877 = vsel %vm8859, %v8554, %v6132
        %v8879 = vsel %vm8859, %v8556, %v6134
        %v8881 = vsel %vm8859, %v8558, %v6136
        %v8883 = vsel %vm8859, %v8560, %v6138
        %v8885 = vsel %vm8859, %v8562, %v6140
        %v8887 = vsel %vm8859, %v8564, %v6142
        %v8889 = vsel %vm8859, %v8566, %v6144
        %v8891 = vsel %vm8859, %v8568, %v6146
        %v8893 = vsel %vm8859, %v8570, %v6148
        %v8895 = vsel %vm8859, %v8572, %v6150
        %v8897 = vsel %vm8859, %v8574, %v6152
        %v8899 = vsel %vm8859, %v8576, %v6154
        %v8901 = vsel %vm8859, %v8578, %v6156
        %v8903 = vsel %vm8859, %v8580, %v6158
        %v8905 = vsel %vm8859, %v8582, %v6160
        %v8907 = vsel %vm8859, %v8584, %v6162
        %v8909 = vsel %vm8859, %v8586, %v6164
        %v8911 = vsel %vm8859, %v8588, %v6166
        %v8913 = vsel %vm8859, %v8590, %v6168
        %v8915 = vsel %vm8859, %v8592, %v6170
        %v8917 = vsel %vm8859, %v8594, %v6172
        %v8919 = vsel %vm8859, %v8596, %v6174
        %v8921 = vsel %vm8859, %v8598, %v6176
        %v8923 = vsel %vm8859, %v8600, %v6178
        %v8925 = vsel %vm8859, %v8602, %v6180
        %v8927 = vsel %vm8859, %v8604, %v6182
        %v8929 = vsel %vm8859, %v8606, %v6184
        %v8931 = vsel %vm8859, %v8608, %v6186
        %v8933 = vsel %vm8859, %v8610, %v6188
        %v8935 = vsel %vm8859, %v8612, %v6190
        %v8937 = vsel %vm8859, %v8614, %v6192
        %v8939 = vsel %vm8859, %v8616, %v6194
        %v8941 = vsel %vm8859, %v8618, %v6196
        %v8943 = vsel %vm8859, %v8620, %v6198
        %v8945 = vsel %vm8859, %v8622, %v6200
        %v8947 = vsel %vm8859, %v8624, %v6202
        %v8949 = vsel %vm8859, %v8626, %v6204
        %v8951 = vsel %vm8859, %v8628, %v6206
        %v8953 = vsel %vm8859, %v8630, %v6208
        %v8955 = vsel %vm8859, %v8632, %v6210
        %v8957 = vsel %vm8859, %v8634, %v6212
        %v8959 = vsel %vm8859, %v8636, %v6214
        %v8961 = vsel %vm8859, %v8638, %v6216
        %v8963 = vsel %vm8859, %v8640, %v6218
        %v8965 = vsel %vm8859, %v8642, %v6220
        %v8967 = vsel %vm8859, %v8644, %v6222
        %v8969 = vsel %vm8859, %v8646, %v6224
        %v8971 = vsel %vm8859, %v8648, %v6226
        %v8973 = vsel %vm8859, %v8650, %v6228
        %v8975 = vsel %vm8859, %v8652, %v6230
        %v8977 = vsel %vm8859, %v8654, %v6232
        %v8979 = vsel %vm8859, %v8656, %v6234
        %v8981 = vsel %vm8859, %v8658, %v6236
        %v8983 = vsel %vm8859, %v8660, %v6238
        %v8985 = vsel %vm8859, %v8662, %v6240
        %v8987 = vsel %vm8859, %v8664, %v6242
        %v8989 = vsel %vm8859, %v8666, %v6244
        %v8991 = vsel %vm8859, %v8668, %v6246
        %v8993 = vsel %vm8859, %v8670, %v6248
        %v8995 = vsel %vm8859, %v8672, %v6250
        %v8997 = vsel %vm8859, %v8674, %v6252
        %v8999 = vsel %vm8859, %v8676, %v6254
        %v9001 = vsel %vm8859, %v8678, %v6256
        %v9003 = vsel %vm8859, %v8680, %v6258
        %v9005 = vsel %vm8859, %v8682, %v6260
        %v9007 = vsel %vm8859, %v8684, %v6262
        %v9009 = vsel %vm8859, %v8686, %v6264
        %v9011 = vsel %vm8859, %v8688, %v6266
        %v9013 = vsel %vm8859, %v8690, %v6268
        %v9015 = vsel %vm8859, %v8692, %v6270
        %v9017 = vsel %vm8859, %v8694, %v6272
        %v9019 = vsel %vm8859, %v8696, %v6274
        %v9021 = vsel %vm8859, %v8698, %v6276
        %v9023 = vsel %vm8859, %v8700, %v6278
        %v9025 = vsel %vm8859, %v8702, %v6280
        %v9027 = vsel %vm8859, %v8704, %v6282
        %v9029 = vsel %vm8859, %v8706, %v6284
        %v9031 = vsel %vm8859, %v8708, %v6286
        %v9033 = vsel %vm8859, %v8710, %v6288
        %v9035 = vsel %vm8859, %v8712, %v6290
        %v9037 = vsel %vm8859, %v8714, %v6292
        %v9039 = vsel %vm8859, %v8716, %v6294
        %v9041 = vsel %vm8859, %v8718, %v6296
        %v9043 = vsel %vm8859, %v8720, %v6298
        %v9045 = vsel %vm8859, %v8722, %v6300
        %v9047 = vsel %vm8859, %v8724, %v6302
        %v9049 = vsel %vm8859, %v8726, %v6304
        %v9051 = vsel %vm8859, %v8728, %v6306
        %v9053 = vsel %vm8859, %v8730, %v6308
        %v9055 = vsel %vm8859, %v8732, %v6310
        %v9057 = vsel %vm8859, %v8734, %v6312
        %v9059 = vsel %vm8859, %v8736, %v6314
        %v9061 = vsel %vm8859, %v8738, %v6316
        %v9063 = vsel %vm8859, %v8740, %v6318
        %v9065 = vsel %vm8859, %v8742, %v6320
        %v9067 = vsel %vm8859, %v8744, %v6322
        %v9069 = vsel %vm8859, %v8746, %v6324
        %v9071 = vsel %vm8859, %v8748, %v6326
        %v9073 = vsel %vm8859, %v8750, %v6328
        %v9075 = vsel %vm8859, %v8752, %v6330
        %v9077 = vsel %vm8859, %v8754, %v6332
        %v9079 = vsel %vm8859, %v8756, %v6334
        %v9081 = vsel %vm8859, %v8758, %v6336
        %v9083 = vsel %vm8859, %v8760, %v6338
        %v9085 = vsel %vm8859, %v8762, %v6340
        %v9087 = vsel %vm8859, %v8764, %v6342
        %v9089 = vsel %vm8859, %v8766, %v6344
        %v9091 = vsel %vm8859, %v8768, %v6346
        %v9093 = vsel %vm8859, %v8770, %v6348
        %v9095 = vsel %vm8859, %v8772, %v6350
        %v9097 = vsel %vm8859, %v8774, %v6352
        %v9099 = vsel %vm8859, %v8776, %v6354
        %v9101 = vsel %vm8859, %v8778, %v6356
        %v9103 = vsel %vm8859, %v8780, %v6358
        %v9105 = vsel %vm8859, %v8782, %v6360
        %v9107 = vsel %vm8859, %v8784, %v6362
        %v9109 = vsel %vm8859, %v8786, %v6364
        %v9111 = vsel %vm8859, %v8788, %v6366
        %v9113 = vsel %vm8859, %v8790, %v6368
        %v9115 = vsel %vm8859, %v8792, %v6370
        %v9117 = vsel %vm8859, %v8794, %v6372
        %v9119 = vsel %vm8859, %v8796, %v6374
        %v9121 = vsel %vm8859, %v8798, %v6376
        %v9123 = vsel %vm8859, %v8800, %v6378
        %v9125 = vsel %vm8859, %v8802, %v6380
        %v9127 = vsel %vm8859, %v8804, %v6382
        %v9129 = vsel %vm8859, %v8806, %v6384
        %v9131 = vsel %vm8859, %v8808, %v6386
        %v9133 = vsel %vm8859, %v8810, %v6388
        %v9135 = vsel %vm8859, %v8812, %v6390
        %v9137 = vsel %vm8859, %v8814, %v6392
        %v9139 = vsel %vm8859, %v8816, %v6394
        %v9141 = vsel %vm8859, %v8818, %v6396
        %v9143 = vsel %vm8859, %v8820, %v6398
        %v9145 = vsel %vm8859, %v8822, %v6400
        %v9147 = vsel %vm8859, %v8824, %v6402
        %v9149 = vsel %vm8859, %v8826, %v6404
        %v9151 = vsel %vm8859, %v8828, %v6406
        %v9153 = vsel %vm8859, %v8830, %v6408
        %v9155 = vsel %vm8859, %v8832, %v6410
        %v9157 = vsel %vm8859, %v8834, %v6412
        %v9159 = vsel %vm8859, %v8836, %v6414
        %v9161 = vsel %vm8859, %v8838, %v6416
        %v9163 = vsel %vm8859, %v8840, %v6418
        %v9165 = vsel %vm8859, %v8842, %v6420
        %v9167 = vsel %vm8859, %v8844, %v6422
        %v9169 = vsel %vm8859, %v8846, %v6424
        %v9171 = vsel %vm8859, %v8848, %v6426
        %v9173 = vsel %vm8859, %v8850, %v6428
        %v9175 = vsel %vm8859, %v8852, %v6430
        %v9177 = vsel %vm8859, %v8854, %v6432
        %v9179 = vsel %vm8859, %v8856, %v6434
        %v9181 = vsel %vm8859, %v8858, %v6436
        %v9182 = vld [vmem:[#allocation5] sm:$0xf]
        %v9183 = vld [vmem:[#allocation5 + $0x4] sm:$0x1]
        %v9186 = vunpack.c.l.b16 %v9182
        %v9187 = vunpack.c.l.b16 %v9183
        %v9188 = vpack.c.b16 %v9187, %v9186
        %vm9189 = vcmask 883712
        %v9191 = vsel %vm9189, %v9188, 0
        %v9193 = vsel %vm9189, %v8861, 0
        %v9195 = vsel %vm9189, %v8863, 0
        %v9197 = vsel %vm9189, %v8865, 0
        %v9199 = vsel %vm9189, %v8867, 0
        %v9201 = vsel %vm9189, %v8869, 0
        %v9203 = vsel %vm9189, %v8871, 0
        %v9205 = vsel %vm9189, %v8873, 0
        %v9207 = vsel %vm9189, %v8875, 0
        %v9209 = vsel %vm9189, %v8877, 0
        %v9211 = vsel %vm9189, %v8879, 0
        %v9213 = vsel %vm9189, %v8881, 0
        %v9215 = vsel %vm9189, %v8883, 0
        %v9217 = vsel %vm9189, %v8885, 0
        %v9219 = vsel %vm9189, %v8887, 0
        %v9221 = vsel %vm9189, %v8889, 0
        %v9223 = vsel %vm9189, %v8891, 0
        %v9225 = vsel %vm9189, %v8893, 0
        %v9227 = vsel %vm9189, %v8895, 0
        %v9229 = vsel %vm9189, %v8897, 0
        %v9231 = vsel %vm9189, %v8899, 0
        %v9233 = vsel %vm9189, %v8901, 0
        %v9235 = vsel %vm9189, %v8903, 0
        %v9237 = vsel %vm9189, %v8905, 0
        %v9239 = vsel %vm9189, %v8907, 0
        %v9241 = vsel %vm9189, %v8909, 0
        %v9243 = vsel %vm9189, %v8911, 0
        %v9245 = vsel %vm9189, %v8913, 0
        %v9247 = vsel %vm9189, %v8915, 0
        %v9249 = vsel %vm9189, %v8917, 0
        %v9251 = vsel %vm9189, %v8919, 0
        %v9253 = vsel %vm9189, %v8921, 0
        %v9255 = vsel %vm9189, %v8923, 0
        %v9257 = vsel %vm9189, %v8925, 0
        %v9259 = vsel %vm9189, %v8927, 0
        %v9261 = vsel %vm9189, %v8929, 0
        %v9263 = vsel %vm9189, %v8931, 0
        %v9265 = vsel %vm9189, %v8933, 0
        %v9267 = vsel %vm9189, %v8935, 0
        %v9269 = vsel %vm9189, %v8937, 0
        %v9271 = vsel %vm9189, %v8939, 0
        %v9273 = vsel %vm9189, %v8941, 0
        %v9275 = vsel %vm9189, %v8943, 0
        %v9277 = vsel %vm9189, %v8945, 0
        %v9279 = vsel %vm9189, %v8947, 0
        %v9281 = vsel %vm9189, %v8949, 0
        %v9283 = vsel %vm9189, %v8951, 0
        %v9285 = vsel %vm9189, %v8953, 0
        %v9287 = vsel %vm9189, %v8955, 0
        %v9289 = vsel %vm9189, %v8957, 0
        %v9291 = vsel %vm9189, %v8959, 0
        %v9293 = vsel %vm9189, %v8961, 0
        %v9295 = vsel %vm9189, %v8963, 0
        %v9297 = vsel %vm9189, %v8965, 0
        %v9299 = vsel %vm9189, %v8967, 0
        %v9301 = vsel %vm9189, %v8969, 0
        %v9303 = vsel %vm9189, %v8971, 0
        %v9305 = vsel %vm9189, %v8973, 0
        %v9307 = vsel %vm9189, %v8975, 0
        %v9309 = vsel %vm9189, %v8977, 0
        %v9311 = vsel %vm9189, %v8979, 0
        %v9313 = vsel %vm9189, %v8981, 0
        %v9315 = vsel %vm9189, %v8983, 0
        %v9317 = vsel %vm9189, %v8985, 0
        %v9319 = vsel %vm9189, %v8987, 0
        %v9321 = vsel %vm9189, %v8989, 0
        %v9323 = vsel %vm9189, %v8991, 0
        %v9325 = vsel %vm9189, %v8993, 0
        %v9327 = vsel %vm9189, %v8995, 0
        %v9329 = vsel %vm9189, %v8997, 0
        %v9331 = vsel %vm9189, %v8999, 0
        %v9333 = vsel %vm9189, %v9001, 0
        %v9335 = vsel %vm9189, %v9003, 0
        %v9337 = vsel %vm9189, %v9005, 0
        %v9339 = vsel %vm9189, %v9007, 0
        %v9341 = vsel %vm9189, %v9009, 0
        %v9343 = vsel %vm9189, %v9011, 0
        %v9345 = vsel %vm9189, %v9013, 0
        %v9347 = vsel %vm9189, %v9015, 0
        %v9349 = vsel %vm9189, %v9017, 0
        %v9351 = vsel %vm9189, %v9019, 0
        %v9353 = vsel %vm9189, %v9021, 0
        %v9355 = vsel %vm9189, %v9023, 0
        %v9357 = vsel %vm9189, %v9025, 0
        %v9359 = vsel %vm9189, %v9027, 0
        %v9361 = vsel %vm9189, %v9029, 0
        %v9363 = vsel %vm9189, %v9031, 0
        %v9365 = vsel %vm9189, %v9033, 0
        %v9367 = vsel %vm9189, %v9035, 0
        %v9369 = vsel %vm9189, %v9037, 0
        %v9371 = vsel %vm9189, %v9039, 0
        %v9373 = vsel %vm9189, %v9041, 0
        %v9375 = vsel %vm9189, %v9043, 0
        %v9377 = vsel %vm9189, %v9045, 0
        %v9379 = vsel %vm9189, %v9047, 0
        %v9381 = vsel %vm9189, %v9049, 0
        %v9383 = vsel %vm9189, %v9051, 0
        %v9385 = vsel %vm9189, %v9053, 0
        %v9387 = vsel %vm9189, %v9055, 0
        %v9389 = vsel %vm9189, %v9057, 0
        %v9391 = vsel %vm9189, %v9059, 0
        %v9393 = vsel %vm9189, %v9061, 0
        %v9395 = vsel %vm9189, %v9063, 0
        %v9397 = vsel %vm9189, %v9065, 0
        %v9399 = vsel %vm9189, %v9067, 0
        %v9401 = vsel %vm9189, %v9069, 0
        %v9403 = vsel %vm9189, %v9071, 0
        %v9405 = vsel %vm9189, %v9073, 0
        %v9407 = vsel %vm9189, %v9075, 0
        %v9409 = vsel %vm9189, %v9077, 0
        %v9411 = vsel %vm9189, %v9079, 0
        %v9413 = vsel %vm9189, %v9081, 0
        %v9415 = vsel %vm9189, %v9083, 0
        %v9417 = vsel %vm9189, %v9085, 0
        %v9419 = vsel %vm9189, %v9087, 0
        %v9421 = vsel %vm9189, %v9089, 0
        %v9423 = vsel %vm9189, %v9091, 0
        %v9425 = vsel %vm9189, %v9093, 0
        %v9427 = vsel %vm9189, %v9095, 0
        %v9429 = vsel %vm9189, %v9097, 0
        %v9431 = vsel %vm9189, %v9099, 0
        %v9433 = vsel %vm9189, %v9101, 0
        %v9435 = vsel %vm9189, %v9103, 0
        %v9437 = vsel %vm9189, %v9105, 0
        %v9439 = vsel %vm9189, %v9107, 0
        %v9441 = vsel %vm9189, %v9109, 0
        %v9443 = vsel %vm9189, %v9111, 0
        %v9445 = vsel %vm9189, %v9113, 0
        %v9447 = vsel %vm9189, %v9115, 0
        %v9449 = vsel %vm9189, %v9117, 0
        %v9451 = vsel %vm9189, %v9119, 0
        %v9453 = vsel %vm9189, %v9121, 0
        %v9455 = vsel %vm9189, %v9123, 0
        %v9457 = vsel %vm9189, %v9125, 0
        %v9459 = vsel %vm9189, %v9127, 0
        %v9461 = vsel %vm9189, %v9129, 0
        %v9463 = vsel %vm9189, %v9131, 0
        %v9465 = vsel %vm9189, %v9133, 0
        %v9467 = vsel %vm9189, %v9135, 0
        %v9469 = vsel %vm9189, %v9137, 0
        %v9471 = vsel %vm9189, %v9139, 0
        %v9473 = vsel %vm9189, %v9141, 0
        %v9475 = vsel %vm9189, %v9143, 0
        %v9477 = vsel %vm9189, %v9145, 0
        %v9479 = vsel %vm9189, %v9147, 0
        %v9481 = vsel %vm9189, %v9149, 0
        %v9483 = vsel %vm9189, %v9151, 0
        %v9485 = vsel %vm9189, %v9153, 0
        %v9487 = vsel %vm9189, %v9155, 0
        %v9489 = vsel %vm9189, %v9157, 0
        %v9491 = vsel %vm9189, %v9159, 0
        %v9493 = vsel %vm9189, %v9161, 0
        %v9495 = vsel %vm9189, %v9163, 0
        %v9497 = vsel %vm9189, %v9165, 0
        %v9499 = vsel %vm9189, %v9167, 0
        %v9501 = vsel %vm9189, %v9169, 0
        %v9503 = vsel %vm9189, %v9171, 0
        %v9505 = vsel %vm9189, %v9173, 0
        %v9507 = vsel %vm9189, %v9175, 0
        %v9509 = vsel %vm9189, %v9177, 0
        %v9511 = vsel %vm9189, %v9179, 0
        %v9513 = vsel %vm9189, %v9181, 0
        %9515 = vmatprep.subr.bf16.mxu0 0
        %9516 = vmatpush1.bf16.xpose.msra.mxu0 %v9193
        %9517 = vmatprep.subr.bf16.mxu0 0
        %9518 = vmatpush1.bf16.xpose.msra.mxu0 %v9195
        %9519 = vmatprep.subr.bf16.mxu0 0
        %9520 = vmatpush1.bf16.xpose.msra.mxu0 %v9197
        %9521 = vmatprep.subr.bf16.mxu0 0
        %9522 = vmatpush1.bf16.xpose.msra.mxu0 %v9199
        %9523 = vmatprep.subr.bf16.mxu0 0
        %9524 = vmatpush1.bf16.xpose.msra.mxu0 %v9201
        %9525 = vmatprep.subr.bf16.mxu0 0
        %9526 = vmatpush1.bf16.xpose.msra.mxu0 %v9203
        %9527 = vmatprep.subr.bf16.mxu0 0
        %9528 = vmatpush1.bf16.xpose.msra.mxu0 %v9205
        %9529 = vmatprep.subr.bf16.mxu0 0
        %9530 = vmatpush1.bf16.xpose.msra.mxu0 %v9207
        %9531 = vmatprep.subr.bf16.mxu0 0
        %9532 = vmatpush1.bf16.xpose.msra.mxu0 %v9209
        %9533 = vmatprep.subr.bf16.mxu0 0
        %9534 = vmatpush1.bf16.xpose.msra.mxu0 %v9211
        %9535 = vmatprep.subr.bf16.mxu0 0
        %9536 = vmatpush1.bf16.xpose.msra.mxu0 %v9213
        %9537 = vmatprep.subr.bf16.mxu0 0
        %9538 = vmatpush1.bf16.xpose.msra.mxu0 %v9215
        %9539 = vmatprep.subr.bf16.mxu0 0
        %9540 = vmatpush1.bf16.xpose.msra.mxu0 %v9217
        %9541 = vmatprep.subr.bf16.mxu0 0
        %9542 = vmatpush1.bf16.xpose.msra.mxu0 %v9219
        %9543 = vmatprep.subr.bf16.mxu0 0
        %9544 = vmatpush1.bf16.xpose.msra.mxu0 %v9221
        %9545 = vmatprep.subr.bf16.mxu0 0
        %9546 = vmatpush1.bf16.xpose.msra.mxu0 %v9223
        %9547 = vmatprep.mubr.bf16.mxu0 0
        %9548 = vmatmul.mubr.bf16.gmra.mrb[0].mxu0 %v9191
        %v9549 = vpop.f32.mrb[0].mxu0
        %v9550 = vadd.f32 0.0, %v9549
        %v9551 = vpop.f32.mrb[0].mxu0
        %v9552 = vadd.f32 0.0, %v9551
        %v9553 = vpop.f32.mrb[0].mxu0
        %v9554 = vadd.f32 0.0, %v9553
        %v9555 = vpop.f32.mrb[0].mxu0
        %v9556 = vadd.f32 0.0, %v9555
        %9557 = vdwg.mxu0
        %9558 = vmatprep.subr.bf16.mxu0 0
        %9559 = vmatpush1.bf16.xpose.msra.mxu0 %v9225
        %9560 = vmatprep.subr.bf16.mxu0 0
        %9561 = vmatpush1.bf16.xpose.msra.mxu0 %v9227
        %9562 = vmatprep.subr.bf16.mxu0 0
        %9563 = vmatpush1.bf16.xpose.msra.mxu0 %v9229
        %9564 = vmatprep.subr.bf16.mxu0 0
        %9565 = vmatpush1.bf16.xpose.msra.mxu0 %v9231
        %9566 = vmatprep.subr.bf16.mxu0 0
        %9567 = vmatpush1.bf16.xpose.msra.mxu0 %v9233
        %9568 = vmatprep.subr.bf16.mxu0 0
        %9569 = vmatpush1.bf16.xpose.msra.mxu0 %v9235
        %9570 = vmatprep.subr.bf16.mxu0 0
        %9571 = vmatpush1.bf16.xpose.msra.mxu0 %v9237
        %9572 = vmatprep.subr.bf16.mxu0 0
        %9573 = vmatpush1.bf16.xpose.msra.mxu0 %v9239
        %9574 = vmatprep.subr.bf16.mxu0 0
        %9575 = vmatpush1.bf16.xpose.msra.mxu0 %v9241
        %9576 = vmatprep.subr.bf16.mxu0 0
        %9577 = vmatpush1.bf16.xpose.msra.mxu0 %v9243
        %9578 = vmatprep.subr.bf16.mxu0 0
        %9579 = vmatpush1.bf16.xpose.msra.mxu0 %v9245
        %9580 = vmatprep.subr.bf16.mxu0 0
        %9581 = vmatpush1.bf16.xpose.msra.mxu0 %v9247
        %9582 = vmatprep.subr.bf16.mxu0 0
        %9583 = vmatpush1.bf16.xpose.msra.mxu0 %v9249
        %9584 = vmatprep.subr.bf16.mxu0 0
        %9585 = vmatpush1.bf16.xpose.msra.mxu0 %v9251
        %9586 = vmatprep.subr.bf16.mxu0 0
        %9587 = vmatpush1.bf16.xpose.msra.mxu0 %v9253
        %9588 = vmatprep.subr.bf16.mxu0 0
        %9589 = vmatpush1.bf16.xpose.msra.mxu0 %v9255
        %9590 = vmatprep.mubr.bf16.mxu0 0
        %9591 = vmatmul.mubr.bf16.gmra.mrb[0].mxu0 %v9191
        %v9592 = vpop.f32.mrb[0].mxu0
        %v9593 = vadd.f32 0.0, %v9592
        %v9594 = vpop.f32.mrb[0].mxu0
        %v9595 = vadd.f32 0.0, %v9594
        %v9596 = vpop.f32.mrb[0].mxu0
        %v9597 = vadd.f32 0.0, %v9596
        %v9598 = vpop.f32.mrb[0].mxu0
        %v9599 = vadd.f32 0.0, %v9598
        %9600 = vdwg.mxu0
        %9601 = vmatprep.subr.bf16.mxu0 0
        %9602 = vmatpush1.bf16.xpose.msra.mxu0 %v9257
        %9603 = vmatprep.subr.bf16.mxu0 0
        %9604 = vmatpush1.bf16.xpose.msra.mxu0 %v9259
        %9605 = vmatprep.subr.bf16.mxu0 0
        %9606 = vmatpush1.bf16.xpose.msra.mxu0 %v9261
        %9607 = vmatprep.subr.bf16.mxu0 0
        %9608 = vmatpush1.bf16.xpose.msra.mxu0 %v9263
        %9609 = vmatprep.subr.bf16.mxu0 0
        %9610 = vmatpush1.bf16.xpose.msra.mxu0 %v9265
        %9611 = vmatprep.subr.bf16.mxu0 0
        %9612 = vmatpush1.bf16.xpose.msra.mxu0 %v9267
        %9613 = vmatprep.subr.bf16.mxu0 0
        %9614 = vmatpush1.bf16.xpose.msra.mxu0 %v9269
        %9615 = vmatprep.subr.bf16.mxu0 0
        %9616 = vmatpush1.bf16.xpose.msra.mxu0 %v9271
        %9617 = vmatprep.subr.bf16.mxu0 0
        %9618 = vmatpush1.bf16.xpose.msra.mxu0 %v9273
        %9619 = vmatprep.subr.bf16.mxu0 0
        %9620 = vmatpush1.bf16.xpose.msra.mxu0 %v9275
        %9621 = vmatprep.subr.bf16.mxu0 0
        %9622 = vmatpush1.bf16.xpose.msra.mxu0 %v9277
        %9623 = vmatprep.subr.bf16.mxu0 0
        %9624 = vmatpush1.bf16.xpose.msra.mxu0 %v9279
        %9625 = vmatprep.subr.bf16.mxu0 0
        %9626 = vmatpush1.bf16.xpose.msra.mxu0 %v9281
        %9627 = vmatprep.subr.bf16.mxu0 0
        %9628 = vmatpush1.bf16.xpose.msra.mxu0 %v9283
        %9629 = vmatprep.subr.bf16.mxu0 0
        %9630 = vmatpush1.bf16.xpose.msra.mxu0 %v9285
        %9631 = vmatprep.subr.bf16.mxu0 0
        %9632 = vmatpush1.bf16.xpose.msra.mxu0 %v9287
        %9633 = vmatprep.mubr.bf16.mxu0 0
        %9634 = vmatmul.mubr.bf16.gmra.mrb[0].mxu0 %v9191
        %v9635 = vpop.f32.mrb[0].mxu0
        %v9636 = vadd.f32 0.0, %v9635
        %v9637 = vpop.f32.mrb[0].mxu0
        %v9638 = vadd.f32 0.0, %v9637
        %v9639 = vpop.f32.mrb[0].mxu0
        %v9640 = vadd.f32 0.0, %v9639
        %v9641 = vpop.f32.mrb[0].mxu0
        %v9642 = vadd.f32 0.0, %v9641
        %9643 = vdwg.mxu0
        %9644 = vmatprep.subr.bf16.mxu0 0
        %9645 = vmatpush1.bf16.xpose.msra.mxu0 %v9289
        %9646 = vmatprep.subr.bf16.mxu0 0
        %9647 = vmatpush1.bf16.xpose.msra.mxu0 %v9291
        %9648 = vmatprep.subr.bf16.mxu0 0
        %9649 = vmatpush1.bf16.xpose.msra.mxu0 %v9293
        %9650 = vmatprep.subr.bf16.mxu0 0
        %9651 = vmatpush1.bf16.xpose.msra.mxu0 %v9295
        %9652 = vmatprep.subr.bf16.mxu0 0
        %9653 = vmatpush1.bf16.xpose.msra.mxu0 %v9297
        %9654 = vmatprep.subr.bf16.mxu0 0
        %9655 = vmatpush1.bf16.xpose.msra.mxu0 %v9299
        %9656 = vmatprep.subr.bf16.mxu0 0
        %9657 = vmatpush1.bf16.xpose.msra.mxu0 %v9301
        %9658 = vmatprep.subr.bf16.mxu0 0
        %9659 = vmatpush1.bf16.xpose.msra.mxu0 %v9303
        %9660 = vmatprep.subr.bf16.mxu0 0
        %9661 = vmatpush1.bf16.xpose.msra.mxu0 %v9305
        %9662 = vmatprep.subr.bf16.mxu0 0
        %9663 = vmatpush1.bf16.xpose.msra.mxu0 %v9307
        %9664 = vmatprep.subr.bf16.mxu0 0
        %9665 = vmatpush1.bf16.xpose.msra.mxu0 %v9309
        %9666 = vmatprep.subr.bf16.mxu0 0
        %9667 = vmatpush1.bf16.xpose.msra.mxu0 %v9311
        %9668 = vmatprep.subr.bf16.mxu0 0
        %9669 = vmatpush1.bf16.xpose.msra.mxu0 %v9313
        %9670 = vmatprep.subr.bf16.mxu0 0
        %9671 = vmatpush1.bf16.xpose.msra.mxu0 %v9315
        %9672 = vmatprep.subr.bf16.mxu0 0
        %9673 = vmatpush1.bf16.xpose.msra.mxu0 %v9317
        %9674 = vmatprep.subr.bf16.mxu0 0
        %9675 = vmatpush1.bf16.xpose.msra.mxu0 %v9319
        %9676 = vmatprep.mubr.bf16.mxu0 0
        %9677 = vmatmul.mubr.bf16.gmra.mrb[0].mxu0 %v9191
        %v9678 = vpop.f32.mrb[0].mxu0
        %v9679 = vadd.f32 0.0, %v9678
        %v9680 = vpop.f32.mrb[0].mxu0
        %v9681 = vadd.f32 0.0, %v9680
        %v9682 = vpop.f32.mrb[0].mxu0
        %v9683 = vadd.f32 0.0, %v9682
        %v9684 = vpop.f32.mrb[0].mxu0
        %v9685 = vadd.f32 0.0, %v9684
        %9686 = vdwg.mxu0
        %9687 = vmatprep.subr.bf16.mxu0 0
        %9688 = vmatpush1.bf16.xpose.msra.mxu0 %v9321
        %9689 = vmatprep.subr.bf16.mxu0 0
        %9690 = vmatpush1.bf16.xpose.msra.mxu0 %v9323
        %9691 = vmatprep.subr.bf16.mxu0 0
        %9692 = vmatpush1.bf16.xpose.msra.mxu0 %v9325
        %9693 = vmatprep.subr.bf16.mxu0 0
        %9694 = vmatpush1.bf16.xpose.msra.mxu0 %v9327
        %9695 = vmatprep.subr.bf16.mxu0 0
        %9696 = vmatpush1.bf16.xpose.msra.mxu0 %v9329
        %9697 = vmatprep.subr.bf16.mxu0 0
        %9698 = vmatpush1.bf16.xpose.msra.mxu0 %v9331
        %9699 = vmatprep.subr.bf16.mxu0 0
        %9700 = vmatpush1.bf16.xpose.msra.mxu0 %v9333
        %9701 = vmatprep.subr.bf16.mxu0 0
        %9702 = vmatpush1.bf16.xpose.msra.mxu0 %v9335
        %9703 = vmatprep.subr.bf16.mxu0 0
        %9704 = vmatpush1.bf16.xpose.msra.mxu0 %v9337
        %9705 = vmatprep.subr.bf16.mxu0 0
        %9706 = vmatpush1.bf16.xpose.msra.mxu0 %v9339
        %9707 = vmatprep.subr.bf16.mxu0 0
        %9708 = vmatpush1.bf16.xpose.msra.mxu0 %v9341
        %9709 = vmatprep.subr.bf16.mxu0 0
        %9710 = vmatpush1.bf16.xpose.msra.mxu0 %v9343
        %9711 = vmatprep.subr.bf16.mxu0 0
        %9712 = vmatpush1.bf16.xpose.msra.mxu0 %v9345
        %9713 = vmatprep.subr.bf16.mxu0 0
        %9714 = vmatpush1.bf16.xpose.msra.mxu0 %v9347
        %9715 = vmatprep.subr.bf16.mxu0 0
        %9716 = vmatpush1.bf16.xpose.msra.mxu0 %v9349
        %9717 = vmatprep.subr.bf16.mxu0 0
        %9718 = vmatpush1.bf16.xpose.msra.mxu0 %v9351
        %9719 = vmatprep.mubr.bf16.mxu0 0
        %9720 = vmatmul.mubr.bf16.gmra.mrb[0].mxu0 %v9191
        %v9721 = vpop.f32.mrb[0].mxu0
        %v9722 = vadd.f32 0.0, %v9721
        %v9723 = vpop.f32.mrb[0].mxu0
        %v9724 = vadd.f32 0.0, %v9723
        %v9725 = vpop.f32.mrb[0].mxu0
        %v9726 = vadd.f32 0.0, %v9725
        %v9727 = vpop.f32.mrb[0].mxu0
        %v9728 = vadd.f32 0.0, %v9727
        %9729 = vdwg.mxu0
        %9730 = vmatprep.subr.bf16.mxu0 0
        %9731 = vmatpush1.bf16.xpose.msra.mxu0 %v9353
        %9732 = vmatprep.subr.bf16.mxu0 0
        %9733 = vmatpush1.bf16.xpose.msra.mxu0 %v9355
        %9734 = vmatprep.subr.bf16.mxu0 0
        %9735 = vmatpush1.bf16.xpose.msra.mxu0 %v9357
        %9736 = vmatprep.subr.bf16.mxu0 0
        %9737 = vmatpush1.bf16.xpose.msra.mxu0 %v9359
        %9738 = vmatprep.subr.bf16.mxu0 0
        %9739 = vmatpush1.bf16.xpose.msra.mxu0 %v9361
        %9740 = vmatprep.subr.bf16.mxu0 0
        %9741 = vmatpush1.bf16.xpose.msra.mxu0 %v9363
        %9742 = vmatprep.subr.bf16.mxu0 0
        %9743 = vmatpush1.bf16.xpose.msra.mxu0 %v9365
        %9744 = vmatprep.subr.bf16.mxu0 0
        %9745 = vmatpush1.bf16.xpose.msra.mxu0 %v9367
        %9746 = vmatprep.subr.bf16.mxu0 0
        %9747 = vmatpush1.bf16.xpose.msra.mxu0 %v9369
        %9748 = vmatprep.subr.bf16.mxu0 0
        %9749 = vmatpush1.bf16.xpose.msra.mxu0 %v9371
        %9750 = vmatprep.subr.bf16.mxu0 0
        %9751 = vmatpush1.bf16.xpose.msra.mxu0 %v9373
        %9752 = vmatprep.subr.bf16.mxu0 0
        %9753 = vmatpush1.bf16.xpose.msra.mxu0 %v9375
        %9754 = vmatprep.subr.bf16.mxu0 0
        %9755 = vmatpush1.bf16.xpose.msra.mxu0 %v9377
        %9756 = vmatprep.subr.bf16.mxu0 0
        %9757 = vmatpush1.bf16.xpose.msra.mxu0 %v9379
        %9758 = vmatprep.subr.bf16.mxu0 0
        %9759 = vmatpush1.bf16.xpose.msra.mxu0 %v9381
        %9760 = vmatprep.subr.bf16.mxu0 0
        %9761 = vmatpush1.bf16.xpose.msra.mxu0 %v9383
        %9762 = vmatprep.mubr.bf16.mxu0 0
        %9763 = vmatmul.mubr.bf16.gmra.mrb[0].mxu0 %v9191
        %v9764 = vpop.f32.mrb[0].mxu0
        %v9765 = vadd.f32 0.0, %v9764
        %v9766 = vpop.f32.mrb[0].mxu0
        %v9767 = vadd.f32 0.0, %v9766
        %v9768 = vpop.f32.mrb[0].mxu0
        %v9769 = vadd.f32 0.0, %v9768
        %v9770 = vpop.f32.mrb[0].mxu0
        %v9771 = vadd.f32 0.0, %v9770
        %9772 = vdwg.mxu0
        %9773 = vmatprep.subr.bf16.mxu0 0
        %9774 = vmatpush1.bf16.xpose.msra.mxu0 %v9385
        %9775 = vmatprep.subr.bf16.mxu0 0
        %9776 = vmatpush1.bf16.xpose.msra.mxu0 %v9387
        %9777 = vmatprep.subr.bf16.mxu0 0
        %9778 = vmatpush1.bf16.xpose.msra.mxu0 %v9389
        %9779 = vmatprep.subr.bf16.mxu0 0
        %9780 = vmatpush1.bf16.xpose.msra.mxu0 %v9391
        %9781 = vmatprep.subr.bf16.mxu0 0
        %9782 = vmatpush1.bf16.xpose.msra.mxu0 %v9393
        %9783 = vmatprep.subr.bf16.mxu0 0
        %9784 = vmatpush1.bf16.xpose.msra.mxu0 %v9395
        %9785 = vmatprep.subr.bf16.mxu0 0
        %9786 = vmatpush1.bf16.xpose.msra.mxu0 %v9397
        %9787 = vmatprep.subr.bf16.mxu0 0
        %9788 = vmatpush1.bf16.xpose.msra.mxu0 %v9399
        %9789 = vmatprep.subr.bf16.mxu0 0
        %9790 = vmatpush1.bf16.xpose.msra.mxu0 %v9401
        %9791 = vmatprep.subr.bf16.mxu0 0
        %9792 = vmatpush1.bf16.xpose.msra.mxu0 %v9403
        %9793 = vmatprep.subr.bf16.mxu0 0
        %9794 = vmatpush1.bf16.xpose.msra.mxu0 %v9405
        %9795 = vmatprep.subr.bf16.mxu0 0
        %9796 = vmatpush1.bf16.xpose.msra.mxu0 %v9407
        %9797 = vmatprep.subr.bf16.mxu0 0
        %9798 = vmatpush1.bf16.xpose.msra.mxu0 %v9409
        %9799 = vmatprep.subr.bf16.mxu0 0
        %9800 = vmatpush1.bf16.xpose.msra.mxu0 %v9411
        %9801 = vmatprep.subr.bf16.mxu0 0
        %9802 = vmatpush1.bf16.xpose.msra.mxu0 %v9413
        %9803 = vmatprep.subr.bf16.mxu0 0
        %9804 = vmatpush1.bf16.xpose.msra.mxu0 %v9415
        %9805 = vmatprep.mubr.bf16.mxu0 0
        %9806 = vmatmul.mubr.bf16.gmra.mrb[0].mxu0 %v9191
        %v9807 = vpop.f32.mrb[0].mxu0
        %v9808 = vadd.f32 0.0, %v9807
        %v9809 = vpop.f32.mrb[0].mxu0
        %v9810 = vadd.f32 0.0, %v9809
        %v9811 = vpop.f32.mrb[0].mxu0
        %v9812 = vadd.f32 0.0, %v9811
        %v9813 = vpop.f32.mrb[0].mxu0
        %v9814 = vadd.f32 0.0, %v9813
        %9815 = vdwg.mxu0
        %9816 = vmatprep.subr.bf16.mxu0 0
        %9817 = vmatpush1.bf16.xpose.msra.mxu0 %v9417
        %9818 = vmatprep.subr.bf16.mxu0 0
        %9819 = vmatpush1.bf16.xpose.msra.mxu0 %v9419
        %9820 = vmatprep.subr.bf16.mxu0 0
        %9821 = vmatpush1.bf16.xpose.msra.mxu0 %v9421
        %9822 = vmatprep.subr.bf16.mxu0 0
        %9823 = vmatpush1.bf16.xpose.msra.mxu0 %v9423
        %9824 = vmatprep.subr.bf16.mxu0 0
        %9825 = vmatpush1.bf16.xpose.msra.mxu0 %v9425
        %9826 = vmatprep.subr.bf16.mxu0 0
        %9827 = vmatpush1.bf16.xpose.msra.mxu0 %v9427
        %9828 = vmatprep.subr.bf16.mxu0 0
        %9829 = vmatpush1.bf16.xpose.msra.mxu0 %v9429
        %9830 = vmatprep.subr.bf16.mxu0 0
        %9831 = vmatpush1.bf16.xpose.msra.mxu0 %v9431
        %9832 = vmatprep.subr.bf16.mxu0 0
        %9833 = vmatpush1.bf16.xpose.msra.mxu0 %v9433
        %9834 = vmatprep.subr.bf16.mxu0 0
        %9835 = vmatpush1.bf16.xpose.msra.mxu0 %v9435
        %9836 = vmatprep.subr.bf16.mxu0 0
        %9837 = vmatpush1.bf16.xpose.msra.mxu0 %v9437
        %9838 = vmatprep.subr.bf16.mxu0 0
        %9839 = vmatpush1.bf16.xpose.msra.mxu0 %v9439
        %9840 = vmatprep.subr.bf16.mxu0 0
        %9841 = vmatpush1.bf16.xpose.msra.mxu0 %v9441
        %9842 = vmatprep.subr.bf16.mxu0 0
        %9843 = vmatpush1.bf16.xpose.msra.mxu0 %v9443
        %9844 = vmatprep.subr.bf16.mxu0 0
        %9845 = vmatpush1.bf16.xpose.msra.mxu0 %v9445
        %9846 = vmatprep.subr.bf16.mxu0 0
        %9847 = vmatpush1.bf16.xpose.msra.mxu0 %v9447
        %9848 = vmatprep.mubr.bf16.mxu0 0
        %9849 = vmatmul.mubr.bf16.gmra.mrb[0].mxu0 %v9191
        %v9850 = vpop.f32.mrb[0].mxu0
        %v9851 = vadd.f32 0.0, %v9850
        %v9852 = vpop.f32.mrb[0].mxu0
        %v9853 = vadd.f32 0.0, %v9852
        %v9854 = vpop.f32.mrb[0].mxu0
        %v9855 = vadd.f32 0.0, %v9854
        %v9856 = vpop.f32.mrb[0].mxu0
        %v9857 = vadd.f32 0.0, %v9856
        %9858 = vdwg.mxu0
        %9859 = vmatprep.subr.bf16.mxu0 0
        %9860 = vmatpush1.bf16.xpose.msra.mxu0 %v9449
        %9861 = vmatprep.subr.bf16.mxu0 0
        %9862 = vmatpush1.bf16.xpose.msra.mxu0 %v9451
        %9863 = vmatprep.subr.bf16.mxu0 0
        %9864 = vmatpush1.bf16.xpose.msra.mxu0 %v9453
        %9865 = vmatprep.subr.bf16.mxu0 0
        %9866 = vmatpush1.bf16.xpose.msra.mxu0 %v9455
        %9867 = vmatprep.subr.bf16.mxu0 0
        %9868 = vmatpush1.bf16.xpose.msra.mxu0 %v9457
        %9869 = vmatprep.subr.bf16.mxu0 0
        %9870 = vmatpush1.bf16.xpose.msra.mxu0 %v9459
        %9871 = vmatprep.subr.bf16.mxu0 0
        %9872 = vmatpush1.bf16.xpose.msra.mxu0 %v9461
        %9873 = vmatprep.subr.bf16.mxu0 0
        %9874 = vmatpush1.bf16.xpose.msra.mxu0 %v9463
        %9875 = vmatprep.subr.bf16.mxu0 0
        %9876 = vmatpush1.bf16.xpose.msra.mxu0 %v9465
        %9877 = vmatprep.subr.bf16.mxu0 0
        %9878 = vmatpush1.bf16.xpose.msra.mxu0 %v9467
        %9879 = vmatprep.subr.bf16.mxu0 0
        %9880 = vmatpush1.bf16.xpose.msra.mxu0 %v9469
        %9881 = vmatprep.subr.bf16.mxu0 0
        %9882 = vmatpush1.bf16.xpose.msra.mxu0 %v9471
        %9883 = vmatprep.subr.bf16.mxu0 0
        %9884 = vmatpush1.bf16.xpose.msra.mxu0 %v9473
        %9885 = vmatprep.subr.bf16.mxu0 0
        %9886 = vmatpush1.bf16.xpose.msra.mxu0 %v9475
        %9887 = vmatprep.subr.bf16.mxu0 0
        %9888 = vmatpush1.bf16.xpose.msra.mxu0 %v9477
        %9889 = vmatprep.subr.bf16.mxu0 0
        %9890 = vmatpush1.bf16.xpose.msra.mxu0 %v9479
        %9891 = vmatprep.mubr.bf16.mxu0 0
        %9892 = vmatmul.mubr.bf16.gmra.mrb[0].mxu0 %v9191
        %v9893 = vpop.f32.mrb[0].mxu0
        %v9894 = vadd.f32 0.0, %v9893
        %v9895 = vpop.f32.mrb[0].mxu0
        %v9896 = vadd.f32 0.0, %v9895
        %v9897 = vpop.f32.mrb[0].mxu0
        %v9898 = vadd.f32 0.0, %v9897
        %v9899 = vpop.f32.mrb[0].mxu0
        %v9900 = vadd.f32 0.0, %v9899
        %9901 = vdwg.mxu0
        %9902 = vmatprep.subr.bf16.mxu0 0
        %9903 = vmatpush1.bf16.xpose.msra.mxu0 %v9481
        %9904 = vmatprep.subr.bf16.mxu0 0
        %9905 = vmatpush1.bf16.xpose.msra.mxu0 %v9483
        %9906 = vmatprep.subr.bf16.mxu0 0
        %9907 = vmatpush1.bf16.xpose.msra.mxu0 %v9485
        %9908 = vmatprep.subr.bf16.mxu0 0
        %9909 = vmatpush1.bf16.xpose.msra.mxu0 %v9487
        %9910 = vmatprep.subr.bf16.mxu0 0
        %9911 = vmatpush1.bf16.xpose.msra.mxu0 %v9489
        %9912 = vmatprep.subr.bf16.mxu0 0
        %9913 = vmatpush1.bf16.xpose.msra.mxu0 %v9491
        %9914 = vmatprep.subr.bf16.mxu0 0
        %9915 = vmatpush1.bf16.xpose.msra.mxu0 %v9493
        %9916 = vmatprep.subr.bf16.mxu0 0
        %9917 = vmatpush1.bf16.xpose.msra.mxu0 %v9495
        %9918 = vmatprep.subr.bf16.mxu0 0
        %9919 = vmatpush1.bf16.xpose.msra.mxu0 %v9497
        %9920 = vmatprep.subr.bf16.mxu0 0
        %9921 = vmatpush1.bf16.xpose.msra.mxu0 %v9499
        %9922 = vmatprep.subr.bf16.mxu0 0
        %9923 = vmatpush1.bf16.xpose.msra.mxu0 %v9501
        %9924 = vmatprep.subr.bf16.mxu0 0
        %9925 = vmatpush1.bf16.xpose.msra.mxu0 %v9503
        %9926 = vmatprep.subr.bf16.mxu0 0
        %9927 = vmatpush1.bf16.xpose.msra.mxu0 %v9505
        %9928 = vmatprep.subr.bf16.mxu0 0
        %9929 = vmatpush1.bf16.xpose.msra.mxu0 %v9507
        %9930 = vmatprep.subr.bf16.mxu0 0
        %9931 = vmatpush1.bf16.xpose.msra.mxu0 %v9509
        %9932 = vmatprep.subr.bf16.mxu0 0
        %9933 = vmatpush1.bf16.xpose.msra.mxu0 %v9511
        %9934 = vmatprep.mubr.bf16.mxu0 0
        %9935 = vmatmul.mubr.bf16.gmra.mrb[0].mxu0 %v9191
        %v9936 = vpop.f32.mrb[0].mxu0
        %v9937 = vadd.f32 0.0, %v9936
        %v9938 = vpop.f32.mrb[0].mxu0
        %v9939 = vadd.f32 0.0, %v9938
        %v9940 = vpop.f32.mrb[0].mxu0
        %v9941 = vadd.f32 0.0, %v9940
        %v9942 = vpop.f32.mrb[0].mxu0
        %v9943 = vadd.f32 0.0, %v9942
        %9944 = vdwg.mxu0
        %9945 = vmatprep.subr.bf16.mxu0 0
        %9946 = vmatpush1.bf16.xpose.msra.mxu0 %v9513
        %9947 = vmatprep.subr.bf16.mxu0 0
        %9948 = vmatpush1.bf16.xpose.msra.mxu0 0
        %9949 = vmatprep.subr.bf16.mxu0 0
        %9950 = vmatpush1.bf16.xpose.msra.mxu0 0
        %9951 = vmatprep.subr.bf16.mxu0 0
        %9952 = vmatpush1.bf16.xpose.msra.mxu0 0
        %9953 = vmatprep.subr.bf16.mxu0 0
        %9954 = vmatpush1.bf16.xpose.msra.mxu0 0
        %9955 = vmatprep.subr.bf16.mxu0 0
        %9956 = vmatpush1.bf16.xpose.msra.mxu0 0
        %9957 = vmatprep.subr.bf16.mxu0 0
        %9958 = vmatpush1.bf16.xpose.msra.mxu0 0
        %9959 = vmatprep.subr.bf16.mxu0 0
        %9960 = vmatpush1.bf16.xpose.msra.mxu0 0
        %9961 = vmatprep.subr.bf16.mxu0 0
        %9962 = vmatpush1.bf16.xpose.msra.mxu0 0
        %9963 = vmatprep.subr.bf16.mxu0 0
        %9964 = vmatpush1.bf16.xpose.msra.mxu0 0
        %9965 = vmatprep.subr.bf16.mxu0 0
        %9966 = vmatpush1.bf16.xpose.msra.mxu0 0
        %9967 = vmatprep.subr.bf16.mxu0 0
        %9968 = vmatpush1.bf16.xpose.msra.mxu0 0
        %9969 = vmatprep.subr.bf16.mxu0 0
        %9970 = vmatpush1.bf16.xpose.msra.mxu0 0
        %9971 = vmatprep.subr.bf16.mxu0 0
        %9972 = vmatpush1.bf16.xpose.msra.mxu0 0
        %9973 = vmatprep.subr.bf16.mxu0 0
        %9974 = vmatpush1.bf16.xpose.msra.mxu0 0
        %9975 = vmatprep.subr.bf16.mxu0 0
        %9976 = vmatpush1.bf16.xpose.msra.mxu0 0
        %9977 = vmatprep.mubr.bf16.mxu0 0
        %9978 = vmatmul.mubr.bf16.gmra.mrb[0].mxu0 %v9191
        %v9979 = vpop.f32.mrb[0].mxu0
        %v9980 = vadd.f32 0.0, %v9979
        %v9981 = vpop.f32.mrb[0].mxu0
        %v9982 = vpop.f32.mrb[0].mxu0
        %v9983 = vadd.f32 0.0, %v9982
        %v9984 = vpop.f32.mrb[0].mxu0
        %9985 = vdwg.mxu0
        %v9986 = vpack.c.bf16 %v9554, %v9550
        %v9987 = vpack.c.bf16 %v9556, %v9552
        %v9988 = vpack.c.bf16 %v9597, %v9593
        %v9989 = vpack.c.bf16 %v9599, %v9595
        %v9990 = vpack.c.bf16 %v9640, %v9636
        %v9991 = vpack.c.bf16 %v9642, %v9638
        %v9992 = vpack.c.bf16 %v9683, %v9679
        %v9993 = vpack.c.bf16 %v9685, %v9681
        %v9994 = vpack.c.bf16 %v9726, %v9722
        %v9995 = vpack.c.bf16 %v9728, %v9724
        %v9996 = vpack.c.bf16 %v9769, %v9765
        %v9997 = vpack.c.bf16 %v9771, %v9767
        %v9998 = vpack.c.bf16 %v9812, %v9808
        %v9999 = vpack.c.bf16 %v9814, %v9810
        %v10000 = vpack.c.bf16 %v9855, %v9851
        %v10001 = vpack.c.bf16 %v9857, %v9853
        %v10002 = vpack.c.bf16 %v9898, %v9894
        %v10003 = vpack.c.bf16 %v9900, %v9896
        %v10004 = vpack.c.bf16 %v9941, %v9937
        %v10005 = vpack.c.bf16 %v9943, %v9939
        %v10006 = vpack.c.bf16 %v9983, %v9980
        %v10028 = vunpack.c.l.b16 %v9986
        %v10029 = vunpack.c.l.b16 %v9987
        %v10030 = vunpack.c.l.b16 %v9988
        %v10031 = vunpack.c.l.b16 %v9989
        %v10032 = vunpack.c.l.b16 %v9990
        %v10033 = vunpack.c.l.b16 %v9991
        %v10034 = vunpack.c.l.b16 %v9992
        %v10035 = vunpack.c.l.b16 %v9993
        %v10036 = vunpack.c.l.b16 %v9994
        %v10037 = vunpack.c.l.b16 %v9995
        %v10038 = vunpack.c.l.b16 %v9996
        %v10039 = vunpack.c.l.b16 %v9997
        %v10040 = vunpack.c.l.b16 %v9998
        %v10041 = vunpack.c.l.b16 %v9999
        %v10042 = vunpack.c.l.b16 %v10000
        %v10043 = vunpack.c.l.b16 %v10001
        %v10044 = vunpack.c.l.b16 %v10002
        %v10045 = vunpack.c.l.b16 %v10003
        %v10046 = vunpack.c.l.b16 %v10004
        %v10047 = vunpack.c.l.b16 %v10005
        %v10048 = vunpack.c.l.b16 %v10006
        %v10049 = vunpack.c.h.b16 %v9986
        %v10050 = vunpack.c.h.b16 %v9987
        %v10051 = vunpack.c.h.b16 %v9988
        %v10052 = vunpack.c.h.b16 %v9989
        %v10053 = vunpack.c.h.b16 %v9990
        %v10054 = vunpack.c.h.b16 %v9991
        %v10055 = vunpack.c.h.b16 %v9992
        %v10056 = vunpack.c.h.b16 %v9993
        %v10057 = vunpack.c.h.b16 %v9994
        %v10058 = vunpack.c.h.b16 %v9995
        %v10059 = vunpack.c.h.b16 %v9996
        %v10060 = vunpack.c.h.b16 %v9997
        %v10061 = vunpack.c.h.b16 %v9998
        %v10062 = vunpack.c.h.b16 %v9999
        %v10063 = vunpack.c.h.b16 %v10000
        %v10064 = vunpack.c.h.b16 %v10001
        %v10065 = vunpack.c.h.b16 %v10002
        %v10066 = vunpack.c.h.b16 %v10003
        %v10067 = vunpack.c.h.b16 %v10004
        %v10068 = vunpack.c.h.b16 %v10005
        %v10069 = vunpack.c.h.b16 %v10006
        %v10070 = vpack.c.b16 %v10029, %v10028
        %v10071 = vpack.c.b16 %v10031, %v10030
        %v10072 = vpack.c.b16 %v10033, %v10032
        %v10073 = vpack.c.b16 %v10035, %v10034
        %v10074 = vpack.c.b16 %v10037, %v10036
        %v10075 = vpack.c.b16 %v10039, %v10038
        %v10076 = vpack.c.b16 %v10041, %v10040
        %v10077 = vpack.c.b16 %v10043, %v10042
        %v10078 = vpack.c.b16 %v10045, %v10044
        %v10079 = vpack.c.b16 %v10047, %v10046
        %v10080 = vpack.c.b16 %v10048, %v10048
        %v10081 = vpack.c.b16 %v10050, %v10049
        %v10082 = vpack.c.b16 %v10052, %v10051
        %v10083 = vpack.c.b16 %v10054, %v10053
        %v10084 = vpack.c.b16 %v10056, %v10055
        %v10085 = vpack.c.b16 %v10058, %v10057
        %v10086 = vpack.c.b16 %v10060, %v10059
        %v10087 = vpack.c.b16 %v10062, %v10061
        %v10088 = vpack.c.b16 %v10064, %v10063
        %v10089 = vpack.c.b16 %v10066, %v10065
        %v10090 = vpack.c.b16 %v10068, %v10067
        %v10091 = vpack.c.b16 %v10069, %v10069
        %10114 = vst [vmem:[%s266] sm:$0xff] %v10070
        %10115 = vst [vmem:[%s266 + $0x8] sm:$0xff] %v10071
        %10116 = vst [vmem:[%s266 + $0x10] sm:$0xff] %v10072
        %10117 = vst [vmem:[%s266 + $0x18] sm:$0xff] %v10073
        %10118 = vst [vmem:[%s266 + $0x20] sm:$0xff] %v10074
        %10119 = vst [vmem:[%s266 + $0x28] sm:$0xff] %v10075
        %10120 = vst [vmem:[%s266 + $0x30] sm:$0xff] %v10076
        %10121 = vst [vmem:[%s266 + $0x38] sm:$0xff] %v10077
        %10122 = vst [vmem:[%s266 + $0x40] sm:$0xff] %v10078
        %10123 = vst [vmem:[%s266 + $0x48] sm:$0xff] %v10079
        %vm10124 = vcmask 76800
        %10125 = vst.msk [vmem:[%s266 + $0x50] sm:$0xf] %vm10124, %v10080
        %vm10126 = vcmask 1040384
        %vm10127 = vsmask.f32 256
        %vm10128 = vmand %vm10126, %vm10127
        %vm10129 = vcmask 1044484
        %vm10130 = vsmask.f32 4352
        %vm10131 = vmand %vm10129, %vm10130
        %vm10132 = vmor %vm10131, %vm10128
        %v10133 = vld [vmem:[%s266 + $0x54] sm:$0x11]
        %v10134 = vsel %vm10132, %v10081, %v10133
        %10135 = vst [vmem:[%s266 + $0x54] sm:$0x11] %v10134
        %v10136 = vld [vmem:[%s266 + $0x5c] sm:$0x11]
        %v10137 = vsel %vm10132, %v10082, %v10136
        %10138 = vst [vmem:[%s266 + $0x5c] sm:$0x11] %v10137
        %v10139 = vld [vmem:[%s266 + $0x64] sm:$0x11]
        %v10140 = vsel %vm10132, %v10083, %v10139
        %10141 = vst [vmem:[%s266 + $0x64] sm:$0x11] %v10140
        %v10142 = vld [vmem:[%s266 + $0x6c] sm:$0x11]
        %v10143 = vsel %vm10132, %v10084, %v10142
        %10144 = vst [vmem:[%s266 + $0x6c] sm:$0x11] %v10143
        %v10145 = vld [vmem:[%s266 + $0x74] sm:$0x11]
        %v10146 = vsel %vm10132, %v10085, %v10145
        %10147 = vst [vmem:[%s266 + $0x74] sm:$0x11] %v10146
        %v10148 = vld [vmem:[%s266 + $0x7c] sm:$0x11]
        %v10149 = vsel %vm10132, %v10086, %v10148
        %10150 = vst [vmem:[%s266 + $0x7c] sm:$0x11] %v10149
        %v10151 = vld [vmem:[%s266 + $0x84] sm:$0x11]
        %v10152 = vsel %vm10132, %v10087, %v10151
        %10153 = vst [vmem:[%s266 + $0x84] sm:$0x11] %v10152
        %v10154 = vld [vmem:[%s266 + $0x8c] sm:$0x11]
        %v10155 = vsel %vm10132, %v10088, %v10154
        %10156 = vst [vmem:[%s266 + $0x8c] sm:$0x11] %v10155
        %v10157 = vld [vmem:[%s266 + $0x94] sm:$0x11]
        %v10158 = vsel %vm10132, %v10089, %v10157
        %10159 = vst [vmem:[%s266 + $0x94] sm:$0x11] %v10158
        %v10160 = vld [vmem:[%s266 + $0x9c] sm:$0x11]
        %v10161 = vsel %vm10132, %v10090, %v10160
        %10162 = vst [vmem:[%s266 + $0x9c] sm:$0x11] %v10161
        %vm10163 = vcmask 73728
        %vm10164 = vmand %vm10163, %vm10127
        %v10165 = vld [vmem:[%s266 + $0xa4] sm:$0x1]
        %v10166 = vsel %vm10164, %v10091, %v10165
        %10167 = vst [vmem:[%s266 + $0xa4] sm:$0x1] %v10166
        %v10168 = vunpack.c.l.bf16 %v9986
        %v10169 = vunpack.c.l.bf16 %v9987
        %v10170 = vunpack.c.l.bf16 %v9988
        %v10171 = vunpack.c.l.bf16 %v9989
        %v10172 = vunpack.c.l.bf16 %v9990
        %v10173 = vunpack.c.l.bf16 %v9991
        %v10174 = vunpack.c.l.bf16 %v9992
        %v10175 = vunpack.c.l.bf16 %v9993
        %v10176 = vunpack.c.l.bf16 %v9994
        %v10177 = vunpack.c.l.bf16 %v9995
        %v10178 = vunpack.c.l.bf16 %v9996
        %v10179 = vunpack.c.l.bf16 %v9997
        %v10180 = vunpack.c.l.bf16 %v9998
        %v10181 = vunpack.c.l.bf16 %v9999
        %v10182 = vunpack.c.l.bf16 %v10000
        %v10183 = vunpack.c.l.bf16 %v10001
        %v10184 = vunpack.c.l.bf16 %v10002
        %v10185 = vunpack.c.l.bf16 %v10003
        %v10186 = vunpack.c.l.bf16 %v10004
        %v10187 = vunpack.c.l.bf16 %v10005
        %v10188 = vunpack.c.l.bf16 %v10006
        %v10189 = vunpack.c.h.bf16 %v9986
        %v10190 = vunpack.c.h.bf16 %v9987
        %v10191 = vunpack.c.h.bf16 %v9988
        %v10192 = vunpack.c.h.bf16 %v9989
        %v10193 = vunpack.c.h.bf16 %v9990
        %v10194 = vunpack.c.h.bf16 %v9991
        %v10195 = vunpack.c.h.bf16 %v9992
        %v10196 = vunpack.c.h.bf16 %v9993
        %v10197 = vunpack.c.h.bf16 %v9994
        %v10198 = vunpack.c.h.bf16 %v9995
        %v10199 = vunpack.c.h.bf16 %v9996
        %v10200 = vunpack.c.h.bf16 %v9997
        %v10201 = vunpack.c.h.bf16 %v9998
        %v10202 = vunpack.c.h.bf16 %v9999
        %v10203 = vunpack.c.h.bf16 %v10000
        %v10204 = vunpack.c.h.bf16 %v10001
        %v10205 = vunpack.c.h.bf16 %v10002
        %v10206 = vunpack.c.h.bf16 %v10003
        %v10207 = vunpack.c.h.bf16 %v10004
        %v10208 = vunpack.c.h.bf16 %v10005
        %v10209 = vunpack.c.h.bf16 %v10006
        %v10210 = vld [vmem:[#allocation7] sm:$0xff]
        %v10211 = vld [vmem:[#allocation7 + $0x8] sm:$0xff]
        %v10212 = vld [vmem:[#allocation7 + $0x10] sm:$0x1f]
        %v10216 = vlaneseq
        %v10217 = vshrl.u32 %v10216, 7
        %v10218 = vsub.s32 0, %v10217
        %v10219 = vrot.slane %v10210, %v10218
        %v10220 = vlaneseq
        %v10221 = vshrl.u32 %v10220, 7
        %v10222 = vsub.s32 1, %v10221
        %v10223 = vrot.slane %v10210, %v10222
        %v10224 = vlaneseq
        %v10225 = vshrl.u32 %v10224, 7
        %v10226 = vsub.s32 2, %v10225
        %v10227 = vrot.slane %v10210, %v10226
        %v10228 = vlaneseq
        %v10229 = vshrl.u32 %v10228, 7
        %v10230 = vsub.s32 3, %v10229
        %v10231 = vrot.slane %v10210, %v10230
        %v10232 = vlaneseq
        %v10233 = vshrl.u32 %v10232, 7
        %v10234 = vsub.s32 4, %v10233
        %v10235 = vrot.slane %v10210, %v10234
        %v10236 = vlaneseq
        %v10237 = vshrl.u32 %v10236, 7
        %v10238 = vsub.s32 5, %v10237
        %v10239 = vrot.slane %v10210, %v10238
        %v10240 = vlaneseq
        %v10241 = vshrl.u32 %v10240, 7
        %v10242 = vsub.s32 6, %v10241
        %v10243 = vrot.slane %v10210, %v10242
        %v10244 = vlaneseq
        %v10245 = vshrl.u32 %v10244, 7
        %v10246 = vsub.s32 7, %v10245
        %v10247 = vrot.slane %v10210, %v10246
        %v10248 = vlaneseq
        %v10249 = vshrl.u32 %v10248, 7
        %v10250 = vsub.s32 0, %v10249
        %v10251 = vrot.slane %v10211, %v10250
        %v10252 = vlaneseq
        %v10253 = vshrl.u32 %v10252, 7
        %v10254 = vsub.s32 1, %v10253
        %v10255 = vrot.slane %v10211, %v10254
        %v10256 = vlaneseq
        %v10257 = vshrl.u32 %v10256, 7
        %v10258 = vsub.s32 2, %v10257
        %v10259 = vrot.slane %v10211, %v10258
        %v10260 = vlaneseq
        %v10261 = vshrl.u32 %v10260, 7
        %v10262 = vsub.s32 3, %v10261
        %v10263 = vrot.slane %v10211, %v10262
        %v10264 = vlaneseq
        %v10265 = vshrl.u32 %v10264, 7
        %v10266 = vsub.s32 4, %v10265
        %v10267 = vrot.slane %v10211, %v10266
        %v10268 = vlaneseq
        %v10269 = vshrl.u32 %v10268, 7
        %v10270 = vsub.s32 5, %v10269
        %v10271 = vrot.slane %v10211, %v10270
        %v10272 = vlaneseq
        %v10273 = vshrl.u32 %v10272, 7
        %v10274 = vsub.s32 6, %v10273
        %v10275 = vrot.slane %v10211, %v10274
        %v10276 = vlaneseq
        %v10277 = vshrl.u32 %v10276, 7
        %v10278 = vsub.s32 7, %v10277
        %v10279 = vrot.slane %v10211, %v10278
        %v10280 = vlaneseq
        %v10281 = vshrl.u32 %v10280, 7
        %v10282 = vsub.s32 0, %v10281
        %v10283 = vrot.slane %v10212, %v10282
        %v10284 = vlaneseq
        %v10285 = vshrl.u32 %v10284, 7
        %v10286 = vsub.s32 1, %v10285
        %v10287 = vrot.slane %v10212, %v10286
        %v10288 = vlaneseq
        %v10289 = vshrl.u32 %v10288, 7
        %v10290 = vsub.s32 2, %v10289
        %v10291 = vrot.slane %v10212, %v10290
        %v10292 = vlaneseq
        %v10293 = vshrl.u32 %v10292, 7
        %v10294 = vsub.s32 3, %v10293
        %v10295 = vrot.slane %v10212, %v10294
        %v10296 = vlaneseq
        %v10297 = vshrl.u32 %v10296, 7
        %v10298 = vsub.s32 4, %v10297
        %v10299 = vrot.slane %v10212, %v10298
        %v10321 = vmul.f32 %v10168, %v10219
        %v10322 = vmul.f32 %v10169, %v10223
        %v10323 = vmul.f32 %v10170, %v10227
        %v10324 = vmul.f32 %v10171, %v10231
        %v10325 = vmul.f32 %v10172, %v10235
        %v10326 = vmul.f32 %v10173, %v10239
        %v10327 = vmul.f32 %v10174, %v10243
        %v10328 = vmul.f32 %v10175, %v10247
        %v10329 = vmul.f32 %v10176, %v10251
        %v10330 = vmul.f32 %v10177, %v10255
        %v10331 = vmul.f32 %v10178, %v10259
        %v10332 = vmul.f32 %v10179, %v10263
        %v10333 = vmul.f32 %v10180, %v10267
        %v10334 = vmul.f32 %v10181, %v10271
        %v10335 = vmul.f32 %v10182, %v10275
        %v10336 = vmul.f32 %v10183, %v10279
        %v10337 = vmul.f32 %v10184, %v10283
        %v10338 = vmul.f32 %v10185, %v10287
        %v10339 = vmul.f32 %v10186, %v10291
        %v10340 = vmul.f32 %v10187, %v10295
        %v10341 = vmul.f32 %v10188, %v10299
        %v10342 = vmul.f32 %v10189, %v10219
        %v10343 = vmul.f32 %v10190, %v10223
        %v10344 = vmul.f32 %v10191, %v10227
        %v10345 = vmul.f32 %v10192, %v10231
        %v10346 = vmul.f32 %v10193, %v10235
        %v10347 = vmul.f32 %v10194, %v10239
        %v10348 = vmul.f32 %v10195, %v10243
        %v10349 = vmul.f32 %v10196, %v10247
        %v10350 = vmul.f32 %v10197, %v10251
        %v10351 = vmul.f32 %v10198, %v10255
        %v10352 = vmul.f32 %v10199, %v10259
        %v10353 = vmul.f32 %v10200, %v10263
        %v10354 = vmul.f32 %v10201, %v10267
        %v10355 = vmul.f32 %v10202, %v10271
        %v10356 = vmul.f32 %v10203, %v10275
        %v10357 = vmul.f32 %v10204, %v10279
        %v10358 = vmul.f32 %v10205, %v10283
        %v10359 = vmul.f32 %v10206, %v10287
        %v10360 = vmul.f32 %v10207, %v10291
        %v10361 = vmul.f32 %v10208, %v10295
        %v10362 = vmul.f32 %v10209, %v10299
        %v10363 = vadd.f32 %v10321, %v10322
        %v10364 = vadd.f32 %v10363, %v10323
        %v10365 = vadd.f32 %v10364, %v10324
        %v10366 = vadd.f32 %v10365, %v10325
        %v10367 = vadd.f32 %v10366, %v10326
        %v10368 = vadd.f32 %v10367, %v10327
        %v10369 = vadd.f32 %v10368, %v10328
        %v10370 = vadd.f32 %v10369, %v10329
        %v10371 = vadd.f32 %v10370, %v10330
        %v10372 = vadd.f32 %v10371, %v10331
        %v10373 = vadd.f32 %v10372, %v10332
        %v10374 = vadd.f32 %v10373, %v10333
        %v10375 = vadd.f32 %v10374, %v10334
        %v10376 = vadd.f32 %v10375, %v10335
        %v10377 = vadd.f32 %v10376, %v10336
        %v10378 = vadd.f32 %v10377, %v10337
        %v10379 = vadd.f32 %v10378, %v10338
        %v10380 = vadd.f32 %v10379, %v10339
        %v10381 = vadd.f32 %v10380, %v10340
        %vm10382 = vcmask 80896
        %v10383 = vsel %vm10382, %v10341, 0.0
        %v10384 = vadd.f32 %v10381, %v10383
        %10385 = vadd.xlane.f32.xlu0 %v10384
        %v10386 = vpop.xlane.xlu0 %10385
        %vm10387 = vcmask 1040384
        %v10388 = vsel %vm10387, %v10342, 0.0
        %v10389 = vsel %vm10387, %v10343, 0.0
        %v10390 = vadd.f32 %v10388, %v10389
        %v10391 = vsel %vm10387, %v10344, 0.0
        %v10392 = vadd.f32 %v10390, %v10391
        %v10393 = vsel %vm10387, %v10345, 0.0
        %v10394 = vadd.f32 %v10392, %v10393
        %v10395 = vsel %vm10387, %v10346, 0.0
        %v10396 = vadd.f32 %v10394, %v10395
        %v10397 = vsel %vm10387, %v10347, 0.0
        %v10398 = vadd.f32 %v10396, %v10397
        %v10399 = vsel %vm10387, %v10348, 0.0
        %v10400 = vadd.f32 %v10398, %v10399
        %v10401 = vsel %vm10387, %v10349, 0.0
        %v10402 = vadd.f32 %v10400, %v10401
        %v10403 = vsel %vm10387, %v10350, 0.0
        %v10404 = vadd.f32 %v10402, %v10403
        %v10405 = vsel %vm10387, %v10351, 0.0
        %v10406 = vadd.f32 %v10404, %v10405
        %v10407 = vsel %vm10387, %v10352, 0.0
        %v10408 = vadd.f32 %v10406, %v10407
        %v10409 = vsel %vm10387, %v10353, 0.0
        %v10410 = vadd.f32 %v10408, %v10409
        %v10411 = vsel %vm10387, %v10354, 0.0
        %v10412 = vadd.f32 %v10410, %v10411
        %v10413 = vsel %vm10387, %v10355, 0.0
        %v10414 = vadd.f32 %v10412, %v10413
        %v10415 = vsel %vm10387, %v10356, 0.0
        %v10416 = vadd.f32 %v10414, %v10415
        %v10417 = vsel %vm10387, %v10357, 0.0
        %v10418 = vadd.f32 %v10416, %v10417
        %v10419 = vsel %vm10387, %v10358, 0.0
        %v10420 = vadd.f32 %v10418, %v10419
        %v10421 = vsel %vm10387, %v10359, 0.0
        %v10422 = vadd.f32 %v10420, %v10421
        %v10423 = vsel %vm10387, %v10360, 0.0
        %v10424 = vadd.f32 %v10422, %v10423
        %v10425 = vsel %vm10387, %v10361, 0.0
        %v10426 = vadd.f32 %v10424, %v10425
        %vm10427 = vcmask 73728
        %v10428 = vsel %vm10427, %v10362, 0.0
        %v10429 = vadd.f32 %v10426, %v10428
        %10430 = vadd.xlane.f32.xlu0 %v10429
        %v10431 = vpop.xlane.xlu0 %10430
        %v10432 = vmul.f32 %v10321, %v10321
        %v10433 = vmul.f32 %v10322, %v10322
        %v10434 = vmul.f32 %v10323, %v10323
        %v10435 = vmul.f32 %v10324, %v10324
        %v10436 = vmul.f32 %v10325, %v10325
        %v10437 = vmul.f32 %v10326, %v10326
        %v10438 = vmul.f32 %v10327, %v10327
        %v10439 = vmul.f32 %v10328, %v10328
        %v10440 = vmul.f32 %v10329, %v10329
        %v10441 = vmul.f32 %v10330, %v10330
        %v10442 = vmul.f32 %v10331, %v10331
        %v10443 = vmul.f32 %v10332, %v10332
        %v10444 = vmul.f32 %v10333, %v10333
        %v10445 = vmul.f32 %v10334, %v10334
        %v10446 = vmul.f32 %v10335, %v10335
        %v10447 = vmul.f32 %v10336, %v10336
        %v10448 = vmul.f32 %v10337, %v10337
        %v10449 = vmul.f32 %v10338, %v10338
        %v10450 = vmul.f32 %v10339, %v10339
        %v10451 = vmul.f32 %v10340, %v10340
        %v10452 = vmul.f32 %v10341, %v10341
        %v10453 = vmul.f32 %v10342, %v10342
        %v10454 = vmul.f32 %v10343, %v10343
        %v10455 = vmul.f32 %v10344, %v10344
        %v10456 = vmul.f32 %v10345, %v10345
        %v10457 = vmul.f32 %v10346, %v10346
        %v10458 = vmul.f32 %v10347, %v10347
        %v10459 = vmul.f32 %v10348, %v10348
        %v10460 = vmul.f32 %v10349, %v10349
        %v10461 = vmul.f32 %v10350, %v10350
        %v10462 = vmul.f32 %v10351, %v10351
        %v10463 = vmul.f32 %v10352, %v10352
        %v10464 = vmul.f32 %v10353, %v10353
        %v10465 = vmul.f32 %v10354, %v10354
        %v10466 = vmul.f32 %v10355, %v10355
        %v10467 = vmul.f32 %v10356, %v10356
        %v10468 = vmul.f32 %v10357, %v10357
        %v10469 = vmul.f32 %v10358, %v10358
        %v10470 = vmul.f32 %v10359, %v10359
        %v10471 = vmul.f32 %v10360, %v10360
        %v10472 = vmul.f32 %v10361, %v10361
        %v10473 = vmul.f32 %v10362, %v10362
        %v10474 = vadd.f32 %v10432, %v10433
        %v10475 = vadd.f32 %v10474, %v10434
        %v10476 = vadd.f32 %v10475, %v10435
        %v10477 = vadd.f32 %v10476, %v10436
        %v10478 = vadd.f32 %v10477, %v10437
        %v10479 = vadd.f32 %v10478, %v10438
        %v10480 = vadd.f32 %v10479, %v10439
        %v10481 = vadd.f32 %v10480, %v10440
        %v10482 = vadd.f32 %v10481, %v10441
        %v10483 = vadd.f32 %v10482, %v10442
        %v10484 = vadd.f32 %v10483, %v10443
        %v10485 = vadd.f32 %v10484, %v10444
        %v10486 = vadd.f32 %v10485, %v10445
        %v10487 = vadd.f32 %v10486, %v10446
        %v10488 = vadd.f32 %v10487, %v10447
        %v10489 = vadd.f32 %v10488, %v10448
        %v10490 = vadd.f32 %v10489, %v10449
        %v10491 = vadd.f32 %v10490, %v10450
        %v10492 = vadd.f32 %v10491, %v10451
        %v10493 = vsel %vm10382, %v10452, 0.0
        %v10494 = vadd.f32 %v10492, %v10493
        %10495 = vadd.xlane.f32.xlu0 %v10494
        %v10496 = vpop.xlane.xlu0 %10495
        %v10497 = vsel %vm10387, %v10453, 0.0
        %v10498 = vsel %vm10387, %v10454, 0.0
        %v10499 = vadd.f32 %v10497, %v10498
        %v10500 = vsel %vm10387, %v10455, 0.0
        %v10501 = vadd.f32 %v10499, %v10500
        %v10502 = vsel %vm10387, %v10456, 0.0
        %v10503 = vadd.f32 %v10501, %v10502
        %v10504 = vsel %vm10387, %v10457, 0.0
        %v10505 = vadd.f32 %v10503, %v10504
        %v10506 = vsel %vm10387, %v10458, 0.0
        %v10507 = vadd.f32 %v10505, %v10506
        %v10508 = vsel %vm10387, %v10459, 0.0
        %v10509 = vadd.f32 %v10507, %v10508
        %v10510 = vsel %vm10387, %v10460, 0.0
        %v10511 = vadd.f32 %v10509, %v10510
        %v10512 = vsel %vm10387, %v10461, 0.0
        %v10513 = vadd.f32 %v10511, %v10512
        %v10514 = vsel %vm10387, %v10462, 0.0
        %v10515 = vadd.f32 %v10513, %v10514
        %v10516 = vsel %vm10387, %v10463, 0.0
        %v10517 = vadd.f32 %v10515, %v10516
        %v10518 = vsel %vm10387, %v10464, 0.0
        %v10519 = vadd.f32 %v10517, %v10518
        %v10520 = vsel %vm10387, %v10465, 0.0
        %v10521 = vadd.f32 %v10519, %v10520
        %v10522 = vsel %vm10387, %v10466, 0.0
        %v10523 = vadd.f32 %v10521, %v10522
        %v10524 = vsel %vm10387, %v10467, 0.0
        %v10525 = vadd.f32 %v10523, %v10524
        %v10526 = vsel %vm10387, %v10468, 0.0
        %v10527 = vadd.f32 %v10525, %v10526
        %v10528 = vsel %vm10387, %v10469, 0.0
        %v10529 = vadd.f32 %v10527, %v10528
        %v10530 = vsel %vm10387, %v10470, 0.0
        %v10531 = vadd.f32 %v10529, %v10530
        %v10532 = vsel %vm10387, %v10471, 0.0
        %v10533 = vadd.f32 %v10531, %v10532
        %v10534 = vsel %vm10387, %v10472, 0.0
        %v10535 = vadd.f32 %v10533, %v10534
        %v10536 = vsel %vm10427, %v10473, 0.0
        %v10537 = vadd.f32 %v10535, %v10536
        %10538 = vadd.xlane.f32.xlu0 %v10537
        %v10539 = vpop.xlane.xlu0 %10538
        %vm10540 = vcmask 7168
        %v10541 = vsel %vm10540, %v10386, %v10496
        %v10542 = vsel %vm10540, %v10431, %v10539
        %vm10543 = vcmask 15360
        %10544 = vst.msk [vmem:[%s273] sm:$0xff] %vm10543, %v10541
        %vm10545 = vcmask 8192
        %10546 = vst.msk [vmem:[%s273 + $0x8] sm:$0x1] %vm10545, %v10542
        %s10547 = sand.u32 %s118, 1
        %s10548 = scalar_lea.sflag [#allocation4], %s10547
        %s10549 = sand.u32 %s118, 1
        %s10550 = smul.addr %s10549, 168
        %s10551 = scalar_lea.vmem [#allocation8], %s10550
        %s10552 = sand.u32 %s146, 1
        %s10553 = scalar_lea.sflag [#allocation10], %s10552
        %s10554 = sand.u32 %s146, 1
        %s10555 = smul.addr %s10554, 16
        %s10556 = scalar_lea.vmem [#allocation9], %s10555
        // Predicated region
        $region45: #{_lambda_.3} parent=31 // pred_check
          %p10557 = pneg %p128
        $region46: #{_lambda_.3} parent=31 // pred_check_branch
          %10559 = sbr.rel (%p10557) target = $region48
        $region47: #{_lambda_.3} parent=31 // pred_region
          %s10561 = ssub.s32 2688, 2688
          %10562 = vsyncadd %s10548, %s10561
          %s10563 = smul.addr %s31, 42
          %s10564 = smul.addr %s30, 42
          %s10565 = sadd.s32 %s10563, %s10564
          %s10566 = smul.addr %s10565, 64
          %s10567 = scalar_lea.hbm %s3, %s10566
          %s10568 = sshll.u32 %s10551, 4
          %s10569 = int_to_ptr.vmem [resolvable:$true] %s10568
          %10574 = dma.vmem_to_hbm [thread:$0]  %s10569, 2688, %s10567, %s10548, 1344, 1344, 84
        $region48: #{_lambda_.3} parent=31 // pred_fallthru
          _
        // Predicated region
        $region49: #{_lambda_.3} parent=31 // pred_check
          %p10575 = pneg %p156
        $region50: #{_lambda_.3} parent=31 // pred_check_branch
          %10577 = sbr.rel (%p10575) target = $region52
        $region51: #{_lambda_.3} parent=31 // pred_region
          %s10579 = ssub.s32 256, 256
          %10580 = vsyncadd %s10553, %s10579
          %s10581 = smul.addr %s31, 2
          %s10582 = smul.addr %s30, 2
          %s10583 = sadd.s32 %s10581, %s10582
          %s10584 = smul.addr %s10583, 128
          %s10585 = scalar_lea.hbm %s4, %s10584
          %s10586 = sshll.u32 %s10556, 4
          %s10587 = int_to_ptr.vmem [resolvable:$true] %s10586
          %10592 = dma.vmem_to_hbm [thread:$0]  %s10587, 256, %s10585, %s10553, 128, 128, 8
        $region52: #{_lambda_.3} parent=31 // pred_fallthru
          _
      $region32: #{_lambda_.3} parent=5 // pred_fallthru
        _
      %p10593 = scmp.le.s32.totalorder 2, %s21
      // Predicated region
      $region53: #{_lambda_.3} parent=5 // pred_check
        %p10594 = pneg %p10593
      $region54: #{_lambda_.3} parent=5 // pred_check_branch
        %10596 = sbr.rel (%p10594) target = $region56
      $region55: #{_lambda_.3} parent=5 // pred_region
        %s10597 = ssub.s32 %s21, 2
        // Predicated region
        $region57: #{_lambda_.3} parent=55 // pred_check
          %p10598 = pneg %p134
        $region58: #{_lambda_.3} parent=55 // pred_check_branch
          %10600 = sbr.rel (%p10598) target = $region60
        $region59: #{_lambda_.3} parent=55 // pred_region
          %s10601 = sand.u32 %s119, 1
          %s10602 = scalar_lea.sflag [#allocation4], %s10601
          %s10603 = sand.u32 %s119, 1
          %s10604 = smul.addr %s10603, 168
          %s10605 = scalar_lea.vmem [#allocation8], %s10604
          %10606 = dma.done %s10602, 2688
        $region60: #{_lambda_.3} parent=55 // pred_fallthru
          _
        // Predicated region
        $region61: #{_lambda_.3} parent=55 // pred_check
          %p10607 = pneg %p162
        $region62: #{_lambda_.3} parent=55 // pred_check_branch
          %10609 = sbr.rel (%p10607) target = $region64
        $region63: #{_lambda_.3} parent=55 // pred_region
          %s10610 = sand.u32 %s147, 1
          %s10611 = scalar_lea.sflag [#allocation10], %s10610
          %s10612 = sand.u32 %s147, 1
          %s10613 = smul.addr %s10612, 16
          %s10614 = scalar_lea.vmem [#allocation9], %s10613
          %10615 = dma.done %s10611, 256
        $region64: #{_lambda_.3} parent=55 // pred_fallthru
          _
      $region56: #{_lambda_.3} parent=5 // pred_fallthru
        _
    $region6: #{_lambda_.3} parent=1 // loop_footer
      %s25 = sadd.s32 1, %s21
    $region7: #{_lambda_.3} parent=1 // loop_footer_branch
      %20 = sbr.rel target = $region3
    $region8: #{_lambda_.3} parent=1 // loop_exit
      _
    %10616 = vsyncpa [#allocation3], 1
    %s10617 = scalar_lea.sflag [#allocation3], 1
    %10618 = vsyncpa %s10617, 1
    %10619 = vsyncpa [#allocation6], 1
    %10620 = vsyncpa [#allocation4], 1
    %s10621 = scalar_lea.sflag [#allocation4], 1
    %10622 = vsyncpa %s10621, 1
    %10623 = vsyncpa [#allocation10], 1
    %s10624 = scalar_lea.sflag [#allocation10], 1
    %10625 = vsyncpa %s10624, 1

</llo_original>
